<compile_context>
chip_gen: v7x
topology: tpu7x:2x2x1
jax: 0.10.0
libtpu: 0.0.40
codegen_flags: <defaults>
</compile_context>

<pallas_src>
import jax
import jax.numpy as jnp
from jax import lax
from jax.experimental import pallas as pl
from jax.experimental.pallas import tpu as pltpu

LANES = 128
WPP = 16  # pooled-width padding: multiple of the bf16 sublane tile -> free reshapes


def _round_up(n, m=LANES):
    return ((n + m - 1) // m) * m


# ----------------------------- Pallas kernels ------------------------------

def make_conv_relu_pool_kernel(ks, hp, hcp, wpp):
    """Fused VALID conv + bias + ReLU + MaxPool(2,2) for one batch element.

    Refs seen by the kernel (batch dim squeezed via a None block dim):
      xp_ref : (4*hcp, wcp, cinp) bf16  2x2 parity-split input; parity blocks
               stacked along axis 0 in order q = row_parity*2 + col_parity.
      w_ref  : (ks*ks*cinp, coutp) bf16 conv taps folded into the K dim.
      b_ref  : (1, coutp) f32
      o_ref  : (hp*wpp, coutp) bf16    pooled rows flattened (wpp-padded columns,
               junk columns are dropped by the wrapper).
    """
    m = hp * wpp

    def kernel(xp_ref, w_ref, b_ref, o_ref):
        patches = []
        for di in range(2):                       # pooling-window row offset
            for dj in range(2):                   # pooling-window col offset
                pieces = []
                for i in range(ks):               # conv taps -> folded into K
                    for j in range(ks):
                        rp, rs = (di + i) % 2, (di + i) // 2
                        cp, cs = (dj + j) % 2, (dj + j) // 2
                        q = rp * 2 + cp
                        pieces.append(xp_ref[q * hcp + rs: q * hcp + rs + hp,
                                             cs: cs + wpp, :])
                patches.append(pieces[0] if len(pieces) == 1
                               else jnp.concatenate(pieces, axis=-1))
        # Stack the 4 quadrants into M and collapse (hp, wpp) -> hp*wpp
        # (tile-aligned since wpp is a multiple of 16): ONE MXU matmul.
        patch = jnp.concatenate(patches, axis=0).reshape(4 * m, -1)
        y = jnp.dot(patch, w_ref[...], preferred_element_type=jnp.float32)
        # MaxPool(2,2): elementwise max over the 4 stacked quadrants.
        pooled = jnp.maximum(jnp.maximum(y[0 * m:1 * m], y[1 * m:2 * m]),
                             jnp.maximum(y[2 * m:3 * m], y[3 * m:4 * m]))
        # bias + ReLU commute with the spatial max (bias is channel-constant,
        # ReLU monotone), so apply them once after pooling.
        o_ref[...] = jnp.maximum(pooled + b_ref[...], 0.0).astype(o_ref.dtype)

    return kernel


def mlp_kernel(x_ref, w1_ref, b1_ref, w2_ref, b2_ref, o_ref):
    # fc1 -> ReLU -> fc2 (tiny; single VMEM-resident call, bf16 MXU inputs)
    h = jnp.dot(x_ref[...], w1_ref[...], preferred_element_type=jnp.float32) + b1_ref[...]
    h = jnp.maximum(h, 0.0).astype(jnp.bfloat16)
    o_ref[...] = jnp.dot(h, w2_ref[...], preferred_element_type=jnp.float32) + b2_ref[...]


# ----------------------------- pallas_call wrappers -------------------------

def conv_relu_pool_pallas(xpar, w_flat, bias, ks, hp):
    """xpar: (B, 4*hcp, wcp, cinp) bf16 parity-split input ->
       (B, hp*WPP, coutp) bf16 fused conv+ReLU+pool output (flattened rows)."""
    B, hcp4, wcp, cinp = xpar.shape
    hcp = hcp4 // 4
    K, coutp = w_flat.shape
    kernel = make_conv_relu_pool_kernel(ks, hp, hcp, WPP)
    return pl.pallas_call(
        kernel,
        out_shape=jax.ShapeDtypeStruct((B, hp * WPP, coutp), jnp.bfloat16),
        grid=(B,),
        in_specs=[
            pl.BlockSpec((None, hcp4, wcp, cinp), lambda b: (b, 0, 0, 0)),
            pl.BlockSpec((K, coutp), lambda b: (0, 0)),
            pl.BlockSpec((1, coutp), lambda b: (0, 0)),
        ],
        out_specs=pl.BlockSpec((None, hp * WPP, coutp), lambda b: (b, 0, 0)),
        compiler_params=pltpu.CompilerParams(
            dimension_semantics=("parallel",),           # megacore over batch (v7x)
            vmem_limit_bytes=32 * 1024 * 1024),
    )(xpar, w_flat, bias)


def mlp_pallas(x, w1, b1, w2, b2):
    B = x.shape[0]
    outp = w2.shape[1]
    vmem = pl.BlockSpec(memory_space=pltpu.MemorySpace.VMEM)
    return pl.pallas_call(
        mlp_kernel,
        out_shape=jax.ShapeDtypeStruct((B, outp), jnp.float32),
        in_specs=[vmem] * 5,
        out_specs=vmem,
    )(x, w1, b1, w2, b2)


# ----------------------------- XLA-side glue --------------------------------

def _im2col_single_channel(x, ks):
    """(B,H,W,1) single-channel -> (B,Ho,Wo,ks*ks) bf16: fold the ks*ks taps into
    the K/channel dim so layer 1 never pads Cin=1 up to 128."""
    B, H, W, _ = x.shape
    ho, wo = H - ks + 1, W - ks + 1
    taps = [x[:, i:i + ho, j:j + wo, 0] for i in range(ks) for j in range(ks)]
    return jnp.stack(taps, axis=-1).astype(jnp.bfloat16)


def _space_to_parity(x, ks, hp):
    """(B,H,W,C) -> (B, 4*hcp, wcp, C): 2x2 spatial parity split (blocks stacked
    along axis 1 in order q = row_parity*2 + col_parity), zero-padded so every
    in-kernel window slice stays in-bounds (junk columns are discarded later)."""
    B, H, W, C = x.shape
    smax = ks // 2                      # max window start within a parity block
    hcp = max(-(-H // 2), smax + hp)
    wcp = max(-(-W // 2), smax + WPP)
    parts = []
    for rp in range(2):
        for cp in range(2):
            p = x[:, rp::2, cp::2, :]
            parts.append(jnp.pad(p, ((0, 0), (0, hcp - p.shape[1]),
                                     (0, wcp - p.shape[2]), (0, 0))))
    return jnp.concatenate(parts, axis=1)


# ----------------------------- parameters ----------------------------------

def init_params(key, input_channels, channel_sizes, kernel_sizes,
                flat_features, output_size):
    """Raw params in PyTorch-equivalent layouts (HWIO conv weights, NCHW flatten fc1)."""
    params = {"conv": [], "fc": None}
    cin = input_channels
    for cs, ks in zip(channel_sizes, kernel_sizes):
        key, kw_, kb_ = jax.random.split(key, 3)
        bound = float(cin * ks * ks) ** -0.5
        w = jax.random.uniform(kw_, (ks, ks, cin, cs), jnp.float32, -bound, bound)
        b = jax.random.uniform(kb_, (1, cs), jnp.float32, -bound, bound)
        params["conv"].append((w, b))
        cin = cs
    key, k1, k2, k3, k4 = jax.random.split(key, 5)
    bound1 = float(flat_features) ** -0.5
    w1 = jax.random.uniform(k1, (flat_features, 32), jnp.float32, -bound1, bound1)
    b1 = jax.random.uniform(k2, (1, 32), jnp.float32, -bound1, bound1)
    bound2 = 32.0 ** -0.5
    w2 = jax.random.uniform(k3, (32, output_size), jnp.float32, -bound2, bound2)
    b2 = jax.random.uniform(k4, (1, output_size), jnp.float32, -bound2, bound2)
    params["fc"] = (w1, b1, w2, b2)
    return params


def prepare_params(raw, kernel_sizes, channel_sizes, feat, output_size):
    """One-time prep: fold conv taps into K (rows ordered (i, j, cin)), pad Cout to
    128 lanes (and Cin to 128 for layers >= 2 whose inputs arrive lane-padded),
    cast MXU operands to bf16, and fold the NCHW flatten into a reordered fc1."""
    prep = {"conv": [], "fc": None}
    for li, ((w, b), ks) in enumerate(zip(raw["conv"], kernel_sizes)):
        kh, kw, cin, cout = w.shape
        coutp = _round_up(cout)
        if li == 0:
            # layer 1: Cin == 1; taps folded into K by the XLA-side im2col (K = 9)
            w_flat = w.reshape(kh * kw * cin, cout)
        else:
            cinp = _round_up(cin)     # inputs arrive padded to 128 channels
            wpad = jnp.pad(w, ((0, 0), (0, 0), (0, cinp - cin), (0, 0)))
            w_flat = wpad.reshape(kh * kw * cinp, cout)
        w_flat = jnp.pad(w_flat, ((0, 0), (0, coutp - cout))).astype(jnp.bfloat16)
        bp = jnp.pad(b, ((0, 0), (0, coutp - cout))).astype(jnp.float32)
        prep["conv"].append((w_flat, bp))

    w1, b1, w2, b2 = raw["fc"]
    hid = w1.shape[1]
    last_c = channel_sizes[-1]
    cpad = _round_up(last_c)
    hidp = _round_up(hid)
    outp = _round_up(output_size)
    # PyTorch flatten order is (c, h, w); our activations flatten as (h, w, c_padded).
    w1r = w1.reshape(last_c, feat, feat, hid).transpose(1, 2, 0, 3)
    w1r = jnp.pad(w1r, ((0, 0), (0, 0), (0, cpad - last_c), (0, hidp - hid)))
    w1r = w1r.reshape(feat * feat * cpad, hidp).astype(jnp.bfloat16)
    b1p = jnp.pad(b1, ((0, 0), (0, hidp - hid))).astype(jnp.float32)
    w2p = jnp.pad(w2, ((0, hidp - hid), (0, outp - output_size))).astype(jnp.bfloat16)
    b2p = jnp.pad(b2, ((0, 0), (0, outp - output_size))).astype(jnp.float32)
    prep["fc"] = (w1r, b1p, w2p, b2p)
    return prep


# ----------------------------- forward passes ------------------------------

def cnn_forward_pallas(prep, x_nchw, kernel_sizes, output_size):
    # x_nchw: (B, Cin, H, W) — PyTorch convention. Internally NHWC.
    x = jnp.transpose(x_nchw, (0, 2, 3, 1)).astype(jnp.float32)
    B = x.shape[0]
    for li, ((w_flat, bp), ks) in enumerate(zip(prep["conv"], kernel_sizes)):
        if li == 0:
            xin = _im2col_single_channel(x, ks)   # taps -> K; no 128x Cin pad
            ks_geom = 1                           # behaves like a 1x1 conv over taps
        else:
            xin = x                               # bf16, 128 channels (lane-padded)
            ks_geom = ks
        ho = xin.shape[1] - ks_geom + 1
        wo = xin.shape[2] - ks_geom + 1
        hp, wp = ho // 2, wo // 2
        xpar = _space_to_parity(xin, ks_geom, hp)
        y = conv_relu_pool_pallas(xpar, w_flat, bp, ks_geom, hp)   # fused Pallas layer
        x = y.reshape(B, hp, WPP, y.shape[-1])[:, :, :wp, :]       # drop padded cols
    # TODO(synk): nn.Dropout is identity in eval mode; training-mode dropout not implemented.
    flat = x.reshape(B, -1)                        # (h, w, c_pad) order; fc1 pre-reordered
    w1r, b1p, w2p, b2p = prep["fc"]
    out = mlp_pallas(flat, w1r, b1p, w2p, b2p)     # fc1 -> ReLU -> fc2 (Pallas)
    return out[:, :output_size]


def cnn_forward_ref(raw, x_nchw, kernel_sizes):
    # pure-JAX reference for correctness check (f32 throughout)
    x = jnp.transpose(x_nchw, (0, 2, 3, 1)).astype(jnp.float32)
    for (w, b), ks in zip(raw["conv"], kernel_sizes):
        y = lax.conv_general_dilated(x, w, (1, 1), "VALID",
                                     dimension_numbers=("NHWC", "HWIO", "NHWC"))
        y = jnp.maximum(y + b.reshape(1, 1, 1, -1), 0.0)
        x = lax.reduce_window(y, -jnp.inf, lax.max,
                              (1, 2, 2, 1), (1, 2, 2, 1), "VALID")
    B = x.shape[0]
    flat = jnp.transpose(x, (0, 3, 1, 2)).reshape(B, -1)
    w1, b1, w2, b2 = raw["fc"]
    h = jnp.maximum(flat @ w1 + b1, 0.0)
    return h @ w2 + b2


# ----------------------------- main -----------------------------------------

if __name__ == "__main__":
    # Small shapes consistent with the module (scaled down from defaults
    # input_channels=1, input_size=128, channels=[32, 64, 128]).
    B, Cin, S = 2, 1, 32
    kernel_sizes = [3, 3, 3]
    channel_sizes = [8, 16, 32]
    output_size = 1

    feat = S
    for ks in kernel_sizes:
        feat = (feat - ks + 1) // 2                   # valid conv then maxpool(2,2)
    flat_features = channel_sizes[-1] * feat * feat   # 32 * 2 * 2 = 128

    key = jax.random.PRNGKey(0)
    key, kx = jax.random.split(key)
    x = jax.random.normal(kx, (B, Cin, S, S), jnp.float32)   # NCHW like PyTorch
    raw = init_params(key, Cin, channel_sizes, kernel_sizes,
                      flat_features, output_size)
    prep = prepare_params(raw, kernel_sizes, channel_sizes, feat, output_size)

    fwd = jax.jit(lambda p, inp: cnn_forward_pallas(p, inp, kernel_sizes, output_size))
    out = jax.block_until_ready(fwd(prep, x))

    ref = cnn_forward_ref(raw, x, kernel_sizes)
    assert out.shape == (B, output_size), out.shape
    # bf16 MXU inputs + bf16 inter-layer activations with f32 accumulation ->
    # compare against the f32 reference with a bf16-appropriate tolerance.
    assert jnp.allclose(out, ref, rtol=3e-2, atol=3e-2), (out, ref)
    print("KERNEL_OK")
</pallas_src>

<mosaic_0001>
module attributes {stable_mosaic.version = 11 : i64} {
  func.func @kernel(%arg0: i32, %arg1: memref<1x60x16x9xbf16, #tpu.memory_space<vmem>>, %arg2: memref<9x128xbf16, #tpu.memory_space<vmem>>, %arg3: memref<1x128xf32, #tpu.memory_space<vmem>>, %arg4: memref<1x240x128xbf16, #tpu.memory_space<vmem>>) attributes {dimension_semantics = [#tpu.dimension_semantics<parallel>], iteration_bounds = array<i64: 2>, scalar_prefetch = 0 : i64, scratch_operands = 0 : i64, tpu.core_type = #tpu.core_type<tc>, window_params = [{transform_indices = @transform_0, window_bounds = array<i64: 1, 60, 16, 9>}, {pipeline_mode = #tpu.pipeline_mode<synchronous>, transform_indices = @transform_1, window_bounds = array<i64: 9, 128>}, {pipeline_mode = #tpu.pipeline_mode<synchronous>, transform_indices = @transform_2, window_bounds = array<i64: 1, 128>}, {transform_indices = @transform_3, window_bounds = array<i64: 1, 240, 128>}]} {
    %c0 = arith.constant 0 : index
    %c0_0 = arith.constant 0 : index
    %c0_1 = arith.constant 0 : index
    %c0_2 = arith.constant 0 : index
    %0 = vector.load %arg1[%c0, %c0_0, %c0_1, %c0_2] : memref<1x60x16x9xbf16, #tpu.memory_space<vmem>>, vector<1x15x16x9xbf16>
    %1 = vector.shape_cast %0 : vector<1x15x16x9xbf16> to vector<15x16x9xbf16>
    %c0_3 = arith.constant 0 : index
    %c15 = arith.constant 15 : index
    %c0_4 = arith.constant 0 : index
    %c0_5 = arith.constant 0 : index
    %2 = vector.load %arg1[%c0_3, %c15, %c0_4, %c0_5] : memref<1x60x16x9xbf16, #tpu.memory_space<vmem>>, vector<1x15x16x9xbf16>
    %3 = vector.shape_cast %2 : vector<1x15x16x9xbf16> to vector<15x16x9xbf16>
    %c0_6 = arith.constant 0 : index
    %c30 = arith.constant 30 : index
    %c0_7 = arith.constant 0 : index
    %c0_8 = arith.constant 0 : index
    %4 = vector.load %arg1[%c0_6, %c30, %c0_7, %c0_8] : memref<1x60x16x9xbf16, #tpu.memory_space<vmem>>, vector<1x15x16x9xbf16>
    %5 = vector.shape_cast %4 : vector<1x15x16x9xbf16> to vector<15x16x9xbf16>
    %c0_9 = arith.constant 0 : index
    %c45 = arith.constant 45 : index
    %c0_10 = arith.constant 0 : index
    %c0_11 = arith.constant 0 : index
    %6 = vector.load %arg1[%c0_9, %c45, %c0_10, %c0_11] : memref<1x60x16x9xbf16, #tpu.memory_space<vmem>>, vector<1x15x16x9xbf16>
    %7 = vector.shape_cast %6 : vector<1x15x16x9xbf16> to vector<15x16x9xbf16>
    %8 = tpu.concatenate %1, %3, %5, %7 in 0 : vector<15x16x9xbf16>, vector<15x16x9xbf16>, vector<15x16x9xbf16>, vector<15x16x9xbf16> -> vector<60x16x9xbf16>
    %9 = vector.shape_cast %8 : vector<60x16x9xbf16> to vector<960x9xbf16>
    %c0_12 = arith.constant 0 : index
    %c0_13 = arith.constant 0 : index
    %10 = vector.load %arg2[%c0_12, %c0_13] : memref<9x128xbf16, #tpu.memory_space<vmem>>, vector<9x128xbf16>
    %cst = arith.constant dense<0.000000e+00> : vector<960x128xf32>
    %11 = tpu.matmul %9, %10, %cst {dimension_numbers = #tpu.dot_dimension_numbers<[1], [0], [0], [1], [0, 0, 1, 1], [], []>} : vector<960x9xbf16>, vector<9x128xbf16>, vector<960x128xf32> -> vector<960x128xf32>
    %12 = vector.extract_strided_slice %11 {offsets = [0, 0], sizes = [240, 128], strides = [1, 1]} : vector<960x128xf32> to vector<240x128xf32>
    %13 = vector.extract_strided_slice %11 {offsets = [240, 0], sizes = [240, 128], strides = [1, 1]} : vector<960x128xf32> to vector<240x128xf32>
    %14 = arith.maximumf %12, %13 : vector<240x128xf32>
    %15 = vector.extract_strided_slice %11 {offsets = [480, 0], sizes = [240, 128], strides = [1, 1]} : vector<960x128xf32> to vector<240x128xf32>
    %16 = vector.extract_strided_slice %11 {offsets = [720, 0], sizes = [240, 128], strides = [1, 1]} : vector<960x128xf32> to vector<240x128xf32>
    %17 = arith.maximumf %15, %16 : vector<240x128xf32>
    %18 = arith.maximumf %14, %17 : vector<240x128xf32>
    %c0_14 = arith.constant 0 : index
    %c0_15 = arith.constant 0 : index
    %19 = vector.load %arg3[%c0_14, %c0_15] : memref<1x128xf32, #tpu.memory_space<vmem>>, vector<1x128xf32>
    %20 = vector.broadcast %19 : vector<1x128xf32> to vector<240x128xf32>
    %21 = arith.addf %18, %20 : vector<240x128xf32>
    %cst_16 = arith.constant 0.000000e+00 : f32
    %22 = vector.broadcast %cst_16 : f32 to vector<240x128xf32>
    %23 = arith.maximumf %21, %22 : vector<240x128xf32>
    %24 = arith.truncf %23 : vector<240x128xf32> to vector<240x128xbf16>
    %c0_17 = arith.constant 0 : index
    %c0_18 = arith.constant 0 : index
    %c0_19 = arith.constant 0 : index
    %25 = vector.load %arg4[%c0_17, %c0_18, %c0_19] : memref<1x240x128xbf16, #tpu.memory_space<vmem>>, vector<1x240x128xbf16>
    %26 = vector.shape_cast %25 : vector<1x240x128xbf16> to vector<240x128xbf16>
    %27 = vector.shape_cast %24 : vector<240x128xbf16> to vector<1x240x128xbf16>
    tpu.vector_store %arg4[%c0_17, %c0_18, %c0_19], %27 {strides = array<i32>} : memref<1x240x128xbf16, #tpu.memory_space<vmem>>, vector<1x240x128xbf16>,
    return
  }
  func.func @transform_0(%arg0: i32) -> (i32, i32, i32, i32) {
    %c0_i32 = arith.constant 0 : i32
    %c0_i32_0 = arith.constant 0 : i32
    %c0_i32_1 = arith.constant 0 : i32
    %c0_i32_2 = arith.constant 0 : i32
    return %arg0, %c0_i32, %c0_i32_0, %c0_i32_1 : i32, i32, i32, i32
  }
  func.func @transform_1(%arg0: i32) -> (i32, i32) {
    %c0_i32 = arith.constant 0 : i32
    %c0_i32_0 = arith.constant 0 : i32
    %c0_i32_1 = arith.constant 0 : i32
    return %c0_i32, %c0_i32_0 : i32, i32
  }
  func.func @transform_2(%arg0: i32) -> (i32, i32) {
    %c0_i32 = arith.constant 0 : i32
    %c0_i32_0 = arith.constant 0 : i32
    %c0_i32_1 = arith.constant 0 : i32
    return %c0_i32, %c0_i32_0 : i32, i32
  }
  func.func @transform_3(%arg0: i32) -> (i32, i32, i32) {
    %c0_i32 = arith.constant 0 : i32
    %c0_i32_0 = arith.constant 0 : i32
    %c0_i32_1 = arith.constant 0 : i32
    return %arg0, %c0_i32, %c0_i32_0 : i32, i32, i32
  }
}

module attributes {stable_mosaic.version = 11 : i64} {
  func.func @kernel(%arg0: i32, %arg1: memref<1x32x17x128xbf16, #tpu.memory_space<vmem>>, %arg2: memref<1152x128xbf16, #tpu.memory_space<vmem>>, %arg3: memref<1x128xf32, #tpu.memory_space<vmem>>, %arg4: memref<1x96x128xbf16, #tpu.memory_space<vmem>>) attributes {dimension_semantics = [#tpu.dimension_semantics<parallel>], iteration_bounds = array<i64: 2>, scalar_prefetch = 0 : i64, scratch_operands = 0 : i64, tpu.core_type = #tpu.core_type<tc>, window_params = [{transform_indices = @transform_0, window_bounds = array<i64: 1, 32, 17, 128>}, {pipeline_mode = #tpu.pipeline_mode<synchronous>, transform_indices = @transform_1, window_bounds = array<i64: 1152, 128>}, {pipeline_mode = #tpu.pipeline_mode<synchronous>, transform_indices = @transform_2, window_bounds = array<i64: 1, 128>}, {transform_indices = @transform_3, window_bounds = array<i64: 1, 96, 128>}]} {
    %c0 = arith.constant 0 : index
    %c0_0 = arith.constant 0 : index
    %c0_1 = arith.constant 0 : index
    %c0_2 = arith.constant 0 : index
    %0 = vector.load %arg1[%c0, %c0_0, %c0_1, %c0_2] : memref<1x32x17x128xbf16, #tpu.memory_space<vmem>>, vector<1x6x16x128xbf16>
    %1 = vector.shape_cast %0 : vector<1x6x16x128xbf16> to vector<6x16x128xbf16>
    %c0_3 = arith.constant 0 : index
    %c8 = arith.constant 8 : index
    %c0_4 = arith.constant 0 : index
    %c0_5 = arith.constant 0 : index
    %2 = vector.load %arg1[%c0_3, %c8, %c0_4, %c0_5] : memref<1x32x17x128xbf16, #tpu.memory_space<vmem>>, vector<1x6x16x128xbf16>
    %3 = vector.shape_cast %2 : vector<1x6x16x128xbf16> to vector<6x16x128xbf16>
    %c0_6 = arith.constant 0 : index
    %c0_7 = arith.constant 0 : index
    %c1 = arith.constant 1 : index
    %c0_8 = arith.constant 0 : index
    %4 = vector.load %arg1[%c0_6, %c0_7, %c1, %c0_8] : memref<1x32x17x128xbf16, #tpu.memory_space<vmem>>, vector<1x6x16x128xbf16>
    %5 = vector.shape_cast %4 : vector<1x6x16x128xbf16> to vector<6x16x128xbf16>
    %c0_9 = arith.constant 0 : index
    %c16 = arith.constant 16 : index
    %c0_10 = arith.constant 0 : index
    %c0_11 = arith.constant 0 : index
    %6 = vector.load %arg1[%c0_9, %c16, %c0_10, %c0_11] : memref<1x32x17x128xbf16, #tpu.memory_space<vmem>>, vector<1x6x16x128xbf16>
    %7 = vector.shape_cast %6 : vector<1x6x16x128xbf16> to vector<6x16x128xbf16>
    %c0_12 = arith.constant 0 : index
    %c24 = arith.constant 24 : index
    %c0_13 = arith.constant 0 : index
    %c0_14 = arith.constant 0 : index
    %8 = vector.load %arg1[%c0_12, %c24, %c0_13, %c0_14] : memref<1x32x17x128xbf16, #tpu.memory_space<vmem>>, vector<1x6x16x128xbf16>
    %9 = vector.shape_cast %8 : vector<1x6x16x128xbf16> to vector<6x16x128xbf16>
    %c0_15 = arith.constant 0 : index
    %c16_16 = arith.constant 16 : index
    %c1_17 = arith.constant 1 : index
    %c0_18 = arith.constant 0 : index
    %10 = vector.load %arg1[%c0_15, %c16_16, %c1_17, %c0_18] : memref<1x32x17x128xbf16, #tpu.memory_space<vmem>>, vector<1x6x16x128xbf16>
    %11 = vector.shape_cast %10 : vector<1x6x16x128xbf16> to vector<6x16x128xbf16>
    %c0_19 = arith.constant 0 : index
    %c1_20 = arith.constant 1 : index
    %c0_21 = arith.constant 0 : index
    %c0_22 = arith.constant 0 : index
    %12 = vector.load %arg1[%c0_19, %c1_20, %c0_21, %c0_22] : memref<1x32x17x128xbf16, #tpu.memory_space<vmem>>, vector<1x6x16x128xbf16>
    %13 = vector.shape_cast %12 : vector<1x6x16x128xbf16> to vector<6x16x128xbf16>
    %c0_23 = arith.constant 0 : index
    %c9 = arith.constant 9 : index
    %c0_24 = arith.constant 0 : index
    %c0_25 = arith.constant 0 : index
    %14 = vector.load %arg1[%c0_23, %c9, %c0_24, %c0_25] : memref<1x32x17x128xbf16, #tpu.memory_space<vmem>>, vector<1x6x16x128xbf16>
    %15 = vector.shape_cast %14 : vector<1x6x16x128xbf16> to vector<6x16x128xbf16>
    %c0_26 = arith.constant 0 : index
    %c1_27 = arith.constant 1 : index
    %c1_28 = arith.constant 1 : index
    %c0_29 = arith.constant 0 : index
    %16 = vector.load %arg1[%c0_26, %c1_27, %c1_28, %c0_29] : memref<1x32x17x128xbf16, #tpu.memory_space<vmem>>, vector<1x6x16x128xbf16>
    %17 = vector.shape_cast %16 : vector<1x6x16x128xbf16> to vector<6x16x128xbf16>
    %18 = tpu.concatenate %1, %3, %5, %7, %9, %11, %13, %15, %17 in 2 : vector<6x16x128xbf16>, vector<6x16x128xbf16>, vector<6x16x128xbf16>, vector<6x16x128xbf16>, vector<6x16x128xbf16>, vector<6x16x128xbf16>, vector<6x16x128xbf16>, vector<6x16x128xbf16>, vector<6x16x128xbf16> -> vector<6x16x1152xbf16>
    %c0_30 = arith.constant 0 : index
    %c8_31 = arith.constant 8 : index
    %c0_32 = arith.constant 0 : index
    %c0_33 = arith.constant 0 : index
    %19 = vector.load %arg1[%c0_30, %c8_31, %c0_32, %c0_33] : memref<1x32x17x128xbf16, #tpu.memory_space<vmem>>, vector<1x6x16x128xbf16>
    %20 = vector.shape_cast %19 : vector<1x6x16x128xbf16> to vector<6x16x128xbf16>
    %c0_34 = arith.constant 0 : index
    %c0_35 = arith.constant 0 : index
    %c1_36 = arith.constant 1 : index
    %c0_37 = arith.constant 0 : index
    %21 = vector.load %arg1[%c0_34, %c0_35, %c1_36, %c0_37] : memref<1x32x17x128xbf16, #tpu.memory_space<vmem>>, vector<1x6x16x128xbf16>
    %22 = vector.shape_cast %21 : vector<1x6x16x128xbf16> to vector<6x16x128xbf16>
    %c0_38 = arith.constant 0 : index
    %c8_39 = arith.constant 8 : index
    %c1_40 = arith.constant 1 : index
    %c0_41 = arith.constant 0 : index
    %23 = vector.load %arg1[%c0_38, %c8_39, %c1_40, %c0_41] : memref<1x32x17x128xbf16, #tpu.memory_space<vmem>>, vector<1x6x16x128xbf16>
    %24 = vector.shape_cast %23 : vector<1x6x16x128xbf16> to vector<6x16x128xbf16>
    %c0_42 = arith.constant 0 : index
    %c24_43 = arith.constant 24 : index
    %c0_44 = arith.constant 0 : index
    %c0_45 = arith.constant 0 : index
    %25 = vector.load %arg1[%c0_42, %c24_43, %c0_44, %c0_45] : memref<1x32x17x128xbf16, #tpu.memory_space<vmem>>, vector<1x6x16x128xbf16>
    %26 = vector.shape_cast %25 : vector<1x6x16x128xbf16> to vector<6x16x128xbf16>
    %c0_46 = arith.constant 0 : index
    %c16_47 = arith.constant 16 : index
    %c1_48 = arith.constant 1 : index
    %c0_49 = arith.constant 0 : index
    %27 = vector.load %arg1[%c0_46, %c16_47, %c1_48, %c0_49] : memref<1x32x17x128xbf16, #tpu.memory_space<vmem>>, vector<1x6x16x128xbf16>
    %28 = vector.shape_cast %27 : vector<1x6x16x128xbf16> to vector<6x16x128xbf16>
    %c0_50 = arith.constant 0 : index
    %c24_51 = arith.constant 24 : index
    %c1_52 = arith.constant 1 : index
    %c0_53 = arith.constant 0 : index
    %29 = vector.load %arg1[%c0_50, %c24_51, %c1_52, %c0_53] : memref<1x32x17x128xbf16, #tpu.memory_space<vmem>>, vector<1x6x16x128xbf16>
    %30 = vector.shape_cast %29 : vector<1x6x16x128xbf16> to vector<6x16x128xbf16>
    %c0_54 = arith.constant 0 : index
    %c9_55 = arith.constant 9 : index
    %c0_56 = arith.constant 0 : index
    %c0_57 = arith.constant 0 : index
    %31 = vector.load %arg1[%c0_54, %c9_55, %c0_56, %c0_57] : memref<1x32x17x128xbf16, #tpu.memory_space<vmem>>, vector<1x6x16x128xbf16>
    %32 = vector.shape_cast %31 : vector<1x6x16x128xbf16> to vector<6x16x128xbf16>
    %c0_58 = arith.constant 0 : index
    %c1_59 = arith.constant 1 : index
    %c1_60 = arith.constant 1 : index
    %c0_61 = arith.constant 0 : index
    %33 = vector.load %arg1[%c0_58, %c1_59, %c1_60, %c0_61] : memref<1x32x17x128xbf16, #tpu.memory_space<vmem>>, vector<1x6x16x128xbf16>
    %34 = vector.shape_cast %33 : vector<1x6x16x128xbf16> to vector<6x16x128xbf16>
    %c0_62 = arith.constant 0 : index
    %c9_63 = arith.constant 9 : index
    %c1_64 = arith.constant 1 : index
    %c0_65 = arith.constant 0 : index
    %35 = vector.load %arg1[%c0_62, %c9_63, %c1_64, %c0_65] : memref<1x32x17x128xbf16, #tpu.memory_space<vmem>>, vector<1x6x16x128xbf16>
    %36 = vector.shape_cast %35 : vector<1x6x16x128xbf16> to vector<6x16x128xbf16>
    %37 = tpu.concatenate %20, %22, %24, %26, %28, %30, %32, %34, %36 in 2 : vector<6x16x128xbf16>, vector<6x16x128xbf16>, vector<6x16x128xbf16>, vector<6x16x128xbf16>, vector<6x16x128xbf16>, vector<6x16x128xbf16>, vector<6x16x128xbf16>, vector<6x16x128xbf16>, vector<6x16x128xbf16> -> vector<6x16x1152xbf16>
    %c0_66 = arith.constant 0 : index
    %c16_67 = arith.constant 16 : index
    %c0_68 = arith.constant 0 : index
    %c0_69 = arith.constant 0 : index
    %38 = vector.load %arg1[%c0_66, %c16_67, %c0_68, %c0_69] : memref<1x32x17x128xbf16, #tpu.memory_space<vmem>>, vector<1x6x16x128xbf16>
    %39 = vector.shape_cast %38 : vector<1x6x16x128xbf16> to vector<6x16x128xbf16>
    %c0_70 = arith.constant 0 : index
    %c24_71 = arith.constant 24 : index
    %c0_72 = arith.constant 0 : index
    %c0_73 = arith.constant 0 : index
    %40 = vector.load %arg1[%c0_70, %c24_71, %c0_72, %c0_73] : memref<1x32x17x128xbf16, #tpu.memory_space<vmem>>, vector<1x6x16x128xbf16>
    %41 = vector.shape_cast %40 : vector<1x6x16x128xbf16> to vector<6x16x128xbf16>
    %c0_74 = arith.constant 0 : index
    %c16_75 = arith.constant 16 : index
    %c1_76 = arith.constant 1 : index
    %c0_77 = arith.constant 0 : index
    %42 = vector.load %arg1[%c0_74, %c16_75, %c1_76, %c0_77] : memref<1x32x17x128xbf16, #tpu.memory_space<vmem>>, vector<1x6x16x128xbf16>
    %43 = vector.shape_cast %42 : vector<1x6x16x128xbf16> to vector<6x16x128xbf16>
    %c0_78 = arith.constant 0 : index
    %c1_79 = arith.constant 1 : index
    %c0_80 = arith.constant 0 : index
    %c0_81 = arith.constant 0 : index
    %44 = vector.load %arg1[%c0_78, %c1_79, %c0_80, %c0_81] : memref<1x32x17x128xbf16, #tpu.memory_space<vmem>>, vector<1x6x16x128xbf16>
    %45 = vector.shape_cast %44 : vector<1x6x16x128xbf16> to vector<6x16x128xbf16>
    %c0_82 = arith.constant 0 : index
    %c9_83 = arith.constant 9 : index
    %c0_84 = arith.constant 0 : index
    %c0_85 = arith.constant 0 : index
    %46 = vector.load %arg1[%c0_82, %c9_83, %c0_84, %c0_85] : memref<1x32x17x128xbf16, #tpu.memory_space<vmem>>, vector<1x6x16x128xbf16>
    %47 = vector.shape_cast %46 : vector<1x6x16x128xbf16> to vector<6x16x128xbf16>
    %c0_86 = arith.constant 0 : index
    %c1_87 = arith.constant 1 : index
    %c1_88 = arith.constant 1 : index
    %c0_89 = arith.constant 0 : index
    %48 = vector.load %arg1[%c0_86, %c1_87, %c1_88, %c0_89] : memref<1x32x17x128xbf16, #tpu.memory_space<vmem>>, vector<1x6x16x128xbf16>
    %49 = vector.shape_cast %48 : vector<1x6x16x128xbf16> to vector<6x16x128xbf16>
    %c0_90 = arith.constant 0 : index
    %c17 = arith.constant 17 : index
    %c0_91 = arith.constant 0 : index
    %c0_92 = arith.constant 0 : index
    %50 = vector.load %arg1[%c0_90, %c17, %c0_91, %c0_92] : memref<1x32x17x128xbf16, #tpu.memory_space<vmem>>, vector<1x6x16x128xbf16>
    %51 = vector.shape_cast %50 : vector<1x6x16x128xbf16> to vector<6x16x128xbf16>
    %c0_93 = arith.constant 0 : index
    %c25 = arith.constant 25 : index
    %c0_94 = arith.constant 0 : index
    %c0_95 = arith.constant 0 : index
    %52 = vector.load %arg1[%c0_93, %c25, %c0_94, %c0_95] : memref<1x32x17x128xbf16, #tpu.memory_space<vmem>>, vector<1x6x16x128xbf16>
    %53 = vector.shape_cast %52 : vector<1x6x16x128xbf16> to vector<6x16x128xbf16>
    %c0_96 = arith.constant 0 : index
    %c17_97 = arith.constant 17 : index
    %c1_98 = arith.constant 1 : index
    %c0_99 = arith.constant 0 : index
    %54 = vector.load %arg1[%c0_96, %c17_97, %c1_98, %c0_99] : memref<1x32x17x128xbf16, #tpu.memory_space<vmem>>, vector<1x6x16x128xbf16>
    %55 = vector.shape_cast %54 : vector<1x6x16x128xbf16> to vector<6x16x128xbf16>
    %56 = tpu.concatenate %39, %41, %43, %45, %47, %49, %51, %53, %55 in 2 : vector<6x16x128xbf16>, vector<6x16x128xbf16>, vector<6x16x128xbf16>, vector<6x16x128xbf16>, vector<6x16x128xbf16>, vector<6x16x128xbf16>, vector<6x16x128xbf16>, vector<6x16x128xbf16>, vector<6x16x128xbf16> -> vector<6x16x1152xbf16>
    %c0_100 = arith.constant 0 : index
    %c24_101 = arith.constant 24 : index
    %c0_102 = arith.constant 0 : index
    %c0_103 = arith.constant 0 : index
    %57 = vector.load %arg1[%c0_100, %c24_101, %c0_102, %c0_103] : memref<1x32x17x128xbf16, #tpu.memory_space<vmem>>, vector<1x6x16x128xbf16>
    %58 = vector.shape_cast %57 : vector<1x6x16x128xbf16> to vector<6x16x128xbf16>
    %c0_104 = arith.constant 0 : index
    %c16_105 = arith.constant 16 : index
    %c1_106 = arith.constant 1 : index
    %c0_107 = arith.constant 0 : index
    %59 = vector.load %arg1[%c0_104, %c16_105, %c1_106, %c0_107] : memref<1x32x17x128xbf16, #tpu.memory_space<vmem>>, vector<1x6x16x128xbf16>
    %60 = vector.shape_cast %59 : vector<1x6x16x128xbf16> to vector<6x16x128xbf16>
    %c0_108 = arith.constant 0 : index
    %c24_109 = arith.constant 24 : index
    %c1_110 = arith.constant 1 : index
    %c0_111 = arith.constant 0 : index
    %61 = vector.load %arg1[%c0_108, %c24_109, %c1_110, %c0_111] : memref<1x32x17x128xbf16, #tpu.memory_space<vmem>>, vector<1x6x16x128xbf16>
    %62 = vector.shape_cast %61 : vector<1x6x16x128xbf16> to vector<6x16x128xbf16>
    %c0_112 = arith.constant 0 : index
    %c9_113 = arith.constant 9 : index
    %c0_114 = arith.constant 0 : index
    %c0_115 = arith.constant 0 : index
    %63 = vector.load %arg1[%c0_112, %c9_113, %c0_114, %c0_115] : memref<1x32x17x128xbf16, #tpu.memory_space<vmem>>, vector<1x6x16x128xbf16>
    %64 = vector.shape_cast %63 : vector<1x6x16x128xbf16> to vector<6x16x128xbf16>
    %c0_116 = arith.constant 0 : index
    %c1_117 = arith.constant 1 : index
    %c1_118 = arith.constant 1 : index
    %c0_119 = arith.constant 0 : index
    %65 = vector.load %arg1[%c0_116, %c1_117, %c1_118, %c0_119] : memref<1x32x17x128xbf16, #tpu.memory_space<vmem>>, vector<1x6x16x128xbf16>
    %66 = vector.shape_cast %65 : vector<1x6x16x128xbf16> to vector<6x16x128xbf16>
    %c0_120 = arith.constant 0 : index
    %c9_121 = arith.constant 9 : index
    %c1_122 = arith.constant 1 : index
    %c0_123 = arith.constant 0 : index
    %67 = vector.load %arg1[%c0_120, %c9_121, %c1_122, %c0_123] : memref<1x32x17x128xbf16, #tpu.memory_space<vmem>>, vector<1x6x16x128xbf16>
    %68 = vector.shape_cast %67 : vector<1x6x16x128xbf16> to vector<6x16x128xbf16>
    %c0_124 = arith.constant 0 : index
    %c25_125 = arith.constant 25 : index
    %c0_126 = arith.constant 0 : index
    %c0_127 = arith.constant 0 : index
    %69 = vector.load %arg1[%c0_124, %c25_125, %c0_126, %c0_127] : memref<1x32x17x128xbf16, #tpu.memory_space<vmem>>, vector<1x6x16x128xbf16>
    %70 = vector.shape_cast %69 : vector<1x6x16x128xbf16> to vector<6x16x128xbf16>
    %c0_128 = arith.constant 0 : index
    %c17_129 = arith.constant 17 : index
    %c1_130 = arith.constant 1 : index
    %c0_131 = arith.constant 0 : index
    %71 = vector.load %arg1[%c0_128, %c17_129, %c1_130, %c0_131] : memref<1x32x17x128xbf16, #tpu.memory_space<vmem>>, vector<1x6x16x128xbf16>
    %72 = vector.shape_cast %71 : vector<1x6x16x128xbf16> to vector<6x16x128xbf16>
    %c0_132 = arith.constant 0 : index
    %c25_133 = arith.constant 25 : index
    %c1_134 = arith.constant 1 : index
    %c0_135 = arith.constant 0 : index
    %73 = vector.load %arg1[%c0_132, %c25_133, %c1_134, %c0_135] : memref<1x32x17x128xbf16, #tpu.memory_space<vmem>>, vector<1x6x16x128xbf16>
    %74 = vector.shape_cast %73 : vector<1x6x16x128xbf16> to vector<6x16x128xbf16>
    %75 = tpu.concatenate %58, %60, %62, %64, %66, %68, %70, %72, %74 in 2 : vector<6x16x128xbf16>, vector<6x16x128xbf16>, vector<6x16x128xbf16>, vector<6x16x128xbf16>, vector<6x16x128xbf16>, vector<6x16x128xbf16>, vector<6x16x128xbf16>, vector<6x16x128xbf16>, vector<6x16x128xbf16> -> vector<6x16x1152xbf16>
    %76 = tpu.concatenate %18, %37, %56, %75 in 0 : vector<6x16x1152xbf16>, vector<6x16x1152xbf16>, vector<6x16x1152xbf16>, vector<6x16x1152xbf16> -> vector<24x16x1152xbf16>
    %77 = vector.shape_cast %76 : vector<24x16x1152xbf16> to vector<384x1152xbf16>
    %c0_136 = arith.constant 0 : index
    %c0_137 = arith.constant 0 : index
    %78 = vector.load %arg2[%c0_136, %c0_137] : memref<1152x128xbf16, #tpu.memory_space<vmem>>, vector<1152x128xbf16>
    %cst = arith.constant dense<0.000000e+00> : vector<384x128xf32>
    %79 = tpu.matmul %77, %78, %cst {dimension_numbers = #tpu.dot_dimension_numbers<[1], [0], [0], [1], [0, 0, 1, 1], [], []>} : vector<384x1152xbf16>, vector<1152x128xbf16>, vector<384x128xf32> -> vector<384x128xf32>
    %80 = vector.extract_strided_slice %79 {offsets = [0, 0], sizes = [96, 128], strides = [1, 1]} : vector<384x128xf32> to vector<96x128xf32>
    %81 = vector.extract_strided_slice %79 {offsets = [96, 0], sizes = [96, 128], strides = [1, 1]} : vector<384x128xf32> to vector<96x128xf32>
    %82 = arith.maximumf %80, %81 : vector<96x128xf32>
    %83 = vector.extract_strided_slice %79 {offsets = [192, 0], sizes = [96, 128], strides = [1, 1]} : vector<384x128xf32> to vector<96x128xf32>
    %84 = vector.extract_strided_slice %79 {offsets = [288, 0], sizes = [96, 128], strides = [1, 1]} : vector<384x128xf32> to vector<96x128xf32>
    %85 = arith.maximumf %83, %84 : vector<96x128xf32>
    %86 = arith.maximumf %82, %85 : vector<96x128xf32>
    %c0_138 = arith.constant 0 : index
    %c0_139 = arith.constant 0 : index
    %87 = vector.load %arg3[%c0_138, %c0_139] : memref<1x128xf32, #tpu.memory_space<vmem>>, vector<1x128xf32>
    %88 = vector.broadcast %87 : vector<1x128xf32> to vector<96x128xf32>
    %89 = arith.addf %86, %88 : vector<96x128xf32>
    %cst_140 = arith.constant 0.000000e+00 : f32
    %90 = vector.broadcast %cst_140 : f32 to vector<96x128xf32>
    %91 = arith.maximumf %89, %90 : vector<96x128xf32>
    %92 = arith.truncf %91 : vector<96x128xf32> to vector<96x128xbf16>
    %c0_141 = arith.constant 0 : index
    %c0_142 = arith.constant 0 : index
    %c0_143 = arith.constant 0 : index
    %93 = vector.load %arg4[%c0_141, %c0_142, %c0_143] : memref<1x96x128xbf16, #tpu.memory_space<vmem>>, vector<1x96x128xbf16>
    %94 = vector.shape_cast %93 : vector<1x96x128xbf16> to vector<96x128xbf16>
    %95 = vector.shape_cast %92 : vector<96x128xbf16> to vector<1x96x128xbf16>
    tpu.vector_store %arg4[%c0_141, %c0_142, %c0_143], %95 {strides = array<i32>} : memref<1x96x128xbf16, #tpu.memory_space<vmem>>, vector<1x96x128xbf16>,
    return
  }
  func.func @transform_0(%arg0: i32) -> (i32, i32, i32, i32) {
    %c0_i32 = arith.constant 0 : i32
    %c0_i32_0 = arith.constant 0 : i32
    %c0_i32_1 = arith.constant 0 : i32
    %c0_i32_2 = arith.constant 0 : i32
    return %arg0, %c0_i32, %c0_i32_0, %c0_i32_1 : i32, i32, i32, i32
  }
  func.func @transform_1(%arg0: i32) -> (i32, i32) {
    %c0_i32 = arith.constant 0 : i32
    %c0_i32_0 = arith.constant 0 : i32
    %c0_i32_1 = arith.constant 0 : i32
    return %c0_i32, %c0_i32_0 : i32, i32
  }
  func.func @transform_2(%arg0: i32) -> (i32, i32) {
    %c0_i32 = arith.constant 0 : i32
    %c0_i32_0 = arith.constant 0 : i32
    %c0_i32_1 = arith.constant 0 : i32
    return %c0_i32, %c0_i32_0 : i32, i32
  }
  func.func @transform_3(%arg0: i32) -> (i32, i32, i32) {
    %c0_i32 = arith.constant 0 : i32
    %c0_i32_0 = arith.constant 0 : i32
    %c0_i32_1 = arith.constant 0 : i32
    return %arg0, %c0_i32, %c0_i32_0 : i32, i32, i32
  }
}

module attributes {stable_mosaic.version = 11 : i64} {
  func.func @kernel(%arg0: i32, %arg1: memref<1x12x17x128xbf16, #tpu.memory_space<vmem>>, %arg2: memref<1152x128xbf16, #tpu.memory_space<vmem>>, %arg3: memref<1x128xf32, #tpu.memory_space<vmem>>, %arg4: memref<1x32x128xbf16, #tpu.memory_space<vmem>>) attributes {dimension_semantics = [#tpu.dimension_semantics<parallel>], iteration_bounds = array<i64: 2>, scalar_prefetch = 0 : i64, scratch_operands = 0 : i64, tpu.core_type = #tpu.core_type<tc>, window_params = [{transform_indices = @transform_0, window_bounds = array<i64: 1, 12, 17, 128>}, {pipeline_mode = #tpu.pipeline_mode<synchronous>, transform_indices = @transform_1, window_bounds = array<i64: 1152, 128>}, {pipeline_mode = #tpu.pipeline_mode<synchronous>, transform_indices = @transform_2, window_bounds = array<i64: 1, 128>}, {transform_indices = @transform_3, window_bounds = array<i64: 1, 32, 128>}]} {
    %c0 = arith.constant 0 : index
    %c0_0 = arith.constant 0 : index
    %c0_1 = arith.constant 0 : index
    %c0_2 = arith.constant 0 : index
    %0 = vector.load %arg1[%c0, %c0_0, %c0_1, %c0_2] : memref<1x12x17x128xbf16, #tpu.memory_space<vmem>>, vector<1x2x16x128xbf16>
    %1 = vector.shape_cast %0 : vector<1x2x16x128xbf16> to vector<2x16x128xbf16>
    %c0_3 = arith.constant 0 : index
    %c3 = arith.constant 3 : index
    %c0_4 = arith.constant 0 : index
    %c0_5 = arith.constant 0 : index
    %2 = vector.load %arg1[%c0_3, %c3, %c0_4, %c0_5] : memref<1x12x17x128xbf16, #tpu.memory_space<vmem>>, vector<1x2x16x128xbf16>
    %3 = vector.shape_cast %2 : vector<1x2x16x128xbf16> to vector<2x16x128xbf16>
    %c0_6 = arith.constant 0 : index
    %c0_7 = arith.constant 0 : index
    %c1 = arith.constant 1 : index
    %c0_8 = arith.constant 0 : index
    %4 = vector.load %arg1[%c0_6, %c0_7, %c1, %c0_8] : memref<1x12x17x128xbf16, #tpu.memory_space<vmem>>, vector<1x2x16x128xbf16>
    %5 = vector.shape_cast %4 : vector<1x2x16x128xbf16> to vector<2x16x128xbf16>
    %c0_9 = arith.constant 0 : index
    %c6 = arith.constant 6 : index
    %c0_10 = arith.constant 0 : index
    %c0_11 = arith.constant 0 : index
    %6 = vector.load %arg1[%c0_9, %c6, %c0_10, %c0_11] : memref<1x12x17x128xbf16, #tpu.memory_space<vmem>>, vector<1x2x16x128xbf16>
    %7 = vector.shape_cast %6 : vector<1x2x16x128xbf16> to vector<2x16x128xbf16>
    %c0_12 = arith.constant 0 : index
    %c9 = arith.constant 9 : index
    %c0_13 = arith.constant 0 : index
    %c0_14 = arith.constant 0 : index
    %8 = vector.load %arg1[%c0_12, %c9, %c0_13, %c0_14] : memref<1x12x17x128xbf16, #tpu.memory_space<vmem>>, vector<1x2x16x128xbf16>
    %9 = vector.shape_cast %8 : vector<1x2x16x128xbf16> to vector<2x16x128xbf16>
    %c0_15 = arith.constant 0 : index
    %c6_16 = arith.constant 6 : index
    %c1_17 = arith.constant 1 : index
    %c0_18 = arith.constant 0 : index
    %10 = vector.load %arg1[%c0_15, %c6_16, %c1_17, %c0_18] : memref<1x12x17x128xbf16, #tpu.memory_space<vmem>>, vector<1x2x16x128xbf16>
    %11 = vector.shape_cast %10 : vector<1x2x16x128xbf16> to vector<2x16x128xbf16>
    %c0_19 = arith.constant 0 : index
    %c1_20 = arith.constant 1 : index
    %c0_21 = arith.constant 0 : index
    %c0_22 = arith.constant 0 : index
    %12 = vector.load %arg1[%c0_19, %c1_20, %c0_21, %c0_22] : memref<1x12x17x128xbf16, #tpu.memory_space<vmem>>, vector<1x2x16x128xbf16>
    %13 = vector.shape_cast %12 : vector<1x2x16x128xbf16> to vector<2x16x128xbf16>
    %c0_23 = arith.constant 0 : index
    %c4 = arith.constant 4 : index
    %c0_24 = arith.constant 0 : index
    %c0_25 = arith.constant 0 : index
    %14 = vector.load %arg1[%c0_23, %c4, %c0_24, %c0_25] : memref<1x12x17x128xbf16, #tpu.memory_space<vmem>>, vector<1x2x16x128xbf16>
    %15 = vector.shape_cast %14 : vector<1x2x16x128xbf16> to vector<2x16x128xbf16>
    %c0_26 = arith.constant 0 : index
    %c1_27 = arith.constant 1 : index
    %c1_28 = arith.constant 1 : index
    %c0_29 = arith.constant 0 : index
    %16 = vector.load %arg1[%c0_26, %c1_27, %c1_28, %c0_29] : memref<1x12x17x128xbf16, #tpu.memory_space<vmem>>, vector<1x2x16x128xbf16>
    %17 = vector.shape_cast %16 : vector<1x2x16x128xbf16> to vector<2x16x128xbf16>
    %18 = tpu.concatenate %1, %3, %5, %7, %9, %11, %13, %15, %17 in 2 : vector<2x16x128xbf16>, vector<2x16x128xbf16>, vector<2x16x128xbf16>, vector<2x16x128xbf16>, vector<2x16x128xbf16>, vector<2x16x128xbf16>, vector<2x16x128xbf16>, vector<2x16x128xbf16>, vector<2x16x128xbf16> -> vector<2x16x1152xbf16>
    %c0_30 = arith.constant 0 : index
    %c3_31 = arith.constant 3 : index
    %c0_32 = arith.constant 0 : index
    %c0_33 = arith.constant 0 : index
    %19 = vector.load %arg1[%c0_30, %c3_31, %c0_32, %c0_33] : memref<1x12x17x128xbf16, #tpu.memory_space<vmem>>, vector<1x2x16x128xbf16>
    %20 = vector.shape_cast %19 : vector<1x2x16x128xbf16> to vector<2x16x128xbf16>
    %c0_34 = arith.constant 0 : index
    %c0_35 = arith.constant 0 : index
    %c1_36 = arith.constant 1 : index
    %c0_37 = arith.constant 0 : index
    %21 = vector.load %arg1[%c0_34, %c0_35, %c1_36, %c0_37] : memref<1x12x17x128xbf16, #tpu.memory_space<vmem>>, vector<1x2x16x128xbf16>
    %22 = vector.shape_cast %21 : vector<1x2x16x128xbf16> to vector<2x16x128xbf16>
    %c0_38 = arith.constant 0 : index
    %c3_39 = arith.constant 3 : index
    %c1_40 = arith.constant 1 : index
    %c0_41 = arith.constant 0 : index
    %23 = vector.load %arg1[%c0_38, %c3_39, %c1_40, %c0_41] : memref<1x12x17x128xbf16, #tpu.memory_space<vmem>>, vector<1x2x16x128xbf16>
    %24 = vector.shape_cast %23 : vector<1x2x16x128xbf16> to vector<2x16x128xbf16>
    %c0_42 = arith.constant 0 : index
    %c9_43 = arith.constant 9 : index
    %c0_44 = arith.constant 0 : index
    %c0_45 = arith.constant 0 : index
    %25 = vector.load %arg1[%c0_42, %c9_43, %c0_44, %c0_45] : memref<1x12x17x128xbf16, #tpu.memory_space<vmem>>, vector<1x2x16x128xbf16>
    %26 = vector.shape_cast %25 : vector<1x2x16x128xbf16> to vector<2x16x128xbf16>
    %c0_46 = arith.constant 0 : index
    %c6_47 = arith.constant 6 : index
    %c1_48 = arith.constant 1 : index
    %c0_49 = arith.constant 0 : index
    %27 = vector.load %arg1[%c0_46, %c6_47, %c1_48, %c0_49] : memref<1x12x17x128xbf16, #tpu.memory_space<vmem>>, vector<1x2x16x128xbf16>
    %28 = vector.shape_cast %27 : vector<1x2x16x128xbf16> to vector<2x16x128xbf16>
    %c0_50 = arith.constant 0 : index
    %c9_51 = arith.constant 9 : index
    %c1_52 = arith.constant 1 : index
    %c0_53 = arith.constant 0 : index
    %29 = vector.load %arg1[%c0_50, %c9_51, %c1_52, %c0_53] : memref<1x12x17x128xbf16, #tpu.memory_space<vmem>>, vector<1x2x16x128xbf16>
    %30 = vector.shape_cast %29 : vector<1x2x16x128xbf16> to vector<2x16x128xbf16>
    %c0_54 = arith.constant 0 : index
    %c4_55 = arith.constant 4 : index
    %c0_56 = arith.constant 0 : index
    %c0_57 = arith.constant 0 : index
    %31 = vector.load %arg1[%c0_54, %c4_55, %c0_56, %c0_57] : memref<1x12x17x128xbf16, #tpu.memory_space<vmem>>, vector<1x2x16x128xbf16>
    %32 = vector.shape_cast %31 : vector<1x2x16x128xbf16> to vector<2x16x128xbf16>
    %c0_58 = arith.constant 0 : index
    %c1_59 = arith.constant 1 : index
    %c1_60 = arith.constant 1 : index
    %c0_61 = arith.constant 0 : index
    %33 = vector.load %arg1[%c0_58, %c1_59, %c1_60, %c0_61] : memref<1x12x17x128xbf16, #tpu.memory_space<vmem>>, vector<1x2x16x128xbf16>
    %34 = vector.shape_cast %33 : vector<1x2x16x128xbf16> to vector<2x16x128xbf16>
    %c0_62 = arith.constant 0 : index
    %c4_63 = arith.constant 4 : index
    %c1_64 = arith.constant 1 : index
    %c0_65 = arith.constant 0 : index
    %35 = vector.load %arg1[%c0_62, %c4_63, %c1_64, %c0_65] : memref<1x12x17x128xbf16, #tpu.memory_space<vmem>>, vector<1x2x16x128xbf16>
    %36 = vector.shape_cast %35 : vector<1x2x16x128xbf16> to vector<2x16x128xbf16>
    %37 = tpu.concatenate %20, %22, %24, %26, %28, %30, %32, %34, %36 in 2 : vector<2x16x128xbf16>, vector<2x16x128xbf16>, vector<2x16x128xbf16>, vector<2x16x128xbf16>, vector<2x16x128xbf16>, vector<2x16x128xbf16>, vector<2x16x128xbf16>, vector<2x16x128xbf16>, vector<2x16x128xbf16> -> vector<2x16x1152xbf16>
    %c0_66 = arith.constant 0 : index
    %c6_67 = arith.constant 6 : index
    %c0_68 = arith.constant 0 : index
    %c0_69 = arith.constant 0 : index
    %38 = vector.load %arg1[%c0_66, %c6_67, %c0_68, %c0_69] : memref<1x12x17x128xbf16, #tpu.memory_space<vmem>>, vector<1x2x16x128xbf16>
    %39 = vector.shape_cast %38 : vector<1x2x16x128xbf16> to vector<2x16x128xbf16>
    %c0_70 = arith.constant 0 : index
    %c9_71 = arith.constant 9 : index
    %c0_72 = arith.constant 0 : index
    %c0_73 = arith.constant 0 : index
    %40 = vector.load %arg1[%c0_70, %c9_71, %c0_72, %c0_73] : memref<1x12x17x128xbf16, #tpu.memory_space<vmem>>, vector<1x2x16x128xbf16>
    %41 = vector.shape_cast %40 : vector<1x2x16x128xbf16> to vector<2x16x128xbf16>
    %c0_74 = arith.constant 0 : index
    %c6_75 = arith.constant 6 : index
    %c1_76 = arith.constant 1 : index
    %c0_77 = arith.constant 0 : index
    %42 = vector.load %arg1[%c0_74, %c6_75, %c1_76, %c0_77] : memref<1x12x17x128xbf16, #tpu.memory_space<vmem>>, vector<1x2x16x128xbf16>
    %43 = vector.shape_cast %42 : vector<1x2x16x128xbf16> to vector<2x16x128xbf16>
    %c0_78 = arith.constant 0 : index
    %c1_79 = arith.constant 1 : index
    %c0_80 = arith.constant 0 : index
    %c0_81 = arith.constant 0 : index
    %44 = vector.load %arg1[%c0_78, %c1_79, %c0_80, %c0_81] : memref<1x12x17x128xbf16, #tpu.memory_space<vmem>>, vector<1x2x16x128xbf16>
    %45 = vector.shape_cast %44 : vector<1x2x16x128xbf16> to vector<2x16x128xbf16>
    %c0_82 = arith.constant 0 : index
    %c4_83 = arith.constant 4 : index
    %c0_84 = arith.constant 0 : index
    %c0_85 = arith.constant 0 : index
    %46 = vector.load %arg1[%c0_82, %c4_83, %c0_84, %c0_85] : memref<1x12x17x128xbf16, #tpu.memory_space<vmem>>, vector<1x2x16x128xbf16>
    %47 = vector.shape_cast %46 : vector<1x2x16x128xbf16> to vector<2x16x128xbf16>
    %c0_86 = arith.constant 0 : index
    %c1_87 = arith.constant 1 : index
    %c1_88 = arith.constant 1 : index
    %c0_89 = arith.constant 0 : index
    %48 = vector.load %arg1[%c0_86, %c1_87, %c1_88, %c0_89] : memref<1x12x17x128xbf16, #tpu.memory_space<vmem>>, vector<1x2x16x128xbf16>
    %49 = vector.shape_cast %48 : vector<1x2x16x128xbf16> to vector<2x16x128xbf16>
    %c0_90 = arith.constant 0 : index
    %c7 = arith.constant 7 : index
    %c0_91 = arith.constant 0 : index
    %c0_92 = arith.constant 0 : index
    %50 = vector.load %arg1[%c0_90, %c7, %c0_91, %c0_92] : memref<1x12x17x128xbf16, #tpu.memory_space<vmem>>, vector<1x2x16x128xbf16>
    %51 = vector.shape_cast %50 : vector<1x2x16x128xbf16> to vector<2x16x128xbf16>
    %c0_93 = arith.constant 0 : index
    %c10 = arith.constant 10 : index
    %c0_94 = arith.constant 0 : index
    %c0_95 = arith.constant 0 : index
    %52 = vector.load %arg1[%c0_93, %c10, %c0_94, %c0_95] : memref<1x12x17x128xbf16, #tpu.memory_space<vmem>>, vector<1x2x16x128xbf16>
    %53 = vector.shape_cast %52 : vector<1x2x16x128xbf16> to vector<2x16x128xbf16>
    %c0_96 = arith.constant 0 : index
    %c7_97 = arith.constant 7 : index
    %c1_98 = arith.constant 1 : index
    %c0_99 = arith.constant 0 : index
    %54 = vector.load %arg1[%c0_96, %c7_97, %c1_98, %c0_99] : memref<1x12x17x128xbf16, #tpu.memory_space<vmem>>, vector<1x2x16x128xbf16>
    %55 = vector.shape_cast %54 : vector<1x2x16x128xbf16> to vector<2x16x128xbf16>
    %56 = tpu.concatenate %39, %41, %43, %45, %47, %49, %51, %53, %55 in 2 : vector<2x16x128xbf16>, vector<2x16x128xbf16>, vector<2x16x128xbf16>, vector<2x16x128xbf16>, vector<2x16x128xbf16>, vector<2x16x128xbf16>, vector<2x16x128xbf16>, vector<2x16x128xbf16>, vector<2x16x128xbf16> -> vector<2x16x1152xbf16>
    %c0_100 = arith.constant 0 : index
    %c9_101 = arith.constant 9 : index
    %c0_102 = arith.constant 0 : index
    %c0_103 = arith.constant 0 : index
    %57 = vector.load %arg1[%c0_100, %c9_101, %c0_102, %c0_103] : memref<1x12x17x128xbf16, #tpu.memory_space<vmem>>, vector<1x2x16x128xbf16>
    %58 = vector.shape_cast %57 : vector<1x2x16x128xbf16> to vector<2x16x128xbf16>
    %c0_104 = arith.constant 0 : index
    %c6_105 = arith.constant 6 : index
    %c1_106 = arith.constant 1 : index
    %c0_107 = arith.constant 0 : index
    %59 = vector.load %arg1[%c0_104, %c6_105, %c1_106, %c0_107] : memref<1x12x17x128xbf16, #tpu.memory_space<vmem>>, vector<1x2x16x128xbf16>
    %60 = vector.shape_cast %59 : vector<1x2x16x128xbf16> to vector<2x16x128xbf16>
    %c0_108 = arith.constant 0 : index
    %c9_109 = arith.constant 9 : index
    %c1_110 = arith.constant 1 : index
    %c0_111 = arith.constant 0 : index
    %61 = vector.load %arg1[%c0_108, %c9_109, %c1_110, %c0_111] : memref<1x12x17x128xbf16, #tpu.memory_space<vmem>>, vector<1x2x16x128xbf16>
    %62 = vector.shape_cast %61 : vector<1x2x16x128xbf16> to vector<2x16x128xbf16>
    %c0_112 = arith.constant 0 : index
    %c4_113 = arith.constant 4 : index
    %c0_114 = arith.constant 0 : index
    %c0_115 = arith.constant 0 : index
    %63 = vector.load %arg1[%c0_112, %c4_113, %c0_114, %c0_115] : memref<1x12x17x128xbf16, #tpu.memory_space<vmem>>, vector<1x2x16x128xbf16>
    %64 = vector.shape_cast %63 : vector<1x2x16x128xbf16> to vector<2x16x128xbf16>
    %c0_116 = arith.constant 0 : index
    %c1_117 = arith.constant 1 : index
    %c1_118 = arith.constant 1 : index
    %c0_119 = arith.constant 0 : index
    %65 = vector.load %arg1[%c0_116, %c1_117, %c1_118, %c0_119] : memref<1x12x17x128xbf16, #tpu.memory_space<vmem>>, vector<1x2x16x128xbf16>
    %66 = vector.shape_cast %65 : vector<1x2x16x128xbf16> to vector<2x16x128xbf16>
    %c0_120 = arith.constant 0 : index
    %c4_121 = arith.constant 4 : index
    %c1_122 = arith.constant 1 : index
    %c0_123 = arith.constant 0 : index
    %67 = vector.load %arg1[%c0_120, %c4_121, %c1_122, %c0_123] : memref<1x12x17x128xbf16, #tpu.memory_space<vmem>>, vector<1x2x16x128xbf16>
    %68 = vector.shape_cast %67 : vector<1x2x16x128xbf16> to vector<2x16x128xbf16>
    %c0_124 = arith.constant 0 : index
    %c10_125 = arith.constant 10 : index
    %c0_126 = arith.constant 0 : index
    %c0_127 = arith.constant 0 : index
    %69 = vector.load %arg1[%c0_124, %c10_125, %c0_126, %c0_127] : memref<1x12x17x128xbf16, #tpu.memory_space<vmem>>, vector<1x2x16x128xbf16>
    %70 = vector.shape_cast %69 : vector<1x2x16x128xbf16> to vector<2x16x128xbf16>
    %c0_128 = arith.constant 0 : index
    %c7_129 = arith.constant 7 : index
    %c1_130 = arith.constant 1 : index
    %c0_131 = arith.constant 0 : index
    %71 = vector.load %arg1[%c0_128, %c7_129, %c1_130, %c0_131] : memref<1x12x17x128xbf16, #tpu.memory_space<vmem>>, vector<1x2x16x128xbf16>
    %72 = vector.shape_cast %71 : vector<1x2x16x128xbf16> to vector<2x16x128xbf16>
    %c0_132 = arith.constant 0 : index
    %c10_133 = arith.constant 10 : index
    %c1_134 = arith.constant 1 : index
    %c0_135 = arith.constant 0 : index
    %73 = vector.load %arg1[%c0_132, %c10_133, %c1_134, %c0_135] : memref<1x12x17x128xbf16, #tpu.memory_space<vmem>>, vector<1x2x16x128xbf16>
    %74 = vector.shape_cast %73 : vector<1x2x16x128xbf16> to vector<2x16x128xbf16>
    %75 = tpu.concatenate %58, %60, %62, %64, %66, %68, %70, %72, %74 in 2 : vector<2x16x128xbf16>, vector<2x16x128xbf16>, vector<2x16x128xbf16>, vector<2x16x128xbf16>, vector<2x16x128xbf16>, vector<2x16x128xbf16>, vector<2x16x128xbf16>, vector<2x16x128xbf16>, vector<2x16x128xbf16> -> vector<2x16x1152xbf16>
    %76 = tpu.concatenate %18, %37, %56, %75 in 0 : vector<2x16x1152xbf16>, vector<2x16x1152xbf16>, vector<2x16x1152xbf16>, vector<2x16x1152xbf16> -> vector<8x16x1152xbf16>
    %77 = vector.shape_cast %76 : vector<8x16x1152xbf16> to vector<128x1152xbf16>
    %c0_136 = arith.constant 0 : index
    %c0_137 = arith.constant 0 : index
    %78 = vector.load %arg2[%c0_136, %c0_137] : memref<1152x128xbf16, #tpu.memory_space<vmem>>, vector<1152x128xbf16>
    %cst = arith.constant dense<0.000000e+00> : vector<128x128xf32>
    %79 = tpu.matmul %77, %78, %cst {dimension_numbers = #tpu.dot_dimension_numbers<[1], [0], [0], [1], [0, 0, 1, 1], [], []>} : vector<128x1152xbf16>, vector<1152x128xbf16>, vector<128x128xf32> -> vector<128x128xf32>
    %80 = vector.extract_strided_slice %79 {offsets = [0, 0], sizes = [32, 128], strides = [1, 1]} : vector<128x128xf32> to vector<32x128xf32>
    %81 = vector.extract_strided_slice %79 {offsets = [32, 0], sizes = [32, 128], strides = [1, 1]} : vector<128x128xf32> to vector<32x128xf32>
    %82 = arith.maximumf %80, %81 : vector<32x128xf32>
    %83 = vector.extract_strided_slice %79 {offsets = [64, 0], sizes = [32, 128], strides = [1, 1]} : vector<128x128xf32> to vector<32x128xf32>
    %84 = vector.extract_strided_slice %79 {offsets = [96, 0], sizes = [32, 128], strides = [1, 1]} : vector<128x128xf32> to vector<32x128xf32>
    %85 = arith.maximumf %83, %84 : vector<32x128xf32>
    %86 = arith.maximumf %82, %85 : vector<32x128xf32>
    %c0_138 = arith.constant 0 : index
    %c0_139 = arith.constant 0 : index
    %87 = vector.load %arg3[%c0_138, %c0_139] : memref<1x128xf32, #tpu.memory_space<vmem>>, vector<1x128xf32>
    %88 = vector.broadcast %87 : vector<1x128xf32> to vector<32x128xf32>
    %89 = arith.addf %86, %88 : vector<32x128xf32>
    %cst_140 = arith.constant 0.000000e+00 : f32
    %90 = vector.broadcast %cst_140 : f32 to vector<32x128xf32>
    %91 = arith.maximumf %89, %90 : vector<32x128xf32>
    %92 = arith.truncf %91 : vector<32x128xf32> to vector<32x128xbf16>
    %c0_141 = arith.constant 0 : index
    %c0_142 = arith.constant 0 : index
    %c0_143 = arith.constant 0 : index
    %93 = vector.load %arg4[%c0_141, %c0_142, %c0_143] : memref<1x32x128xbf16, #tpu.memory_space<vmem>>, vector<1x32x128xbf16>
    %94 = vector.shape_cast %93 : vector<1x32x128xbf16> to vector<32x128xbf16>
    %95 = vector.shape_cast %92 : vector<32x128xbf16> to vector<1x32x128xbf16>
    tpu.vector_store %arg4[%c0_141, %c0_142, %c0_143], %95 {strides = array<i32>} : memref<1x32x128xbf16, #tpu.memory_space<vmem>>, vector<1x32x128xbf16>,
    return
  }
  func.func @transform_0(%arg0: i32) -> (i32, i32, i32, i32) {
    %c0_i32 = arith.constant 0 : i32
    %c0_i32_0 = arith.constant 0 : i32
    %c0_i32_1 = arith.constant 0 : i32
    %c0_i32_2 = arith.constant 0 : i32
    return %arg0, %c0_i32, %c0_i32_0, %c0_i32_1 : i32, i32, i32, i32
  }
  func.func @transform_1(%arg0: i32) -> (i32, i32) {
    %c0_i32 = arith.constant 0 : i32
    %c0_i32_0 = arith.constant 0 : i32
    %c0_i32_1 = arith.constant 0 : i32
    return %c0_i32, %c0_i32_0 : i32, i32
  }
  func.func @transform_2(%arg0: i32) -> (i32, i32) {
    %c0_i32 = arith.constant 0 : i32
    %c0_i32_0 = arith.constant 0 : i32
    %c0_i32_1 = arith.constant 0 : i32
    return %c0_i32, %c0_i32_0 : i32, i32
  }
  func.func @transform_3(%arg0: i32) -> (i32, i32, i32) {
    %c0_i32 = arith.constant 0 : i32
    %c0_i32_0 = arith.constant 0 : i32
    %c0_i32_1 = arith.constant 0 : i32
    return %arg0, %c0_i32, %c0_i32_0 : i32, i32, i32
  }
}

module attributes {stable_mosaic.version = 11 : i64} {
  func.func @mlp_kernel(%arg0: memref<2x512xbf16, #tpu.memory_space<vmem>>, %arg1: memref<512x128xbf16, #tpu.memory_space<vmem>>, %arg2: memref<1x128xf32, #tpu.memory_space<vmem>>, %arg3: memref<128x128xbf16, #tpu.memory_space<vmem>>, %arg4: memref<1x128xf32, #tpu.memory_space<vmem>>, %arg5: memref<2x128xf32, #tpu.memory_space<vmem>>) attributes {dimension_semantics = [], scalar_prefetch = 0 : i64, scratch_operands = 0 : i64, tpu.core_type = #tpu.core_type<tc>} {
    %c0 = arith.constant 0 : index
    %c0_0 = arith.constant 0 : index
    %0 = vector.load %arg0[%c0, %c0_0] : memref<2x512xbf16, #tpu.memory_space<vmem>>, vector<2x512xbf16>
    %c0_1 = arith.constant 0 : index
    %c0_2 = arith.constant 0 : index
    %1 = vector.load %arg1[%c0_1, %c0_2] : memref<512x128xbf16, #tpu.memory_space<vmem>>, vector<512x128xbf16>
    %cst = arith.constant dense<0.000000e+00> : vector<2x128xf32>
    %2 = tpu.matmul %0, %1, %cst {dimension_numbers = #tpu.dot_dimension_numbers<[1], [0], [0], [1], [0, 0, 1, 1], [], []>} : vector<2x512xbf16>, vector<512x128xbf16>, vector<2x128xf32> -> vector<2x128xf32>
    %c0_3 = arith.constant 0 : index
    %c0_4 = arith.constant 0 : index
    %3 = vector.load %arg2[%c0_3, %c0_4] : memref<1x128xf32, #tpu.memory_space<vmem>>, vector<1x128xf32>
    %4 = vector.broadcast %3 : vector<1x128xf32> to vector<2x128xf32>
    %5 = arith.addf %2, %4 : vector<2x128xf32>
    %cst_5 = arith.constant 0.000000e+00 : f32
    %6 = vector.broadcast %cst_5 : f32 to vector<2x128xf32>
    %7 = arith.maximumf %5, %6 : vector<2x128xf32>
    %8 = arith.truncf %7 : vector<2x128xf32> to vector<2x128xbf16>
    %c0_6 = arith.constant 0 : index
    %c0_7 = arith.constant 0 : index
    %9 = vector.load %arg3[%c0_6, %c0_7] : memref<128x128xbf16, #tpu.memory_space<vmem>>, vector<128x128xbf16>
    %cst_8 = arith.constant dense<0.000000e+00> : vector<2x128xf32>
    %10 = tpu.matmul %8, %9, %cst_8 {dimension_numbers = #tpu.dot_dimension_numbers<[1], [0], [0], [1], [0, 0, 1, 1], [], []>} : vector<2x128xbf16>, vector<128x128xbf16>, vector<2x128xf32> -> vector<2x128xf32>
    %c0_9 = arith.constant 0 : index
    %c0_10 = arith.constant 0 : index
    %11 = vector.load %arg4[%c0_9, %c0_10] : memref<1x128xf32, #tpu.memory_space<vmem>>, vector<1x128xf32>
    %12 = vector.broadcast %11 : vector<1x128xf32> to vector<2x128xf32>
    %13 = arith.addf %10, %12 : vector<2x128xf32>
    %c0_11 = arith.constant 0 : index
    %c0_12 = arith.constant 0 : index
    %14 = vector.load %arg5[%c0_11, %c0_12] : memref<2x128xf32, #tpu.memory_space<vmem>>, vector<2x128xf32>
    tpu.vector_store %arg5[%c0_11, %c0_12], %13 {strides = array<i32>} : memref<2x128xf32, #tpu.memory_space<vmem>>, vector<2x128xf32>,
    return
  }
}

</mosaic_0001>

<llo_original>
// kernel: _lambda_.4
$region0: #{_lambda_.4}
  #allocation0 [shape = 'u32[]', space=smem, size = 0x4, offset = 0x4, fixed_abs, tag = 'smem constant byte address 0x4 - core index']
  #allocation1 [shape = 'u32[144,128]{1,0:T(1,128)}', space=vmem, size = 0x12000, scoped, tag = 'internal scratch']
  %s0 = inlined_call_operand.vmem [shape: bf16[2,60,16,9], index: 0, kind: input, shape index: {}]
  %s1 = inlined_call_operand.vmem [shape: bf16[9,128], index: 1, kind: input, shape index: {}]
  %s2 = inlined_call_operand.vmem [shape: f32[1,128], index: 2, kind: input, shape index: {}]
  %s3 = inlined_call_operand.vmem [shape: bf16[2,240,128], index: 3, kind: output, shape index: {}]
  %s4 = sld [smem:[#allocation0]]
  $region45: #{_lambda_.4} parent=0
    _
  %s6 = ssub.s32 1, %s4
  %s7 = scalar_select 0, %s6, %s4
  loop: start=0, step=1, limit=4
  $region2: #{_lambda_.4} parent=0 // loop_pre_header
    _
  $region3: #{_lambda_.4} parent=0 // loop_header
    %s9 = sphi 0, %s13
    %p10 = scmp.ge.s32.totalorder %s9, 4
    %s19 = sphi 0, %s21
    %s22 = sphi 0, %s19
    %s23 = sphi 0, %s22
    %s39 = sphi 0, %s23
    %s43 = sphi 0, %s43
    %s45 = sphi 0, %s43
    %s46 = sphi 0, %s45
    %s60 = sphi 0, %s46
    %s64 = sphi 0, %s64
    %s66 = sphi 0, %s64
    %s67 = sphi 0, %s66
    %s81 = sphi 0, %s67
    %s87 = sphi 0, %s89
    %s90 = sphi 0, %s87
    %s91 = sphi 0, %s90
    %s107 = sphi 0, %s91
  $region4: #{_lambda_.4} parent=0 // loop_header_branch
    %12 = sbr.rel (%p10) target = $region8
  $region5: #{_lambda_.4} parent=0 // loop_body
    %s14 = ssub.s32 %s9, 1
    %s15 = ssub.s32 %s9, 2
    %s16 = sadd.s32 %s9, 1
    %s17 = ssub.s32 %s9, %s16
    %p18 = scmp.eq.s32.totalorder %s17, 0
    %s20 = sadd.s32 %s19, 1
    %s21 = scalar_select %p18, %s19, %s20
    %p24 = pneg %p18
    %p25 = scmp.eq.s32.totalorder %s9, 1
    %p26 = por %p24, %p25
    %p27 = scmp.ne.s32.totalorder %s19, %s22
    %p28 = scmp.eq.s32.totalorder %s9, 0
    %p29 = por %p27, %p28
    %p30 = scmp.ne.s32.totalorder %s19, %s22
    %p31 = scmp.eq.s32.totalorder %s14, 1
    %p32 = por %p30, %p31
    %p33 = scmp.ne.s32.totalorder %s22, %s23
    %p34 = scmp.eq.s32.totalorder %s14, 0
    %p35 = por %p33, %p34
    %p36 = scmp.ne.s32.totalorder %s22, %s23
    %p37 = scmp.eq.s32.totalorder %s15, 1
    %p38 = por %p36, %p37
    %p40 = scmp.ne.s32.totalorder %s23, %s39
    %p41 = scmp.eq.s32.totalorder %s15, 0
    %p42 = por %p40, %p41
    %s44 = sadd.s32 %s43, 1
    %p47 = scmp.eq.s32.totalorder %s9, 1
    %p48 = scmp.ne.s32.totalorder %s43, %s45
    %p49 = scmp.eq.s32.totalorder %s9, 0
    %p50 = por %p48, %p49
    %p51 = scmp.ne.s32.totalorder %s43, %s45
    %p52 = scmp.eq.s32.totalorder %s14, 1
    %p53 = por %p51, %p52
    %p54 = scmp.ne.s32.totalorder %s45, %s46
    %p55 = scmp.eq.s32.totalorder %s14, 0
    %p56 = por %p54, %p55
    %p57 = scmp.ne.s32.totalorder %s45, %s46
    %p58 = scmp.eq.s32.totalorder %s15, 1
    %p59 = por %p57, %p58
    %p61 = scmp.ne.s32.totalorder %s46, %s60
    %p62 = scmp.eq.s32.totalorder %s15, 0
    %p63 = por %p61, %p62
    %s65 = sadd.s32 %s64, 1
    %p68 = scmp.eq.s32.totalorder %s9, 1
    %p69 = scmp.ne.s32.totalorder %s64, %s66
    %p70 = scmp.eq.s32.totalorder %s9, 0
    %p71 = por %p69, %p70
    %p72 = scmp.ne.s32.totalorder %s64, %s66
    %p73 = scmp.eq.s32.totalorder %s14, 1
    %p74 = por %p72, %p73
    %p75 = scmp.ne.s32.totalorder %s66, %s67
    %p76 = scmp.eq.s32.totalorder %s14, 0
    %p77 = por %p75, %p76
    %p78 = scmp.ne.s32.totalorder %s66, %s67
    %p79 = scmp.eq.s32.totalorder %s15, 1
    %p80 = por %p78, %p79
    %p82 = scmp.ne.s32.totalorder %s67, %s81
    %p83 = scmp.eq.s32.totalorder %s15, 0
    %p84 = por %p82, %p83
    %s85 = ssub.s32 %s9, %s16
    %p86 = scmp.eq.s32.totalorder %s85, 0
    %s88 = sadd.s32 %s87, 1
    %s89 = scalar_select %p86, %s87, %s88
    %p92 = pneg %p86
    %p93 = scmp.eq.s32.totalorder %s9, 1
    %p94 = por %p92, %p93
    %p95 = scmp.ne.s32.totalorder %s87, %s90
    %p96 = scmp.eq.s32.totalorder %s9, 0
    %p97 = por %p95, %p96
    %p98 = scmp.ne.s32.totalorder %s87, %s90
    %p99 = scmp.eq.s32.totalorder %s14, 1
    %p100 = por %p98, %p99
    %p101 = scmp.ne.s32.totalorder %s90, %s91
    %p102 = scmp.eq.s32.totalorder %s14, 0
    %p103 = por %p101, %p102
    %p104 = scmp.ne.s32.totalorder %s90, %s91
    %p105 = scmp.eq.s32.totalorder %s15, 1
    %p106 = por %p104, %p105
    %p108 = scmp.ne.s32.totalorder %s91, %s107
    %p109 = scmp.eq.s32.totalorder %s15, 0
    %p110 = por %p108, %p109
    %p111 = scmp.le.s32.totalorder 1, %s9
    %p112 = scmp.lt.s32.totalorder %s9, 3
    %p113 = pnand %p111, %p112
    %p114 = pneg %p113
    // Predicated region
    $region9: #{_lambda_.4} parent=5 // pred_check
      _
    $region10: #{_lambda_.4} parent=5 // pred_check_branch
      %116 = sbr.rel (%p113) target = $region12
    $region11: #{_lambda_.4} parent=5 // pred_region
      %s117 = ssub.s32 %s9, 1
      // Predicated region
      $region13: #{_lambda_.4} parent=11 // pred_check
        %p118 = pneg %p56
      $region14: #{_lambda_.4} parent=11 // pred_check_branch
        %120 = sbr.rel (%p118) target = $region16
      $region15: #{_lambda_.4} parent=11 // pred_region
        _
      $region16: #{_lambda_.4} parent=11 // pred_fallthru
        _
      // Predicated region
      $region17: #{_lambda_.4} parent=11 // pred_check
        %p121 = pneg %p77
      $region18: #{_lambda_.4} parent=11 // pred_check_branch
        %123 = sbr.rel (%p121) target = $region20
      $region19: #{_lambda_.4} parent=11 // pred_region
        _
      $region20: #{_lambda_.4} parent=11 // pred_fallthru
        _
    $region12: #{_lambda_.4} parent=5 // pred_fallthru
      _
    %p124 = scmp.lt.s32.totalorder %s9, 2
    // Predicated region
    $region21: #{_lambda_.4} parent=5 // pred_check
      %p125 = pneg %p124
    $region22: #{_lambda_.4} parent=5 // pred_check_branch
      %127 = sbr.rel (%p125) target = $region24
    $region23: #{_lambda_.4} parent=5 // pred_region
      // Predicated region
      $region25: #{_lambda_.4} parent=23 // pred_check
        %p128 = pneg %p29
      $region26: #{_lambda_.4} parent=23 // pred_check_branch
        %130 = sbr.rel (%p128) target = $region28
      $region27: #{_lambda_.4} parent=23 // pred_region
        %p131 = scmp.lt.s32.totalorder %s9, 1
        %s132 = scalar_select %p131, %s9, 1
        %s133 = smul.addr %s132, 120
        %s134 = smul.addr %s133, 4
        %s135 = scalar_lea.vmem %s0, %s134
      $region28: #{_lambda_.4} parent=23 // pred_fallthru
        _
    $region24: #{_lambda_.4} parent=5 // pred_fallthru
      _
    %p136 = scmp.le.s32.totalorder 1, %s9
    %p137 = scmp.lt.s32.totalorder %s9, 3
    %p138 = pnand %p136, %p137
    %p139 = pneg %p138
    // Predicated region
    $region29: #{_lambda_.4} parent=5 // pred_check
      _
    $region30: #{_lambda_.4} parent=5 // pred_check_branch
      %141 = sbr.rel (%p138) target = $region32
    $region31: #{_lambda_.4} parent=5 // pred_region
      %s142 = ssub.s32 %s9, 1
      %p143 = scmp.lt.s32.totalorder %s14, 1
      %s144 = scalar_select %p143, %s14, 1
      %s145 = smul.addr %s144, 120
      %s146 = smul.addr %s145, 4
      %s147 = scalar_lea.vmem %s0, %s146
      %p148 = pneg %p35
      %p149 = pneg %p32
      %p150 = pneg %p56
      %p151 = pneg %p53
      %p152 = pneg %p77
      %p153 = pneg %p74
      %p154 = pneg %p103
      %p155 = pneg %p100
      %p156 = scmp.lt.s32.totalorder %s14, 1
      %s157 = scalar_select %p156, %s14, 1
      %s158 = smul.addr %s157, 30
      %s159 = smul.addr %s158, 4
      %s160 = scalar_lea.vmem %s3, %s159
      %p161 = scmp.lt.s32.totalorder %s14, 1
      %s162 = scalar_select %p161, %s14, 1
      %s163 = smul.addr %s162, 120
      %s164 = smul.addr %s163, 4
      %s165 = scalar_lea.vmem %s0, %s164
      %p166 = scmp.lt.s32.totalorder %s14, 1
      %s167 = scalar_select %p166, %s14, 1
      %s168 = smul.addr %s167, 30
      %s169 = smul.addr %s168, 4
      %s170 = scalar_lea.vmem %s3, %s169
      %v172 = vld [vmem:[%s165] sm:$0xf]
      %v173 = vld [vmem:[%s165 + $0x4] sm:$0xf]
      %v174 = vld [vmem:[%s165 + $0x8] sm:$0xf]
      %v175 = vld [vmem:[%s165 + $0xc] sm:$0xf]
      %v176 = vld [vmem:[%s165 + $0x10] sm:$0xf]
      %v177 = vld [vmem:[%s165 + $0x14] sm:$0xf]
      %v178 = vld [vmem:[%s165 + $0x18] sm:$0xf]
      %v179 = vld [vmem:[%s165 + $0x1c] sm:$0xf]
      %v180 = vld [vmem:[%s165 + $0x20] sm:$0xf]
      %v181 = vld [vmem:[%s165 + $0x24] sm:$0xf]
      %v182 = vld [vmem:[%s165 + $0x28] sm:$0xf]
      %v183 = vld [vmem:[%s165 + $0x2c] sm:$0xf]
      %v184 = vld [vmem:[%s165 + $0x30] sm:$0xf]
      %v185 = vld [vmem:[%s165 + $0x34] sm:$0xf]
      %v186 = vld [vmem:[%s165 + $0x38] sm:$0xf]
      %v187 = vld [vmem:[%s165 + $0x3c] sm:$0xf]
      %v188 = vld [vmem:[%s165 + $0x40] sm:$0xf]
      %v189 = vld [vmem:[%s165 + $0x44] sm:$0xf]
      %v190 = vld [vmem:[%s165 + $0x48] sm:$0xf]
      %v191 = vld [vmem:[%s165 + $0x4c] sm:$0xf]
      %v192 = vld [vmem:[%s165 + $0x50] sm:$0xf]
      %v193 = vld [vmem:[%s165 + $0x54] sm:$0xf]
      %v194 = vld [vmem:[%s165 + $0x58] sm:$0xf]
      %v195 = vld [vmem:[%s165 + $0x5c] sm:$0xf]
      %v196 = vld [vmem:[%s165 + $0x60] sm:$0xf]
      %v197 = vld [vmem:[%s165 + $0x64] sm:$0xf]
      %v198 = vld [vmem:[%s165 + $0x68] sm:$0xf]
      %v199 = vld [vmem:[%s165 + $0x6c] sm:$0xf]
      %v200 = vld [vmem:[%s165 + $0x70] sm:$0xf]
      %v201 = vld [vmem:[%s165 + $0x74] sm:$0xf]
      %s202 = scalar_lea.vmem %s165, 120
      %v203 = vld [vmem:[%s202] sm:$0xf]
      %v204 = vld [vmem:[%s202 + $0x4] sm:$0xf]
      %v205 = vld [vmem:[%s202 + $0x8] sm:$0xf]
      %v206 = vld [vmem:[%s202 + $0xc] sm:$0xf]
      %v207 = vld [vmem:[%s202 + $0x10] sm:$0xf]
      %v208 = vld [vmem:[%s202 + $0x14] sm:$0xf]
      %v209 = vld [vmem:[%s202 + $0x18] sm:$0xf]
      %v210 = vld [vmem:[%s202 + $0x1c] sm:$0xf]
      %v211 = vld [vmem:[%s202 + $0x20] sm:$0xf]
      %v212 = vld [vmem:[%s202 + $0x24] sm:$0xf]
      %v213 = vld [vmem:[%s202 + $0x28] sm:$0xf]
      %v214 = vld [vmem:[%s202 + $0x2c] sm:$0xf]
      %v215 = vld [vmem:[%s202 + $0x30] sm:$0xf]
      %v216 = vld [vmem:[%s202 + $0x34] sm:$0xf]
      %v217 = vld [vmem:[%s202 + $0x38] sm:$0xf]
      %v218 = vld [vmem:[%s202 + $0x3c] sm:$0xf]
      %v219 = vld [vmem:[%s202 + $0x40] sm:$0xf]
      %v220 = vld [vmem:[%s202 + $0x44] sm:$0xf]
      %v221 = vld [vmem:[%s202 + $0x48] sm:$0xf]
      %v222 = vld [vmem:[%s202 + $0x4c] sm:$0xf]
      %v223 = vld [vmem:[%s202 + $0x50] sm:$0xf]
      %v224 = vld [vmem:[%s202 + $0x54] sm:$0xf]
      %v225 = vld [vmem:[%s202 + $0x58] sm:$0xf]
      %v226 = vld [vmem:[%s202 + $0x5c] sm:$0xf]
      %v227 = vld [vmem:[%s202 + $0x60] sm:$0xf]
      %v228 = vld [vmem:[%s202 + $0x64] sm:$0xf]
      %v229 = vld [vmem:[%s202 + $0x68] sm:$0xf]
      %v230 = vld [vmem:[%s202 + $0x6c] sm:$0xf]
      %v231 = vld [vmem:[%s202 + $0x70] sm:$0xf]
      %v232 = vld [vmem:[%s202 + $0x74] sm:$0xf]
      %s233 = scalar_lea.vmem %s165, 240
      %v234 = vld [vmem:[%s233] sm:$0xf]
      %v235 = vld [vmem:[%s233 + $0x4] sm:$0xf]
      %v236 = vld [vmem:[%s233 + $0x8] sm:$0xf]
      %v237 = vld [vmem:[%s233 + $0xc] sm:$0xf]
      %v238 = vld [vmem:[%s233 + $0x10] sm:$0xf]
      %v239 = vld [vmem:[%s233 + $0x14] sm:$0xf]
      %v240 = vld [vmem:[%s233 + $0x18] sm:$0xf]
      %v241 = vld [vmem:[%s233 + $0x1c] sm:$0xf]
      %v242 = vld [vmem:[%s233 + $0x20] sm:$0xf]
      %v243 = vld [vmem:[%s233 + $0x24] sm:$0xf]
      %v244 = vld [vmem:[%s233 + $0x28] sm:$0xf]
      %v245 = vld [vmem:[%s233 + $0x2c] sm:$0xf]
      %v246 = vld [vmem:[%s233 + $0x30] sm:$0xf]
      %v247 = vld [vmem:[%s233 + $0x34] sm:$0xf]
      %v248 = vld [vmem:[%s233 + $0x38] sm:$0xf]
      %v249 = vld [vmem:[%s233 + $0x3c] sm:$0xf]
      %v250 = vld [vmem:[%s233 + $0x40] sm:$0xf]
      %v251 = vld [vmem:[%s233 + $0x44] sm:$0xf]
      %v252 = vld [vmem:[%s233 + $0x48] sm:$0xf]
      %v253 = vld [vmem:[%s233 + $0x4c] sm:$0xf]
      %v254 = vld [vmem:[%s233 + $0x50] sm:$0xf]
      %v255 = vld [vmem:[%s233 + $0x54] sm:$0xf]
      %v256 = vld [vmem:[%s233 + $0x58] sm:$0xf]
      %v257 = vld [vmem:[%s233 + $0x5c] sm:$0xf]
      %v258 = vld [vmem:[%s233 + $0x60] sm:$0xf]
      %v259 = vld [vmem:[%s233 + $0x64] sm:$0xf]
      %v260 = vld [vmem:[%s233 + $0x68] sm:$0xf]
      %v261 = vld [vmem:[%s233 + $0x6c] sm:$0xf]
      %v262 = vld [vmem:[%s233 + $0x70] sm:$0xf]
      %v263 = vld [vmem:[%s233 + $0x74] sm:$0xf]
      %s264 = scalar_lea.vmem %s165, 360
      %v265 = vld [vmem:[%s264] sm:$0xf]
      %v266 = vld [vmem:[%s264 + $0x4] sm:$0xf]
      %v267 = vld [vmem:[%s264 + $0x8] sm:$0xf]
      %v268 = vld [vmem:[%s264 + $0xc] sm:$0xf]
      %v269 = vld [vmem:[%s264 + $0x10] sm:$0xf]
      %v270 = vld [vmem:[%s264 + $0x14] sm:$0xf]
      %v271 = vld [vmem:[%s264 + $0x18] sm:$0xf]
      %v272 = vld [vmem:[%s264 + $0x1c] sm:$0xf]
      %v273 = vld [vmem:[%s264 + $0x20] sm:$0xf]
      %v274 = vld [vmem:[%s264 + $0x24] sm:$0xf]
      %v275 = vld [vmem:[%s264 + $0x28] sm:$0xf]
      %v276 = vld [vmem:[%s264 + $0x2c] sm:$0xf]
      %v277 = vld [vmem:[%s264 + $0x30] sm:$0xf]
      %v278 = vld [vmem:[%s264 + $0x34] sm:$0xf]
      %v279 = vld [vmem:[%s264 + $0x38] sm:$0xf]
      %v280 = vld [vmem:[%s264 + $0x3c] sm:$0xf]
      %v281 = vld [vmem:[%s264 + $0x40] sm:$0xf]
      %v282 = vld [vmem:[%s264 + $0x44] sm:$0xf]
      %v283 = vld [vmem:[%s264 + $0x48] sm:$0xf]
      %v284 = vld [vmem:[%s264 + $0x4c] sm:$0xf]
      %v285 = vld [vmem:[%s264 + $0x50] sm:$0xf]
      %v286 = vld [vmem:[%s264 + $0x54] sm:$0xf]
      %v287 = vld [vmem:[%s264 + $0x58] sm:$0xf]
      %v288 = vld [vmem:[%s264 + $0x5c] sm:$0xf]
      %v289 = vld [vmem:[%s264 + $0x60] sm:$0xf]
      %v290 = vld [vmem:[%s264 + $0x64] sm:$0xf]
      %v291 = vld [vmem:[%s264 + $0x68] sm:$0xf]
      %v292 = vld [vmem:[%s264 + $0x6c] sm:$0xf]
      %v293 = vld [vmem:[%s264 + $0x70] sm:$0xf]
      %v294 = vld [vmem:[%s264 + $0x74] sm:$0xf]
      %v295 = vld [vmem:[%s1] sm:$0xf]
      %v296 = vld [vmem:[%s1 + $0x4] sm:$0x1]
      %v417 = vunpack.c.l.b16 %v172
      %v418 = vunpack.c.l.b16 %v173
      %v419 = vunpack.c.l.b16 %v174
      %v420 = vunpack.c.l.b16 %v175
      %v421 = vunpack.c.l.b16 %v176
      %v422 = vunpack.c.l.b16 %v177
      %v423 = vunpack.c.l.b16 %v178
      %v424 = vunpack.c.l.b16 %v179
      %v425 = vunpack.c.l.b16 %v180
      %v426 = vunpack.c.l.b16 %v181
      %v427 = vunpack.c.l.b16 %v182
      %v428 = vunpack.c.l.b16 %v183
      %v429 = vunpack.c.l.b16 %v184
      %v430 = vunpack.c.l.b16 %v185
      %v431 = vunpack.c.l.b16 %v186
      %v432 = vunpack.c.l.b16 %v187
      %v433 = vunpack.c.l.b16 %v188
      %v434 = vunpack.c.l.b16 %v189
      %v435 = vunpack.c.l.b16 %v190
      %v436 = vunpack.c.l.b16 %v191
      %v437 = vunpack.c.l.b16 %v192
      %v438 = vunpack.c.l.b16 %v193
      %v439 = vunpack.c.l.b16 %v194
      %v440 = vunpack.c.l.b16 %v195
      %v441 = vunpack.c.l.b16 %v196
      %v442 = vunpack.c.l.b16 %v197
      %v443 = vunpack.c.l.b16 %v198
      %v444 = vunpack.c.l.b16 %v199
      %v445 = vunpack.c.l.b16 %v200
      %v446 = vunpack.c.l.b16 %v201
      %v447 = vunpack.c.l.b16 %v203
      %v448 = vunpack.c.l.b16 %v204
      %v449 = vunpack.c.l.b16 %v205
      %v450 = vunpack.c.l.b16 %v206
      %v451 = vunpack.c.l.b16 %v207
      %v452 = vunpack.c.l.b16 %v208
      %v453 = vunpack.c.l.b16 %v209
      %v454 = vunpack.c.l.b16 %v210
      %v455 = vunpack.c.l.b16 %v211
      %v456 = vunpack.c.l.b16 %v212
      %v457 = vunpack.c.l.b16 %v213
      %v458 = vunpack.c.l.b16 %v214
      %v459 = vunpack.c.l.b16 %v215
      %v460 = vunpack.c.l.b16 %v216
      %v461 = vunpack.c.l.b16 %v217
      %v462 = vunpack.c.l.b16 %v218
      %v463 = vunpack.c.l.b16 %v219
      %v464 = vunpack.c.l.b16 %v220
      %v465 = vunpack.c.l.b16 %v221
      %v466 = vunpack.c.l.b16 %v222
      %v467 = vunpack.c.l.b16 %v223
      %v468 = vunpack.c.l.b16 %v224
      %v469 = vunpack.c.l.b16 %v225
      %v470 = vunpack.c.l.b16 %v226
      %v471 = vunpack.c.l.b16 %v227
      %v472 = vunpack.c.l.b16 %v228
      %v473 = vunpack.c.l.b16 %v229
      %v474 = vunpack.c.l.b16 %v230
      %v475 = vunpack.c.l.b16 %v231
      %v476 = vunpack.c.l.b16 %v232
      %v477 = vunpack.c.l.b16 %v234
      %v478 = vunpack.c.l.b16 %v235
      %v479 = vunpack.c.l.b16 %v236
      %v480 = vunpack.c.l.b16 %v237
      %v481 = vunpack.c.l.b16 %v238
      %v482 = vunpack.c.l.b16 %v239
      %v483 = vunpack.c.l.b16 %v240
      %v484 = vunpack.c.l.b16 %v241
      %v485 = vunpack.c.l.b16 %v242
      %v486 = vunpack.c.l.b16 %v243
      %v487 = vunpack.c.l.b16 %v244
      %v488 = vunpack.c.l.b16 %v245
      %v489 = vunpack.c.l.b16 %v246
      %v490 = vunpack.c.l.b16 %v247
      %v491 = vunpack.c.l.b16 %v248
      %v492 = vunpack.c.l.b16 %v249
      %v493 = vunpack.c.l.b16 %v250
      %v494 = vunpack.c.l.b16 %v251
      %v495 = vunpack.c.l.b16 %v252
      %v496 = vunpack.c.l.b16 %v253
      %v497 = vunpack.c.l.b16 %v254
      %v498 = vunpack.c.l.b16 %v255
      %v499 = vunpack.c.l.b16 %v256
      %v500 = vunpack.c.l.b16 %v257
      %v501 = vunpack.c.l.b16 %v258
      %v502 = vunpack.c.l.b16 %v259
      %v503 = vunpack.c.l.b16 %v260
      %v504 = vunpack.c.l.b16 %v261
      %v505 = vunpack.c.l.b16 %v262
      %v506 = vunpack.c.l.b16 %v263
      %v507 = vunpack.c.l.b16 %v265
      %v508 = vunpack.c.l.b16 %v266
      %v509 = vunpack.c.l.b16 %v267
      %v510 = vunpack.c.l.b16 %v268
      %v511 = vunpack.c.l.b16 %v269
      %v512 = vunpack.c.l.b16 %v270
      %v513 = vunpack.c.l.b16 %v271
      %v514 = vunpack.c.l.b16 %v272
      %v515 = vunpack.c.l.b16 %v273
      %v516 = vunpack.c.l.b16 %v274
      %v517 = vunpack.c.l.b16 %v275
      %v518 = vunpack.c.l.b16 %v276
      %v519 = vunpack.c.l.b16 %v277
      %v520 = vunpack.c.l.b16 %v278
      %v521 = vunpack.c.l.b16 %v279
      %v522 = vunpack.c.l.b16 %v280
      %v523 = vunpack.c.l.b16 %v281
      %v524 = vunpack.c.l.b16 %v282
      %v525 = vunpack.c.l.b16 %v283
      %v526 = vunpack.c.l.b16 %v284
      %v527 = vunpack.c.l.b16 %v285
      %v528 = vunpack.c.l.b16 %v286
      %v529 = vunpack.c.l.b16 %v287
      %v530 = vunpack.c.l.b16 %v288
      %v531 = vunpack.c.l.b16 %v289
      %v532 = vunpack.c.l.b16 %v290
      %v533 = vunpack.c.l.b16 %v291
      %v534 = vunpack.c.l.b16 %v292
      %v535 = vunpack.c.l.b16 %v293
      %v536 = vunpack.c.l.b16 %v294
      %v537 = vpack.c.b16 %v418, %v417
      %v538 = vpack.c.b16 %v420, %v419
      %v539 = vpack.c.b16 %v422, %v421
      %v540 = vpack.c.b16 %v424, %v423
      %v541 = vpack.c.b16 %v426, %v425
      %v542 = vpack.c.b16 %v428, %v427
      %v543 = vpack.c.b16 %v430, %v429
      %v544 = vpack.c.b16 %v432, %v431
      %v545 = vpack.c.b16 %v434, %v433
      %v546 = vpack.c.b16 %v436, %v435
      %v547 = vpack.c.b16 %v438, %v437
      %v548 = vpack.c.b16 %v440, %v439
      %v549 = vpack.c.b16 %v442, %v441
      %v550 = vpack.c.b16 %v444, %v443
      %v551 = vpack.c.b16 %v446, %v445
      %v552 = vpack.c.b16 %v448, %v447
      %v553 = vpack.c.b16 %v450, %v449
      %v554 = vpack.c.b16 %v452, %v451
      %v555 = vpack.c.b16 %v454, %v453
      %v556 = vpack.c.b16 %v456, %v455
      %v557 = vpack.c.b16 %v458, %v457
      %v558 = vpack.c.b16 %v460, %v459
      %v559 = vpack.c.b16 %v462, %v461
      %v560 = vpack.c.b16 %v464, %v463
      %v561 = vpack.c.b16 %v466, %v465
      %v562 = vpack.c.b16 %v468, %v467
      %v563 = vpack.c.b16 %v470, %v469
      %v564 = vpack.c.b16 %v472, %v471
      %v565 = vpack.c.b16 %v474, %v473
      %v566 = vpack.c.b16 %v476, %v475
      %v567 = vpack.c.b16 %v478, %v477
      %v568 = vpack.c.b16 %v480, %v479
      %v569 = vpack.c.b16 %v482, %v481
      %v570 = vpack.c.b16 %v484, %v483
      %v571 = vpack.c.b16 %v486, %v485
      %v572 = vpack.c.b16 %v488, %v487
      %v573 = vpack.c.b16 %v490, %v489
      %v574 = vpack.c.b16 %v492, %v491
      %v575 = vpack.c.b16 %v494, %v493
      %v576 = vpack.c.b16 %v496, %v495
      %v577 = vpack.c.b16 %v498, %v497
      %v578 = vpack.c.b16 %v500, %v499
      %v579 = vpack.c.b16 %v502, %v501
      %v580 = vpack.c.b16 %v504, %v503
      %v581 = vpack.c.b16 %v506, %v505
      %v582 = vpack.c.b16 %v508, %v507
      %v583 = vpack.c.b16 %v510, %v509
      %v584 = vpack.c.b16 %v512, %v511
      %v585 = vpack.c.b16 %v514, %v513
      %v586 = vpack.c.b16 %v516, %v515
      %v587 = vpack.c.b16 %v518, %v517
      %v588 = vpack.c.b16 %v520, %v519
      %v589 = vpack.c.b16 %v522, %v521
      %v590 = vpack.c.b16 %v524, %v523
      %v591 = vpack.c.b16 %v526, %v525
      %v592 = vpack.c.b16 %v528, %v527
      %v593 = vpack.c.b16 %v530, %v529
      %v594 = vpack.c.b16 %v532, %v531
      %v595 = vpack.c.b16 %v534, %v533
      %v596 = vpack.c.b16 %v536, %v535
      %v599 = vunpack.c.l.b16 %v295
      %v600 = vunpack.c.l.b16 %v296
      %v601 = vpack.c.b16 %v600, %v599
      %vm602 = vcmask 72704
      %v604 = vsel %vm602, %v537, 0
      %v607 = vsel %vm602, %v538, 0
      %v610 = vsel %vm602, %v539, 0
      %v613 = vsel %vm602, %v540, 0
      %v616 = vsel %vm602, %v541, 0
      %v619 = vsel %vm602, %v542, 0
      %v622 = vsel %vm602, %v543, 0
      %v625 = vsel %vm602, %v544, 0
      %v628 = vsel %vm602, %v545, 0
      %v631 = vsel %vm602, %v546, 0
      %v634 = vsel %vm602, %v547, 0
      %v637 = vsel %vm602, %v548, 0
      %v640 = vsel %vm602, %v549, 0
      %v643 = vsel %vm602, %v550, 0
      %v646 = vsel %vm602, %v551, 0
      %v649 = vsel %vm602, %v552, 0
      %v652 = vsel %vm602, %v553, 0
      %v655 = vsel %vm602, %v554, 0
      %v658 = vsel %vm602, %v555, 0
      %v661 = vsel %vm602, %v556, 0
      %v664 = vsel %vm602, %v557, 0
      %v667 = vsel %vm602, %v558, 0
      %v670 = vsel %vm602, %v559, 0
      %v673 = vsel %vm602, %v560, 0
      %v676 = vsel %vm602, %v561, 0
      %v679 = vsel %vm602, %v562, 0
      %v682 = vsel %vm602, %v563, 0
      %v685 = vsel %vm602, %v564, 0
      %v688 = vsel %vm602, %v565, 0
      %v691 = vsel %vm602, %v566, 0
      %v694 = vsel %vm602, %v567, 0
      %v697 = vsel %vm602, %v568, 0
      %v700 = vsel %vm602, %v569, 0
      %v703 = vsel %vm602, %v570, 0
      %v706 = vsel %vm602, %v571, 0
      %v709 = vsel %vm602, %v572, 0
      %v712 = vsel %vm602, %v573, 0
      %v715 = vsel %vm602, %v574, 0
      %v718 = vsel %vm602, %v575, 0
      %v721 = vsel %vm602, %v576, 0
      %v724 = vsel %vm602, %v577, 0
      %v727 = vsel %vm602, %v578, 0
      %v730 = vsel %vm602, %v579, 0
      %v733 = vsel %vm602, %v580, 0
      %v736 = vsel %vm602, %v581, 0
      %v739 = vsel %vm602, %v582, 0
      %v742 = vsel %vm602, %v583, 0
      %v745 = vsel %vm602, %v584, 0
      %v748 = vsel %vm602, %v585, 0
      %v751 = vsel %vm602, %v586, 0
      %v754 = vsel %vm602, %v587, 0
      %v757 = vsel %vm602, %v588, 0
      %v760 = vsel %vm602, %v589, 0
      %v763 = vsel %vm602, %v590, 0
      %v766 = vsel %vm602, %v591, 0
      %v769 = vsel %vm602, %v592, 0
      %v772 = vsel %vm602, %v593, 0
      %v775 = vsel %vm602, %v594, 0
      %v778 = vsel %vm602, %v595, 0
      %v781 = vsel %vm602, %v596, 0
      %vm783 = vcmask 1043456
      %vm784 = vcmask 1044480
      %v785 = vsel %vm783, 4294967295, 65535
      %v786 = vsel %vm784, %v785, 0
      %v788 = vand.u32 %v601, %v786
      %790 = vmatprep.subr.bf16.mxu0 0
      %791 = vmatpush1.bf16.msra.mxu0 %v788
      %792 = vmatprep.subr.bf16.mxu0 0
      %793 = vmatpush1.bf16.msra.mxu0 0
      %794 = vmatprep.subr.bf16.mxu0 0
      %795 = vmatpush1.bf16.msra.mxu0 0
      %796 = vmatprep.subr.bf16.mxu0 0
      %797 = vmatpush1.bf16.msra.mxu0 0
      %798 = vmatprep.subr.bf16.mxu0 0
      %799 = vmatpush1.bf16.msra.mxu0 0
      %800 = vmatprep.subr.bf16.mxu0 0
      %801 = vmatpush1.bf16.msra.mxu0 0
      %802 = vmatprep.subr.bf16.mxu0 0
      %803 = vmatpush1.bf16.msra.mxu0 0
      %804 = vmatprep.subr.bf16.mxu0 0
      %805 = vmatpush1.bf16.msra.mxu0 0
      %806 = vmatprep.subr.bf16.mxu0 0
      %807 = vmatpush1.bf16.msra.mxu0 0
      %808 = vmatprep.subr.bf16.mxu0 0
      %809 = vmatpush1.bf16.msra.mxu0 0
      %810 = vmatprep.subr.bf16.mxu0 0
      %811 = vmatpush1.bf16.msra.mxu0 0
      %812 = vmatprep.subr.bf16.mxu0 0
      %813 = vmatpush1.bf16.msra.mxu0 0
      %814 = vmatprep.subr.bf16.mxu0 0
      %815 = vmatpush1.bf16.msra.mxu0 0
      %816 = vmatprep.subr.bf16.mxu0 0
      %817 = vmatpush1.bf16.msra.mxu0 0
      %818 = vmatprep.subr.bf16.mxu0 0
      %819 = vmatpush1.bf16.msra.mxu0 0
      %820 = vmatprep.subr.bf16.mxu0 0
      %821 = vmatpush1.bf16.msra.mxu0 0
      %822 = vmatprep.mubr.bf16.mxu0 0
      %823 = vmatmul.mubr.bf16.gmra.mrb[0].mxu0 %v604
      %v824 = vpop.f32.mrb[0].mxu0
      %v825 = vadd.f32 0.0, %v824
      %v826 = vpop.f32.mrb[0].mxu0
      %v827 = vpop.f32.mrb[0].mxu0
      %v828 = vadd.f32 0.0, %v827
      %v829 = vpop.f32.mrb[0].mxu0
      %830 = vmatprep.mubr.bf16.mxu0 0
      %831 = vmatmul.mubr.bf16.gmra.mrb[0].mxu0 %v607
      %v832 = vpop.f32.mrb[0].mxu0
      %v833 = vadd.f32 0.0, %v832
      %v834 = vpop.f32.mrb[0].mxu0
      %v835 = vpop.f32.mrb[0].mxu0
      %v836 = vadd.f32 0.0, %v835
      %v837 = vpop.f32.mrb[0].mxu0
      %838 = vmatprep.mubr.bf16.mxu0 0
      %839 = vmatmul.mubr.bf16.gmra.mrb[0].mxu0 %v610
      %v840 = vpop.f32.mrb[0].mxu0
      %v841 = vadd.f32 0.0, %v840
      %v842 = vpop.f32.mrb[0].mxu0
      %v843 = vpop.f32.mrb[0].mxu0
      %v844 = vadd.f32 0.0, %v843
      %v845 = vpop.f32.mrb[0].mxu0
      %846 = vmatprep.mubr.bf16.mxu0 0
      %847 = vmatmul.mubr.bf16.gmra.mrb[0].mxu0 %v613
      %v848 = vpop.f32.mrb[0].mxu0
      %v849 = vadd.f32 0.0, %v848
      %v850 = vpop.f32.mrb[0].mxu0
      %v851 = vpop.f32.mrb[0].mxu0
      %v852 = vadd.f32 0.0, %v851
      %v853 = vpop.f32.mrb[0].mxu0
      %854 = vmatprep.mubr.bf16.mxu0 0
      %855 = vmatmul.mubr.bf16.gmra.mrb[0].mxu0 %v616
      %v856 = vpop.f32.mrb[0].mxu0
      %v857 = vadd.f32 0.0, %v856
      %v858 = vpop.f32.mrb[0].mxu0
      %v859 = vpop.f32.mrb[0].mxu0
      %v860 = vadd.f32 0.0, %v859
      %v861 = vpop.f32.mrb[0].mxu0
      %862 = vmatprep.mubr.bf16.mxu0 0
      %863 = vmatmul.mubr.bf16.gmra.mrb[0].mxu0 %v619
      %v864 = vpop.f32.mrb[0].mxu0
      %v865 = vadd.f32 0.0, %v864
      %v866 = vpop.f32.mrb[0].mxu0
      %v867 = vpop.f32.mrb[0].mxu0
      %v868 = vadd.f32 0.0, %v867
      %v869 = vpop.f32.mrb[0].mxu0
      %870 = vmatprep.mubr.bf16.mxu0 0
      %871 = vmatmul.mubr.bf16.gmra.mrb[0].mxu0 %v622
      %v872 = vpop.f32.mrb[0].mxu0
      %v873 = vadd.f32 0.0, %v872
      %v874 = vpop.f32.mrb[0].mxu0
      %v875 = vpop.f32.mrb[0].mxu0
      %v876 = vadd.f32 0.0, %v875
      %v877 = vpop.f32.mrb[0].mxu0
      %878 = vmatprep.mubr.bf16.mxu0 0
      %879 = vmatmul.mubr.bf16.gmra.mrb[0].mxu0 %v625
      %v880 = vpop.f32.mrb[0].mxu0
      %v881 = vadd.f32 0.0, %v880
      %v882 = vpop.f32.mrb[0].mxu0
      %v883 = vpop.f32.mrb[0].mxu0
      %v884 = vadd.f32 0.0, %v883
      %v885 = vpop.f32.mrb[0].mxu0
      %886 = vmatprep.mubr.bf16.mxu0 0
      %887 = vmatmul.mubr.bf16.gmra.mrb[0].mxu0 %v628
      %v888 = vpop.f32.mrb[0].mxu0
      %v889 = vadd.f32 0.0, %v888
      %v890 = vpop.f32.mrb[0].mxu0
      %v891 = vpop.f32.mrb[0].mxu0
      %v892 = vadd.f32 0.0, %v891
      %v893 = vpop.f32.mrb[0].mxu0
      %894 = vmatprep.mubr.bf16.mxu0 0
      %895 = vmatmul.mubr.bf16.gmra.mrb[0].mxu0 %v631
      %v896 = vpop.f32.mrb[0].mxu0
      %v897 = vadd.f32 0.0, %v896
      %v898 = vpop.f32.mrb[0].mxu0
      %v899 = vpop.f32.mrb[0].mxu0
      %v900 = vadd.f32 0.0, %v899
      %v901 = vpop.f32.mrb[0].mxu0
      %902 = vmatprep.mubr.bf16.mxu0 0
      %903 = vmatmul.mubr.bf16.gmra.mrb[0].mxu0 %v634
      %v904 = vpop.f32.mrb[0].mxu0
      %v905 = vadd.f32 0.0, %v904
      %v906 = vpop.f32.mrb[0].mxu0
      %v907 = vpop.f32.mrb[0].mxu0
      %v908 = vadd.f32 0.0, %v907
      %v909 = vpop.f32.mrb[0].mxu0
      %910 = vmatprep.mubr.bf16.mxu0 0
      %911 = vmatmul.mubr.bf16.gmra.mrb[0].mxu0 %v637
      %v912 = vpop.f32.mrb[0].mxu0
      %v913 = vadd.f32 0.0, %v912
      %v914 = vpop.f32.mrb[0].mxu0
      %v915 = vpop.f32.mrb[0].mxu0
      %v916 = vadd.f32 0.0, %v915
      %v917 = vpop.f32.mrb[0].mxu0
      %918 = vmatprep.mubr.bf16.mxu0 0
      %919 = vmatmul.mubr.bf16.gmra.mrb[0].mxu0 %v640
      %v920 = vpop.f32.mrb[0].mxu0
      %v921 = vadd.f32 0.0, %v920
      %v922 = vpop.f32.mrb[0].mxu0
      %v923 = vpop.f32.mrb[0].mxu0
      %v924 = vadd.f32 0.0, %v923
      %v925 = vpop.f32.mrb[0].mxu0
      %926 = vmatprep.mubr.bf16.mxu0 0
      %927 = vmatmul.mubr.bf16.gmra.mrb[0].mxu0 %v643
      %v928 = vpop.f32.mrb[0].mxu0
      %v929 = vadd.f32 0.0, %v928
      %v930 = vpop.f32.mrb[0].mxu0
      %v931 = vpop.f32.mrb[0].mxu0
      %v932 = vadd.f32 0.0, %v931
      %v933 = vpop.f32.mrb[0].mxu0
      %934 = vmatprep.mubr.bf16.mxu0 0
      %935 = vmatmul.mubr.bf16.gmra.mrb[0].mxu0 %v646
      %v936 = vpop.f32.mrb[0].mxu0
      %v937 = vadd.f32 0.0, %v936
      %v938 = vpop.f32.mrb[0].mxu0
      %v939 = vpop.f32.mrb[0].mxu0
      %v940 = vadd.f32 0.0, %v939
      %v941 = vpop.f32.mrb[0].mxu0
      %942 = vmatprep.mubr.bf16.mxu0 0
      %943 = vmatmul.mubr.bf16.gmra.mrb[0].mxu0 %v649
      %v944 = vpop.f32.mrb[0].mxu0
      %v945 = vadd.f32 0.0, %v944
      %v946 = vpop.f32.mrb[0].mxu0
      %v947 = vpop.f32.mrb[0].mxu0
      %v948 = vadd.f32 0.0, %v947
      %v949 = vpop.f32.mrb[0].mxu0
      %950 = vmatprep.mubr.bf16.mxu0 0
      %951 = vmatmul.mubr.bf16.gmra.mrb[0].mxu0 %v652
      %v952 = vpop.f32.mrb[0].mxu0
      %v953 = vadd.f32 0.0, %v952
      %v954 = vpop.f32.mrb[0].mxu0
      %v955 = vpop.f32.mrb[0].mxu0
      %v956 = vadd.f32 0.0, %v955
      %v957 = vpop.f32.mrb[0].mxu0
      %958 = vmatprep.mubr.bf16.mxu0 0
      %959 = vmatmul.mubr.bf16.gmra.mrb[0].mxu0 %v655
      %v960 = vpop.f32.mrb[0].mxu0
      %v961 = vadd.f32 0.0, %v960
      %v962 = vpop.f32.mrb[0].mxu0
      %v963 = vpop.f32.mrb[0].mxu0
      %v964 = vadd.f32 0.0, %v963
      %v965 = vpop.f32.mrb[0].mxu0
      %966 = vmatprep.mubr.bf16.mxu0 0
      %967 = vmatmul.mubr.bf16.gmra.mrb[0].mxu0 %v658
      %v968 = vpop.f32.mrb[0].mxu0
      %v969 = vadd.f32 0.0, %v968
      %v970 = vpop.f32.mrb[0].mxu0
      %v971 = vpop.f32.mrb[0].mxu0
      %v972 = vadd.f32 0.0, %v971
      %v973 = vpop.f32.mrb[0].mxu0
      %974 = vmatprep.mubr.bf16.mxu0 0
      %975 = vmatmul.mubr.bf16.gmra.mrb[0].mxu0 %v661
      %v976 = vpop.f32.mrb[0].mxu0
      %v977 = vadd.f32 0.0, %v976
      %v978 = vpop.f32.mrb[0].mxu0
      %v979 = vpop.f32.mrb[0].mxu0
      %v980 = vadd.f32 0.0, %v979
      %v981 = vpop.f32.mrb[0].mxu0
      %982 = vmatprep.mubr.bf16.mxu0 0
      %983 = vmatmul.mubr.bf16.gmra.mrb[0].mxu0 %v664
      %v984 = vpop.f32.mrb[0].mxu0
      %v985 = vadd.f32 0.0, %v984
      %v986 = vpop.f32.mrb[0].mxu0
      %v987 = vpop.f32.mrb[0].mxu0
      %v988 = vadd.f32 0.0, %v987
      %v989 = vpop.f32.mrb[0].mxu0
      %990 = vmatprep.mubr.bf16.mxu0 0
      %991 = vmatmul.mubr.bf16.gmra.mrb[0].mxu0 %v667
      %v992 = vpop.f32.mrb[0].mxu0
      %v993 = vadd.f32 0.0, %v992
      %v994 = vpop.f32.mrb[0].mxu0
      %v995 = vpop.f32.mrb[0].mxu0
      %v996 = vadd.f32 0.0, %v995
      %v997 = vpop.f32.mrb[0].mxu0
      %998 = vmatprep.mubr.bf16.mxu0 0
      %999 = vmatmul.mubr.bf16.gmra.mrb[0].mxu0 %v670
      %v1000 = vpop.f32.mrb[0].mxu0
      %v1001 = vadd.f32 0.0, %v1000
      %v1002 = vpop.f32.mrb[0].mxu0
      %v1003 = vpop.f32.mrb[0].mxu0
      %v1004 = vadd.f32 0.0, %v1003
      %v1005 = vpop.f32.mrb[0].mxu0
      %1006 = vmatprep.mubr.bf16.mxu0 0
      %1007 = vmatmul.mubr.bf16.gmra.mrb[0].mxu0 %v673
      %v1008 = vpop.f32.mrb[0].mxu0
      %v1009 = vadd.f32 0.0, %v1008
      %v1010 = vpop.f32.mrb[0].mxu0
      %v1011 = vpop.f32.mrb[0].mxu0
      %v1012 = vadd.f32 0.0, %v1011
      %v1013 = vpop.f32.mrb[0].mxu0
      %1014 = vmatprep.mubr.bf16.mxu0 0
      %1015 = vmatmul.mubr.bf16.gmra.mrb[0].mxu0 %v676
      %v1016 = vpop.f32.mrb[0].mxu0
      %v1017 = vadd.f32 0.0, %v1016
      %v1018 = vpop.f32.mrb[0].mxu0
      %v1019 = vpop.f32.mrb[0].mxu0
      %v1020 = vadd.f32 0.0, %v1019
      %v1021 = vpop.f32.mrb[0].mxu0
      %1022 = vmatprep.mubr.bf16.mxu0 0
      %1023 = vmatmul.mubr.bf16.gmra.mrb[0].mxu0 %v679
      %v1024 = vpop.f32.mrb[0].mxu0
      %v1025 = vadd.f32 0.0, %v1024
      %v1026 = vpop.f32.mrb[0].mxu0
      %v1027 = vpop.f32.mrb[0].mxu0
      %v1028 = vadd.f32 0.0, %v1027
      %v1029 = vpop.f32.mrb[0].mxu0
      %1030 = vmatprep.mubr.bf16.mxu0 0
      %1031 = vmatmul.mubr.bf16.gmra.mrb[0].mxu0 %v682
      %v1032 = vpop.f32.mrb[0].mxu0
      %v1033 = vadd.f32 0.0, %v1032
      %v1034 = vpop.f32.mrb[0].mxu0
      %v1035 = vpop.f32.mrb[0].mxu0
      %v1036 = vadd.f32 0.0, %v1035
      %v1037 = vpop.f32.mrb[0].mxu0
      %1038 = vmatprep.mubr.bf16.mxu0 0
      %1039 = vmatmul.mubr.bf16.gmra.mrb[0].mxu0 %v685
      %v1040 = vpop.f32.mrb[0].mxu0
      %v1041 = vadd.f32 0.0, %v1040
      %v1042 = vpop.f32.mrb[0].mxu0
      %v1043 = vpop.f32.mrb[0].mxu0
      %v1044 = vadd.f32 0.0, %v1043
      %v1045 = vpop.f32.mrb[0].mxu0
      %1046 = vmatprep.mubr.bf16.mxu0 0
      %1047 = vmatmul.mubr.bf16.gmra.mrb[0].mxu0 %v688
      %v1048 = vpop.f32.mrb[0].mxu0
      %v1049 = vadd.f32 0.0, %v1048
      %v1050 = vpop.f32.mrb[0].mxu0
      %v1051 = vpop.f32.mrb[0].mxu0
      %v1052 = vadd.f32 0.0, %v1051
      %v1053 = vpop.f32.mrb[0].mxu0
      %1054 = vmatprep.mubr.bf16.mxu0 0
      %1055 = vmatmul.mubr.bf16.gmra.mrb[0].mxu0 %v691
      %v1056 = vpop.f32.mrb[0].mxu0
      %v1057 = vadd.f32 0.0, %v1056
      %v1058 = vpop.f32.mrb[0].mxu0
      %v1059 = vpop.f32.mrb[0].mxu0
      %v1060 = vadd.f32 0.0, %v1059
      %v1061 = vpop.f32.mrb[0].mxu0
      %1062 = vmatprep.mubr.bf16.mxu0 0
      %1063 = vmatmul.mubr.bf16.gmra.mrb[0].mxu0 %v694
      %v1064 = vpop.f32.mrb[0].mxu0
      %v1065 = vadd.f32 0.0, %v1064
      %v1066 = vpop.f32.mrb[0].mxu0
      %v1067 = vpop.f32.mrb[0].mxu0
      %v1068 = vadd.f32 0.0, %v1067
      %v1069 = vpop.f32.mrb[0].mxu0
      %1070 = vmatprep.mubr.bf16.mxu0 0
      %1071 = vmatmul.mubr.bf16.gmra.mrb[0].mxu0 %v697
      %v1072 = vpop.f32.mrb[0].mxu0
      %v1073 = vadd.f32 0.0, %v1072
      %v1074 = vpop.f32.mrb[0].mxu0
      %v1075 = vpop.f32.mrb[0].mxu0
      %v1076 = vadd.f32 0.0, %v1075
      %v1077 = vpop.f32.mrb[0].mxu0
      %1078 = vmatprep.mubr.bf16.mxu0 0
      %1079 = vmatmul.mubr.bf16.gmra.mrb[0].mxu0 %v700
      %v1080 = vpop.f32.mrb[0].mxu0
      %v1081 = vadd.f32 0.0, %v1080
      %v1082 = vpop.f32.mrb[0].mxu0
      %v1083 = vpop.f32.mrb[0].mxu0
      %v1084 = vadd.f32 0.0, %v1083
      %v1085 = vpop.f32.mrb[0].mxu0
      %1086 = vmatprep.mubr.bf16.mxu0 0
      %1087 = vmatmul.mubr.bf16.gmra.mrb[0].mxu0 %v703
      %v1088 = vpop.f32.mrb[0].mxu0
      %v1089 = vadd.f32 0.0, %v1088
      %v1090 = vpop.f32.mrb[0].mxu0
      %v1091 = vpop.f32.mrb[0].mxu0
      %v1092 = vadd.f32 0.0, %v1091
      %v1093 = vpop.f32.mrb[0].mxu0
      %1094 = vmatprep.mubr.bf16.mxu0 0
      %1095 = vmatmul.mubr.bf16.gmra.mrb[0].mxu0 %v706
      %v1096 = vpop.f32.mrb[0].mxu0
      %v1097 = vadd.f32 0.0, %v1096
      %v1098 = vpop.f32.mrb[0].mxu0
      %v1099 = vpop.f32.mrb[0].mxu0
      %v1100 = vadd.f32 0.0, %v1099
      %v1101 = vpop.f32.mrb[0].mxu0
      %1102 = vmatprep.mubr.bf16.mxu0 0
      %1103 = vmatmul.mubr.bf16.gmra.mrb[0].mxu0 %v709
      %v1104 = vpop.f32.mrb[0].mxu0
      %v1105 = vadd.f32 0.0, %v1104
      %v1106 = vpop.f32.mrb[0].mxu0
      %v1107 = vpop.f32.mrb[0].mxu0
      %v1108 = vadd.f32 0.0, %v1107
      %v1109 = vpop.f32.mrb[0].mxu0
      %1110 = vmatprep.mubr.bf16.mxu0 0
      %1111 = vmatmul.mubr.bf16.gmra.mrb[0].mxu0 %v712
      %v1112 = vpop.f32.mrb[0].mxu0
      %v1113 = vadd.f32 0.0, %v1112
      %v1114 = vpop.f32.mrb[0].mxu0
      %v1115 = vpop.f32.mrb[0].mxu0
      %v1116 = vadd.f32 0.0, %v1115
      %v1117 = vpop.f32.mrb[0].mxu0
      %1118 = vmatprep.mubr.bf16.mxu0 0
      %1119 = vmatmul.mubr.bf16.gmra.mrb[0].mxu0 %v715
      %v1120 = vpop.f32.mrb[0].mxu0
      %v1121 = vadd.f32 0.0, %v1120
      %v1122 = vpop.f32.mrb[0].mxu0
      %v1123 = vpop.f32.mrb[0].mxu0
      %v1124 = vadd.f32 0.0, %v1123
      %v1125 = vpop.f32.mrb[0].mxu0
      %1126 = vmatprep.mubr.bf16.mxu0 0
      %1127 = vmatmul.mubr.bf16.gmra.mrb[0].mxu0 %v718
      %v1128 = vpop.f32.mrb[0].mxu0
      %v1129 = vadd.f32 0.0, %v1128
      %v1130 = vpop.f32.mrb[0].mxu0
      %v1131 = vpop.f32.mrb[0].mxu0
      %v1132 = vadd.f32 0.0, %v1131
      %v1133 = vpop.f32.mrb[0].mxu0
      %1134 = vmatprep.mubr.bf16.mxu0 0
      %1135 = vmatmul.mubr.bf16.gmra.mrb[0].mxu0 %v721
      %v1136 = vpop.f32.mrb[0].mxu0
      %v1137 = vadd.f32 0.0, %v1136
      %v1138 = vpop.f32.mrb[0].mxu0
      %v1139 = vpop.f32.mrb[0].mxu0
      %v1140 = vadd.f32 0.0, %v1139
      %v1141 = vpop.f32.mrb[0].mxu0
      %1142 = vmatprep.mubr.bf16.mxu0 0
      %1143 = vmatmul.mubr.bf16.gmra.mrb[0].mxu0 %v724
      %v1144 = vpop.f32.mrb[0].mxu0
      %v1145 = vadd.f32 0.0, %v1144
      %v1146 = vpop.f32.mrb[0].mxu0
      %v1147 = vpop.f32.mrb[0].mxu0
      %v1148 = vadd.f32 0.0, %v1147
      %v1149 = vpop.f32.mrb[0].mxu0
      %1150 = vmatprep.mubr.bf16.mxu0 0
      %1151 = vmatmul.mubr.bf16.gmra.mrb[0].mxu0 %v727
      %v1152 = vpop.f32.mrb[0].mxu0
      %v1153 = vadd.f32 0.0, %v1152
      %v1154 = vpop.f32.mrb[0].mxu0
      %v1155 = vpop.f32.mrb[0].mxu0
      %v1156 = vadd.f32 0.0, %v1155
      %v1157 = vpop.f32.mrb[0].mxu0
      %1158 = vmatprep.mubr.bf16.mxu0 0
      %1159 = vmatmul.mubr.bf16.gmra.mrb[0].mxu0 %v730
      %v1160 = vpop.f32.mrb[0].mxu0
      %v1161 = vadd.f32 0.0, %v1160
      %v1162 = vpop.f32.mrb[0].mxu0
      %v1163 = vpop.f32.mrb[0].mxu0
      %v1164 = vadd.f32 0.0, %v1163
      %v1165 = vpop.f32.mrb[0].mxu0
      %1166 = vmatprep.mubr.bf16.mxu0 0
      %1167 = vmatmul.mubr.bf16.gmra.mrb[0].mxu0 %v733
      %v1168 = vpop.f32.mrb[0].mxu0
      %v1169 = vadd.f32 0.0, %v1168
      %v1170 = vpop.f32.mrb[0].mxu0
      %v1171 = vpop.f32.mrb[0].mxu0
      %v1172 = vadd.f32 0.0, %v1171
      %v1173 = vpop.f32.mrb[0].mxu0
      %1174 = vmatprep.mubr.bf16.mxu0 0
      %1175 = vmatmul.mubr.bf16.gmra.mrb[0].mxu0 %v736
      %v1176 = vpop.f32.mrb[0].mxu0
      %v1177 = vadd.f32 0.0, %v1176
      %v1178 = vpop.f32.mrb[0].mxu0
      %v1179 = vpop.f32.mrb[0].mxu0
      %v1180 = vadd.f32 0.0, %v1179
      %v1181 = vpop.f32.mrb[0].mxu0
      %1182 = vmatprep.mubr.bf16.mxu0 0
      %1183 = vmatmul.mubr.bf16.gmra.mrb[0].mxu0 %v739
      %v1184 = vpop.f32.mrb[0].mxu0
      %v1185 = vadd.f32 0.0, %v1184
      %v1186 = vpop.f32.mrb[0].mxu0
      %v1187 = vpop.f32.mrb[0].mxu0
      %v1188 = vadd.f32 0.0, %v1187
      %v1189 = vpop.f32.mrb[0].mxu0
      %1190 = vmatprep.mubr.bf16.mxu0 0
      %1191 = vmatmul.mubr.bf16.gmra.mrb[0].mxu0 %v742
      %v1192 = vpop.f32.mrb[0].mxu0
      %v1193 = vadd.f32 0.0, %v1192
      %v1194 = vpop.f32.mrb[0].mxu0
      %v1195 = vpop.f32.mrb[0].mxu0
      %v1196 = vadd.f32 0.0, %v1195
      %v1197 = vpop.f32.mrb[0].mxu0
      %1198 = vmatprep.mubr.bf16.mxu0 0
      %1199 = vmatmul.mubr.bf16.gmra.mrb[0].mxu0 %v745
      %v1200 = vpop.f32.mrb[0].mxu0
      %v1201 = vadd.f32 0.0, %v1200
      %v1202 = vpop.f32.mrb[0].mxu0
      %v1203 = vpop.f32.mrb[0].mxu0
      %v1204 = vadd.f32 0.0, %v1203
      %v1205 = vpop.f32.mrb[0].mxu0
      %1206 = vmatprep.mubr.bf16.mxu0 0
      %1207 = vmatmul.mubr.bf16.gmra.mrb[0].mxu0 %v748
      %v1208 = vpop.f32.mrb[0].mxu0
      %v1209 = vadd.f32 0.0, %v1208
      %v1210 = vpop.f32.mrb[0].mxu0
      %v1211 = vpop.f32.mrb[0].mxu0
      %v1212 = vadd.f32 0.0, %v1211
      %v1213 = vpop.f32.mrb[0].mxu0
      %1214 = vmatprep.mubr.bf16.mxu0 0
      %1215 = vmatmul.mubr.bf16.gmra.mrb[0].mxu0 %v751
      %v1216 = vpop.f32.mrb[0].mxu0
      %v1217 = vadd.f32 0.0, %v1216
      %v1218 = vpop.f32.mrb[0].mxu0
      %v1219 = vpop.f32.mrb[0].mxu0
      %v1220 = vadd.f32 0.0, %v1219
      %v1221 = vpop.f32.mrb[0].mxu0
      %1222 = vmatprep.mubr.bf16.mxu0 0
      %1223 = vmatmul.mubr.bf16.gmra.mrb[0].mxu0 %v754
      %v1224 = vpop.f32.mrb[0].mxu0
      %v1225 = vadd.f32 0.0, %v1224
      %v1226 = vpop.f32.mrb[0].mxu0
      %v1227 = vpop.f32.mrb[0].mxu0
      %v1228 = vadd.f32 0.0, %v1227
      %v1229 = vpop.f32.mrb[0].mxu0
      %1230 = vmatprep.mubr.bf16.mxu0 0
      %1231 = vmatmul.mubr.bf16.gmra.mrb[0].mxu0 %v757
      %v1232 = vpop.f32.mrb[0].mxu0
      %v1233 = vadd.f32 0.0, %v1232
      %v1234 = vpop.f32.mrb[0].mxu0
      %v1235 = vpop.f32.mrb[0].mxu0
      %v1236 = vadd.f32 0.0, %v1235
      %v1237 = vpop.f32.mrb[0].mxu0
      %1238 = vmatprep.mubr.bf16.mxu0 0
      %1239 = vmatmul.mubr.bf16.gmra.mrb[0].mxu0 %v760
      %v1240 = vpop.f32.mrb[0].mxu0
      %v1241 = vadd.f32 0.0, %v1240
      %v1242 = vpop.f32.mrb[0].mxu0
      %v1243 = vpop.f32.mrb[0].mxu0
      %v1244 = vadd.f32 0.0, %v1243
      %v1245 = vpop.f32.mrb[0].mxu0
      %1246 = vmatprep.mubr.bf16.mxu0 0
      %1247 = vmatmul.mubr.bf16.gmra.mrb[0].mxu0 %v763
      %v1248 = vpop.f32.mrb[0].mxu0
      %v1249 = vadd.f32 0.0, %v1248
      %v1250 = vpop.f32.mrb[0].mxu0
      %v1251 = vpop.f32.mrb[0].mxu0
      %v1252 = vadd.f32 0.0, %v1251
      %v1253 = vpop.f32.mrb[0].mxu0
      %1254 = vmatprep.mubr.bf16.mxu0 0
      %1255 = vmatmul.mubr.bf16.gmra.mrb[0].mxu0 %v766
      %v1256 = vpop.f32.mrb[0].mxu0
      %v1257 = vadd.f32 0.0, %v1256
      %v1258 = vpop.f32.mrb[0].mxu0
      %v1259 = vpop.f32.mrb[0].mxu0
      %v1260 = vadd.f32 0.0, %v1259
      %v1261 = vpop.f32.mrb[0].mxu0
      %1262 = vmatprep.mubr.bf16.mxu0 0
      %1263 = vmatmul.mubr.bf16.gmra.mrb[0].mxu0 %v769
      %v1264 = vpop.f32.mrb[0].mxu0
      %v1265 = vadd.f32 0.0, %v1264
      %v1266 = vpop.f32.mrb[0].mxu0
      %v1267 = vpop.f32.mrb[0].mxu0
      %v1268 = vadd.f32 0.0, %v1267
      %v1269 = vpop.f32.mrb[0].mxu0
      %1270 = vmatprep.mubr.bf16.mxu0 0
      %1271 = vmatmul.mubr.bf16.gmra.mrb[0].mxu0 %v772
      %v1272 = vpop.f32.mrb[0].mxu0
      %v1273 = vadd.f32 0.0, %v1272
      %v1274 = vpop.f32.mrb[0].mxu0
      %v1275 = vpop.f32.mrb[0].mxu0
      %v1276 = vadd.f32 0.0, %v1275
      %v1277 = vpop.f32.mrb[0].mxu0
      %1278 = vmatprep.mubr.bf16.mxu0 0
      %1279 = vmatmul.mubr.bf16.gmra.mrb[0].mxu0 %v775
      %v1280 = vpop.f32.mrb[0].mxu0
      %v1281 = vadd.f32 0.0, %v1280
      %v1282 = vpop.f32.mrb[0].mxu0
      %v1283 = vpop.f32.mrb[0].mxu0
      %v1284 = vadd.f32 0.0, %v1283
      %v1285 = vpop.f32.mrb[0].mxu0
      %1286 = vmatprep.mubr.bf16.mxu0 0
      %1287 = vmatmul.mubr.bf16.gmra.mrb[0].mxu0 %v778
      %v1288 = vpop.f32.mrb[0].mxu0
      %v1289 = vadd.f32 0.0, %v1288
      %v1290 = vpop.f32.mrb[0].mxu0
      %v1291 = vpop.f32.mrb[0].mxu0
      %v1292 = vadd.f32 0.0, %v1291
      %v1293 = vpop.f32.mrb[0].mxu0
      %1294 = vmatprep.mubr.bf16.mxu0 0
      %1295 = vmatmul.mubr.bf16.gmra.mrb[0].mxu0 %v781
      %v1296 = vpop.f32.mrb[0].mxu0
      %v1297 = vadd.f32 0.0, %v1296
      %v1298 = vpop.f32.mrb[0].mxu0
      %v1299 = vpop.f32.mrb[0].mxu0
      %v1300 = vadd.f32 0.0, %v1299
      %v1301 = vpop.f32.mrb[0].mxu0
      %1302 = vdwg.mxu0
      %v1303 = vmax.f32 %v825, %v945
      %v1304 = vmax.f32 %v828, %v948
      %v1305 = vmax.f32 %v833, %v953
      %v1306 = vmax.f32 %v836, %v956
      %v1307 = vmax.f32 %v841, %v961
      %v1308 = vmax.f32 %v844, %v964
      %v1309 = vmax.f32 %v849, %v969
      %v1310 = vmax.f32 %v852, %v972
      %v1311 = vmax.f32 %v857, %v977
      %v1312 = vmax.f32 %v860, %v980
      %v1313 = vmax.f32 %v865, %v985
      %v1314 = vmax.f32 %v868, %v988
      %v1315 = vmax.f32 %v873, %v993
      %v1316 = vmax.f32 %v876, %v996
      %v1317 = vmax.f32 %v881, %v1001
      %v1318 = vmax.f32 %v884, %v1004
      %v1319 = vmax.f32 %v889, %v1009
      %v1320 = vmax.f32 %v892, %v1012
      %v1321 = vmax.f32 %v897, %v1017
      %v1322 = vmax.f32 %v900, %v1020
      %v1323 = vmax.f32 %v905, %v1025
      %v1324 = vmax.f32 %v908, %v1028
      %v1325 = vmax.f32 %v913, %v1033
      %v1326 = vmax.f32 %v916, %v1036
      %v1327 = vmax.f32 %v921, %v1041
      %v1328 = vmax.f32 %v924, %v1044
      %v1329 = vmax.f32 %v929, %v1049
      %v1330 = vmax.f32 %v932, %v1052
      %v1331 = vmax.f32 %v937, %v1057
      %v1332 = vmax.f32 %v940, %v1060
      %v1333 = vmax.f32 %v1065, %v1185
      %v1334 = vmax.f32 %v1068, %v1188
      %v1335 = vmax.f32 %v1073, %v1193
      %v1336 = vmax.f32 %v1076, %v1196
      %v1337 = vmax.f32 %v1081, %v1201
      %v1338 = vmax.f32 %v1084, %v1204
      %v1339 = vmax.f32 %v1089, %v1209
      %v1340 = vmax.f32 %v1092, %v1212
      %v1341 = vmax.f32 %v1097, %v1217
      %v1342 = vmax.f32 %v1100, %v1220
      %v1343 = vmax.f32 %v1105, %v1225
      %v1344 = vmax.f32 %v1108, %v1228
      %v1345 = vmax.f32 %v1113, %v1233
      %v1346 = vmax.f32 %v1116, %v1236
      %v1347 = vmax.f32 %v1121, %v1241
      %v1348 = vmax.f32 %v1124, %v1244
      %v1349 = vmax.f32 %v1129, %v1249
      %v1350 = vmax.f32 %v1132, %v1252
      %v1351 = vmax.f32 %v1137, %v1257
      %v1352 = vmax.f32 %v1140, %v1260
      %v1353 = vmax.f32 %v1145, %v1265
      %v1354 = vmax.f32 %v1148, %v1268
      %v1355 = vmax.f32 %v1153, %v1273
      %v1356 = vmax.f32 %v1156, %v1276
      %v1357 = vmax.f32 %v1161, %v1281
      %v1358 = vmax.f32 %v1164, %v1284
      %v1359 = vmax.f32 %v1169, %v1289
      %v1360 = vmax.f32 %v1172, %v1292
      %v1361 = vmax.f32 %v1177, %v1297
      %v1362 = vmax.f32 %v1180, %v1300
      %v1363 = vmax.f32 %v1303, %v1333
      %v1364 = vmax.f32 %v1304, %v1334
      %v1365 = vmax.f32 %v1305, %v1335
      %v1366 = vmax.f32 %v1306, %v1336
      %v1367 = vmax.f32 %v1307, %v1337
      %v1368 = vmax.f32 %v1308, %v1338
      %v1369 = vmax.f32 %v1309, %v1339
      %v1370 = vmax.f32 %v1310, %v1340
      %v1371 = vmax.f32 %v1311, %v1341
      %v1372 = vmax.f32 %v1312, %v1342
      %v1373 = vmax.f32 %v1313, %v1343
      %v1374 = vmax.f32 %v1314, %v1344
      %v1375 = vmax.f32 %v1315, %v1345
      %v1376 = vmax.f32 %v1316, %v1346
      %v1377 = vmax.f32 %v1317, %v1347
      %v1378 = vmax.f32 %v1318, %v1348
      %v1379 = vmax.f32 %v1319, %v1349
      %v1380 = vmax.f32 %v1320, %v1350
      %v1381 = vmax.f32 %v1321, %v1351
      %v1382 = vmax.f32 %v1322, %v1352
      %v1383 = vmax.f32 %v1323, %v1353
      %v1384 = vmax.f32 %v1324, %v1354
      %v1385 = vmax.f32 %v1325, %v1355
      %v1386 = vmax.f32 %v1326, %v1356
      %v1387 = vmax.f32 %v1327, %v1357
      %v1388 = vmax.f32 %v1328, %v1358
      %v1389 = vmax.f32 %v1329, %v1359
      %v1390 = vmax.f32 %v1330, %v1360
      %v1391 = vmax.f32 %v1331, %v1361
      %v1392 = vmax.f32 %v1332, %v1362
      %v1393 = vld [vmem:[%s2] sm:$0x1]
      %v1395 = vlaneseq
      %v1396 = vshrl.u32 %v1395, 7
      %v1397 = vsub.s32 0, %v1396
      %v1398 = vrot.slane %v1393, %v1397
      %v1400 = vadd.f32 %v1363, %v1398
      %v1401 = vadd.f32 %v1364, %v1398
      %v1402 = vadd.f32 %v1365, %v1398
      %v1403 = vadd.f32 %v1366, %v1398
      %v1404 = vadd.f32 %v1367, %v1398
      %v1405 = vadd.f32 %v1368, %v1398
      %v1406 = vadd.f32 %v1369, %v1398
      %v1407 = vadd.f32 %v1370, %v1398
      %v1408 = vadd.f32 %v1371, %v1398
      %v1409 = vadd.f32 %v1372, %v1398
      %v1410 = vadd.f32 %v1373, %v1398
      %v1411 = vadd.f32 %v1374, %v1398
      %v1412 = vadd.f32 %v1375, %v1398
      %v1413 = vadd.f32 %v1376, %v1398
      %v1414 = vadd.f32 %v1377, %v1398
      %v1415 = vadd.f32 %v1378, %v1398
      %v1416 = vadd.f32 %v1379, %v1398
      %v1417 = vadd.f32 %v1380, %v1398
      %v1418 = vadd.f32 %v1381, %v1398
      %v1419 = vadd.f32 %v1382, %v1398
      %v1420 = vadd.f32 %v1383, %v1398
      %v1421 = vadd.f32 %v1384, %v1398
      %v1422 = vadd.f32 %v1385, %v1398
      %v1423 = vadd.f32 %v1386, %v1398
      %v1424 = vadd.f32 %v1387, %v1398
      %v1425 = vadd.f32 %v1388, %v1398
      %v1426 = vadd.f32 %v1389, %v1398
      %v1427 = vadd.f32 %v1390, %v1398
      %v1428 = vadd.f32 %v1391, %v1398
      %v1429 = vadd.f32 %v1392, %v1398
      %v1430 = vmax.f32 %v1400, 0.0
      %v1431 = vmax.f32 %v1401, 0.0
      %v1432 = vmax.f32 %v1402, 0.0
      %v1433 = vmax.f32 %v1403, 0.0
      %v1434 = vmax.f32 %v1404, 0.0
      %v1435 = vmax.f32 %v1405, 0.0
      %v1436 = vmax.f32 %v1406, 0.0
      %v1437 = vmax.f32 %v1407, 0.0
      %v1438 = vmax.f32 %v1408, 0.0
      %v1439 = vmax.f32 %v1409, 0.0
      %v1440 = vmax.f32 %v1410, 0.0
      %v1441 = vmax.f32 %v1411, 0.0
      %v1442 = vmax.f32 %v1412, 0.0
      %v1443 = vmax.f32 %v1413, 0.0
      %v1444 = vmax.f32 %v1414, 0.0
      %v1445 = vmax.f32 %v1415, 0.0
      %v1446 = vmax.f32 %v1416, 0.0
      %v1447 = vmax.f32 %v1417, 0.0
      %v1448 = vmax.f32 %v1418, 0.0
      %v1449 = vmax.f32 %v1419, 0.0
      %v1450 = vmax.f32 %v1420, 0.0
      %v1451 = vmax.f32 %v1421, 0.0
      %v1452 = vmax.f32 %v1422, 0.0
      %v1453 = vmax.f32 %v1423, 0.0
      %v1454 = vmax.f32 %v1424, 0.0
      %v1455 = vmax.f32 %v1425, 0.0
      %v1456 = vmax.f32 %v1426, 0.0
      %v1457 = vmax.f32 %v1427, 0.0
      %v1458 = vmax.f32 %v1428, 0.0
      %v1459 = vmax.f32 %v1429, 0.0
      %v1460 = vpack.c.bf16 %v1431, %v1430
      %v1461 = vpack.c.bf16 %v1433, %v1432
      %v1462 = vpack.c.bf16 %v1435, %v1434
      %v1463 = vpack.c.bf16 %v1437, %v1436
      %v1464 = vpack.c.bf16 %v1439, %v1438
      %v1465 = vpack.c.bf16 %v1441, %v1440
      %v1466 = vpack.c.bf16 %v1443, %v1442
      %v1467 = vpack.c.bf16 %v1445, %v1444
      %v1468 = vpack.c.bf16 %v1447, %v1446
      %v1469 = vpack.c.bf16 %v1449, %v1448
      %v1470 = vpack.c.bf16 %v1451, %v1450
      %v1471 = vpack.c.bf16 %v1453, %v1452
      %v1472 = vpack.c.bf16 %v1455, %v1454
      %v1473 = vpack.c.bf16 %v1457, %v1456
      %v1474 = vpack.c.bf16 %v1459, %v1458
      %v1490 = vunpack.c.l.b16 %v1460
      %v1491 = vunpack.c.h.b16 %v1460
      %v1492 = vunpack.c.l.b16 %v1461
      %v1493 = vunpack.c.h.b16 %v1461
      %v1494 = vunpack.c.l.b16 %v1462
      %v1495 = vunpack.c.h.b16 %v1462
      %v1496 = vunpack.c.l.b16 %v1463
      %v1497 = vunpack.c.h.b16 %v1463
      %v1498 = vunpack.c.l.b16 %v1464
      %v1499 = vunpack.c.h.b16 %v1464
      %v1500 = vunpack.c.l.b16 %v1465
      %v1501 = vunpack.c.h.b16 %v1465
      %v1502 = vunpack.c.l.b16 %v1466
      %v1503 = vunpack.c.h.b16 %v1466
      %v1504 = vunpack.c.l.b16 %v1467
      %v1505 = vunpack.c.h.b16 %v1467
      %v1506 = vunpack.c.l.b16 %v1468
      %v1507 = vunpack.c.h.b16 %v1468
      %v1508 = vunpack.c.l.b16 %v1469
      %v1509 = vunpack.c.h.b16 %v1469
      %v1510 = vunpack.c.l.b16 %v1470
      %v1511 = vunpack.c.h.b16 %v1470
      %v1512 = vunpack.c.l.b16 %v1471
      %v1513 = vunpack.c.h.b16 %v1471
      %v1514 = vunpack.c.l.b16 %v1472
      %v1515 = vunpack.c.h.b16 %v1472
      %v1516 = vunpack.c.l.b16 %v1473
      %v1517 = vunpack.c.h.b16 %v1473
      %v1518 = vunpack.c.l.b16 %v1474
      %v1519 = vunpack.c.h.b16 %v1474
      %v1520 = vpack.c.b16 %v1490, %v1490
      %v1521 = vpack.c.b16 %v1491, %v1491
      %v1522 = vpack.c.b16 %v1492, %v1492
      %v1523 = vpack.c.b16 %v1493, %v1493
      %v1524 = vpack.c.b16 %v1494, %v1494
      %v1525 = vpack.c.b16 %v1495, %v1495
      %v1526 = vpack.c.b16 %v1496, %v1496
      %v1527 = vpack.c.b16 %v1497, %v1497
      %v1528 = vpack.c.b16 %v1498, %v1498
      %v1529 = vpack.c.b16 %v1499, %v1499
      %v1530 = vpack.c.b16 %v1500, %v1500
      %v1531 = vpack.c.b16 %v1501, %v1501
      %v1532 = vpack.c.b16 %v1502, %v1502
      %v1533 = vpack.c.b16 %v1503, %v1503
      %v1534 = vpack.c.b16 %v1504, %v1504
      %v1535 = vpack.c.b16 %v1505, %v1505
      %v1536 = vpack.c.b16 %v1506, %v1506
      %v1537 = vpack.c.b16 %v1507, %v1507
      %v1538 = vpack.c.b16 %v1508, %v1508
      %v1539 = vpack.c.b16 %v1509, %v1509
      %v1540 = vpack.c.b16 %v1510, %v1510
      %v1541 = vpack.c.b16 %v1511, %v1511
      %v1542 = vpack.c.b16 %v1512, %v1512
      %v1543 = vpack.c.b16 %v1513, %v1513
      %v1544 = vpack.c.b16 %v1514, %v1514
      %v1545 = vpack.c.b16 %v1515, %v1515
      %v1546 = vpack.c.b16 %v1516, %v1516
      %v1547 = vpack.c.b16 %v1517, %v1517
      %v1548 = vpack.c.b16 %v1518, %v1518
      %v1549 = vpack.c.b16 %v1519, %v1519
      %1580 = vst [vmem:[%s170] sm:$0xf] %v1520
      %1581 = vst [vmem:[%s170 + $0x4] sm:$0xf] %v1521
      %1582 = vst [vmem:[%s170 + $0x8] sm:$0xf] %v1522
      %1583 = vst [vmem:[%s170 + $0xc] sm:$0xf] %v1523
      %1584 = vst [vmem:[%s170 + $0x10] sm:$0xf] %v1524
      %1585 = vst [vmem:[%s170 + $0x14] sm:$0xf] %v1525
      %1586 = vst [vmem:[%s170 + $0x18] sm:$0xf] %v1526
      %1587 = vst [vmem:[%s170 + $0x1c] sm:$0xf] %v1527
      %1588 = vst [vmem:[%s170 + $0x20] sm:$0xf] %v1528
      %1589 = vst [vmem:[%s170 + $0x24] sm:$0xf] %v1529
      %1590 = vst [vmem:[%s170 + $0x28] sm:$0xf] %v1530
      %1591 = vst [vmem:[%s170 + $0x2c] sm:$0xf] %v1531
      %1592 = vst [vmem:[%s170 + $0x30] sm:$0xf] %v1532
      %1593 = vst [vmem:[%s170 + $0x34] sm:$0xf] %v1533
      %1594 = vst [vmem:[%s170 + $0x38] sm:$0xf] %v1534
      %1595 = vst [vmem:[%s170 + $0x3c] sm:$0xf] %v1535
      %1596 = vst [vmem:[%s170 + $0x40] sm:$0xf] %v1536
      %1597 = vst [vmem:[%s170 + $0x44] sm:$0xf] %v1537
      %1598 = vst [vmem:[%s170 + $0x48] sm:$0xf] %v1538
      %1599 = vst [vmem:[%s170 + $0x4c] sm:$0xf] %v1539
      %1600 = vst [vmem:[%s170 + $0x50] sm:$0xf] %v1540
      %1601 = vst [vmem:[%s170 + $0x54] sm:$0xf] %v1541
      %1602 = vst [vmem:[%s170 + $0x58] sm:$0xf] %v1542
      %1603 = vst [vmem:[%s170 + $0x5c] sm:$0xf] %v1543
      %1604 = vst [vmem:[%s170 + $0x60] sm:$0xf] %v1544
      %1605 = vst [vmem:[%s170 + $0x64] sm:$0xf] %v1545
      %1606 = vst [vmem:[%s170 + $0x68] sm:$0xf] %v1546
      %1607 = vst [vmem:[%s170 + $0x6c] sm:$0xf] %v1547
      %1608 = vst [vmem:[%s170 + $0x70] sm:$0xf] %v1548
      %1609 = vst [vmem:[%s170 + $0x74] sm:$0xf] %v1549
      %p1610 = scmp.lt.s32.totalorder %s14, 1
      %s1611 = scalar_select %p1610, %s14, 1
      %s1612 = smul.addr %s1611, 30
      %s1613 = smul.addr %s1612, 4
      %s1614 = scalar_lea.vmem %s3, %s1613
      // Predicated region
      $region33: #{_lambda_.4} parent=31 // pred_check
        %p1615 = pneg %p100
      $region34: #{_lambda_.4} parent=31 // pred_check_branch
        %1617 = sbr.rel (%p1615) target = $region36
      $region35: #{_lambda_.4} parent=31 // pred_region
        _
      $region36: #{_lambda_.4} parent=31 // pred_fallthru
        _
    $region32: #{_lambda_.4} parent=5 // pred_fallthru
      _
    %p1618 = scmp.le.s32.totalorder 2, %s9
    // Predicated region
    $region37: #{_lambda_.4} parent=5 // pred_check
      %p1619 = pneg %p1618
    $region38: #{_lambda_.4} parent=5 // pred_check_branch
      %1621 = sbr.rel (%p1619) target = $region40
    $region39: #{_lambda_.4} parent=5 // pred_region
      %s1622 = ssub.s32 %s9, 2
      // Predicated region
      $region41: #{_lambda_.4} parent=39 // pred_check
        %p1623 = pneg %p106
      $region42: #{_lambda_.4} parent=39 // pred_check_branch
        %1625 = sbr.rel (%p1623) target = $region44
      $region43: #{_lambda_.4} parent=39 // pred_region
        %p1626 = scmp.lt.s32.totalorder %s15, 1
        %s1627 = scalar_select %p1626, %s15, 1
        %s1628 = smul.addr %s1627, 30
        %s1629 = smul.addr %s1628, 4
        %s1630 = scalar_lea.vmem %s3, %s1629
      $region44: #{_lambda_.4} parent=39 // pred_fallthru
        _
    $region40: #{_lambda_.4} parent=5 // pred_fallthru
      _
  $region6: #{_lambda_.4} parent=0 // loop_footer
    %s13 = sadd.s32 1, %s9
  $region7: #{_lambda_.4} parent=0 // loop_footer_branch
    %8 = sbr.rel target = $region3
  $region8: #{_lambda_.4} parent=0 // loop_exit
    _

// kernel: _lambda_.7
$region0: #{_lambda_.7}
  #allocation0 [shape = 'u32[]', space=smem, size = 0x4, offset = 0x4, fixed_abs, tag = 'smem constant byte address 0x4 - core index']
  #allocation1 [shape = 'u32[144,128]{1,0:T(1,128)}', space=vmem, size = 0x12000, scoped, tag = 'internal scratch']
  %s0 = inlined_call_operand.vmem [shape: bf16[2,512], index: 0, kind: input, shape index: {}]
  %s1 = inlined_call_operand.vmem [shape: bf16[512,128], index: 1, kind: input, shape index: {}]
  %s2 = inlined_call_operand.vmem [shape: f32[1,128], index: 2, kind: input, shape index: {}]
  %s3 = inlined_call_operand.vmem [shape: bf16[128,128], index: 3, kind: input, shape index: {}]
  %s4 = inlined_call_operand.vmem [shape: f32[1,128], index: 4, kind: input, shape index: {}]
  %s5 = inlined_call_operand.vmem [shape: f32[2,128], index: 5, kind: output, shape index: {}]
  %s6 = sld [smem:[#allocation0]]
  $region30: #{_lambda_.7} parent=0
    _
  %s8 = ssub.s32 1, %s6
  %s9 = scalar_select 0, %s8, %s6
  // Predicated region
  $region2: #{_lambda_.7} parent=0 // pred_check
    _
  $region3: #{_lambda_.7} parent=0 // pred_check_branch
    %11 = sbr.rel (0) target = $region5
  $region4: #{_lambda_.7} parent=0 // pred_region
    _
  $region5: #{_lambda_.7} parent=0 // pred_fallthru
    _
  // Predicated region
  $region6: #{_lambda_.7} parent=0 // pred_check
    _
  $region7: #{_lambda_.7} parent=0 // pred_check_branch
    %13 = sbr.rel (0) target = $region9
  $region8: #{_lambda_.7} parent=0 // pred_region
    _
  $region9: #{_lambda_.7} parent=0 // pred_fallthru
    _
  // Predicated region
  $region10: #{_lambda_.7} parent=0 // pred_check
    _
  $region11: #{_lambda_.7} parent=0 // pred_check_branch
    %15 = sbr.rel (0) target = $region13
  $region12: #{_lambda_.7} parent=0 // pred_region
    _
  $region13: #{_lambda_.7} parent=0 // pred_fallthru
    _
  // Predicated region
  $region14: #{_lambda_.7} parent=0 // pred_check
    _
  $region15: #{_lambda_.7} parent=0 // pred_check_branch
    %17 = sbr.rel (0) target = $region17
  $region16: #{_lambda_.7} parent=0 // pred_region
    _
  $region17: #{_lambda_.7} parent=0 // pred_fallthru
    _
  // Predicated region
  $region18: #{_lambda_.7} parent=0 // pred_check
    _
  $region19: #{_lambda_.7} parent=0 // pred_check_branch
    %19 = sbr.rel (0) target = $region21
  $region20: #{_lambda_.7} parent=0 // pred_region
    _
  $region21: #{_lambda_.7} parent=0 // pred_fallthru
    _
  %v21 = vld [vmem:[%s0] sm:$0xf]
  %v22 = vld [vmem:[%s1] sm:$0xf]
  %v23 = vld [vmem:[%s1 + $0x4] sm:$0xf]
  %v24 = vld [vmem:[%s1 + $0x8] sm:$0xf]
  %v25 = vld [vmem:[%s1 + $0xc] sm:$0xf]
  %v26 = vld [vmem:[%s1 + $0x10] sm:$0xf]
  %v27 = vld [vmem:[%s1 + $0x14] sm:$0xf]
  %v28 = vld [vmem:[%s1 + $0x18] sm:$0xf]
  %v29 = vld [vmem:[%s1 + $0x1c] sm:$0xf]
  %v30 = vld [vmem:[%s1 + $0x20] sm:$0xf]
  %v31 = vld [vmem:[%s1 + $0x24] sm:$0xf]
  %v32 = vld [vmem:[%s1 + $0x28] sm:$0xf]
  %v33 = vld [vmem:[%s1 + $0x2c] sm:$0xf]
  %v34 = vld [vmem:[%s1 + $0x30] sm:$0xf]
  %v35 = vld [vmem:[%s1 + $0x34] sm:$0xf]
  %v36 = vld [vmem:[%s1 + $0x38] sm:$0xf]
  %v37 = vld [vmem:[%s1 + $0x3c] sm:$0xf]
  %v38 = vld [vmem:[%s1 + $0x40] sm:$0xf]
  %v39 = vld [vmem:[%s1 + $0x44] sm:$0xf]
  %v40 = vld [vmem:[%s1 + $0x48] sm:$0xf]
  %v41 = vld [vmem:[%s1 + $0x4c] sm:$0xf]
  %v42 = vld [vmem:[%s1 + $0x50] sm:$0xf]
  %v43 = vld [vmem:[%s1 + $0x54] sm:$0xf]
  %v44 = vld [vmem:[%s1 + $0x58] sm:$0xf]
  %v45 = vld [vmem:[%s1 + $0x5c] sm:$0xf]
  %v46 = vld [vmem:[%s1 + $0x60] sm:$0xf]
  %v47 = vld [vmem:[%s1 + $0x64] sm:$0xf]
  %v48 = vld [vmem:[%s1 + $0x68] sm:$0xf]
  %v49 = vld [vmem:[%s1 + $0x6c] sm:$0xf]
  %v50 = vld [vmem:[%s1 + $0x70] sm:$0xf]
  %v51 = vld [vmem:[%s1 + $0x74] sm:$0xf]
  %v52 = vld [vmem:[%s1 + $0x78] sm:$0xf]
  %v53 = vld [vmem:[%s1 + $0x7c] sm:$0xf]
  %v54 = vld [vmem:[%s1 + $0x80] sm:$0xf]
  %v55 = vld [vmem:[%s1 + $0x84] sm:$0xf]
  %v56 = vld [vmem:[%s1 + $0x88] sm:$0xf]
  %v57 = vld [vmem:[%s1 + $0x8c] sm:$0xf]
  %v58 = vld [vmem:[%s1 + $0x90] sm:$0xf]
  %v59 = vld [vmem:[%s1 + $0x94] sm:$0xf]
  %v60 = vld [vmem:[%s1 + $0x98] sm:$0xf]
  %v61 = vld [vmem:[%s1 + $0x9c] sm:$0xf]
  %v62 = vld [vmem:[%s1 + $0xa0] sm:$0xf]
  %v63 = vld [vmem:[%s1 + $0xa4] sm:$0xf]
  %v64 = vld [vmem:[%s1 + $0xa8] sm:$0xf]
  %v65 = vld [vmem:[%s1 + $0xac] sm:$0xf]
  %v66 = vld [vmem:[%s1 + $0xb0] sm:$0xf]
  %v67 = vld [vmem:[%s1 + $0xb4] sm:$0xf]
  %v68 = vld [vmem:[%s1 + $0xb8] sm:$0xf]
  %v69 = vld [vmem:[%s1 + $0xbc] sm:$0xf]
  %v70 = vld [vmem:[%s1 + $0xc0] sm:$0xf]
  %v71 = vld [vmem:[%s1 + $0xc4] sm:$0xf]
  %v72 = vld [vmem:[%s1 + $0xc8] sm:$0xf]
  %v73 = vld [vmem:[%s1 + $0xcc] sm:$0xf]
  %v74 = vld [vmem:[%s1 + $0xd0] sm:$0xf]
  %v75 = vld [vmem:[%s1 + $0xd4] sm:$0xf]
  %v76 = vld [vmem:[%s1 + $0xd8] sm:$0xf]
  %v77 = vld [vmem:[%s1 + $0xdc] sm:$0xf]
  %v78 = vld [vmem:[%s1 + $0xe0] sm:$0xf]
  %v79 = vld [vmem:[%s1 + $0xe4] sm:$0xf]
  %v80 = vld [vmem:[%s1 + $0xe8] sm:$0xf]
  %v81 = vld [vmem:[%s1 + $0xec] sm:$0xf]
  %v82 = vld [vmem:[%s1 + $0xf0] sm:$0xf]
  %v83 = vld [vmem:[%s1 + $0xf4] sm:$0xf]
  %v84 = vld [vmem:[%s1 + $0xf8] sm:$0xf]
  %v85 = vld [vmem:[%s1 + $0xfc] sm:$0xf]
  %v86 = vld [vmem:[%s2] sm:$0x1]
  %v88 = vlaneseq
  %v89 = vshrl.u32 %v88, 7
  %v90 = vsub.s32 0, %v89
  %v91 = vrot.slane %v86, %v90
  %v95 = vunpack.c.l.s4 1966171168
  %v96 = vunpack.c.0.s8 %v95
  %v97 = vlaneseq
  %v98 = vshrl.u32 %v97, 7
  %v99 = vsub.s32 %v96, %v98
  %v100 = vrot.slane %v21, %v99
  %v101 = vcombine.high %v100, %v100
  %v103 = vunpack.c.l.s4 1966171168
  %v104 = vunpack.c.0.s8 %v103
  %v105 = vlaneseq
  %v106 = vshrl.u32 %v105, 7
  %v107 = vsub.s32 %v104, %v106
  %v108 = vrot.slane %v100, %v107
  %v110 = vunpack.c.l.s4 1966171168
  %v111 = vunpack.c.0.s8 %v110
  %v112 = vlaneseq
  %v113 = vshrl.u32 %v112, 7
  %v114 = vsub.s32 %v111, %v113
  %v115 = vrot.slane %v101, %v114
  %v116 = vcombine.high %v108, %v108
  %v117 = vcombine.high %v115, %v115
  %v186 = vunpack.c.l.b16 %v22
  %v187 = vunpack.c.l.b16 %v23
  %v188 = vunpack.c.l.b16 %v24
  %v189 = vunpack.c.l.b16 %v25
  %v190 = vunpack.c.l.b16 %v26
  %v191 = vunpack.c.l.b16 %v27
  %v192 = vunpack.c.l.b16 %v28
  %v193 = vunpack.c.l.b16 %v29
  %v194 = vunpack.c.l.b16 %v30
  %v195 = vunpack.c.l.b16 %v31
  %v196 = vunpack.c.l.b16 %v32
  %v197 = vunpack.c.l.b16 %v33
  %v198 = vunpack.c.l.b16 %v34
  %v199 = vunpack.c.l.b16 %v35
  %v200 = vunpack.c.l.b16 %v36
  %v201 = vunpack.c.l.b16 %v37
  %v202 = vunpack.c.l.b16 %v38
  %v203 = vunpack.c.l.b16 %v39
  %v204 = vunpack.c.l.b16 %v40
  %v205 = vunpack.c.l.b16 %v41
  %v206 = vunpack.c.l.b16 %v42
  %v207 = vunpack.c.l.b16 %v43
  %v208 = vunpack.c.l.b16 %v44
  %v209 = vunpack.c.l.b16 %v45
  %v210 = vunpack.c.l.b16 %v46
  %v211 = vunpack.c.l.b16 %v47
  %v212 = vunpack.c.l.b16 %v48
  %v213 = vunpack.c.l.b16 %v49
  %v214 = vunpack.c.l.b16 %v50
  %v215 = vunpack.c.l.b16 %v51
  %v216 = vunpack.c.l.b16 %v52
  %v217 = vunpack.c.l.b16 %v53
  %v218 = vunpack.c.l.b16 %v54
  %v219 = vunpack.c.l.b16 %v55
  %v220 = vunpack.c.l.b16 %v56
  %v221 = vunpack.c.l.b16 %v57
  %v222 = vunpack.c.l.b16 %v58
  %v223 = vunpack.c.l.b16 %v59
  %v224 = vunpack.c.l.b16 %v60
  %v225 = vunpack.c.l.b16 %v61
  %v226 = vunpack.c.l.b16 %v62
  %v227 = vunpack.c.l.b16 %v63
  %v228 = vunpack.c.l.b16 %v64
  %v229 = vunpack.c.l.b16 %v65
  %v230 = vunpack.c.l.b16 %v66
  %v231 = vunpack.c.l.b16 %v67
  %v232 = vunpack.c.l.b16 %v68
  %v233 = vunpack.c.l.b16 %v69
  %v234 = vunpack.c.l.b16 %v70
  %v235 = vunpack.c.l.b16 %v71
  %v236 = vunpack.c.l.b16 %v72
  %v237 = vunpack.c.l.b16 %v73
  %v238 = vunpack.c.l.b16 %v74
  %v239 = vunpack.c.l.b16 %v75
  %v240 = vunpack.c.l.b16 %v76
  %v241 = vunpack.c.l.b16 %v77
  %v242 = vunpack.c.l.b16 %v78
  %v243 = vunpack.c.l.b16 %v79
  %v244 = vunpack.c.l.b16 %v80
  %v245 = vunpack.c.l.b16 %v81
  %v246 = vunpack.c.l.b16 %v82
  %v247 = vunpack.c.l.b16 %v83
  %v248 = vunpack.c.l.b16 %v84
  %v249 = vunpack.c.l.b16 %v85
  %v250 = vpack.c.b16 %v187, %v186
  %v251 = vpack.c.b16 %v189, %v188
  %v252 = vpack.c.b16 %v191, %v190
  %v253 = vpack.c.b16 %v193, %v192
  %v254 = vpack.c.b16 %v195, %v194
  %v255 = vpack.c.b16 %v197, %v196
  %v256 = vpack.c.b16 %v199, %v198
  %v257 = vpack.c.b16 %v201, %v200
  %v258 = vpack.c.b16 %v203, %v202
  %v259 = vpack.c.b16 %v205, %v204
  %v260 = vpack.c.b16 %v207, %v206
  %v261 = vpack.c.b16 %v209, %v208
  %v262 = vpack.c.b16 %v211, %v210
  %v263 = vpack.c.b16 %v213, %v212
  %v264 = vpack.c.b16 %v215, %v214
  %v265 = vpack.c.b16 %v217, %v216
  %v266 = vpack.c.b16 %v219, %v218
  %v267 = vpack.c.b16 %v221, %v220
  %v268 = vpack.c.b16 %v223, %v222
  %v269 = vpack.c.b16 %v225, %v224
  %v270 = vpack.c.b16 %v227, %v226
  %v271 = vpack.c.b16 %v229, %v228
  %v272 = vpack.c.b16 %v231, %v230
  %v273 = vpack.c.b16 %v233, %v232
  %v274 = vpack.c.b16 %v235, %v234
  %v275 = vpack.c.b16 %v237, %v236
  %v276 = vpack.c.b16 %v239, %v238
  %v277 = vpack.c.b16 %v241, %v240
  %v278 = vpack.c.b16 %v243, %v242
  %v279 = vpack.c.b16 %v245, %v244
  %v280 = vpack.c.b16 %v247, %v246
  %v281 = vpack.c.b16 %v249, %v248
  %314 = vmatprep.subr.bf16.mxu0 0
  %315 = vmatpush1.bf16.msra.mxu0 %v250
  %316 = vmatprep.subr.bf16.mxu0 0
  %317 = vmatpush1.bf16.msra.mxu0 %v251
  %318 = vmatprep.subr.bf16.mxu0 0
  %319 = vmatpush1.bf16.msra.mxu0 %v252
  %320 = vmatprep.subr.bf16.mxu0 0
  %321 = vmatpush1.bf16.msra.mxu0 %v253
  %322 = vmatprep.subr.bf16.mxu0 0
  %323 = vmatpush1.bf16.msra.mxu0 %v254
  %324 = vmatprep.subr.bf16.mxu0 0
  %325 = vmatpush1.bf16.msra.mxu0 %v255
  %326 = vmatprep.subr.bf16.mxu0 0
  %327 = vmatpush1.bf16.msra.mxu0 %v256
  %328 = vmatprep.subr.bf16.mxu0 0
  %329 = vmatpush1.bf16.msra.mxu0 %v257
  %330 = vmatprep.subr.bf16.mxu0 0
  %331 = vmatpush1.bf16.msra.mxu0 %v258
  %332 = vmatprep.subr.bf16.mxu0 0
  %333 = vmatpush1.bf16.msra.mxu0 %v259
  %334 = vmatprep.subr.bf16.mxu0 0
  %335 = vmatpush1.bf16.msra.mxu0 %v260
  %336 = vmatprep.subr.bf16.mxu0 0
  %337 = vmatpush1.bf16.msra.mxu0 %v261
  %338 = vmatprep.subr.bf16.mxu0 0
  %339 = vmatpush1.bf16.msra.mxu0 %v262
  %340 = vmatprep.subr.bf16.mxu0 0
  %341 = vmatpush1.bf16.msra.mxu0 %v263
  %342 = vmatprep.subr.bf16.mxu0 0
  %343 = vmatpush1.bf16.msra.mxu0 %v264
  %344 = vmatprep.subr.bf16.mxu0 0
  %345 = vmatpush1.bf16.msra.mxu0 %v265
  %346 = vmatprep.mubr.bf16.mxu0 %v115
  %347 = vmatmul.mubr.bf16.gmra.mrb[0].mxu0 %v108
  %v348 = vpop.f32.mrb[0].mxu0
  %v349 = vadd.f32 %v91, %v348
  %v350 = vpop.f32.mrb[0].mxu0
  %v351 = vpop.f32.mrb[0].mxu0
  %v352 = vpop.f32.mrb[0].mxu0
  %353 = vdwg.mxu0
  %354 = vmatprep.subr.bf16.mxu0 0
  %355 = vmatpush1.bf16.msra.mxu0 %v266
  %356 = vmatprep.subr.bf16.mxu0 0
  %357 = vmatpush1.bf16.msra.mxu0 %v267
  %358 = vmatprep.subr.bf16.mxu0 0
  %359 = vmatpush1.bf16.msra.mxu0 %v268
  %360 = vmatprep.subr.bf16.mxu0 0
  %361 = vmatpush1.bf16.msra.mxu0 %v269
  %362 = vmatprep.subr.bf16.mxu0 0
  %363 = vmatpush1.bf16.msra.mxu0 %v270
  %364 = vmatprep.subr.bf16.mxu0 0
  %365 = vmatpush1.bf16.msra.mxu0 %v271
  %366 = vmatprep.subr.bf16.mxu0 0
  %367 = vmatpush1.bf16.msra.mxu0 %v272
  %368 = vmatprep.subr.bf16.mxu0 0
  %369 = vmatpush1.bf16.msra.mxu0 %v273
  %370 = vmatprep.subr.bf16.mxu0 0
  %371 = vmatpush1.bf16.msra.mxu0 %v274
  %372 = vmatprep.subr.bf16.mxu0 0
  %373 = vmatpush1.bf16.msra.mxu0 %v275
  %374 = vmatprep.subr.bf16.mxu0 0
  %375 = vmatpush1.bf16.msra.mxu0 %v276
  %376 = vmatprep.subr.bf16.mxu0 0
  %377 = vmatpush1.bf16.msra.mxu0 %v277
  %378 = vmatprep.subr.bf16.mxu0 0
  %379 = vmatpush1.bf16.msra.mxu0 %v278
  %380 = vmatprep.subr.bf16.mxu0 0
  %381 = vmatpush1.bf16.msra.mxu0 %v279
  %382 = vmatprep.subr.bf16.mxu0 0
  %383 = vmatpush1.bf16.msra.mxu0 %v280
  %384 = vmatprep.subr.bf16.mxu0 0
  %385 = vmatpush1.bf16.msra.mxu0 %v281
  %386 = vmatprep.mubr.bf16.mxu0 %v117
  %387 = vmatmul.mubr.bf16.gmra.mrb[0].mxu0 %v116
  %v388 = vpop.f32.mrb[0].mxu0
  %v389 = vadd.f32 %v349, %v388
  %v390 = vpop.f32.mrb[0].mxu0
  %v391 = vpop.f32.mrb[0].mxu0
  %v392 = vpop.f32.mrb[0].mxu0
  %393 = vdwg.mxu0
  %v394 = vmax.f32 %v389, 0.0
  %v395 = vpack.c.bf16 %v394, %v394
  %v396 = vld [vmem:[%s3] sm:$0xf]
  %v397 = vld [vmem:[%s3 + $0x4] sm:$0xf]
  %v398 = vld [vmem:[%s3 + $0x8] sm:$0xf]
  %v399 = vld [vmem:[%s3 + $0xc] sm:$0xf]
  %v400 = vld [vmem:[%s3 + $0x10] sm:$0xf]
  %v401 = vld [vmem:[%s3 + $0x14] sm:$0xf]
  %v402 = vld [vmem:[%s3 + $0x18] sm:$0xf]
  %v403 = vld [vmem:[%s3 + $0x1c] sm:$0xf]
  %v404 = vld [vmem:[%s3 + $0x20] sm:$0xf]
  %v405 = vld [vmem:[%s3 + $0x24] sm:$0xf]
  %v406 = vld [vmem:[%s3 + $0x28] sm:$0xf]
  %v407 = vld [vmem:[%s3 + $0x2c] sm:$0xf]
  %v408 = vld [vmem:[%s3 + $0x30] sm:$0xf]
  %v409 = vld [vmem:[%s3 + $0x34] sm:$0xf]
  %v410 = vld [vmem:[%s3 + $0x38] sm:$0xf]
  %v411 = vld [vmem:[%s3 + $0x3c] sm:$0xf]
  %v412 = vld [vmem:[%s4] sm:$0x1]
  %v414 = vlaneseq
  %v415 = vshrl.u32 %v414, 7
  %v416 = vsub.s32 0, %v415
  %v417 = vrot.slane %v412, %v416
  %v435 = vunpack.c.l.b16 %v396
  %v436 = vunpack.c.l.b16 %v397
  %v437 = vunpack.c.l.b16 %v398
  %v438 = vunpack.c.l.b16 %v399
  %v439 = vunpack.c.l.b16 %v400
  %v440 = vunpack.c.l.b16 %v401
  %v441 = vunpack.c.l.b16 %v402
  %v442 = vunpack.c.l.b16 %v403
  %v443 = vunpack.c.l.b16 %v404
  %v444 = vunpack.c.l.b16 %v405
  %v445 = vunpack.c.l.b16 %v406
  %v446 = vunpack.c.l.b16 %v407
  %v447 = vunpack.c.l.b16 %v408
  %v448 = vunpack.c.l.b16 %v409
  %v449 = vunpack.c.l.b16 %v410
  %v450 = vunpack.c.l.b16 %v411
  %v451 = vpack.c.b16 %v436, %v435
  %v452 = vpack.c.b16 %v438, %v437
  %v453 = vpack.c.b16 %v440, %v439
  %v454 = vpack.c.b16 %v442, %v441
  %v455 = vpack.c.b16 %v444, %v443
  %v456 = vpack.c.b16 %v446, %v445
  %v457 = vpack.c.b16 %v448, %v447
  %v458 = vpack.c.b16 %v450, %v449
  %467 = vmatprep.subr.bf16.mxu0 0
  %468 = vmatpush1.bf16.msra.mxu0 %v451
  %469 = vmatprep.subr.bf16.mxu0 0
  %470 = vmatpush1.bf16.msra.mxu0 %v452
  %471 = vmatprep.subr.bf16.mxu0 0
  %472 = vmatpush1.bf16.msra.mxu0 %v453
  %473 = vmatprep.subr.bf16.mxu0 0
  %474 = vmatpush1.bf16.msra.mxu0 %v454
  %475 = vmatprep.subr.bf16.mxu0 0
  %476 = vmatpush1.bf16.msra.mxu0 %v455
  %477 = vmatprep.subr.bf16.mxu0 0
  %478 = vmatpush1.bf16.msra.mxu0 %v456
  %479 = vmatprep.subr.bf16.mxu0 0
  %480 = vmatpush1.bf16.msra.mxu0 %v457
  %481 = vmatprep.subr.bf16.mxu0 0
  %482 = vmatpush1.bf16.msra.mxu0 %v458
  %483 = vmatprep.subr.bf16.mxu0 0
  %484 = vmatpush1.bf16.msra.mxu0 0
  %485 = vmatprep.subr.bf16.mxu0 0
  %486 = vmatpush1.bf16.msra.mxu0 0
  %487 = vmatprep.subr.bf16.mxu0 0
  %488 = vmatpush1.bf16.msra.mxu0 0
  %489 = vmatprep.subr.bf16.mxu0 0
  %490 = vmatpush1.bf16.msra.mxu0 0
  %491 = vmatprep.subr.bf16.mxu0 0
  %492 = vmatpush1.bf16.msra.mxu0 0
  %493 = vmatprep.subr.bf16.mxu0 0
  %494 = vmatpush1.bf16.msra.mxu0 0
  %495 = vmatprep.subr.bf16.mxu0 0
  %496 = vmatpush1.bf16.msra.mxu0 0
  %497 = vmatprep.subr.bf16.mxu0 0
  %498 = vmatpush1.bf16.msra.mxu0 0
  %499 = vmatprep.mubr.bf16.mxu0 0
  %500 = vmatmul.mubr.bf16.gmra.mrb[0].mxu0 %v395
  %v501 = vpop.f32.mrb[0].mxu0
  %v502 = vadd.f32 %v417, %v501
  %v503 = vpop.f32.mrb[0].mxu0
  %v504 = vpop.f32.mrb[0].mxu0
  %v505 = vpop.f32.mrb[0].mxu0
  %506 = vdwg.mxu0
  %507 = vst [vmem:[%s5] sm:$0x3] %v502
  // Predicated region
  $region22: #{_lambda_.7} parent=0 // pred_check
    _
  $region23: #{_lambda_.7} parent=0 // pred_check_branch
    %509 = sbr.rel (0) target = $region25
  $region24: #{_lambda_.7} parent=0 // pred_region
    _
  $region25: #{_lambda_.7} parent=0 // pred_fallthru
    _
  // Predicated region
  $region26: #{_lambda_.7} parent=0 // pred_check
    _
  $region27: #{_lambda_.7} parent=0 // pred_check_branch
    %511 = sbr.rel (0) target = $region29
  $region28: #{_lambda_.7} parent=0 // pred_region
    _
  $region29: #{_lambda_.7} parent=0 // pred_fallthru
    _

// kernel: _lambda_.5
$region0: #{_lambda_.5}
  #allocation0 [shape = 'u32[]', space=smem, size = 0x4, offset = 0x4, fixed_abs, tag = 'smem constant byte address 0x4 - core index']
  #allocation1 [shape = 'u32[144,128]{1,0:T(1,128)}', space=vmem, size = 0x12000, scoped, tag = 'internal scratch']
  %s0 = inlined_call_operand.vmem [shape: bf16[2,32,17,128], index: 0, kind: input, shape index: {}]
  %s1 = inlined_call_operand.vmem [shape: bf16[1152,128], index: 1, kind: input, shape index: {}]
  %s2 = inlined_call_operand.vmem [shape: f32[1,128], index: 2, kind: input, shape index: {}]
  %s3 = inlined_call_operand.vmem [shape: bf16[2,96,128], index: 3, kind: output, shape index: {}]
  %s4 = sld [smem:[#allocation0]]
  $region45: #{_lambda_.5} parent=0
    _
  %s6 = ssub.s32 1, %s4
  %s7 = scalar_select 0, %s6, %s4
  loop: start=0, step=1, limit=4
  $region2: #{_lambda_.5} parent=0 // loop_pre_header
    _
  $region3: #{_lambda_.5} parent=0 // loop_header
    %s9 = sphi 0, %s13
    %p10 = scmp.ge.s32.totalorder %s9, 4
    %s19 = sphi 0, %s21
    %s22 = sphi 0, %s19
    %s23 = sphi 0, %s22
    %s39 = sphi 0, %s23
    %s43 = sphi 0, %s43
    %s45 = sphi 0, %s43
    %s46 = sphi 0, %s45
    %s60 = sphi 0, %s46
    %s64 = sphi 0, %s64
    %s66 = sphi 0, %s64
    %s67 = sphi 0, %s66
    %s81 = sphi 0, %s67
    %s87 = sphi 0, %s89
    %s90 = sphi 0, %s87
    %s91 = sphi 0, %s90
    %s107 = sphi 0, %s91
  $region4: #{_lambda_.5} parent=0 // loop_header_branch
    %12 = sbr.rel (%p10) target = $region8
  $region5: #{_lambda_.5} parent=0 // loop_body
    %s14 = ssub.s32 %s9, 1
    %s15 = ssub.s32 %s9, 2
    %s16 = sadd.s32 %s9, 1
    %s17 = ssub.s32 %s9, %s16
    %p18 = scmp.eq.s32.totalorder %s17, 0
    %s20 = sadd.s32 %s19, 1
    %s21 = scalar_select %p18, %s19, %s20
    %p24 = pneg %p18
    %p25 = scmp.eq.s32.totalorder %s9, 1
    %p26 = por %p24, %p25
    %p27 = scmp.ne.s32.totalorder %s19, %s22
    %p28 = scmp.eq.s32.totalorder %s9, 0
    %p29 = por %p27, %p28
    %p30 = scmp.ne.s32.totalorder %s19, %s22
    %p31 = scmp.eq.s32.totalorder %s14, 1
    %p32 = por %p30, %p31
    %p33 = scmp.ne.s32.totalorder %s22, %s23
    %p34 = scmp.eq.s32.totalorder %s14, 0
    %p35 = por %p33, %p34
    %p36 = scmp.ne.s32.totalorder %s22, %s23
    %p37 = scmp.eq.s32.totalorder %s15, 1
    %p38 = por %p36, %p37
    %p40 = scmp.ne.s32.totalorder %s23, %s39
    %p41 = scmp.eq.s32.totalorder %s15, 0
    %p42 = por %p40, %p41
    %s44 = sadd.s32 %s43, 1
    %p47 = scmp.eq.s32.totalorder %s9, 1
    %p48 = scmp.ne.s32.totalorder %s43, %s45
    %p49 = scmp.eq.s32.totalorder %s9, 0
    %p50 = por %p48, %p49
    %p51 = scmp.ne.s32.totalorder %s43, %s45
    %p52 = scmp.eq.s32.totalorder %s14, 1
    %p53 = por %p51, %p52
    %p54 = scmp.ne.s32.totalorder %s45, %s46
    %p55 = scmp.eq.s32.totalorder %s14, 0
    %p56 = por %p54, %p55
    %p57 = scmp.ne.s32.totalorder %s45, %s46
    %p58 = scmp.eq.s32.totalorder %s15, 1
    %p59 = por %p57, %p58
    %p61 = scmp.ne.s32.totalorder %s46, %s60
    %p62 = scmp.eq.s32.totalorder %s15, 0
    %p63 = por %p61, %p62
    %s65 = sadd.s32 %s64, 1
    %p68 = scmp.eq.s32.totalorder %s9, 1
    %p69 = scmp.ne.s32.totalorder %s64, %s66
    %p70 = scmp.eq.s32.totalorder %s9, 0
    %p71 = por %p69, %p70
    %p72 = scmp.ne.s32.totalorder %s64, %s66
    %p73 = scmp.eq.s32.totalorder %s14, 1
    %p74 = por %p72, %p73
    %p75 = scmp.ne.s32.totalorder %s66, %s67
    %p76 = scmp.eq.s32.totalorder %s14, 0
    %p77 = por %p75, %p76
    %p78 = scmp.ne.s32.totalorder %s66, %s67
    %p79 = scmp.eq.s32.totalorder %s15, 1
    %p80 = por %p78, %p79
    %p82 = scmp.ne.s32.totalorder %s67, %s81
    %p83 = scmp.eq.s32.totalorder %s15, 0
    %p84 = por %p82, %p83
    %s85 = ssub.s32 %s9, %s16
    %p86 = scmp.eq.s32.totalorder %s85, 0
    %s88 = sadd.s32 %s87, 1
    %s89 = scalar_select %p86, %s87, %s88
    %p92 = pneg %p86
    %p93 = scmp.eq.s32.totalorder %s9, 1
    %p94 = por %p92, %p93
    %p95 = scmp.ne.s32.totalorder %s87, %s90
    %p96 = scmp.eq.s32.totalorder %s9, 0
    %p97 = por %p95, %p96
    %p98 = scmp.ne.s32.totalorder %s87, %s90
    %p99 = scmp.eq.s32.totalorder %s14, 1
    %p100 = por %p98, %p99
    %p101 = scmp.ne.s32.totalorder %s90, %s91
    %p102 = scmp.eq.s32.totalorder %s14, 0
    %p103 = por %p101, %p102
    %p104 = scmp.ne.s32.totalorder %s90, %s91
    %p105 = scmp.eq.s32.totalorder %s15, 1
    %p106 = por %p104, %p105
    %p108 = scmp.ne.s32.totalorder %s91, %s107
    %p109 = scmp.eq.s32.totalorder %s15, 0
    %p110 = por %p108, %p109
    %p111 = scmp.le.s32.totalorder 1, %s9
    %p112 = scmp.lt.s32.totalorder %s9, 3
    %p113 = pnand %p111, %p112
    %p114 = pneg %p113
    // Predicated region
    $region9: #{_lambda_.5} parent=5 // pred_check
      _
    $region10: #{_lambda_.5} parent=5 // pred_check_branch
      %116 = sbr.rel (%p113) target = $region12
    $region11: #{_lambda_.5} parent=5 // pred_region
      %s117 = ssub.s32 %s9, 1
      // Predicated region
      $region13: #{_lambda_.5} parent=11 // pred_check
        %p118 = pneg %p56
      $region14: #{_lambda_.5} parent=11 // pred_check_branch
        %120 = sbr.rel (%p118) target = $region16
      $region15: #{_lambda_.5} parent=11 // pred_region
        _
      $region16: #{_lambda_.5} parent=11 // pred_fallthru
        _
      // Predicated region
      $region17: #{_lambda_.5} parent=11 // pred_check
        %p121 = pneg %p77
      $region18: #{_lambda_.5} parent=11 // pred_check_branch
        %123 = sbr.rel (%p121) target = $region20
      $region19: #{_lambda_.5} parent=11 // pred_region
        _
      $region20: #{_lambda_.5} parent=11 // pred_fallthru
        _
    $region12: #{_lambda_.5} parent=5 // pred_fallthru
      _
    %p124 = scmp.lt.s32.totalorder %s9, 2
    // Predicated region
    $region21: #{_lambda_.5} parent=5 // pred_check
      %p125 = pneg %p124
    $region22: #{_lambda_.5} parent=5 // pred_check_branch
      %127 = sbr.rel (%p125) target = $region24
    $region23: #{_lambda_.5} parent=5 // pred_region
      // Predicated region
      $region25: #{_lambda_.5} parent=23 // pred_check
        %p128 = pneg %p29
      $region26: #{_lambda_.5} parent=23 // pred_check_branch
        %130 = sbr.rel (%p128) target = $region28
      $region27: #{_lambda_.5} parent=23 // pred_region
        %p131 = scmp.lt.s32.totalorder %s9, 1
        %s132 = scalar_select %p131, %s9, 1
        %s133 = smul.addr %s132, 96
        %s134 = smul.addr %s133, 4
        %s135 = scalar_lea.vmem %s0, %s134
      $region28: #{_lambda_.5} parent=23 // pred_fallthru
        _
    $region24: #{_lambda_.5} parent=5 // pred_fallthru
      _
    %p136 = scmp.le.s32.totalorder 1, %s9
    %p137 = scmp.lt.s32.totalorder %s9, 3
    %p138 = pnand %p136, %p137
    %p139 = pneg %p138
    // Predicated region
    $region29: #{_lambda_.5} parent=5 // pred_check
      _
    $region30: #{_lambda_.5} parent=5 // pred_check_branch
      %141 = sbr.rel (%p138) target = $region32
    $region31: #{_lambda_.5} parent=5 // pred_region
      %s142 = ssub.s32 %s9, 1
      %p143 = scmp.lt.s32.totalorder %s14, 1
      %s144 = scalar_select %p143, %s14, 1
      %s145 = smul.addr %s144, 96
      %s146 = smul.addr %s145, 4
      %s147 = scalar_lea.vmem %s0, %s146
      %p148 = pneg %p35
      %p149 = pneg %p32
      %p150 = pneg %p56
      %p151 = pneg %p53
      %p152 = pneg %p77
      %p153 = pneg %p74
      %p154 = pneg %p103
      %p155 = pneg %p100
      %p156 = scmp.lt.s32.totalorder %s14, 1
      %s157 = scalar_select %p156, %s14, 1
      %s158 = smul.addr %s157, 12
      %s159 = smul.addr %s158, 4
      %s160 = scalar_lea.vmem %s3, %s159
      %p161 = scmp.lt.s32.totalorder %s14, 1
      %s162 = scalar_select %p161, %s14, 1
      %s163 = smul.addr %s162, 96
      %s164 = smul.addr %s163, 4
      %s165 = scalar_lea.vmem %s0, %s164
      %p166 = scmp.lt.s32.totalorder %s14, 1
      %s167 = scalar_select %p166, %s14, 1
      %s168 = smul.addr %s167, 12
      %s169 = smul.addr %s168, 4
      %s170 = scalar_lea.vmem %s3, %s169
      %v172 = vld [vmem:[%s165] sm:$0xf]
      %v173 = vld [vmem:[%s165 + $0x4] sm:$0xf]
      %v174 = vld [vmem:[%s165 + $0xc] sm:$0xf]
      %v175 = vld [vmem:[%s165 + $0x10] sm:$0xf]
      %v176 = vld [vmem:[%s165 + $0x18] sm:$0xf]
      %v177 = vld [vmem:[%s165 + $0x1c] sm:$0xf]
      %v178 = vld [vmem:[%s165 + $0x24] sm:$0xf]
      %v179 = vld [vmem:[%s165 + $0x28] sm:$0xf]
      %v180 = vld [vmem:[%s165 + $0x30] sm:$0xf]
      %v181 = vld [vmem:[%s165 + $0x34] sm:$0xf]
      %v182 = vld [vmem:[%s165 + $0x3c] sm:$0xf]
      %v183 = vld [vmem:[%s165 + $0x40] sm:$0xf]
      %s184 = scalar_lea.vmem %s165, 96
      %v185 = vld [vmem:[%s184] sm:$0xf]
      %v186 = vld [vmem:[%s184 + $0x4] sm:$0xf]
      %v187 = vld [vmem:[%s184 + $0xc] sm:$0xf]
      %v188 = vld [vmem:[%s184 + $0x10] sm:$0xf]
      %v189 = vld [vmem:[%s184 + $0x18] sm:$0xf]
      %v190 = vld [vmem:[%s184 + $0x1c] sm:$0xf]
      %v191 = vld [vmem:[%s184 + $0x24] sm:$0xf]
      %v192 = vld [vmem:[%s184 + $0x28] sm:$0xf]
      %v193 = vld [vmem:[%s184 + $0x30] sm:$0xf]
      %v194 = vld [vmem:[%s184 + $0x34] sm:$0xf]
      %v195 = vld [vmem:[%s184 + $0x3c] sm:$0xf]
      %v196 = vld [vmem:[%s184 + $0x40] sm:$0xf]
      %v197 = vld [vmem:[%s165 + $0x8] sm:$0x1]
      %v198 = vld [vmem:[%s165 + $0x14] sm:$0x1]
      %v199 = vld [vmem:[%s165 + $0x20] sm:$0x1]
      %v200 = vld [vmem:[%s165 + $0x2c] sm:$0x1]
      %v201 = vld [vmem:[%s165 + $0x38] sm:$0x1]
      %v202 = vld [vmem:[%s165 + $0x44] sm:$0x1]
      %s203 = scalar_lea.vmem %s165, 192
      %v204 = vld [vmem:[%s203] sm:$0xf]
      %v205 = vld [vmem:[%s203 + $0x4] sm:$0xf]
      %v206 = vld [vmem:[%s203 + $0xc] sm:$0xf]
      %v207 = vld [vmem:[%s203 + $0x10] sm:$0xf]
      %v208 = vld [vmem:[%s203 + $0x18] sm:$0xf]
      %v209 = vld [vmem:[%s203 + $0x1c] sm:$0xf]
      %v210 = vld [vmem:[%s203 + $0x24] sm:$0xf]
      %v211 = vld [vmem:[%s203 + $0x28] sm:$0xf]
      %v212 = vld [vmem:[%s203 + $0x30] sm:$0xf]
      %v213 = vld [vmem:[%s203 + $0x34] sm:$0xf]
      %v214 = vld [vmem:[%s203 + $0x3c] sm:$0xf]
      %v215 = vld [vmem:[%s203 + $0x40] sm:$0xf]
      %s216 = scalar_lea.vmem %s165, 288
      %v217 = vld [vmem:[%s216] sm:$0xf]
      %v218 = vld [vmem:[%s216 + $0x4] sm:$0xf]
      %v219 = vld [vmem:[%s216 + $0xc] sm:$0xf]
      %v220 = vld [vmem:[%s216 + $0x10] sm:$0xf]
      %v221 = vld [vmem:[%s216 + $0x18] sm:$0xf]
      %v222 = vld [vmem:[%s216 + $0x1c] sm:$0xf]
      %v223 = vld [vmem:[%s216 + $0x24] sm:$0xf]
      %v224 = vld [vmem:[%s216 + $0x28] sm:$0xf]
      %v225 = vld [vmem:[%s216 + $0x30] sm:$0xf]
      %v226 = vld [vmem:[%s216 + $0x34] sm:$0xf]
      %v227 = vld [vmem:[%s216 + $0x3c] sm:$0xf]
      %v228 = vld [vmem:[%s216 + $0x40] sm:$0xf]
      %v229 = vld [vmem:[%s203 + $0x8] sm:$0x1]
      %v230 = vld [vmem:[%s203 + $0x14] sm:$0x1]
      %v231 = vld [vmem:[%s203 + $0x20] sm:$0x1]
      %v232 = vld [vmem:[%s203 + $0x2c] sm:$0x1]
      %v233 = vld [vmem:[%s203 + $0x38] sm:$0x1]
      %v234 = vld [vmem:[%s203 + $0x44] sm:$0x1]
      %s235 = scalar_lea.vmem %s165, 12
      %v236 = vld [vmem:[%s235] sm:$0xf]
      %v237 = vld [vmem:[%s235 + $0x4] sm:$0xf]
      %v238 = vld [vmem:[%s235 + $0xc] sm:$0xf]
      %v239 = vld [vmem:[%s235 + $0x10] sm:$0xf]
      %v240 = vld [vmem:[%s235 + $0x18] sm:$0xf]
      %v241 = vld [vmem:[%s235 + $0x1c] sm:$0xf]
      %v242 = vld [vmem:[%s235 + $0x24] sm:$0xf]
      %v243 = vld [vmem:[%s235 + $0x28] sm:$0xf]
      %v244 = vld [vmem:[%s235 + $0x30] sm:$0xf]
      %v245 = vld [vmem:[%s235 + $0x34] sm:$0xf]
      %v246 = vld [vmem:[%s235 + $0x3c] sm:$0xf]
      %v247 = vld [vmem:[%s235 + $0x40] sm:$0xf]
      %s248 = scalar_lea.vmem %s165, 108
      %v249 = vld [vmem:[%s248] sm:$0xf]
      %v250 = vld [vmem:[%s248 + $0x4] sm:$0xf]
      %v251 = vld [vmem:[%s248 + $0xc] sm:$0xf]
      %v252 = vld [vmem:[%s248 + $0x10] sm:$0xf]
      %v253 = vld [vmem:[%s248 + $0x18] sm:$0xf]
      %v254 = vld [vmem:[%s248 + $0x1c] sm:$0xf]
      %v255 = vld [vmem:[%s248 + $0x24] sm:$0xf]
      %v256 = vld [vmem:[%s248 + $0x28] sm:$0xf]
      %v257 = vld [vmem:[%s248 + $0x30] sm:$0xf]
      %v258 = vld [vmem:[%s248 + $0x34] sm:$0xf]
      %v259 = vld [vmem:[%s248 + $0x3c] sm:$0xf]
      %v260 = vld [vmem:[%s248 + $0x40] sm:$0xf]
      %v261 = vld [vmem:[%s235 + $0x8] sm:$0x1]
      %v262 = vld [vmem:[%s235 + $0x14] sm:$0x1]
      %v263 = vld [vmem:[%s235 + $0x20] sm:$0x1]
      %v264 = vld [vmem:[%s235 + $0x2c] sm:$0x1]
      %v265 = vld [vmem:[%s235 + $0x38] sm:$0x1]
      %v266 = vld [vmem:[%s235 + $0x44] sm:$0x1]
      %v279 = vunpack.c.l.b16 %v172
      %v280 = vunpack.c.l.b16 %v173
      %v281 = vunpack.c.l.b16 %v174
      %v282 = vunpack.c.l.b16 %v175
      %v283 = vunpack.c.l.b16 %v176
      %v284 = vunpack.c.l.b16 %v177
      %v285 = vunpack.c.l.b16 %v178
      %v286 = vunpack.c.l.b16 %v179
      %v287 = vunpack.c.l.b16 %v180
      %v288 = vunpack.c.l.b16 %v181
      %v289 = vunpack.c.l.b16 %v182
      %v290 = vunpack.c.l.b16 %v183
      %v291 = vpack.c.b16 %v280, %v279
      %v292 = vpack.c.b16 %v282, %v281
      %v293 = vpack.c.b16 %v284, %v283
      %v294 = vpack.c.b16 %v286, %v285
      %v295 = vpack.c.b16 %v288, %v287
      %v296 = vpack.c.b16 %v290, %v289
      %v315 = vunpack.c.l.b16 %v185
      %v316 = vunpack.c.l.b16 %v186
      %v317 = vunpack.c.l.b16 %v187
      %v318 = vunpack.c.l.b16 %v188
      %v319 = vunpack.c.l.b16 %v189
      %v320 = vunpack.c.l.b16 %v190
      %v321 = vunpack.c.l.b16 %v191
      %v322 = vunpack.c.l.b16 %v192
      %v323 = vunpack.c.l.b16 %v193
      %v324 = vunpack.c.l.b16 %v194
      %v325 = vunpack.c.l.b16 %v195
      %v326 = vunpack.c.l.b16 %v196
      %v327 = vpack.c.b16 %v316, %v315
      %v328 = vpack.c.b16 %v318, %v317
      %v329 = vpack.c.b16 %v320, %v319
      %v330 = vpack.c.b16 %v322, %v321
      %v331 = vpack.c.b16 %v324, %v323
      %v332 = vpack.c.b16 %v326, %v325
      %v345 = vunpack.c.l.b16 %v197
      %v346 = vunpack.c.l.b16 %v198
      %v347 = vunpack.c.l.b16 %v199
      %v348 = vunpack.c.l.b16 %v200
      %v349 = vunpack.c.l.b16 %v201
      %v350 = vunpack.c.l.b16 %v202
      %v351 = vpack.c.b16 %v345, %v345
      %v352 = vpack.c.b16 %v346, %v346
      %v353 = vpack.c.b16 %v347, %v347
      %v354 = vpack.c.b16 %v348, %v348
      %v355 = vpack.c.b16 %v349, %v349
      %v356 = vpack.c.b16 %v350, %v350
      %vm357 = vsmask.f32 7424
      %v359 = vshrl.u32 %v291, 16
      %v361 = vshll.u32 %v291, 16
      %v363 = vrot.slane %v361, 1
      %v364 = vor.u32 %v359, %v363
      %v366 = vshll.u32 %v351, 16
      %v368 = vrot.slane %v366, 1
      %v369 = vsel %vm357, %v364, %v368
      %v371 = vshrl.u32 %v292, 16
      %v373 = vshll.u32 %v292, 16
      %v375 = vrot.slane %v373, 1
      %v376 = vor.u32 %v371, %v375
      %v378 = vshll.u32 %v352, 16
      %v380 = vrot.slane %v378, 1
      %v381 = vsel %vm357, %v376, %v380
      %v383 = vshrl.u32 %v293, 16
      %v385 = vshll.u32 %v293, 16
      %v387 = vrot.slane %v385, 1
      %v388 = vor.u32 %v383, %v387
      %v390 = vshll.u32 %v353, 16
      %v392 = vrot.slane %v390, 1
      %v393 = vsel %vm357, %v388, %v392
      %v395 = vshrl.u32 %v294, 16
      %v397 = vshll.u32 %v294, 16
      %v399 = vrot.slane %v397, 1
      %v400 = vor.u32 %v395, %v399
      %v402 = vshll.u32 %v354, 16
      %v404 = vrot.slane %v402, 1
      %v405 = vsel %vm357, %v400, %v404
      %v407 = vshrl.u32 %v295, 16
      %v409 = vshll.u32 %v295, 16
      %v411 = vrot.slane %v409, 1
      %v412 = vor.u32 %v407, %v411
      %v414 = vshll.u32 %v355, 16
      %v416 = vrot.slane %v414, 1
      %v417 = vsel %vm357, %v412, %v416
      %v419 = vshrl.u32 %v296, 16
      %v421 = vshll.u32 %v296, 16
      %v423 = vrot.slane %v421, 1
      %v424 = vor.u32 %v419, %v423
      %v426 = vshll.u32 %v356, 16
      %v428 = vrot.slane %v426, 1
      %v429 = vsel %vm357, %v424, %v428
      %v448 = vunpack.c.l.b16 %v204
      %v449 = vunpack.c.l.b16 %v205
      %v450 = vunpack.c.l.b16 %v206
      %v451 = vunpack.c.l.b16 %v207
      %v452 = vunpack.c.l.b16 %v208
      %v453 = vunpack.c.l.b16 %v209
      %v454 = vunpack.c.l.b16 %v210
      %v455 = vunpack.c.l.b16 %v211
      %v456 = vunpack.c.l.b16 %v212
      %v457 = vunpack.c.l.b16 %v213
      %v458 = vunpack.c.l.b16 %v214
      %v459 = vunpack.c.l.b16 %v215
      %v460 = vpack.c.b16 %v449, %v448
      %v461 = vpack.c.b16 %v451, %v450
      %v462 = vpack.c.b16 %v453, %v452
      %v463 = vpack.c.b16 %v455, %v454
      %v464 = vpack.c.b16 %v457, %v456
      %v465 = vpack.c.b16 %v459, %v458
      %v484 = vunpack.c.l.b16 %v217
      %v485 = vunpack.c.l.b16 %v218
      %v486 = vunpack.c.l.b16 %v219
      %v487 = vunpack.c.l.b16 %v220
      %v488 = vunpack.c.l.b16 %v221
      %v489 = vunpack.c.l.b16 %v222
      %v490 = vunpack.c.l.b16 %v223
      %v491 = vunpack.c.l.b16 %v224
      %v492 = vunpack.c.l.b16 %v225
      %v493 = vunpack.c.l.b16 %v226
      %v494 = vunpack.c.l.b16 %v227
      %v495 = vunpack.c.l.b16 %v228
      %v496 = vpack.c.b16 %v485, %v484
      %v497 = vpack.c.b16 %v487, %v486
      %v498 = vpack.c.b16 %v489, %v488
      %v499 = vpack.c.b16 %v491, %v490
      %v500 = vpack.c.b16 %v493, %v492
      %v501 = vpack.c.b16 %v495, %v494
      %v514 = vunpack.c.l.b16 %v229
      %v515 = vunpack.c.l.b16 %v230
      %v516 = vunpack.c.l.b16 %v231
      %v517 = vunpack.c.l.b16 %v232
      %v518 = vunpack.c.l.b16 %v233
      %v519 = vunpack.c.l.b16 %v234
      %v520 = vpack.c.b16 %v514, %v514
      %v521 = vpack.c.b16 %v515, %v515
      %v522 = vpack.c.b16 %v516, %v516
      %v523 = vpack.c.b16 %v517, %v517
      %v524 = vpack.c.b16 %v518, %v518
      %v525 = vpack.c.b16 %v519, %v519
      %v527 = vshrl.u32 %v460, 16
      %v529 = vshll.u32 %v460, 16
      %v531 = vrot.slane %v529, 1
      %v532 = vor.u32 %v527, %v531
      %v534 = vshll.u32 %v520, 16
      %v536 = vrot.slane %v534, 1
      %v537 = vsel %vm357, %v532, %v536
      %v539 = vshrl.u32 %v461, 16
      %v541 = vshll.u32 %v461, 16
      %v543 = vrot.slane %v541, 1
      %v544 = vor.u32 %v539, %v543
      %v546 = vshll.u32 %v521, 16
      %v548 = vrot.slane %v546, 1
      %v549 = vsel %vm357, %v544, %v548
      %v551 = vshrl.u32 %v462, 16
      %v553 = vshll.u32 %v462, 16
      %v555 = vrot.slane %v553, 1
      %v556 = vor.u32 %v551, %v555
      %v558 = vshll.u32 %v522, 16
      %v560 = vrot.slane %v558, 1
      %v561 = vsel %vm357, %v556, %v560
      %v563 = vshrl.u32 %v463, 16
      %v565 = vshll.u32 %v463, 16
      %v567 = vrot.slane %v565, 1
      %v568 = vor.u32 %v563, %v567
      %v570 = vshll.u32 %v523, 16
      %v572 = vrot.slane %v570, 1
      %v573 = vsel %vm357, %v568, %v572
      %v575 = vshrl.u32 %v464, 16
      %v577 = vshll.u32 %v464, 16
      %v579 = vrot.slane %v577, 1
      %v580 = vor.u32 %v575, %v579
      %v582 = vshll.u32 %v524, 16
      %v584 = vrot.slane %v582, 1
      %v585 = vsel %vm357, %v580, %v584
      %v587 = vshrl.u32 %v465, 16
      %v589 = vshll.u32 %v465, 16
      %v591 = vrot.slane %v589, 1
      %v592 = vor.u32 %v587, %v591
      %v594 = vshll.u32 %v525, 16
      %v596 = vrot.slane %v594, 1
      %v597 = vsel %vm357, %v592, %v596
      %v616 = vunpack.c.l.b16 %v236
      %v617 = vunpack.c.l.b16 %v237
      %v618 = vunpack.c.l.b16 %v238
      %v619 = vunpack.c.l.b16 %v239
      %v620 = vunpack.c.l.b16 %v240
      %v621 = vunpack.c.l.b16 %v241
      %v622 = vunpack.c.l.b16 %v242
      %v623 = vunpack.c.l.b16 %v243
      %v624 = vunpack.c.l.b16 %v244
      %v625 = vunpack.c.l.b16 %v245
      %v626 = vunpack.c.l.b16 %v246
      %v627 = vunpack.c.l.b16 %v247
      %v628 = vpack.c.b16 %v617, %v616
      %v629 = vpack.c.b16 %v619, %v618
      %v630 = vpack.c.b16 %v621, %v620
      %v631 = vpack.c.b16 %v623, %v622
      %v632 = vpack.c.b16 %v625, %v624
      %v633 = vpack.c.b16 %v627, %v626
      %v652 = vunpack.c.l.b16 %v249
      %v653 = vunpack.c.l.b16 %v250
      %v654 = vunpack.c.l.b16 %v251
      %v655 = vunpack.c.l.b16 %v252
      %v656 = vunpack.c.l.b16 %v253
      %v657 = vunpack.c.l.b16 %v254
      %v658 = vunpack.c.l.b16 %v255
      %v659 = vunpack.c.l.b16 %v256
      %v660 = vunpack.c.l.b16 %v257
      %v661 = vunpack.c.l.b16 %v258
      %v662 = vunpack.c.l.b16 %v259
      %v663 = vunpack.c.l.b16 %v260
      %v664 = vpack.c.b16 %v653, %v652
      %v665 = vpack.c.b16 %v655, %v654
      %v666 = vpack.c.b16 %v657, %v656
      %v667 = vpack.c.b16 %v659, %v658
      %v668 = vpack.c.b16 %v661, %v660
      %v669 = vpack.c.b16 %v663, %v662
      %v682 = vunpack.c.l.b16 %v261
      %v683 = vunpack.c.l.b16 %v262
      %v684 = vunpack.c.l.b16 %v263
      %v685 = vunpack.c.l.b16 %v264
      %v686 = vunpack.c.l.b16 %v265
      %v687 = vunpack.c.l.b16 %v266
      %v688 = vpack.c.b16 %v682, %v682
      %v689 = vpack.c.b16 %v683, %v683
      %v690 = vpack.c.b16 %v684, %v684
      %v691 = vpack.c.b16 %v685, %v685
      %v692 = vpack.c.b16 %v686, %v686
      %v693 = vpack.c.b16 %v687, %v687
      %v695 = vshrl.u32 %v628, 16
      %v697 = vshll.u32 %v628, 16
      %v699 = vrot.slane %v697, 1
      %v700 = vor.u32 %v695, %v699
      %v702 = vshll.u32 %v688, 16
      %v704 = vrot.slane %v702, 1
      %v705 = vsel %vm357, %v700, %v704
      %v707 = vshrl.u32 %v629, 16
      %v709 = vshll.u32 %v629, 16
      %v711 = vrot.slane %v709, 1
      %v712 = vor.u32 %v707, %v711
      %v714 = vshll.u32 %v689, 16
      %v716 = vrot.slane %v714, 1
      %v717 = vsel %vm357, %v712, %v716
      %v719 = vshrl.u32 %v630, 16
      %v721 = vshll.u32 %v630, 16
      %v723 = vrot.slane %v721, 1
      %v724 = vor.u32 %v719, %v723
      %v726 = vshll.u32 %v690, 16
      %v728 = vrot.slane %v726, 1
      %v729 = vsel %vm357, %v724, %v728
      %v731 = vshrl.u32 %v631, 16
      %v733 = vshll.u32 %v631, 16
      %v735 = vrot.slane %v733, 1
      %v736 = vor.u32 %v731, %v735
      %v738 = vshll.u32 %v691, 16
      %v740 = vrot.slane %v738, 1
      %v741 = vsel %vm357, %v736, %v740
      %v743 = vshrl.u32 %v632, 16
      %v745 = vshll.u32 %v632, 16
      %v747 = vrot.slane %v745, 1
      %v748 = vor.u32 %v743, %v747
      %v750 = vshll.u32 %v692, 16
      %v752 = vrot.slane %v750, 1
      %v753 = vsel %vm357, %v748, %v752
      %v755 = vshrl.u32 %v633, 16
      %v757 = vshll.u32 %v633, 16
      %v759 = vrot.slane %v757, 1
      %v760 = vor.u32 %v755, %v759
      %v762 = vshll.u32 %v693, 16
      %v764 = vrot.slane %v762, 1
      %v765 = vsel %vm357, %v760, %v764
      %v772 = vld [vmem:[%s184 + $0x8] sm:$0x1]
      %v773 = vld [vmem:[%s184 + $0x14] sm:$0x1]
      %v774 = vld [vmem:[%s184 + $0x20] sm:$0x1]
      %v775 = vld [vmem:[%s184 + $0x2c] sm:$0x1]
      %v776 = vld [vmem:[%s184 + $0x38] sm:$0x1]
      %v777 = vld [vmem:[%s184 + $0x44] sm:$0x1]
      %v778 = vld [vmem:[%s216 + $0x8] sm:$0x1]
      %v779 = vld [vmem:[%s216 + $0x14] sm:$0x1]
      %v780 = vld [vmem:[%s216 + $0x20] sm:$0x1]
      %v781 = vld [vmem:[%s216 + $0x2c] sm:$0x1]
      %v782 = vld [vmem:[%s216 + $0x38] sm:$0x1]
      %v783 = vld [vmem:[%s216 + $0x44] sm:$0x1]
      %v784 = vld [vmem:[%s248 + $0x8] sm:$0x1]
      %v785 = vld [vmem:[%s248 + $0x14] sm:$0x1]
      %v786 = vld [vmem:[%s248 + $0x20] sm:$0x1]
      %v787 = vld [vmem:[%s248 + $0x2c] sm:$0x1]
      %v788 = vld [vmem:[%s248 + $0x38] sm:$0x1]
      %v789 = vld [vmem:[%s248 + $0x44] sm:$0x1]
      %v796 = vunpack.c.l.b16 %v772
      %v797 = vunpack.c.l.b16 %v773
      %v798 = vunpack.c.l.b16 %v774
      %v799 = vunpack.c.l.b16 %v775
      %v800 = vunpack.c.l.b16 %v776
      %v801 = vunpack.c.l.b16 %v777
      %v802 = vpack.c.b16 %v796, %v796
      %v803 = vpack.c.b16 %v797, %v797
      %v804 = vpack.c.b16 %v798, %v798
      %v805 = vpack.c.b16 %v799, %v799
      %v806 = vpack.c.b16 %v800, %v800
      %v807 = vpack.c.b16 %v801, %v801
      %v809 = vshrl.u32 %v327, 16
      %v811 = vshll.u32 %v327, 16
      %v813 = vrot.slane %v811, 1
      %v814 = vor.u32 %v809, %v813
      %v816 = vshll.u32 %v802, 16
      %v818 = vrot.slane %v816, 1
      %v819 = vsel %vm357, %v814, %v818
      %v821 = vshrl.u32 %v328, 16
      %v823 = vshll.u32 %v328, 16
      %v825 = vrot.slane %v823, 1
      %v826 = vor.u32 %v821, %v825
      %v828 = vshll.u32 %v803, 16
      %v830 = vrot.slane %v828, 1
      %v831 = vsel %vm357, %v826, %v830
      %v833 = vshrl.u32 %v329, 16
      %v835 = vshll.u32 %v329, 16
      %v837 = vrot.slane %v835, 1
      %v838 = vor.u32 %v833, %v837
      %v840 = vshll.u32 %v804, 16
      %v842 = vrot.slane %v840, 1
      %v843 = vsel %vm357, %v838, %v842
      %v845 = vshrl.u32 %v330, 16
      %v847 = vshll.u32 %v330, 16
      %v849 = vrot.slane %v847, 1
      %v850 = vor.u32 %v845, %v849
      %v852 = vshll.u32 %v805, 16
      %v854 = vrot.slane %v852, 1
      %v855 = vsel %vm357, %v850, %v854
      %v857 = vshrl.u32 %v331, 16
      %v859 = vshll.u32 %v331, 16
      %v861 = vrot.slane %v859, 1
      %v862 = vor.u32 %v857, %v861
      %v864 = vshll.u32 %v806, 16
      %v866 = vrot.slane %v864, 1
      %v867 = vsel %vm357, %v862, %v866
      %v869 = vshrl.u32 %v332, 16
      %v871 = vshll.u32 %v332, 16
      %v873 = vrot.slane %v871, 1
      %v874 = vor.u32 %v869, %v873
      %v876 = vshll.u32 %v807, 16
      %v878 = vrot.slane %v876, 1
      %v879 = vsel %vm357, %v874, %v878
      %v892 = vunpack.c.l.b16 %v778
      %v893 = vunpack.c.l.b16 %v779
      %v894 = vunpack.c.l.b16 %v780
      %v895 = vunpack.c.l.b16 %v781
      %v896 = vunpack.c.l.b16 %v782
      %v897 = vunpack.c.l.b16 %v783
      %v898 = vpack.c.b16 %v892, %v892
      %v899 = vpack.c.b16 %v893, %v893
      %v900 = vpack.c.b16 %v894, %v894
      %v901 = vpack.c.b16 %v895, %v895
      %v902 = vpack.c.b16 %v896, %v896
      %v903 = vpack.c.b16 %v897, %v897
      %v905 = vshrl.u32 %v496, 16
      %v907 = vshll.u32 %v496, 16
      %v909 = vrot.slane %v907, 1
      %v910 = vor.u32 %v905, %v909
      %v912 = vshll.u32 %v898, 16
      %v914 = vrot.slane %v912, 1
      %v915 = vsel %vm357, %v910, %v914
      %v917 = vshrl.u32 %v497, 16
      %v919 = vshll.u32 %v497, 16
      %v921 = vrot.slane %v919, 1
      %v922 = vor.u32 %v917, %v921
      %v924 = vshll.u32 %v899, 16
      %v926 = vrot.slane %v924, 1
      %v927 = vsel %vm357, %v922, %v926
      %v929 = vshrl.u32 %v498, 16
      %v931 = vshll.u32 %v498, 16
      %v933 = vrot.slane %v931, 1
      %v934 = vor.u32 %v929, %v933
      %v936 = vshll.u32 %v900, 16
      %v938 = vrot.slane %v936, 1
      %v939 = vsel %vm357, %v934, %v938
      %v941 = vshrl.u32 %v499, 16
      %v943 = vshll.u32 %v499, 16
      %v945 = vrot.slane %v943, 1
      %v946 = vor.u32 %v941, %v945
      %v948 = vshll.u32 %v901, 16
      %v950 = vrot.slane %v948, 1
      %v951 = vsel %vm357, %v946, %v950
      %v953 = vshrl.u32 %v500, 16
      %v955 = vshll.u32 %v500, 16
      %v957 = vrot.slane %v955, 1
      %v958 = vor.u32 %v953, %v957
      %v960 = vshll.u32 %v902, 16
      %v962 = vrot.slane %v960, 1
      %v963 = vsel %vm357, %v958, %v962
      %v965 = vshrl.u32 %v501, 16
      %v967 = vshll.u32 %v501, 16
      %v969 = vrot.slane %v967, 1
      %v970 = vor.u32 %v965, %v969
      %v972 = vshll.u32 %v903, 16
      %v974 = vrot.slane %v972, 1
      %v975 = vsel %vm357, %v970, %v974
      %v988 = vunpack.c.l.b16 %v784
      %v989 = vunpack.c.l.b16 %v785
      %v990 = vunpack.c.l.b16 %v786
      %v991 = vunpack.c.l.b16 %v787
      %v992 = vunpack.c.l.b16 %v788
      %v993 = vunpack.c.l.b16 %v789
      %v994 = vpack.c.b16 %v988, %v988
      %v995 = vpack.c.b16 %v989, %v989
      %v996 = vpack.c.b16 %v990, %v990
      %v997 = vpack.c.b16 %v991, %v991
      %v998 = vpack.c.b16 %v992, %v992
      %v999 = vpack.c.b16 %v993, %v993
      %v1001 = vshrl.u32 %v664, 16
      %v1003 = vshll.u32 %v664, 16
      %v1005 = vrot.slane %v1003, 1
      %v1006 = vor.u32 %v1001, %v1005
      %v1008 = vshll.u32 %v994, 16
      %v1010 = vrot.slane %v1008, 1
      %v1011 = vsel %vm357, %v1006, %v1010
      %v1013 = vshrl.u32 %v665, 16
      %v1015 = vshll.u32 %v665, 16
      %v1017 = vrot.slane %v1015, 1
      %v1018 = vor.u32 %v1013, %v1017
      %v1020 = vshll.u32 %v995, 16
      %v1022 = vrot.slane %v1020, 1
      %v1023 = vsel %vm357, %v1018, %v1022
      %v1025 = vshrl.u32 %v666, 16
      %v1027 = vshll.u32 %v666, 16
      %v1029 = vrot.slane %v1027, 1
      %v1030 = vor.u32 %v1025, %v1029
      %v1032 = vshll.u32 %v996, 16
      %v1034 = vrot.slane %v1032, 1
      %v1035 = vsel %vm357, %v1030, %v1034
      %v1037 = vshrl.u32 %v667, 16
      %v1039 = vshll.u32 %v667, 16
      %v1041 = vrot.slane %v1039, 1
      %v1042 = vor.u32 %v1037, %v1041
      %v1044 = vshll.u32 %v997, 16
      %v1046 = vrot.slane %v1044, 1
      %v1047 = vsel %vm357, %v1042, %v1046
      %v1049 = vshrl.u32 %v668, 16
      %v1051 = vshll.u32 %v668, 16
      %v1053 = vrot.slane %v1051, 1
      %v1054 = vor.u32 %v1049, %v1053
      %v1056 = vshll.u32 %v998, 16
      %v1058 = vrot.slane %v1056, 1
      %v1059 = vsel %vm357, %v1054, %v1058
      %v1061 = vshrl.u32 %v669, 16
      %v1063 = vshll.u32 %v669, 16
      %v1065 = vrot.slane %v1063, 1
      %v1066 = vor.u32 %v1061, %v1065
      %v1068 = vshll.u32 %v999, 16
      %v1070 = vrot.slane %v1068, 1
      %v1071 = vsel %vm357, %v1066, %v1070
      %s1078 = scalar_lea.vmem %s165, 204
      %v1079 = vld [vmem:[%s1078] sm:$0xf]
      %v1080 = vld [vmem:[%s1078 + $0x4] sm:$0xf]
      %v1081 = vld [vmem:[%s1078 + $0xc] sm:$0xf]
      %v1082 = vld [vmem:[%s1078 + $0x10] sm:$0xf]
      %v1083 = vld [vmem:[%s1078 + $0x18] sm:$0xf]
      %v1084 = vld [vmem:[%s1078 + $0x1c] sm:$0xf]
      %v1085 = vld [vmem:[%s1078 + $0x24] sm:$0xf]
      %v1086 = vld [vmem:[%s1078 + $0x28] sm:$0xf]
      %v1087 = vld [vmem:[%s1078 + $0x30] sm:$0xf]
      %v1088 = vld [vmem:[%s1078 + $0x34] sm:$0xf]
      %v1089 = vld [vmem:[%s1078 + $0x3c] sm:$0xf]
      %v1090 = vld [vmem:[%s1078 + $0x40] sm:$0xf]
      %s1091 = scalar_lea.vmem %s165, 300
      %v1092 = vld [vmem:[%s1091] sm:$0xf]
      %v1093 = vld [vmem:[%s1091 + $0x4] sm:$0xf]
      %v1094 = vld [vmem:[%s1091 + $0xc] sm:$0xf]
      %v1095 = vld [vmem:[%s1091 + $0x10] sm:$0xf]
      %v1096 = vld [vmem:[%s1091 + $0x18] sm:$0xf]
      %v1097 = vld [vmem:[%s1091 + $0x1c] sm:$0xf]
      %v1098 = vld [vmem:[%s1091 + $0x24] sm:$0xf]
      %v1099 = vld [vmem:[%s1091 + $0x28] sm:$0xf]
      %v1100 = vld [vmem:[%s1091 + $0x30] sm:$0xf]
      %v1101 = vld [vmem:[%s1091 + $0x34] sm:$0xf]
      %v1102 = vld [vmem:[%s1091 + $0x3c] sm:$0xf]
      %v1103 = vld [vmem:[%s1091 + $0x40] sm:$0xf]
      %v1104 = vld [vmem:[%s1078 + $0x8] sm:$0x1]
      %v1105 = vld [vmem:[%s1078 + $0x14] sm:$0x1]
      %v1106 = vld [vmem:[%s1078 + $0x20] sm:$0x1]
      %v1107 = vld [vmem:[%s1078 + $0x2c] sm:$0x1]
      %v1108 = vld [vmem:[%s1078 + $0x38] sm:$0x1]
      %v1109 = vld [vmem:[%s1078 + $0x44] sm:$0x1]
      %v1122 = vunpack.c.l.b16 %v1079
      %v1123 = vunpack.c.l.b16 %v1080
      %v1124 = vunpack.c.l.b16 %v1081
      %v1125 = vunpack.c.l.b16 %v1082
      %v1126 = vunpack.c.l.b16 %v1083
      %v1127 = vunpack.c.l.b16 %v1084
      %v1128 = vunpack.c.l.b16 %v1085
      %v1129 = vunpack.c.l.b16 %v1086
      %v1130 = vunpack.c.l.b16 %v1087
      %v1131 = vunpack.c.l.b16 %v1088
      %v1132 = vunpack.c.l.b16 %v1089
      %v1133 = vunpack.c.l.b16 %v1090
      %v1134 = vpack.c.b16 %v1123, %v1122
      %v1135 = vpack.c.b16 %v1125, %v1124
      %v1136 = vpack.c.b16 %v1127, %v1126
      %v1137 = vpack.c.b16 %v1129, %v1128
      %v1138 = vpack.c.b16 %v1131, %v1130
      %v1139 = vpack.c.b16 %v1133, %v1132
      %v1158 = vunpack.c.l.b16 %v1092
      %v1159 = vunpack.c.l.b16 %v1093
      %v1160 = vunpack.c.l.b16 %v1094
      %v1161 = vunpack.c.l.b16 %v1095
      %v1162 = vunpack.c.l.b16 %v1096
      %v1163 = vunpack.c.l.b16 %v1097
      %v1164 = vunpack.c.l.b16 %v1098
      %v1165 = vunpack.c.l.b16 %v1099
      %v1166 = vunpack.c.l.b16 %v1100
      %v1167 = vunpack.c.l.b16 %v1101
      %v1168 = vunpack.c.l.b16 %v1102
      %v1169 = vunpack.c.l.b16 %v1103
      %v1170 = vpack.c.b16 %v1159, %v1158
      %v1171 = vpack.c.b16 %v1161, %v1160
      %v1172 = vpack.c.b16 %v1163, %v1162
      %v1173 = vpack.c.b16 %v1165, %v1164
      %v1174 = vpack.c.b16 %v1167, %v1166
      %v1175 = vpack.c.b16 %v1169, %v1168
      %v1188 = vunpack.c.l.b16 %v1104
      %v1189 = vunpack.c.l.b16 %v1105
      %v1190 = vunpack.c.l.b16 %v1106
      %v1191 = vunpack.c.l.b16 %v1107
      %v1192 = vunpack.c.l.b16 %v1108
      %v1193 = vunpack.c.l.b16 %v1109
      %v1194 = vpack.c.b16 %v1188, %v1188
      %v1195 = vpack.c.b16 %v1189, %v1189
      %v1196 = vpack.c.b16 %v1190, %v1190
      %v1197 = vpack.c.b16 %v1191, %v1191
      %v1198 = vpack.c.b16 %v1192, %v1192
      %v1199 = vpack.c.b16 %v1193, %v1193
      %v1201 = vshrl.u32 %v1134, 16
      %v1203 = vshll.u32 %v1134, 16
      %v1205 = vrot.slane %v1203, 1
      %v1206 = vor.u32 %v1201, %v1205
      %v1208 = vshll.u32 %v1194, 16
      %v1210 = vrot.slane %v1208, 1
      %v1211 = vsel %vm357, %v1206, %v1210
      %v1213 = vshrl.u32 %v1135, 16
      %v1215 = vshll.u32 %v1135, 16
      %v1217 = vrot.slane %v1215, 1
      %v1218 = vor.u32 %v1213, %v1217
      %v1220 = vshll.u32 %v1195, 16
      %v1222 = vrot.slane %v1220, 1
      %v1223 = vsel %vm357, %v1218, %v1222
      %v1225 = vshrl.u32 %v1136, 16
      %v1227 = vshll.u32 %v1136, 16
      %v1229 = vrot.slane %v1227, 1
      %v1230 = vor.u32 %v1225, %v1229
      %v1232 = vshll.u32 %v1196, 16
      %v1234 = vrot.slane %v1232, 1
      %v1235 = vsel %vm357, %v1230, %v1234
      %v1237 = vshrl.u32 %v1137, 16
      %v1239 = vshll.u32 %v1137, 16
      %v1241 = vrot.slane %v1239, 1
      %v1242 = vor.u32 %v1237, %v1241
      %v1244 = vshll.u32 %v1197, 16
      %v1246 = vrot.slane %v1244, 1
      %v1247 = vsel %vm357, %v1242, %v1246
      %v1249 = vshrl.u32 %v1138, 16
      %v1251 = vshll.u32 %v1138, 16
      %v1253 = vrot.slane %v1251, 1
      %v1254 = vor.u32 %v1249, %v1253
      %v1256 = vshll.u32 %v1198, 16
      %v1258 = vrot.slane %v1256, 1
      %v1259 = vsel %vm357, %v1254, %v1258
      %v1261 = vshrl.u32 %v1139, 16
      %v1263 = vshll.u32 %v1139, 16
      %v1265 = vrot.slane %v1263, 1
      %v1266 = vor.u32 %v1261, %v1265
      %v1268 = vshll.u32 %v1199, 16
      %v1270 = vrot.slane %v1268, 1
      %v1271 = vsel %vm357, %v1266, %v1270
      %v1278 = vld [vmem:[%s1091 + $0x8] sm:$0x1]
      %v1279 = vld [vmem:[%s1091 + $0x14] sm:$0x1]
      %v1280 = vld [vmem:[%s1091 + $0x20] sm:$0x1]
      %v1281 = vld [vmem:[%s1091 + $0x2c] sm:$0x1]
      %v1282 = vld [vmem:[%s1091 + $0x38] sm:$0x1]
      %v1283 = vld [vmem:[%s1091 + $0x44] sm:$0x1]
      %v1290 = vunpack.c.l.b16 %v1278
      %v1291 = vunpack.c.l.b16 %v1279
      %v1292 = vunpack.c.l.b16 %v1280
      %v1293 = vunpack.c.l.b16 %v1281
      %v1294 = vunpack.c.l.b16 %v1282
      %v1295 = vunpack.c.l.b16 %v1283
      %v1296 = vpack.c.b16 %v1290, %v1290
      %v1297 = vpack.c.b16 %v1291, %v1291
      %v1298 = vpack.c.b16 %v1292, %v1292
      %v1299 = vpack.c.b16 %v1293, %v1293
      %v1300 = vpack.c.b16 %v1294, %v1294
      %v1301 = vpack.c.b16 %v1295, %v1295
      %v1303 = vshrl.u32 %v1170, 16
      %v1305 = vshll.u32 %v1170, 16
      %v1307 = vrot.slane %v1305, 1
      %v1308 = vor.u32 %v1303, %v1307
      %v1310 = vshll.u32 %v1296, 16
      %v1312 = vrot.slane %v1310, 1
      %v1313 = vsel %vm357, %v1308, %v1312
      %v1315 = vshrl.u32 %v1171, 16
      %v1317 = vshll.u32 %v1171, 16
      %v1319 = vrot.slane %v1317, 1
      %v1320 = vor.u32 %v1315, %v1319
      %v1322 = vshll.u32 %v1297, 16
      %v1324 = vrot.slane %v1322, 1
      %v1325 = vsel %vm357, %v1320, %v1324
      %v1327 = vshrl.u32 %v1172, 16
      %v1329 = vshll.u32 %v1172, 16
      %v1331 = vrot.slane %v1329, 1
      %v1332 = vor.u32 %v1327, %v1331
      %v1334 = vshll.u32 %v1298, 16
      %v1336 = vrot.slane %v1334, 1
      %v1337 = vsel %vm357, %v1332, %v1336
      %v1339 = vshrl.u32 %v1173, 16
      %v1341 = vshll.u32 %v1173, 16
      %v1343 = vrot.slane %v1341, 1
      %v1344 = vor.u32 %v1339, %v1343
      %v1346 = vshll.u32 %v1299, 16
      %v1348 = vrot.slane %v1346, 1
      %v1349 = vsel %vm357, %v1344, %v1348
      %v1351 = vshrl.u32 %v1174, 16
      %v1353 = vshll.u32 %v1174, 16
      %v1355 = vrot.slane %v1353, 1
      %v1356 = vor.u32 %v1351, %v1355
      %v1358 = vshll.u32 %v1300, 16
      %v1360 = vrot.slane %v1358, 1
      %v1361 = vsel %vm357, %v1356, %v1360
      %v1363 = vshrl.u32 %v1175, 16
      %v1365 = vshll.u32 %v1175, 16
      %v1367 = vrot.slane %v1365, 1
      %v1368 = vor.u32 %v1363, %v1367
      %v1370 = vshll.u32 %v1301, 16
      %v1372 = vrot.slane %v1370, 1
      %v1373 = vsel %vm357, %v1368, %v1372
      %v1380 = vld [vmem:[%s1] sm:$0xf]
      %v1381 = vld [vmem:[%s1 + $0x4] sm:$0xf]
      %v1382 = vld [vmem:[%s1 + $0x8] sm:$0xf]
      %v1383 = vld [vmem:[%s1 + $0xc] sm:$0xf]
      %v1384 = vld [vmem:[%s1 + $0x10] sm:$0xf]
      %v1385 = vld [vmem:[%s1 + $0x14] sm:$0xf]
      %v1386 = vld [vmem:[%s1 + $0x18] sm:$0xf]
      %v1387 = vld [vmem:[%s1 + $0x1c] sm:$0xf]
      %v1388 = vld [vmem:[%s1 + $0x20] sm:$0xf]
      %v1389 = vld [vmem:[%s1 + $0x24] sm:$0xf]
      %v1390 = vld [vmem:[%s1 + $0x28] sm:$0xf]
      %v1391 = vld [vmem:[%s1 + $0x2c] sm:$0xf]
      %v1392 = vld [vmem:[%s1 + $0x30] sm:$0xf]
      %v1393 = vld [vmem:[%s1 + $0x34] sm:$0xf]
      %v1394 = vld [vmem:[%s1 + $0x38] sm:$0xf]
      %v1395 = vld [vmem:[%s1 + $0x3c] sm:$0xf]
      %v1396 = vld [vmem:[%s1 + $0x40] sm:$0xf]
      %v1397 = vld [vmem:[%s1 + $0x44] sm:$0xf]
      %v1398 = vld [vmem:[%s1 + $0x48] sm:$0xf]
      %v1399 = vld [vmem:[%s1 + $0x4c] sm:$0xf]
      %v1400 = vld [vmem:[%s1 + $0x50] sm:$0xf]
      %v1401 = vld [vmem:[%s1 + $0x54] sm:$0xf]
      %v1402 = vld [vmem:[%s1 + $0x58] sm:$0xf]
      %v1403 = vld [vmem:[%s1 + $0x5c] sm:$0xf]
      %v1404 = vld [vmem:[%s1 + $0x60] sm:$0xf]
      %v1405 = vld [vmem:[%s1 + $0x64] sm:$0xf]
      %v1406 = vld [vmem:[%s1 + $0x68] sm:$0xf]
      %v1407 = vld [vmem:[%s1 + $0x6c] sm:$0xf]
      %v1408 = vld [vmem:[%s1 + $0x70] sm:$0xf]
      %v1409 = vld [vmem:[%s1 + $0x74] sm:$0xf]
      %v1410 = vld [vmem:[%s1 + $0x78] sm:$0xf]
      %v1411 = vld [vmem:[%s1 + $0x7c] sm:$0xf]
      %v1412 = vld [vmem:[%s1 + $0x80] sm:$0xf]
      %v1413 = vld [vmem:[%s1 + $0x84] sm:$0xf]
      %v1414 = vld [vmem:[%s1 + $0x88] sm:$0xf]
      %v1415 = vld [vmem:[%s1 + $0x8c] sm:$0xf]
      %v1416 = vld [vmem:[%s1 + $0x90] sm:$0xf]
      %v1417 = vld [vmem:[%s1 + $0x94] sm:$0xf]
      %v1418 = vld [vmem:[%s1 + $0x98] sm:$0xf]
      %v1419 = vld [vmem:[%s1 + $0x9c] sm:$0xf]
      %v1420 = vld [vmem:[%s1 + $0xa0] sm:$0xf]
      %v1421 = vld [vmem:[%s1 + $0xa4] sm:$0xf]
      %v1422 = vld [vmem:[%s1 + $0xa8] sm:$0xf]
      %v1423 = vld [vmem:[%s1 + $0xac] sm:$0xf]
      %v1424 = vld [vmem:[%s1 + $0xb0] sm:$0xf]
      %v1425 = vld [vmem:[%s1 + $0xb4] sm:$0xf]
      %v1426 = vld [vmem:[%s1 + $0xb8] sm:$0xf]
      %v1427 = vld [vmem:[%s1 + $0xbc] sm:$0xf]
      %v1428 = vld [vmem:[%s1 + $0xc0] sm:$0xf]
      %v1429 = vld [vmem:[%s1 + $0xc4] sm:$0xf]
      %v1430 = vld [vmem:[%s1 + $0xc8] sm:$0xf]
      %v1431 = vld [vmem:[%s1 + $0xcc] sm:$0xf]
      %v1432 = vld [vmem:[%s1 + $0xd0] sm:$0xf]
      %v1433 = vld [vmem:[%s1 + $0xd4] sm:$0xf]
      %v1434 = vld [vmem:[%s1 + $0xd8] sm:$0xf]
      %v1435 = vld [vmem:[%s1 + $0xdc] sm:$0xf]
      %v1436 = vld [vmem:[%s1 + $0xe0] sm:$0xf]
      %v1437 = vld [vmem:[%s1 + $0xe4] sm:$0xf]
      %v1438 = vld [vmem:[%s1 + $0xe8] sm:$0xf]
      %v1439 = vld [vmem:[%s1 + $0xec] sm:$0xf]
      %v1440 = vld [vmem:[%s1 + $0xf0] sm:$0xf]
      %v1441 = vld [vmem:[%s1 + $0xf4] sm:$0xf]
      %v1442 = vld [vmem:[%s1 + $0xf8] sm:$0xf]
      %v1443 = vld [vmem:[%s1 + $0xfc] sm:$0xf]
      %v1444 = vld [vmem:[%s1 + $0x100] sm:$0xf]
      %v1445 = vld [vmem:[%s1 + $0x104] sm:$0xf]
      %v1446 = vld [vmem:[%s1 + $0x108] sm:$0xf]
      %v1447 = vld [vmem:[%s1 + $0x10c] sm:$0xf]
      %v1448 = vld [vmem:[%s1 + $0x110] sm:$0xf]
      %v1449 = vld [vmem:[%s1 + $0x114] sm:$0xf]
      %v1450 = vld [vmem:[%s1 + $0x118] sm:$0xf]
      %v1451 = vld [vmem:[%s1 + $0x11c] sm:$0xf]
      %v1452 = vld [vmem:[%s1 + $0x120] sm:$0xf]
      %v1453 = vld [vmem:[%s1 + $0x124] sm:$0xf]
      %v1454 = vld [vmem:[%s1 + $0x128] sm:$0xf]
      %v1455 = vld [vmem:[%s1 + $0x12c] sm:$0xf]
      %v1456 = vld [vmem:[%s1 + $0x130] sm:$0xf]
      %v1457 = vld [vmem:[%s1 + $0x134] sm:$0xf]
      %v1458 = vld [vmem:[%s1 + $0x138] sm:$0xf]
      %v1459 = vld [vmem:[%s1 + $0x13c] sm:$0xf]
      %v1460 = vld [vmem:[%s1 + $0x140] sm:$0xf]
      %v1461 = vld [vmem:[%s1 + $0x144] sm:$0xf]
      %v1462 = vld [vmem:[%s1 + $0x148] sm:$0xf]
      %v1463 = vld [vmem:[%s1 + $0x14c] sm:$0xf]
      %v1464 = vld [vmem:[%s1 + $0x150] sm:$0xf]
      %v1465 = vld [vmem:[%s1 + $0x154] sm:$0xf]
      %v1466 = vld [vmem:[%s1 + $0x158] sm:$0xf]
      %v1467 = vld [vmem:[%s1 + $0x15c] sm:$0xf]
      %v1468 = vld [vmem:[%s1 + $0x160] sm:$0xf]
      %v1469 = vld [vmem:[%s1 + $0x164] sm:$0xf]
      %v1470 = vld [vmem:[%s1 + $0x168] sm:$0xf]
      %v1471 = vld [vmem:[%s1 + $0x16c] sm:$0xf]
      %v1472 = vld [vmem:[%s1 + $0x170] sm:$0xf]
      %v1473 = vld [vmem:[%s1 + $0x174] sm:$0xf]
      %v1474 = vld [vmem:[%s1 + $0x178] sm:$0xf]
      %v1475 = vld [vmem:[%s1 + $0x17c] sm:$0xf]
      %v1476 = vld [vmem:[%s1 + $0x180] sm:$0xf]
      %v1477 = vld [vmem:[%s1 + $0x184] sm:$0xf]
      %v1478 = vld [vmem:[%s1 + $0x188] sm:$0xf]
      %v1479 = vld [vmem:[%s1 + $0x18c] sm:$0xf]
      %v1480 = vld [vmem:[%s1 + $0x190] sm:$0xf]
      %v1481 = vld [vmem:[%s1 + $0x194] sm:$0xf]
      %v1482 = vld [vmem:[%s1 + $0x198] sm:$0xf]
      %v1483 = vld [vmem:[%s1 + $0x19c] sm:$0xf]
      %v1484 = vld [vmem:[%s1 + $0x1a0] sm:$0xf]
      %v1485 = vld [vmem:[%s1 + $0x1a4] sm:$0xf]
      %v1486 = vld [vmem:[%s1 + $0x1a8] sm:$0xf]
      %v1487 = vld [vmem:[%s1 + $0x1ac] sm:$0xf]
      %v1488 = vld [vmem:[%s1 + $0x1b0] sm:$0xf]
      %v1489 = vld [vmem:[%s1 + $0x1b4] sm:$0xf]
      %v1490 = vld [vmem:[%s1 + $0x1b8] sm:$0xf]
      %v1491 = vld [vmem:[%s1 + $0x1bc] sm:$0xf]
      %v1492 = vld [vmem:[%s1 + $0x1c0] sm:$0xf]
      %v1493 = vld [vmem:[%s1 + $0x1c4] sm:$0xf]
      %v1494 = vld [vmem:[%s1 + $0x1c8] sm:$0xf]
      %v1495 = vld [vmem:[%s1 + $0x1cc] sm:$0xf]
      %v1496 = vld [vmem:[%s1 + $0x1d0] sm:$0xf]
      %v1497 = vld [vmem:[%s1 + $0x1d4] sm:$0xf]
      %v1498 = vld [vmem:[%s1 + $0x1d8] sm:$0xf]
      %v1499 = vld [vmem:[%s1 + $0x1dc] sm:$0xf]
      %v1500 = vld [vmem:[%s1 + $0x1e0] sm:$0xf]
      %v1501 = vld [vmem:[%s1 + $0x1e4] sm:$0xf]
      %v1502 = vld [vmem:[%s1 + $0x1e8] sm:$0xf]
      %v1503 = vld [vmem:[%s1 + $0x1ec] sm:$0xf]
      %v1504 = vld [vmem:[%s1 + $0x1f0] sm:$0xf]
      %v1505 = vld [vmem:[%s1 + $0x1f4] sm:$0xf]
      %v1506 = vld [vmem:[%s1 + $0x1f8] sm:$0xf]
      %v1507 = vld [vmem:[%s1 + $0x1fc] sm:$0xf]
      %v1508 = vld [vmem:[%s1 + $0x200] sm:$0xf]
      %v1509 = vld [vmem:[%s1 + $0x204] sm:$0xf]
      %v1510 = vld [vmem:[%s1 + $0x208] sm:$0xf]
      %v1511 = vld [vmem:[%s1 + $0x20c] sm:$0xf]
      %v1512 = vld [vmem:[%s1 + $0x210] sm:$0xf]
      %v1513 = vld [vmem:[%s1 + $0x214] sm:$0xf]
      %v1514 = vld [vmem:[%s1 + $0x218] sm:$0xf]
      %v1515 = vld [vmem:[%s1 + $0x21c] sm:$0xf]
      %v1516 = vld [vmem:[%s1 + $0x220] sm:$0xf]
      %v1517 = vld [vmem:[%s1 + $0x224] sm:$0xf]
      %v1518 = vld [vmem:[%s1 + $0x228] sm:$0xf]
      %v1519 = vld [vmem:[%s1 + $0x22c] sm:$0xf]
      %v1520 = vld [vmem:[%s1 + $0x230] sm:$0xf]
      %v1521 = vld [vmem:[%s1 + $0x234] sm:$0xf]
      %v1522 = vld [vmem:[%s1 + $0x238] sm:$0xf]
      %v1523 = vld [vmem:[%s1 + $0x23c] sm:$0xf]
      %v1668 = vunpack.c.l.b16 %v1380
      %v1669 = vunpack.c.l.b16 %v1381
      %v1670 = vunpack.c.l.b16 %v1382
      %v1671 = vunpack.c.l.b16 %v1383
      %v1672 = vunpack.c.l.b16 %v1384
      %v1673 = vunpack.c.l.b16 %v1385
      %v1674 = vunpack.c.l.b16 %v1386
      %v1675 = vunpack.c.l.b16 %v1387
      %v1676 = vunpack.c.l.b16 %v1388
      %v1677 = vunpack.c.l.b16 %v1389
      %v1678 = vunpack.c.l.b16 %v1390
      %v1679 = vunpack.c.l.b16 %v1391
      %v1680 = vunpack.c.l.b16 %v1392
      %v1681 = vunpack.c.l.b16 %v1393
      %v1682 = vunpack.c.l.b16 %v1394
      %v1683 = vunpack.c.l.b16 %v1395
      %v1684 = vunpack.c.l.b16 %v1396
      %v1685 = vunpack.c.l.b16 %v1397
      %v1686 = vunpack.c.l.b16 %v1398
      %v1687 = vunpack.c.l.b16 %v1399
      %v1688 = vunpack.c.l.b16 %v1400
      %v1689 = vunpack.c.l.b16 %v1401
      %v1690 = vunpack.c.l.b16 %v1402
      %v1691 = vunpack.c.l.b16 %v1403
      %v1692 = vunpack.c.l.b16 %v1404
      %v1693 = vunpack.c.l.b16 %v1405
      %v1694 = vunpack.c.l.b16 %v1406
      %v1695 = vunpack.c.l.b16 %v1407
      %v1696 = vunpack.c.l.b16 %v1408
      %v1697 = vunpack.c.l.b16 %v1409
      %v1698 = vunpack.c.l.b16 %v1410
      %v1699 = vunpack.c.l.b16 %v1411
      %v1700 = vunpack.c.l.b16 %v1412
      %v1701 = vunpack.c.l.b16 %v1413
      %v1702 = vunpack.c.l.b16 %v1414
      %v1703 = vunpack.c.l.b16 %v1415
      %v1704 = vunpack.c.l.b16 %v1416
      %v1705 = vunpack.c.l.b16 %v1417
      %v1706 = vunpack.c.l.b16 %v1418
      %v1707 = vunpack.c.l.b16 %v1419
      %v1708 = vunpack.c.l.b16 %v1420
      %v1709 = vunpack.c.l.b16 %v1421
      %v1710 = vunpack.c.l.b16 %v1422
      %v1711 = vunpack.c.l.b16 %v1423
      %v1712 = vunpack.c.l.b16 %v1424
      %v1713 = vunpack.c.l.b16 %v1425
      %v1714 = vunpack.c.l.b16 %v1426
      %v1715 = vunpack.c.l.b16 %v1427
      %v1716 = vunpack.c.l.b16 %v1428
      %v1717 = vunpack.c.l.b16 %v1429
      %v1718 = vunpack.c.l.b16 %v1430
      %v1719 = vunpack.c.l.b16 %v1431
      %v1720 = vunpack.c.l.b16 %v1432
      %v1721 = vunpack.c.l.b16 %v1433
      %v1722 = vunpack.c.l.b16 %v1434
      %v1723 = vunpack.c.l.b16 %v1435
      %v1724 = vunpack.c.l.b16 %v1436
      %v1725 = vunpack.c.l.b16 %v1437
      %v1726 = vunpack.c.l.b16 %v1438
      %v1727 = vunpack.c.l.b16 %v1439
      %v1728 = vunpack.c.l.b16 %v1440
      %v1729 = vunpack.c.l.b16 %v1441
      %v1730 = vunpack.c.l.b16 %v1442
      %v1731 = vunpack.c.l.b16 %v1443
      %v1732 = vunpack.c.l.b16 %v1444
      %v1733 = vunpack.c.l.b16 %v1445
      %v1734 = vunpack.c.l.b16 %v1446
      %v1735 = vunpack.c.l.b16 %v1447
      %v1736 = vunpack.c.l.b16 %v1448
      %v1737 = vunpack.c.l.b16 %v1449
      %v1738 = vunpack.c.l.b16 %v1450
      %v1739 = vunpack.c.l.b16 %v1451
      %v1740 = vunpack.c.l.b16 %v1452
      %v1741 = vunpack.c.l.b16 %v1453
      %v1742 = vunpack.c.l.b16 %v1454
      %v1743 = vunpack.c.l.b16 %v1455
      %v1744 = vunpack.c.l.b16 %v1456
      %v1745 = vunpack.c.l.b16 %v1457
      %v1746 = vunpack.c.l.b16 %v1458
      %v1747 = vunpack.c.l.b16 %v1459
      %v1748 = vunpack.c.l.b16 %v1460
      %v1749 = vunpack.c.l.b16 %v1461
      %v1750 = vunpack.c.l.b16 %v1462
      %v1751 = vunpack.c.l.b16 %v1463
      %v1752 = vunpack.c.l.b16 %v1464
      %v1753 = vunpack.c.l.b16 %v1465
      %v1754 = vunpack.c.l.b16 %v1466
      %v1755 = vunpack.c.l.b16 %v1467
      %v1756 = vunpack.c.l.b16 %v1468
      %v1757 = vunpack.c.l.b16 %v1469
      %v1758 = vunpack.c.l.b16 %v1470
      %v1759 = vunpack.c.l.b16 %v1471
      %v1760 = vunpack.c.l.b16 %v1472
      %v1761 = vunpack.c.l.b16 %v1473
      %v1762 = vunpack.c.l.b16 %v1474
      %v1763 = vunpack.c.l.b16 %v1475
      %v1764 = vunpack.c.l.b16 %v1476
      %v1765 = vunpack.c.l.b16 %v1477
      %v1766 = vunpack.c.l.b16 %v1478
      %v1767 = vunpack.c.l.b16 %v1479
      %v1768 = vunpack.c.l.b16 %v1480
      %v1769 = vunpack.c.l.b16 %v1481
      %v1770 = vunpack.c.l.b16 %v1482
      %v1771 = vunpack.c.l.b16 %v1483
      %v1772 = vunpack.c.l.b16 %v1484
      %v1773 = vunpack.c.l.b16 %v1485
      %v1774 = vunpack.c.l.b16 %v1486
      %v1775 = vunpack.c.l.b16 %v1487
      %v1776 = vunpack.c.l.b16 %v1488
      %v1777 = vunpack.c.l.b16 %v1489
      %v1778 = vunpack.c.l.b16 %v1490
      %v1779 = vunpack.c.l.b16 %v1491
      %v1780 = vunpack.c.l.b16 %v1492
      %v1781 = vunpack.c.l.b16 %v1493
      %v1782 = vunpack.c.l.b16 %v1494
      %v1783 = vunpack.c.l.b16 %v1495
      %v1784 = vunpack.c.l.b16 %v1496
      %v1785 = vunpack.c.l.b16 %v1497
      %v1786 = vunpack.c.l.b16 %v1498
      %v1787 = vunpack.c.l.b16 %v1499
      %v1788 = vunpack.c.l.b16 %v1500
      %v1789 = vunpack.c.l.b16 %v1501
      %v1790 = vunpack.c.l.b16 %v1502
      %v1791 = vunpack.c.l.b16 %v1503
      %v1792 = vunpack.c.l.b16 %v1504
      %v1793 = vunpack.c.l.b16 %v1505
      %v1794 = vunpack.c.l.b16 %v1506
      %v1795 = vunpack.c.l.b16 %v1507
      %v1796 = vunpack.c.l.b16 %v1508
      %v1797 = vunpack.c.l.b16 %v1509
      %v1798 = vunpack.c.l.b16 %v1510
      %v1799 = vunpack.c.l.b16 %v1511
      %v1800 = vunpack.c.l.b16 %v1512
      %v1801 = vunpack.c.l.b16 %v1513
      %v1802 = vunpack.c.l.b16 %v1514
      %v1803 = vunpack.c.l.b16 %v1515
      %v1804 = vunpack.c.l.b16 %v1516
      %v1805 = vunpack.c.l.b16 %v1517
      %v1806 = vunpack.c.l.b16 %v1518
      %v1807 = vunpack.c.l.b16 %v1519
      %v1808 = vunpack.c.l.b16 %v1520
      %v1809 = vunpack.c.l.b16 %v1521
      %v1810 = vunpack.c.l.b16 %v1522
      %v1811 = vunpack.c.l.b16 %v1523
      %v1812 = vpack.c.b16 %v1669, %v1668
      %v1813 = vpack.c.b16 %v1671, %v1670
      %v1814 = vpack.c.b16 %v1673, %v1672
      %v1815 = vpack.c.b16 %v1675, %v1674
      %v1816 = vpack.c.b16 %v1677, %v1676
      %v1817 = vpack.c.b16 %v1679, %v1678
      %v1818 = vpack.c.b16 %v1681, %v1680
      %v1819 = vpack.c.b16 %v1683, %v1682
      %v1820 = vpack.c.b16 %v1685, %v1684
      %v1821 = vpack.c.b16 %v1687, %v1686
      %v1822 = vpack.c.b16 %v1689, %v1688
      %v1823 = vpack.c.b16 %v1691, %v1690
      %v1824 = vpack.c.b16 %v1693, %v1692
      %v1825 = vpack.c.b16 %v1695, %v1694
      %v1826 = vpack.c.b16 %v1697, %v1696
      %v1827 = vpack.c.b16 %v1699, %v1698
      %v1828 = vpack.c.b16 %v1701, %v1700
      %v1829 = vpack.c.b16 %v1703, %v1702
      %v1830 = vpack.c.b16 %v1705, %v1704
      %v1831 = vpack.c.b16 %v1707, %v1706
      %v1832 = vpack.c.b16 %v1709, %v1708
      %v1833 = vpack.c.b16 %v1711, %v1710
      %v1834 = vpack.c.b16 %v1713, %v1712
      %v1835 = vpack.c.b16 %v1715, %v1714
      %v1836 = vpack.c.b16 %v1717, %v1716
      %v1837 = vpack.c.b16 %v1719, %v1718
      %v1838 = vpack.c.b16 %v1721, %v1720
      %v1839 = vpack.c.b16 %v1723, %v1722
      %v1840 = vpack.c.b16 %v1725, %v1724
      %v1841 = vpack.c.b16 %v1727, %v1726
      %v1842 = vpack.c.b16 %v1729, %v1728
      %v1843 = vpack.c.b16 %v1731, %v1730
      %v1844 = vpack.c.b16 %v1733, %v1732
      %v1845 = vpack.c.b16 %v1735, %v1734
      %v1846 = vpack.c.b16 %v1737, %v1736
      %v1847 = vpack.c.b16 %v1739, %v1738
      %v1848 = vpack.c.b16 %v1741, %v1740
      %v1849 = vpack.c.b16 %v1743, %v1742
      %v1850 = vpack.c.b16 %v1745, %v1744
      %v1851 = vpack.c.b16 %v1747, %v1746
      %v1852 = vpack.c.b16 %v1749, %v1748
      %v1853 = vpack.c.b16 %v1751, %v1750
      %v1854 = vpack.c.b16 %v1753, %v1752
      %v1855 = vpack.c.b16 %v1755, %v1754
      %v1856 = vpack.c.b16 %v1757, %v1756
      %v1857 = vpack.c.b16 %v1759, %v1758
      %v1858 = vpack.c.b16 %v1761, %v1760
      %v1859 = vpack.c.b16 %v1763, %v1762
      %v1860 = vpack.c.b16 %v1765, %v1764
      %v1861 = vpack.c.b16 %v1767, %v1766
      %v1862 = vpack.c.b16 %v1769, %v1768
      %v1863 = vpack.c.b16 %v1771, %v1770
      %v1864 = vpack.c.b16 %v1773, %v1772
      %v1865 = vpack.c.b16 %v1775, %v1774
      %v1866 = vpack.c.b16 %v1777, %v1776
      %v1867 = vpack.c.b16 %v1779, %v1778
      %v1868 = vpack.c.b16 %v1781, %v1780
      %v1869 = vpack.c.b16 %v1783, %v1782
      %v1870 = vpack.c.b16 %v1785, %v1784
      %v1871 = vpack.c.b16 %v1787, %v1786
      %v1872 = vpack.c.b16 %v1789, %v1788
      %v1873 = vpack.c.b16 %v1791, %v1790
      %v1874 = vpack.c.b16 %v1793, %v1792
      %v1875 = vpack.c.b16 %v1795, %v1794
      %v1876 = vpack.c.b16 %v1797, %v1796
      %v1877 = vpack.c.b16 %v1799, %v1798
      %v1878 = vpack.c.b16 %v1801, %v1800
      %v1879 = vpack.c.b16 %v1803, %v1802
      %v1880 = vpack.c.b16 %v1805, %v1804
      %v1881 = vpack.c.b16 %v1807, %v1806
      %v1882 = vpack.c.b16 %v1809, %v1808
      %v1883 = vpack.c.b16 %v1811, %v1810
      %1956 = vmatprep.subr.bf16.mxu0 0
      %1957 = vmatpush1.bf16.msra.mxu0 %v1812
      %1958 = vmatprep.subr.bf16.mxu0 0
      %1959 = vmatpush1.bf16.msra.mxu0 %v1813
      %1960 = vmatprep.subr.bf16.mxu0 0
      %1961 = vmatpush1.bf16.msra.mxu0 %v1814
      %1962 = vmatprep.subr.bf16.mxu0 0
      %1963 = vmatpush1.bf16.msra.mxu0 %v1815
      %1964 = vmatprep.subr.bf16.mxu0 0
      %1965 = vmatpush1.bf16.msra.mxu0 %v1816
      %1966 = vmatprep.subr.bf16.mxu0 0
      %1967 = vmatpush1.bf16.msra.mxu0 %v1817
      %1968 = vmatprep.subr.bf16.mxu0 0
      %1969 = vmatpush1.bf16.msra.mxu0 %v1818
      %1970 = vmatprep.subr.bf16.mxu0 0
      %1971 = vmatpush1.bf16.msra.mxu0 %v1819
      %1972 = vmatprep.subr.bf16.mxu0 0
      %1973 = vmatpush1.bf16.msra.mxu0 %v1820
      %1974 = vmatprep.subr.bf16.mxu0 0
      %1975 = vmatpush1.bf16.msra.mxu0 %v1821
      %1976 = vmatprep.subr.bf16.mxu0 0
      %1977 = vmatpush1.bf16.msra.mxu0 %v1822
      %1978 = vmatprep.subr.bf16.mxu0 0
      %1979 = vmatpush1.bf16.msra.mxu0 %v1823
      %1980 = vmatprep.subr.bf16.mxu0 0
      %1981 = vmatpush1.bf16.msra.mxu0 %v1824
      %1982 = vmatprep.subr.bf16.mxu0 0
      %1983 = vmatpush1.bf16.msra.mxu0 %v1825
      %1984 = vmatprep.subr.bf16.mxu0 0
      %1985 = vmatpush1.bf16.msra.mxu0 %v1826
      %1986 = vmatprep.subr.bf16.mxu0 0
      %1987 = vmatpush1.bf16.msra.mxu0 %v1827
      %1988 = vmatprep.mubr.bf16.mxu0 %v327
      %1989 = vmatmul.mubr.bf16.gmra.mrb[0].mxu0 %v291
      %v1990 = vpop.f32.mrb[0].mxu0
      %v1991 = vadd.f32 0.0, %v1990
      %v1992 = vpop.f32.mrb[0].mxu0
      %v1993 = vpop.f32.mrb[0].mxu0
      %v1994 = vadd.f32 0.0, %v1993
      %v1995 = vpop.f32.mrb[0].mxu0
      %1996 = vmatprep.mubr.bf16.mxu0 %v328
      %1997 = vmatmul.mubr.bf16.gmra.mrb[0].mxu0 %v292
      %v1998 = vpop.f32.mrb[0].mxu0
      %v1999 = vadd.f32 0.0, %v1998
      %v2000 = vpop.f32.mrb[0].mxu0
      %v2001 = vpop.f32.mrb[0].mxu0
      %v2002 = vadd.f32 0.0, %v2001
      %v2003 = vpop.f32.mrb[0].mxu0
      %2004 = vmatprep.mubr.bf16.mxu0 %v329
      %2005 = vmatmul.mubr.bf16.gmra.mrb[0].mxu0 %v293
      %v2006 = vpop.f32.mrb[0].mxu0
      %v2007 = vadd.f32 0.0, %v2006
      %v2008 = vpop.f32.mrb[0].mxu0
      %v2009 = vpop.f32.mrb[0].mxu0
      %v2010 = vadd.f32 0.0, %v2009
      %v2011 = vpop.f32.mrb[0].mxu0
      %2012 = vmatprep.mubr.bf16.mxu0 %v330
      %2013 = vmatmul.mubr.bf16.gmra.mrb[0].mxu0 %v294
      %v2014 = vpop.f32.mrb[0].mxu0
      %v2015 = vadd.f32 0.0, %v2014
      %v2016 = vpop.f32.mrb[0].mxu0
      %v2017 = vpop.f32.mrb[0].mxu0
      %v2018 = vadd.f32 0.0, %v2017
      %v2019 = vpop.f32.mrb[0].mxu0
      %2020 = vmatprep.mubr.bf16.mxu0 %v331
      %2021 = vmatmul.mubr.bf16.gmra.mrb[0].mxu0 %v295
      %v2022 = vpop.f32.mrb[0].mxu0
      %v2023 = vadd.f32 0.0, %v2022
      %v2024 = vpop.f32.mrb[0].mxu0
      %v2025 = vpop.f32.mrb[0].mxu0
      %v2026 = vadd.f32 0.0, %v2025
      %v2027 = vpop.f32.mrb[0].mxu0
      %2028 = vmatprep.mubr.bf16.mxu0 %v332
      %2029 = vmatmul.mubr.bf16.gmra.mrb[0].mxu0 %v296
      %v2030 = vpop.f32.mrb[0].mxu0
      %v2031 = vadd.f32 0.0, %v2030
      %v2032 = vpop.f32.mrb[0].mxu0
      %v2033 = vpop.f32.mrb[0].mxu0
      %v2034 = vadd.f32 0.0, %v2033
      %v2035 = vpop.f32.mrb[0].mxu0
      %2036 = vmatprep.mubr.bf16.mxu0 %v369
      %2037 = vmatmul.mubr.bf16.gmra.mrb[0].mxu0 %v327
      %v2038 = vpop.f32.mrb[0].mxu0
      %v2039 = vadd.f32 0.0, %v2038
      %v2040 = vpop.f32.mrb[0].mxu0
      %v2041 = vpop.f32.mrb[0].mxu0
      %v2042 = vadd.f32 0.0, %v2041
      %v2043 = vpop.f32.mrb[0].mxu0
      %2044 = vmatprep.mubr.bf16.mxu0 %v381
      %2045 = vmatmul.mubr.bf16.gmra.mrb[0].mxu0 %v328
      %v2046 = vpop.f32.mrb[0].mxu0
      %v2047 = vadd.f32 0.0, %v2046
      %v2048 = vpop.f32.mrb[0].mxu0
      %v2049 = vpop.f32.mrb[0].mxu0
      %v2050 = vadd.f32 0.0, %v2049
      %v2051 = vpop.f32.mrb[0].mxu0
      %2052 = vmatprep.mubr.bf16.mxu0 %v393
      %2053 = vmatmul.mubr.bf16.gmra.mrb[0].mxu0 %v329
      %v2054 = vpop.f32.mrb[0].mxu0
      %v2055 = vadd.f32 0.0, %v2054
      %v2056 = vpop.f32.mrb[0].mxu0
      %v2057 = vpop.f32.mrb[0].mxu0
      %v2058 = vadd.f32 0.0, %v2057
      %v2059 = vpop.f32.mrb[0].mxu0
      %2060 = vmatprep.mubr.bf16.mxu0 %v405
      %2061 = vmatmul.mubr.bf16.gmra.mrb[0].mxu0 %v330
      %v2062 = vpop.f32.mrb[0].mxu0
      %v2063 = vadd.f32 0.0, %v2062
      %v2064 = vpop.f32.mrb[0].mxu0
      %v2065 = vpop.f32.mrb[0].mxu0
      %v2066 = vadd.f32 0.0, %v2065
      %v2067 = vpop.f32.mrb[0].mxu0
      %2068 = vmatprep.mubr.bf16.mxu0 %v417
      %2069 = vmatmul.mubr.bf16.gmra.mrb[0].mxu0 %v331
      %v2070 = vpop.f32.mrb[0].mxu0
      %v2071 = vadd.f32 0.0, %v2070
      %v2072 = vpop.f32.mrb[0].mxu0
      %v2073 = vpop.f32.mrb[0].mxu0
      %v2074 = vadd.f32 0.0, %v2073
      %v2075 = vpop.f32.mrb[0].mxu0
      %2076 = vmatprep.mubr.bf16.mxu0 %v429
      %2077 = vmatmul.mubr.bf16.gmra.mrb[0].mxu0 %v332
      %v2078 = vpop.f32.mrb[0].mxu0
      %v2079 = vadd.f32 0.0, %v2078
      %v2080 = vpop.f32.mrb[0].mxu0
      %v2081 = vpop.f32.mrb[0].mxu0
      %v2082 = vadd.f32 0.0, %v2081
      %v2083 = vpop.f32.mrb[0].mxu0
      %2084 = vmatprep.mubr.bf16.mxu0 %v496
      %2085 = vmatmul.mubr.bf16.gmra.mrb[0].mxu0 %v460
      %v2086 = vpop.f32.mrb[0].mxu0
      %v2087 = vadd.f32 0.0, %v2086
      %v2088 = vpop.f32.mrb[0].mxu0
      %v2089 = vpop.f32.mrb[0].mxu0
      %v2090 = vadd.f32 0.0, %v2089
      %v2091 = vpop.f32.mrb[0].mxu0
      %2092 = vmatprep.mubr.bf16.mxu0 %v497
      %2093 = vmatmul.mubr.bf16.gmra.mrb[0].mxu0 %v461
      %v2094 = vpop.f32.mrb[0].mxu0
      %v2095 = vadd.f32 0.0, %v2094
      %v2096 = vpop.f32.mrb[0].mxu0
      %v2097 = vpop.f32.mrb[0].mxu0
      %v2098 = vadd.f32 0.0, %v2097
      %v2099 = vpop.f32.mrb[0].mxu0
      %2100 = vmatprep.mubr.bf16.mxu0 %v498
      %2101 = vmatmul.mubr.bf16.gmra.mrb[0].mxu0 %v462
      %v2102 = vpop.f32.mrb[0].mxu0
      %v2103 = vadd.f32 0.0, %v2102
      %v2104 = vpop.f32.mrb[0].mxu0
      %v2105 = vpop.f32.mrb[0].mxu0
      %v2106 = vadd.f32 0.0, %v2105
      %v2107 = vpop.f32.mrb[0].mxu0
      %2108 = vmatprep.mubr.bf16.mxu0 %v499
      %2109 = vmatmul.mubr.bf16.gmra.mrb[0].mxu0 %v463
      %v2110 = vpop.f32.mrb[0].mxu0
      %v2111 = vadd.f32 0.0, %v2110
      %v2112 = vpop.f32.mrb[0].mxu0
      %v2113 = vpop.f32.mrb[0].mxu0
      %v2114 = vadd.f32 0.0, %v2113
      %v2115 = vpop.f32.mrb[0].mxu0
      %2116 = vmatprep.mubr.bf16.mxu0 %v500
      %2117 = vmatmul.mubr.bf16.gmra.mrb[0].mxu0 %v464
      %v2118 = vpop.f32.mrb[0].mxu0
      %v2119 = vadd.f32 0.0, %v2118
      %v2120 = vpop.f32.mrb[0].mxu0
      %v2121 = vpop.f32.mrb[0].mxu0
      %v2122 = vadd.f32 0.0, %v2121
      %v2123 = vpop.f32.mrb[0].mxu0
      %2124 = vmatprep.mubr.bf16.mxu0 %v501
      %2125 = vmatmul.mubr.bf16.gmra.mrb[0].mxu0 %v465
      %v2126 = vpop.f32.mrb[0].mxu0
      %v2127 = vadd.f32 0.0, %v2126
      %v2128 = vpop.f32.mrb[0].mxu0
      %v2129 = vpop.f32.mrb[0].mxu0
      %v2130 = vadd.f32 0.0, %v2129
      %v2131 = vpop.f32.mrb[0].mxu0
      %2132 = vmatprep.mubr.bf16.mxu0 %v537
      %2133 = vmatmul.mubr.bf16.gmra.mrb[0].mxu0 %v496
      %v2134 = vpop.f32.mrb[0].mxu0
      %v2135 = vadd.f32 0.0, %v2134
      %v2136 = vpop.f32.mrb[0].mxu0
      %v2137 = vpop.f32.mrb[0].mxu0
      %v2138 = vadd.f32 0.0, %v2137
      %v2139 = vpop.f32.mrb[0].mxu0
      %2140 = vmatprep.mubr.bf16.mxu0 %v549
      %2141 = vmatmul.mubr.bf16.gmra.mrb[0].mxu0 %v497
      %v2142 = vpop.f32.mrb[0].mxu0
      %v2143 = vadd.f32 0.0, %v2142
      %v2144 = vpop.f32.mrb[0].mxu0
      %v2145 = vpop.f32.mrb[0].mxu0
      %v2146 = vadd.f32 0.0, %v2145
      %v2147 = vpop.f32.mrb[0].mxu0
      %2148 = vmatprep.mubr.bf16.mxu0 %v561
      %2149 = vmatmul.mubr.bf16.gmra.mrb[0].mxu0 %v498
      %v2150 = vpop.f32.mrb[0].mxu0
      %v2151 = vadd.f32 0.0, %v2150
      %v2152 = vpop.f32.mrb[0].mxu0
      %v2153 = vpop.f32.mrb[0].mxu0
      %v2154 = vadd.f32 0.0, %v2153
      %v2155 = vpop.f32.mrb[0].mxu0
      %2156 = vmatprep.mubr.bf16.mxu0 %v573
      %2157 = vmatmul.mubr.bf16.gmra.mrb[0].mxu0 %v499
      %v2158 = vpop.f32.mrb[0].mxu0
      %v2159 = vadd.f32 0.0, %v2158
      %v2160 = vpop.f32.mrb[0].mxu0
      %v2161 = vpop.f32.mrb[0].mxu0
      %v2162 = vadd.f32 0.0, %v2161
      %v2163 = vpop.f32.mrb[0].mxu0
      %2164 = vmatprep.mubr.bf16.mxu0 %v585
      %2165 = vmatmul.mubr.bf16.gmra.mrb[0].mxu0 %v500
      %v2166 = vpop.f32.mrb[0].mxu0
      %v2167 = vadd.f32 0.0, %v2166
      %v2168 = vpop.f32.mrb[0].mxu0
      %v2169 = vpop.f32.mrb[0].mxu0
      %v2170 = vadd.f32 0.0, %v2169
      %v2171 = vpop.f32.mrb[0].mxu0
      %2172 = vmatprep.mubr.bf16.mxu0 %v597
      %2173 = vmatmul.mubr.bf16.gmra.mrb[0].mxu0 %v501
      %v2174 = vpop.f32.mrb[0].mxu0
      %v2175 = vadd.f32 0.0, %v2174
      %v2176 = vpop.f32.mrb[0].mxu0
      %v2177 = vpop.f32.mrb[0].mxu0
      %v2178 = vadd.f32 0.0, %v2177
      %v2179 = vpop.f32.mrb[0].mxu0
      %2180 = vdwg.mxu0
      %2181 = vmatprep.subr.bf16.mxu0 0
      %2182 = vmatpush1.bf16.msra.mxu0 %v1828
      %2183 = vmatprep.subr.bf16.mxu0 0
      %2184 = vmatpush1.bf16.msra.mxu0 %v1829
      %2185 = vmatprep.subr.bf16.mxu0 0
      %2186 = vmatpush1.bf16.msra.mxu0 %v1830
      %2187 = vmatprep.subr.bf16.mxu0 0
      %2188 = vmatpush1.bf16.msra.mxu0 %v1831
      %2189 = vmatprep.subr.bf16.mxu0 0
      %2190 = vmatpush1.bf16.msra.mxu0 %v1832
      %2191 = vmatprep.subr.bf16.mxu0 0
      %2192 = vmatpush1.bf16.msra.mxu0 %v1833
      %2193 = vmatprep.subr.bf16.mxu0 0
      %2194 = vmatpush1.bf16.msra.mxu0 %v1834
      %2195 = vmatprep.subr.bf16.mxu0 0
      %2196 = vmatpush1.bf16.msra.mxu0 %v1835
      %2197 = vmatprep.subr.bf16.mxu0 0
      %2198 = vmatpush1.bf16.msra.mxu0 %v1836
      %2199 = vmatprep.subr.bf16.mxu0 0
      %2200 = vmatpush1.bf16.msra.mxu0 %v1837
      %2201 = vmatprep.subr.bf16.mxu0 0
      %2202 = vmatpush1.bf16.msra.mxu0 %v1838
      %2203 = vmatprep.subr.bf16.mxu0 0
      %2204 = vmatpush1.bf16.msra.mxu0 %v1839
      %2205 = vmatprep.subr.bf16.mxu0 0
      %2206 = vmatpush1.bf16.msra.mxu0 %v1840
      %2207 = vmatprep.subr.bf16.mxu0 0
      %2208 = vmatpush1.bf16.msra.mxu0 %v1841
      %2209 = vmatprep.subr.bf16.mxu0 0
      %2210 = vmatpush1.bf16.msra.mxu0 %v1842
      %2211 = vmatprep.subr.bf16.mxu0 0
      %2212 = vmatpush1.bf16.msra.mxu0 %v1843
      %2213 = vmatprep.mubr.bf16.mxu0 %v460
      %2214 = vmatmul.mubr.bf16.gmra.mrb[0].mxu0 %v369
      %v2215 = vpop.f32.mrb[0].mxu0
      %v2216 = vadd.f32 %v1991, %v2215
      %v2217 = vpop.f32.mrb[0].mxu0
      %v2218 = vpop.f32.mrb[0].mxu0
      %v2219 = vadd.f32 %v1994, %v2218
      %v2220 = vpop.f32.mrb[0].mxu0
      %2221 = vmatprep.mubr.bf16.mxu0 %v461
      %2222 = vmatmul.mubr.bf16.gmra.mrb[0].mxu0 %v381
      %v2223 = vpop.f32.mrb[0].mxu0
      %v2224 = vadd.f32 %v1999, %v2223
      %v2225 = vpop.f32.mrb[0].mxu0
      %v2226 = vpop.f32.mrb[0].mxu0
      %v2227 = vadd.f32 %v2002, %v2226
      %v2228 = vpop.f32.mrb[0].mxu0
      %2229 = vmatprep.mubr.bf16.mxu0 %v462
      %2230 = vmatmul.mubr.bf16.gmra.mrb[0].mxu0 %v393
      %v2231 = vpop.f32.mrb[0].mxu0
      %v2232 = vadd.f32 %v2007, %v2231
      %v2233 = vpop.f32.mrb[0].mxu0
      %v2234 = vpop.f32.mrb[0].mxu0
      %v2235 = vadd.f32 %v2010, %v2234
      %v2236 = vpop.f32.mrb[0].mxu0
      %2237 = vmatprep.mubr.bf16.mxu0 %v463
      %2238 = vmatmul.mubr.bf16.gmra.mrb[0].mxu0 %v405
      %v2239 = vpop.f32.mrb[0].mxu0
      %v2240 = vadd.f32 %v2015, %v2239
      %v2241 = vpop.f32.mrb[0].mxu0
      %v2242 = vpop.f32.mrb[0].mxu0
      %v2243 = vadd.f32 %v2018, %v2242
      %v2244 = vpop.f32.mrb[0].mxu0
      %2245 = vmatprep.mubr.bf16.mxu0 %v464
      %2246 = vmatmul.mubr.bf16.gmra.mrb[0].mxu0 %v417
      %v2247 = vpop.f32.mrb[0].mxu0
      %v2248 = vadd.f32 %v2023, %v2247
      %v2249 = vpop.f32.mrb[0].mxu0
      %v2250 = vpop.f32.mrb[0].mxu0
      %v2251 = vadd.f32 %v2026, %v2250
      %v2252 = vpop.f32.mrb[0].mxu0
      %2253 = vmatprep.mubr.bf16.mxu0 %v465
      %2254 = vmatmul.mubr.bf16.gmra.mrb[0].mxu0 %v429
      %v2255 = vpop.f32.mrb[0].mxu0
      %v2256 = vadd.f32 %v2031, %v2255
      %v2257 = vpop.f32.mrb[0].mxu0
      %v2258 = vpop.f32.mrb[0].mxu0
      %v2259 = vadd.f32 %v2034, %v2258
      %v2260 = vpop.f32.mrb[0].mxu0
      %2261 = vmatprep.mubr.bf16.mxu0 %v496
      %2262 = vmatmul.mubr.bf16.gmra.mrb[0].mxu0 %v819
      %v2263 = vpop.f32.mrb[0].mxu0
      %v2264 = vadd.f32 %v2039, %v2263
      %v2265 = vpop.f32.mrb[0].mxu0
      %v2266 = vpop.f32.mrb[0].mxu0
      %v2267 = vadd.f32 %v2042, %v2266
      %v2268 = vpop.f32.mrb[0].mxu0
      %2269 = vmatprep.mubr.bf16.mxu0 %v497
      %2270 = vmatmul.mubr.bf16.gmra.mrb[0].mxu0 %v831
      %v2271 = vpop.f32.mrb[0].mxu0
      %v2272 = vadd.f32 %v2047, %v2271
      %v2273 = vpop.f32.mrb[0].mxu0
      %v2274 = vpop.f32.mrb[0].mxu0
      %v2275 = vadd.f32 %v2050, %v2274
      %v2276 = vpop.f32.mrb[0].mxu0
      %2277 = vmatprep.mubr.bf16.mxu0 %v498
      %2278 = vmatmul.mubr.bf16.gmra.mrb[0].mxu0 %v843
      %v2279 = vpop.f32.mrb[0].mxu0
      %v2280 = vadd.f32 %v2055, %v2279
      %v2281 = vpop.f32.mrb[0].mxu0
      %v2282 = vpop.f32.mrb[0].mxu0
      %v2283 = vadd.f32 %v2058, %v2282
      %v2284 = vpop.f32.mrb[0].mxu0
      %2285 = vmatprep.mubr.bf16.mxu0 %v499
      %2286 = vmatmul.mubr.bf16.gmra.mrb[0].mxu0 %v855
      %v2287 = vpop.f32.mrb[0].mxu0
      %v2288 = vadd.f32 %v2063, %v2287
      %v2289 = vpop.f32.mrb[0].mxu0
      %v2290 = vpop.f32.mrb[0].mxu0
      %v2291 = vadd.f32 %v2066, %v2290
      %v2292 = vpop.f32.mrb[0].mxu0
      %2293 = vmatprep.mubr.bf16.mxu0 %v500
      %2294 = vmatmul.mubr.bf16.gmra.mrb[0].mxu0 %v867
      %v2295 = vpop.f32.mrb[0].mxu0
      %v2296 = vadd.f32 %v2071, %v2295
      %v2297 = vpop.f32.mrb[0].mxu0
      %v2298 = vpop.f32.mrb[0].mxu0
      %v2299 = vadd.f32 %v2074, %v2298
      %v2300 = vpop.f32.mrb[0].mxu0
      %2301 = vmatprep.mubr.bf16.mxu0 %v501
      %2302 = vmatmul.mubr.bf16.gmra.mrb[0].mxu0 %v879
      %v2303 = vpop.f32.mrb[0].mxu0
      %v2304 = vadd.f32 %v2079, %v2303
      %v2305 = vpop.f32.mrb[0].mxu0
      %v2306 = vpop.f32.mrb[0].mxu0
      %v2307 = vadd.f32 %v2082, %v2306
      %v2308 = vpop.f32.mrb[0].mxu0
      %2309 = vmatprep.mubr.bf16.mxu0 %v628
      %2310 = vmatmul.mubr.bf16.gmra.mrb[0].mxu0 %v537
      %v2311 = vpop.f32.mrb[0].mxu0
      %v2312 = vadd.f32 %v2087, %v2311
      %v2313 = vpop.f32.mrb[0].mxu0
      %v2314 = vpop.f32.mrb[0].mxu0
      %v2315 = vadd.f32 %v2090, %v2314
      %v2316 = vpop.f32.mrb[0].mxu0
      %2317 = vmatprep.mubr.bf16.mxu0 %v629
      %2318 = vmatmul.mubr.bf16.gmra.mrb[0].mxu0 %v549
      %v2319 = vpop.f32.mrb[0].mxu0
      %v2320 = vadd.f32 %v2095, %v2319
      %v2321 = vpop.f32.mrb[0].mxu0
      %v2322 = vpop.f32.mrb[0].mxu0
      %v2323 = vadd.f32 %v2098, %v2322
      %v2324 = vpop.f32.mrb[0].mxu0
      %2325 = vmatprep.mubr.bf16.mxu0 %v630
      %2326 = vmatmul.mubr.bf16.gmra.mrb[0].mxu0 %v561
      %v2327 = vpop.f32.mrb[0].mxu0
      %v2328 = vadd.f32 %v2103, %v2327
      %v2329 = vpop.f32.mrb[0].mxu0
      %v2330 = vpop.f32.mrb[0].mxu0
      %v2331 = vadd.f32 %v2106, %v2330
      %v2332 = vpop.f32.mrb[0].mxu0
      %2333 = vmatprep.mubr.bf16.mxu0 %v631
      %2334 = vmatmul.mubr.bf16.gmra.mrb[0].mxu0 %v573
      %v2335 = vpop.f32.mrb[0].mxu0
      %v2336 = vadd.f32 %v2111, %v2335
      %v2337 = vpop.f32.mrb[0].mxu0
      %v2338 = vpop.f32.mrb[0].mxu0
      %v2339 = vadd.f32 %v2114, %v2338
      %v2340 = vpop.f32.mrb[0].mxu0
      %2341 = vmatprep.mubr.bf16.mxu0 %v632
      %2342 = vmatmul.mubr.bf16.gmra.mrb[0].mxu0 %v585
      %v2343 = vpop.f32.mrb[0].mxu0
      %v2344 = vadd.f32 %v2119, %v2343
      %v2345 = vpop.f32.mrb[0].mxu0
      %v2346 = vpop.f32.mrb[0].mxu0
      %v2347 = vadd.f32 %v2122, %v2346
      %v2348 = vpop.f32.mrb[0].mxu0
      %2349 = vmatprep.mubr.bf16.mxu0 %v633
      %2350 = vmatmul.mubr.bf16.gmra.mrb[0].mxu0 %v597
      %v2351 = vpop.f32.mrb[0].mxu0
      %v2352 = vadd.f32 %v2127, %v2351
      %v2353 = vpop.f32.mrb[0].mxu0
      %v2354 = vpop.f32.mrb[0].mxu0
      %v2355 = vadd.f32 %v2130, %v2354
      %v2356 = vpop.f32.mrb[0].mxu0
      %2357 = vmatprep.mubr.bf16.mxu0 %v664
      %2358 = vmatmul.mubr.bf16.gmra.mrb[0].mxu0 %v915
      %v2359 = vpop.f32.mrb[0].mxu0
      %v2360 = vadd.f32 %v2135, %v2359
      %v2361 = vpop.f32.mrb[0].mxu0
      %v2362 = vpop.f32.mrb[0].mxu0
      %v2363 = vadd.f32 %v2138, %v2362
      %v2364 = vpop.f32.mrb[0].mxu0
      %2365 = vmatprep.mubr.bf16.mxu0 %v665
      %2366 = vmatmul.mubr.bf16.gmra.mrb[0].mxu0 %v927
      %v2367 = vpop.f32.mrb[0].mxu0
      %v2368 = vadd.f32 %v2143, %v2367
      %v2369 = vpop.f32.mrb[0].mxu0
      %v2370 = vpop.f32.mrb[0].mxu0
      %v2371 = vadd.f32 %v2146, %v2370
      %v2372 = vpop.f32.mrb[0].mxu0
      %2373 = vmatprep.mubr.bf16.mxu0 %v666
      %2374 = vmatmul.mubr.bf16.gmra.mrb[0].mxu0 %v939
      %v2375 = vpop.f32.mrb[0].mxu0
      %v2376 = vadd.f32 %v2151, %v2375
      %v2377 = vpop.f32.mrb[0].mxu0
      %v2378 = vpop.f32.mrb[0].mxu0
      %v2379 = vadd.f32 %v2154, %v2378
      %v2380 = vpop.f32.mrb[0].mxu0
      %2381 = vmatprep.mubr.bf16.mxu0 %v667
      %2382 = vmatmul.mubr.bf16.gmra.mrb[0].mxu0 %v951
      %v2383 = vpop.f32.mrb[0].mxu0
      %v2384 = vadd.f32 %v2159, %v2383
      %v2385 = vpop.f32.mrb[0].mxu0
      %v2386 = vpop.f32.mrb[0].mxu0
      %v2387 = vadd.f32 %v2162, %v2386
      %v2388 = vpop.f32.mrb[0].mxu0
      %2389 = vmatprep.mubr.bf16.mxu0 %v668
      %2390 = vmatmul.mubr.bf16.gmra.mrb[0].mxu0 %v963
      %v2391 = vpop.f32.mrb[0].mxu0
      %v2392 = vadd.f32 %v2167, %v2391
      %v2393 = vpop.f32.mrb[0].mxu0
      %v2394 = vpop.f32.mrb[0].mxu0
      %v2395 = vadd.f32 %v2170, %v2394
      %v2396 = vpop.f32.mrb[0].mxu0
      %2397 = vmatprep.mubr.bf16.mxu0 %v669
      %2398 = vmatmul.mubr.bf16.gmra.mrb[0].mxu0 %v975
      %v2399 = vpop.f32.mrb[0].mxu0
      %v2400 = vadd.f32 %v2175, %v2399
      %v2401 = vpop.f32.mrb[0].mxu0
      %v2402 = vpop.f32.mrb[0].mxu0
      %v2403 = vadd.f32 %v2178, %v2402
      %v2404 = vpop.f32.mrb[0].mxu0
      %2405 = vdwg.mxu0
      %2406 = vmatprep.subr.bf16.mxu0 0
      %2407 = vmatpush1.bf16.msra.mxu0 %v1844
      %2408 = vmatprep.subr.bf16.mxu0 0
      %2409 = vmatpush1.bf16.msra.mxu0 %v1845
      %2410 = vmatprep.subr.bf16.mxu0 0
      %2411 = vmatpush1.bf16.msra.mxu0 %v1846
      %2412 = vmatprep.subr.bf16.mxu0 0
      %2413 = vmatpush1.bf16.msra.mxu0 %v1847
      %2414 = vmatprep.subr.bf16.mxu0 0
      %2415 = vmatpush1.bf16.msra.mxu0 %v1848
      %2416 = vmatprep.subr.bf16.mxu0 0
      %2417 = vmatpush1.bf16.msra.mxu0 %v1849
      %2418 = vmatprep.subr.bf16.mxu0 0
      %2419 = vmatpush1.bf16.msra.mxu0 %v1850
      %2420 = vmatprep.subr.bf16.mxu0 0
      %2421 = vmatpush1.bf16.msra.mxu0 %v1851
      %2422 = vmatprep.subr.bf16.mxu0 0
      %2423 = vmatpush1.bf16.msra.mxu0 %v1852
      %2424 = vmatprep.subr.bf16.mxu0 0
      %2425 = vmatpush1.bf16.msra.mxu0 %v1853
      %2426 = vmatprep.subr.bf16.mxu0 0
      %2427 = vmatpush1.bf16.msra.mxu0 %v1854
      %2428 = vmatprep.subr.bf16.mxu0 0
      %2429 = vmatpush1.bf16.msra.mxu0 %v1855
      %2430 = vmatprep.subr.bf16.mxu0 0
      %2431 = vmatpush1.bf16.msra.mxu0 %v1856
      %2432 = vmatprep.subr.bf16.mxu0 0
      %2433 = vmatpush1.bf16.msra.mxu0 %v1857
      %2434 = vmatprep.subr.bf16.mxu0 0
      %2435 = vmatpush1.bf16.msra.mxu0 %v1858
      %2436 = vmatprep.subr.bf16.mxu0 0
      %2437 = vmatpush1.bf16.msra.mxu0 %v1859
      %2438 = vmatprep.mubr.bf16.mxu0 %v537
      %2439 = vmatmul.mubr.bf16.gmra.mrb[0].mxu0 %v496
      %v2440 = vpop.f32.mrb[0].mxu0
      %v2441 = vadd.f32 %v2216, %v2440
      %v2442 = vpop.f32.mrb[0].mxu0
      %v2443 = vpop.f32.mrb[0].mxu0
      %v2444 = vadd.f32 %v2219, %v2443
      %v2445 = vpop.f32.mrb[0].mxu0
      %2446 = vmatprep.mubr.bf16.mxu0 %v549
      %2447 = vmatmul.mubr.bf16.gmra.mrb[0].mxu0 %v497
      %v2448 = vpop.f32.mrb[0].mxu0
      %v2449 = vadd.f32 %v2224, %v2448
      %v2450 = vpop.f32.mrb[0].mxu0
      %v2451 = vpop.f32.mrb[0].mxu0
      %v2452 = vadd.f32 %v2227, %v2451
      %v2453 = vpop.f32.mrb[0].mxu0
      %2454 = vmatprep.mubr.bf16.mxu0 %v561
      %2455 = vmatmul.mubr.bf16.gmra.mrb[0].mxu0 %v498
      %v2456 = vpop.f32.mrb[0].mxu0
      %v2457 = vadd.f32 %v2232, %v2456
      %v2458 = vpop.f32.mrb[0].mxu0
      %v2459 = vpop.f32.mrb[0].mxu0
      %v2460 = vadd.f32 %v2235, %v2459
      %v2461 = vpop.f32.mrb[0].mxu0
      %2462 = vmatprep.mubr.bf16.mxu0 %v573
      %2463 = vmatmul.mubr.bf16.gmra.mrb[0].mxu0 %v499
      %v2464 = vpop.f32.mrb[0].mxu0
      %v2465 = vadd.f32 %v2240, %v2464
      %v2466 = vpop.f32.mrb[0].mxu0
      %v2467 = vpop.f32.mrb[0].mxu0
      %v2468 = vadd.f32 %v2243, %v2467
      %v2469 = vpop.f32.mrb[0].mxu0
      %2470 = vmatprep.mubr.bf16.mxu0 %v585
      %2471 = vmatmul.mubr.bf16.gmra.mrb[0].mxu0 %v500
      %v2472 = vpop.f32.mrb[0].mxu0
      %v2473 = vadd.f32 %v2248, %v2472
      %v2474 = vpop.f32.mrb[0].mxu0
      %v2475 = vpop.f32.mrb[0].mxu0
      %v2476 = vadd.f32 %v2251, %v2475
      %v2477 = vpop.f32.mrb[0].mxu0
      %2478 = vmatprep.mubr.bf16.mxu0 %v597
      %2479 = vmatmul.mubr.bf16.gmra.mrb[0].mxu0 %v501
      %v2480 = vpop.f32.mrb[0].mxu0
      %v2481 = vadd.f32 %v2256, %v2480
      %v2482 = vpop.f32.mrb[0].mxu0
      %v2483 = vpop.f32.mrb[0].mxu0
      %v2484 = vadd.f32 %v2259, %v2483
      %v2485 = vpop.f32.mrb[0].mxu0
      %2486 = vmatprep.mubr.bf16.mxu0 %v915
      %2487 = vmatmul.mubr.bf16.gmra.mrb[0].mxu0 %v537
      %v2488 = vpop.f32.mrb[0].mxu0
      %v2489 = vadd.f32 %v2264, %v2488
      %v2490 = vpop.f32.mrb[0].mxu0
      %v2491 = vpop.f32.mrb[0].mxu0
      %v2492 = vadd.f32 %v2267, %v2491
      %v2493 = vpop.f32.mrb[0].mxu0
      %2494 = vmatprep.mubr.bf16.mxu0 %v927
      %2495 = vmatmul.mubr.bf16.gmra.mrb[0].mxu0 %v549
      %v2496 = vpop.f32.mrb[0].mxu0
      %v2497 = vadd.f32 %v2272, %v2496
      %v2498 = vpop.f32.mrb[0].mxu0
      %v2499 = vpop.f32.mrb[0].mxu0
      %v2500 = vadd.f32 %v2275, %v2499
      %v2501 = vpop.f32.mrb[0].mxu0
      %2502 = vmatprep.mubr.bf16.mxu0 %v939
      %2503 = vmatmul.mubr.bf16.gmra.mrb[0].mxu0 %v561
      %v2504 = vpop.f32.mrb[0].mxu0
      %v2505 = vadd.f32 %v2280, %v2504
      %v2506 = vpop.f32.mrb[0].mxu0
      %v2507 = vpop.f32.mrb[0].mxu0
      %v2508 = vadd.f32 %v2283, %v2507
      %v2509 = vpop.f32.mrb[0].mxu0
      %2510 = vmatprep.mubr.bf16.mxu0 %v951
      %2511 = vmatmul.mubr.bf16.gmra.mrb[0].mxu0 %v573
      %v2512 = vpop.f32.mrb[0].mxu0
      %v2513 = vadd.f32 %v2288, %v2512
      %v2514 = vpop.f32.mrb[0].mxu0
      %v2515 = vpop.f32.mrb[0].mxu0
      %v2516 = vadd.f32 %v2291, %v2515
      %v2517 = vpop.f32.mrb[0].mxu0
      %2518 = vmatprep.mubr.bf16.mxu0 %v963
      %2519 = vmatmul.mubr.bf16.gmra.mrb[0].mxu0 %v585
      %v2520 = vpop.f32.mrb[0].mxu0
      %v2521 = vadd.f32 %v2296, %v2520
      %v2522 = vpop.f32.mrb[0].mxu0
      %v2523 = vpop.f32.mrb[0].mxu0
      %v2524 = vadd.f32 %v2299, %v2523
      %v2525 = vpop.f32.mrb[0].mxu0
      %2526 = vmatprep.mubr.bf16.mxu0 %v975
      %2527 = vmatmul.mubr.bf16.gmra.mrb[0].mxu0 %v597
      %v2528 = vpop.f32.mrb[0].mxu0
      %v2529 = vadd.f32 %v2304, %v2528
      %v2530 = vpop.f32.mrb[0].mxu0
      %v2531 = vpop.f32.mrb[0].mxu0
      %v2532 = vadd.f32 %v2307, %v2531
      %v2533 = vpop.f32.mrb[0].mxu0
      %2534 = vmatprep.mubr.bf16.mxu0 %v705
      %2535 = vmatmul.mubr.bf16.gmra.mrb[0].mxu0 %v664
      %v2536 = vpop.f32.mrb[0].mxu0
      %v2537 = vadd.f32 %v2312, %v2536
      %v2538 = vpop.f32.mrb[0].mxu0
      %v2539 = vpop.f32.mrb[0].mxu0
      %v2540 = vadd.f32 %v2315, %v2539
      %v2541 = vpop.f32.mrb[0].mxu0
      %2542 = vmatprep.mubr.bf16.mxu0 %v717
      %2543 = vmatmul.mubr.bf16.gmra.mrb[0].mxu0 %v665
      %v2544 = vpop.f32.mrb[0].mxu0
      %v2545 = vadd.f32 %v2320, %v2544
      %v2546 = vpop.f32.mrb[0].mxu0
      %v2547 = vpop.f32.mrb[0].mxu0
      %v2548 = vadd.f32 %v2323, %v2547
      %v2549 = vpop.f32.mrb[0].mxu0
      %2550 = vmatprep.mubr.bf16.mxu0 %v729
      %2551 = vmatmul.mubr.bf16.gmra.mrb[0].mxu0 %v666
      %v2552 = vpop.f32.mrb[0].mxu0
      %v2553 = vadd.f32 %v2328, %v2552
      %v2554 = vpop.f32.mrb[0].mxu0
      %v2555 = vpop.f32.mrb[0].mxu0
      %v2556 = vadd.f32 %v2331, %v2555
      %v2557 = vpop.f32.mrb[0].mxu0
      %2558 = vmatprep.mubr.bf16.mxu0 %v741
      %2559 = vmatmul.mubr.bf16.gmra.mrb[0].mxu0 %v667
      %v2560 = vpop.f32.mrb[0].mxu0
      %v2561 = vadd.f32 %v2336, %v2560
      %v2562 = vpop.f32.mrb[0].mxu0
      %v2563 = vpop.f32.mrb[0].mxu0
      %v2564 = vadd.f32 %v2339, %v2563
      %v2565 = vpop.f32.mrb[0].mxu0
      %2566 = vmatprep.mubr.bf16.mxu0 %v753
      %2567 = vmatmul.mubr.bf16.gmra.mrb[0].mxu0 %v668
      %v2568 = vpop.f32.mrb[0].mxu0
      %v2569 = vadd.f32 %v2344, %v2568
      %v2570 = vpop.f32.mrb[0].mxu0
      %v2571 = vpop.f32.mrb[0].mxu0
      %v2572 = vadd.f32 %v2347, %v2571
      %v2573 = vpop.f32.mrb[0].mxu0
      %2574 = vmatprep.mubr.bf16.mxu0 %v765
      %2575 = vmatmul.mubr.bf16.gmra.mrb[0].mxu0 %v669
      %v2576 = vpop.f32.mrb[0].mxu0
      %v2577 = vadd.f32 %v2352, %v2576
      %v2578 = vpop.f32.mrb[0].mxu0
      %v2579 = vpop.f32.mrb[0].mxu0
      %v2580 = vadd.f32 %v2355, %v2579
      %v2581 = vpop.f32.mrb[0].mxu0
      %2582 = vmatprep.mubr.bf16.mxu0 %v1011
      %2583 = vmatmul.mubr.bf16.gmra.mrb[0].mxu0 %v705
      %v2584 = vpop.f32.mrb[0].mxu0
      %v2585 = vadd.f32 %v2360, %v2584
      %v2586 = vpop.f32.mrb[0].mxu0
      %v2587 = vpop.f32.mrb[0].mxu0
      %v2588 = vadd.f32 %v2363, %v2587
      %v2589 = vpop.f32.mrb[0].mxu0
      %2590 = vmatprep.mubr.bf16.mxu0 %v1023
      %2591 = vmatmul.mubr.bf16.gmra.mrb[0].mxu0 %v717
      %v2592 = vpop.f32.mrb[0].mxu0
      %v2593 = vadd.f32 %v2368, %v2592
      %v2594 = vpop.f32.mrb[0].mxu0
      %v2595 = vpop.f32.mrb[0].mxu0
      %v2596 = vadd.f32 %v2371, %v2595
      %v2597 = vpop.f32.mrb[0].mxu0
      %2598 = vmatprep.mubr.bf16.mxu0 %v1035
      %2599 = vmatmul.mubr.bf16.gmra.mrb[0].mxu0 %v729
      %v2600 = vpop.f32.mrb[0].mxu0
      %v2601 = vadd.f32 %v2376, %v2600
      %v2602 = vpop.f32.mrb[0].mxu0
      %v2603 = vpop.f32.mrb[0].mxu0
      %v2604 = vadd.f32 %v2379, %v2603
      %v2605 = vpop.f32.mrb[0].mxu0
      %2606 = vmatprep.mubr.bf16.mxu0 %v1047
      %2607 = vmatmul.mubr.bf16.gmra.mrb[0].mxu0 %v741
      %v2608 = vpop.f32.mrb[0].mxu0
      %v2609 = vadd.f32 %v2384, %v2608
      %v2610 = vpop.f32.mrb[0].mxu0
      %v2611 = vpop.f32.mrb[0].mxu0
      %v2612 = vadd.f32 %v2387, %v2611
      %v2613 = vpop.f32.mrb[0].mxu0
      %2614 = vmatprep.mubr.bf16.mxu0 %v1059
      %2615 = vmatmul.mubr.bf16.gmra.mrb[0].mxu0 %v753
      %v2616 = vpop.f32.mrb[0].mxu0
      %v2617 = vadd.f32 %v2392, %v2616
      %v2618 = vpop.f32.mrb[0].mxu0
      %v2619 = vpop.f32.mrb[0].mxu0
      %v2620 = vadd.f32 %v2395, %v2619
      %v2621 = vpop.f32.mrb[0].mxu0
      %2622 = vmatprep.mubr.bf16.mxu0 %v1071
      %2623 = vmatmul.mubr.bf16.gmra.mrb[0].mxu0 %v765
      %v2624 = vpop.f32.mrb[0].mxu0
      %v2625 = vadd.f32 %v2400, %v2624
      %v2626 = vpop.f32.mrb[0].mxu0
      %v2627 = vpop.f32.mrb[0].mxu0
      %v2628 = vadd.f32 %v2403, %v2627
      %v2629 = vpop.f32.mrb[0].mxu0
      %2630 = vdwg.mxu0
      %2631 = vmatprep.subr.bf16.mxu0 0
      %2632 = vmatpush1.bf16.msra.mxu0 %v1860
      %2633 = vmatprep.subr.bf16.mxu0 0
      %2634 = vmatpush1.bf16.msra.mxu0 %v1861
      %2635 = vmatprep.subr.bf16.mxu0 0
      %2636 = vmatpush1.bf16.msra.mxu0 %v1862
      %2637 = vmatprep.subr.bf16.mxu0 0
      %2638 = vmatpush1.bf16.msra.mxu0 %v1863
      %2639 = vmatprep.subr.bf16.mxu0 0
      %2640 = vmatpush1.bf16.msra.mxu0 %v1864
      %2641 = vmatprep.subr.bf16.mxu0 0
      %2642 = vmatpush1.bf16.msra.mxu0 %v1865
      %2643 = vmatprep.subr.bf16.mxu0 0
      %2644 = vmatpush1.bf16.msra.mxu0 %v1866
      %2645 = vmatprep.subr.bf16.mxu0 0
      %2646 = vmatpush1.bf16.msra.mxu0 %v1867
      %2647 = vmatprep.subr.bf16.mxu0 0
      %2648 = vmatpush1.bf16.msra.mxu0 %v1868
      %2649 = vmatprep.subr.bf16.mxu0 0
      %2650 = vmatpush1.bf16.msra.mxu0 %v1869
      %2651 = vmatprep.subr.bf16.mxu0 0
      %2652 = vmatpush1.bf16.msra.mxu0 %v1870
      %2653 = vmatprep.subr.bf16.mxu0 0
      %2654 = vmatpush1.bf16.msra.mxu0 %v1871
      %2655 = vmatprep.subr.bf16.mxu0 0
      %2656 = vmatpush1.bf16.msra.mxu0 %v1872
      %2657 = vmatprep.subr.bf16.mxu0 0
      %2658 = vmatpush1.bf16.msra.mxu0 %v1873
      %2659 = vmatprep.subr.bf16.mxu0 0
      %2660 = vmatpush1.bf16.msra.mxu0 %v1874
      %2661 = vmatprep.subr.bf16.mxu0 0
      %2662 = vmatpush1.bf16.msra.mxu0 %v1875
      %2663 = vmatprep.mubr.bf16.mxu0 %v664
      %2664 = vmatmul.mubr.bf16.gmra.mrb[0].mxu0 %v628
      %v2665 = vpop.f32.mrb[0].mxu0
      %v2666 = vadd.f32 %v2441, %v2665
      %v2667 = vpop.f32.mrb[0].mxu0
      %v2668 = vpop.f32.mrb[0].mxu0
      %v2669 = vadd.f32 %v2444, %v2668
      %v2670 = vpop.f32.mrb[0].mxu0
      %2671 = vmatprep.mubr.bf16.mxu0 %v665
      %2672 = vmatmul.mubr.bf16.gmra.mrb[0].mxu0 %v629
      %v2673 = vpop.f32.mrb[0].mxu0
      %v2674 = vadd.f32 %v2449, %v2673
      %v2675 = vpop.f32.mrb[0].mxu0
      %v2676 = vpop.f32.mrb[0].mxu0
      %v2677 = vadd.f32 %v2452, %v2676
      %v2678 = vpop.f32.mrb[0].mxu0
      %2679 = vmatprep.mubr.bf16.mxu0 %v666
      %2680 = vmatmul.mubr.bf16.gmra.mrb[0].mxu0 %v630
      %v2681 = vpop.f32.mrb[0].mxu0
      %v2682 = vadd.f32 %v2457, %v2681
      %v2683 = vpop.f32.mrb[0].mxu0
      %v2684 = vpop.f32.mrb[0].mxu0
      %v2685 = vadd.f32 %v2460, %v2684
      %v2686 = vpop.f32.mrb[0].mxu0
      %2687 = vmatprep.mubr.bf16.mxu0 %v667
      %2688 = vmatmul.mubr.bf16.gmra.mrb[0].mxu0 %v631
      %v2689 = vpop.f32.mrb[0].mxu0
      %v2690 = vadd.f32 %v2465, %v2689
      %v2691 = vpop.f32.mrb[0].mxu0
      %v2692 = vpop.f32.mrb[0].mxu0
      %v2693 = vadd.f32 %v2468, %v2692
      %v2694 = vpop.f32.mrb[0].mxu0
      %2695 = vmatprep.mubr.bf16.mxu0 %v668
      %2696 = vmatmul.mubr.bf16.gmra.mrb[0].mxu0 %v632
      %v2697 = vpop.f32.mrb[0].mxu0
      %v2698 = vadd.f32 %v2473, %v2697
      %v2699 = vpop.f32.mrb[0].mxu0
      %v2700 = vpop.f32.mrb[0].mxu0
      %v2701 = vadd.f32 %v2476, %v2700
      %v2702 = vpop.f32.mrb[0].mxu0
      %2703 = vmatprep.mubr.bf16.mxu0 %v669
      %2704 = vmatmul.mubr.bf16.gmra.mrb[0].mxu0 %v633
      %v2705 = vpop.f32.mrb[0].mxu0
      %v2706 = vadd.f32 %v2481, %v2705
      %v2707 = vpop.f32.mrb[0].mxu0
      %v2708 = vpop.f32.mrb[0].mxu0
      %v2709 = vadd.f32 %v2484, %v2708
      %v2710 = vpop.f32.mrb[0].mxu0
      %2711 = vmatprep.mubr.bf16.mxu0 %v705
      %2712 = vmatmul.mubr.bf16.gmra.mrb[0].mxu0 %v664
      %v2713 = vpop.f32.mrb[0].mxu0
      %v2714 = vadd.f32 %v2489, %v2713
      %v2715 = vpop.f32.mrb[0].mxu0
      %v2716 = vpop.f32.mrb[0].mxu0
      %v2717 = vadd.f32 %v2492, %v2716
      %v2718 = vpop.f32.mrb[0].mxu0
      %2719 = vmatprep.mubr.bf16.mxu0 %v717
      %2720 = vmatmul.mubr.bf16.gmra.mrb[0].mxu0 %v665
      %v2721 = vpop.f32.mrb[0].mxu0
      %v2722 = vadd.f32 %v2497, %v2721
      %v2723 = vpop.f32.mrb[0].mxu0
      %v2724 = vpop.f32.mrb[0].mxu0
      %v2725 = vadd.f32 %v2500, %v2724
      %v2726 = vpop.f32.mrb[0].mxu0
      %2727 = vmatprep.mubr.bf16.mxu0 %v729
      %2728 = vmatmul.mubr.bf16.gmra.mrb[0].mxu0 %v666
      %v2729 = vpop.f32.mrb[0].mxu0
      %v2730 = vadd.f32 %v2505, %v2729
      %v2731 = vpop.f32.mrb[0].mxu0
      %v2732 = vpop.f32.mrb[0].mxu0
      %v2733 = vadd.f32 %v2508, %v2732
      %v2734 = vpop.f32.mrb[0].mxu0
      %2735 = vmatprep.mubr.bf16.mxu0 %v741
      %2736 = vmatmul.mubr.bf16.gmra.mrb[0].mxu0 %v667
      %v2737 = vpop.f32.mrb[0].mxu0
      %v2738 = vadd.f32 %v2513, %v2737
      %v2739 = vpop.f32.mrb[0].mxu0
      %v2740 = vpop.f32.mrb[0].mxu0
      %v2741 = vadd.f32 %v2516, %v2740
      %v2742 = vpop.f32.mrb[0].mxu0
      %2743 = vmatprep.mubr.bf16.mxu0 %v753
      %2744 = vmatmul.mubr.bf16.gmra.mrb[0].mxu0 %v668
      %v2745 = vpop.f32.mrb[0].mxu0
      %v2746 = vadd.f32 %v2521, %v2745
      %v2747 = vpop.f32.mrb[0].mxu0
      %v2748 = vpop.f32.mrb[0].mxu0
      %v2749 = vadd.f32 %v2524, %v2748
      %v2750 = vpop.f32.mrb[0].mxu0
      %2751 = vmatprep.mubr.bf16.mxu0 %v765
      %2752 = vmatmul.mubr.bf16.gmra.mrb[0].mxu0 %v669
      %v2753 = vpop.f32.mrb[0].mxu0
      %v2754 = vadd.f32 %v2529, %v2753
      %v2755 = vpop.f32.mrb[0].mxu0
      %v2756 = vpop.f32.mrb[0].mxu0
      %v2757 = vadd.f32 %v2532, %v2756
      %v2758 = vpop.f32.mrb[0].mxu0
      %2759 = vmatprep.mubr.bf16.mxu0 %v1170
      %2760 = vmatmul.mubr.bf16.gmra.mrb[0].mxu0 %v1134
      %v2761 = vpop.f32.mrb[0].mxu0
      %v2762 = vadd.f32 %v2537, %v2761
      %v2763 = vpop.f32.mrb[0].mxu0
      %v2764 = vpop.f32.mrb[0].mxu0
      %v2765 = vadd.f32 %v2540, %v2764
      %v2766 = vpop.f32.mrb[0].mxu0
      %2767 = vmatprep.mubr.bf16.mxu0 %v1171
      %2768 = vmatmul.mubr.bf16.gmra.mrb[0].mxu0 %v1135
      %v2769 = vpop.f32.mrb[0].mxu0
      %v2770 = vadd.f32 %v2545, %v2769
      %v2771 = vpop.f32.mrb[0].mxu0
      %v2772 = vpop.f32.mrb[0].mxu0
      %v2773 = vadd.f32 %v2548, %v2772
      %v2774 = vpop.f32.mrb[0].mxu0
      %2775 = vmatprep.mubr.bf16.mxu0 %v1172
      %2776 = vmatmul.mubr.bf16.gmra.mrb[0].mxu0 %v1136
      %v2777 = vpop.f32.mrb[0].mxu0
      %v2778 = vadd.f32 %v2553, %v2777
      %v2779 = vpop.f32.mrb[0].mxu0
      %v2780 = vpop.f32.mrb[0].mxu0
      %v2781 = vadd.f32 %v2556, %v2780
      %v2782 = vpop.f32.mrb[0].mxu0
      %2783 = vmatprep.mubr.bf16.mxu0 %v1173
      %2784 = vmatmul.mubr.bf16.gmra.mrb[0].mxu0 %v1137
      %v2785 = vpop.f32.mrb[0].mxu0
      %v2786 = vadd.f32 %v2561, %v2785
      %v2787 = vpop.f32.mrb[0].mxu0
      %v2788 = vpop.f32.mrb[0].mxu0
      %v2789 = vadd.f32 %v2564, %v2788
      %v2790 = vpop.f32.mrb[0].mxu0
      %2791 = vmatprep.mubr.bf16.mxu0 %v1174
      %2792 = vmatmul.mubr.bf16.gmra.mrb[0].mxu0 %v1138
      %v2793 = vpop.f32.mrb[0].mxu0
      %v2794 = vadd.f32 %v2569, %v2793
      %v2795 = vpop.f32.mrb[0].mxu0
      %v2796 = vpop.f32.mrb[0].mxu0
      %v2797 = vadd.f32 %v2572, %v2796
      %v2798 = vpop.f32.mrb[0].mxu0
      %2799 = vmatprep.mubr.bf16.mxu0 %v1175
      %2800 = vmatmul.mubr.bf16.gmra.mrb[0].mxu0 %v1139
      %v2801 = vpop.f32.mrb[0].mxu0
      %v2802 = vadd.f32 %v2577, %v2801
      %v2803 = vpop.f32.mrb[0].mxu0
      %v2804 = vpop.f32.mrb[0].mxu0
      %v2805 = vadd.f32 %v2580, %v2804
      %v2806 = vpop.f32.mrb[0].mxu0
      %2807 = vmatprep.mubr.bf16.mxu0 %v1211
      %2808 = vmatmul.mubr.bf16.gmra.mrb[0].mxu0 %v1170
      %v2809 = vpop.f32.mrb[0].mxu0
      %v2810 = vadd.f32 %v2585, %v2809
      %v2811 = vpop.f32.mrb[0].mxu0
      %v2812 = vpop.f32.mrb[0].mxu0
      %v2813 = vadd.f32 %v2588, %v2812
      %v2814 = vpop.f32.mrb[0].mxu0
      %2815 = vmatprep.mubr.bf16.mxu0 %v1223
      %2816 = vmatmul.mubr.bf16.gmra.mrb[0].mxu0 %v1171
      %v2817 = vpop.f32.mrb[0].mxu0
      %v2818 = vadd.f32 %v2593, %v2817
      %v2819 = vpop.f32.mrb[0].mxu0
      %v2820 = vpop.f32.mrb[0].mxu0
      %v2821 = vadd.f32 %v2596, %v2820
      %v2822 = vpop.f32.mrb[0].mxu0
      %2823 = vmatprep.mubr.bf16.mxu0 %v1235
      %2824 = vmatmul.mubr.bf16.gmra.mrb[0].mxu0 %v1172
      %v2825 = vpop.f32.mrb[0].mxu0
      %v2826 = vadd.f32 %v2601, %v2825
      %v2827 = vpop.f32.mrb[0].mxu0
      %v2828 = vpop.f32.mrb[0].mxu0
      %v2829 = vadd.f32 %v2604, %v2828
      %v2830 = vpop.f32.mrb[0].mxu0
      %2831 = vmatprep.mubr.bf16.mxu0 %v1247
      %2832 = vmatmul.mubr.bf16.gmra.mrb[0].mxu0 %v1173
      %v2833 = vpop.f32.mrb[0].mxu0
      %v2834 = vadd.f32 %v2609, %v2833
      %v2835 = vpop.f32.mrb[0].mxu0
      %v2836 = vpop.f32.mrb[0].mxu0
      %v2837 = vadd.f32 %v2612, %v2836
      %v2838 = vpop.f32.mrb[0].mxu0
      %2839 = vmatprep.mubr.bf16.mxu0 %v1259
      %2840 = vmatmul.mubr.bf16.gmra.mrb[0].mxu0 %v1174
      %v2841 = vpop.f32.mrb[0].mxu0
      %v2842 = vadd.f32 %v2617, %v2841
      %v2843 = vpop.f32.mrb[0].mxu0
      %v2844 = vpop.f32.mrb[0].mxu0
      %v2845 = vadd.f32 %v2620, %v2844
      %v2846 = vpop.f32.mrb[0].mxu0
      %2847 = vmatprep.mubr.bf16.mxu0 %v1271
      %2848 = vmatmul.mubr.bf16.gmra.mrb[0].mxu0 %v1175
      %v2849 = vpop.f32.mrb[0].mxu0
      %v2850 = vadd.f32 %v2625, %v2849
      %v2851 = vpop.f32.mrb[0].mxu0
      %v2852 = vpop.f32.mrb[0].mxu0
      %v2853 = vadd.f32 %v2628, %v2852
      %v2854 = vpop.f32.mrb[0].mxu0
      %2855 = vdwg.mxu0
      %2856 = vmatprep.subr.bf16.mxu0 0
      %2857 = vmatpush1.bf16.msra.mxu0 %v1876
      %2858 = vmatprep.subr.bf16.mxu0 0
      %2859 = vmatpush1.bf16.msra.mxu0 %v1877
      %2860 = vmatprep.subr.bf16.mxu0 0
      %2861 = vmatpush1.bf16.msra.mxu0 %v1878
      %2862 = vmatprep.subr.bf16.mxu0 0
      %2863 = vmatpush1.bf16.msra.mxu0 %v1879
      %2864 = vmatprep.subr.bf16.mxu0 0
      %2865 = vmatpush1.bf16.msra.mxu0 %v1880
      %2866 = vmatprep.subr.bf16.mxu0 0
      %2867 = vmatpush1.bf16.msra.mxu0 %v1881
      %2868 = vmatprep.subr.bf16.mxu0 0
      %2869 = vmatpush1.bf16.msra.mxu0 %v1882
      %2870 = vmatprep.subr.bf16.mxu0 0
      %2871 = vmatpush1.bf16.msra.mxu0 %v1883
      %2872 = vmatprep.subr.bf16.mxu0 0
      %2873 = vmatpush1.bf16.msra.mxu0 0
      %2874 = vmatprep.subr.bf16.mxu0 0
      %2875 = vmatpush1.bf16.msra.mxu0 0
      %2876 = vmatprep.subr.bf16.mxu0 0
      %2877 = vmatpush1.bf16.msra.mxu0 0
      %2878 = vmatprep.subr.bf16.mxu0 0
      %2879 = vmatpush1.bf16.msra.mxu0 0
      %2880 = vmatprep.subr.bf16.mxu0 0
      %2881 = vmatpush1.bf16.msra.mxu0 0
      %2882 = vmatprep.subr.bf16.mxu0 0
      %2883 = vmatpush1.bf16.msra.mxu0 0
      %2884 = vmatprep.subr.bf16.mxu0 0
      %2885 = vmatpush1.bf16.msra.mxu0 0
      %2886 = vmatprep.subr.bf16.mxu0 0
      %2887 = vmatpush1.bf16.msra.mxu0 0
      %2888 = vmatprep.mubr.bf16.mxu0 0
      %2889 = vmatmul.mubr.bf16.gmra.mrb[0].mxu0 %v705
      %v2890 = vpop.f32.mrb[0].mxu0
      %v2891 = vadd.f32 %v2666, %v2890
      %v2892 = vpop.f32.mrb[0].mxu0
      %v2893 = vpop.f32.mrb[0].mxu0
      %v2894 = vadd.f32 %v2669, %v2893
      %v2895 = vpop.f32.mrb[0].mxu0
      %2896 = vmatprep.mubr.bf16.mxu0 0
      %2897 = vmatmul.mubr.bf16.gmra.mrb[0].mxu0 %v717
      %v2898 = vpop.f32.mrb[0].mxu0
      %v2899 = vadd.f32 %v2674, %v2898
      %v2900 = vpop.f32.mrb[0].mxu0
      %v2901 = vpop.f32.mrb[0].mxu0
      %v2902 = vadd.f32 %v2677, %v2901
      %v2903 = vpop.f32.mrb[0].mxu0
      %2904 = vmatprep.mubr.bf16.mxu0 0
      %2905 = vmatmul.mubr.bf16.gmra.mrb[0].mxu0 %v729
      %v2906 = vpop.f32.mrb[0].mxu0
      %v2907 = vadd.f32 %v2682, %v2906
      %v2908 = vpop.f32.mrb[0].mxu0
      %v2909 = vpop.f32.mrb[0].mxu0
      %v2910 = vadd.f32 %v2685, %v2909
      %v2911 = vpop.f32.mrb[0].mxu0
      %2912 = vmatprep.mubr.bf16.mxu0 0
      %2913 = vmatmul.mubr.bf16.gmra.mrb[0].mxu0 %v741
      %v2914 = vpop.f32.mrb[0].mxu0
      %v2915 = vadd.f32 %v2690, %v2914
      %v2916 = vpop.f32.mrb[0].mxu0
      %v2917 = vpop.f32.mrb[0].mxu0
      %v2918 = vadd.f32 %v2693, %v2917
      %v2919 = vpop.f32.mrb[0].mxu0
      %2920 = vmatprep.mubr.bf16.mxu0 0
      %2921 = vmatmul.mubr.bf16.gmra.mrb[0].mxu0 %v753
      %v2922 = vpop.f32.mrb[0].mxu0
      %v2923 = vadd.f32 %v2698, %v2922
      %v2924 = vpop.f32.mrb[0].mxu0
      %v2925 = vpop.f32.mrb[0].mxu0
      %v2926 = vadd.f32 %v2701, %v2925
      %v2927 = vpop.f32.mrb[0].mxu0
      %2928 = vmatprep.mubr.bf16.mxu0 0
      %2929 = vmatmul.mubr.bf16.gmra.mrb[0].mxu0 %v765
      %v2930 = vpop.f32.mrb[0].mxu0
      %v2931 = vadd.f32 %v2706, %v2930
      %v2932 = vpop.f32.mrb[0].mxu0
      %v2933 = vpop.f32.mrb[0].mxu0
      %v2934 = vadd.f32 %v2709, %v2933
      %v2935 = vpop.f32.mrb[0].mxu0
      %2936 = vmatprep.mubr.bf16.mxu0 0
      %2937 = vmatmul.mubr.bf16.gmra.mrb[0].mxu0 %v1011
      %v2938 = vpop.f32.mrb[0].mxu0
      %v2939 = vadd.f32 %v2714, %v2938
      %v2940 = vpop.f32.mrb[0].mxu0
      %v2941 = vpop.f32.mrb[0].mxu0
      %v2942 = vadd.f32 %v2717, %v2941
      %v2943 = vpop.f32.mrb[0].mxu0
      %2944 = vmatprep.mubr.bf16.mxu0 0
      %2945 = vmatmul.mubr.bf16.gmra.mrb[0].mxu0 %v1023
      %v2946 = vpop.f32.mrb[0].mxu0
      %v2947 = vadd.f32 %v2722, %v2946
      %v2948 = vpop.f32.mrb[0].mxu0
      %v2949 = vpop.f32.mrb[0].mxu0
      %v2950 = vadd.f32 %v2725, %v2949
      %v2951 = vpop.f32.mrb[0].mxu0
      %2952 = vmatprep.mubr.bf16.mxu0 0
      %2953 = vmatmul.mubr.bf16.gmra.mrb[0].mxu0 %v1035
      %v2954 = vpop.f32.mrb[0].mxu0
      %v2955 = vadd.f32 %v2730, %v2954
      %v2956 = vpop.f32.mrb[0].mxu0
      %v2957 = vpop.f32.mrb[0].mxu0
      %v2958 = vadd.f32 %v2733, %v2957
      %v2959 = vpop.f32.mrb[0].mxu0
      %2960 = vmatprep.mubr.bf16.mxu0 0
      %2961 = vmatmul.mubr.bf16.gmra.mrb[0].mxu0 %v1047
      %v2962 = vpop.f32.mrb[0].mxu0
      %v2963 = vadd.f32 %v2738, %v2962
      %v2964 = vpop.f32.mrb[0].mxu0
      %v2965 = vpop.f32.mrb[0].mxu0
      %v2966 = vadd.f32 %v2741, %v2965
      %v2967 = vpop.f32.mrb[0].mxu0
      %2968 = vmatprep.mubr.bf16.mxu0 0
      %2969 = vmatmul.mubr.bf16.gmra.mrb[0].mxu0 %v1059
      %v2970 = vpop.f32.mrb[0].mxu0
      %v2971 = vadd.f32 %v2746, %v2970
      %v2972 = vpop.f32.mrb[0].mxu0
      %v2973 = vpop.f32.mrb[0].mxu0
      %v2974 = vadd.f32 %v2749, %v2973
      %v2975 = vpop.f32.mrb[0].mxu0
      %2976 = vmatprep.mubr.bf16.mxu0 0
      %2977 = vmatmul.mubr.bf16.gmra.mrb[0].mxu0 %v1071
      %v2978 = vpop.f32.mrb[0].mxu0
      %v2979 = vadd.f32 %v2754, %v2978
      %v2980 = vpop.f32.mrb[0].mxu0
      %v2981 = vpop.f32.mrb[0].mxu0
      %v2982 = vadd.f32 %v2757, %v2981
      %v2983 = vpop.f32.mrb[0].mxu0
      %2984 = vmatprep.mubr.bf16.mxu0 0
      %2985 = vmatmul.mubr.bf16.gmra.mrb[0].mxu0 %v1211
      %v2986 = vpop.f32.mrb[0].mxu0
      %v2987 = vadd.f32 %v2762, %v2986
      %v2988 = vpop.f32.mrb[0].mxu0
      %v2989 = vpop.f32.mrb[0].mxu0
      %v2990 = vadd.f32 %v2765, %v2989
      %v2991 = vpop.f32.mrb[0].mxu0
      %2992 = vmatprep.mubr.bf16.mxu0 0
      %2993 = vmatmul.mubr.bf16.gmra.mrb[0].mxu0 %v1223
      %v2994 = vpop.f32.mrb[0].mxu0
      %v2995 = vadd.f32 %v2770, %v2994
      %v2996 = vpop.f32.mrb[0].mxu0
      %v2997 = vpop.f32.mrb[0].mxu0
      %v2998 = vadd.f32 %v2773, %v2997
      %v2999 = vpop.f32.mrb[0].mxu0
      %3000 = vmatprep.mubr.bf16.mxu0 0
      %3001 = vmatmul.mubr.bf16.gmra.mrb[0].mxu0 %v1235
      %v3002 = vpop.f32.mrb[0].mxu0
      %v3003 = vadd.f32 %v2778, %v3002
      %v3004 = vpop.f32.mrb[0].mxu0
      %v3005 = vpop.f32.mrb[0].mxu0
      %v3006 = vadd.f32 %v2781, %v3005
      %v3007 = vpop.f32.mrb[0].mxu0
      %3008 = vmatprep.mubr.bf16.mxu0 0
      %3009 = vmatmul.mubr.bf16.gmra.mrb[0].mxu0 %v1247
      %v3010 = vpop.f32.mrb[0].mxu0
      %v3011 = vadd.f32 %v2786, %v3010
      %v3012 = vpop.f32.mrb[0].mxu0
      %v3013 = vpop.f32.mrb[0].mxu0
      %v3014 = vadd.f32 %v2789, %v3013
      %v3015 = vpop.f32.mrb[0].mxu0
      %3016 = vmatprep.mubr.bf16.mxu0 0
      %3017 = vmatmul.mubr.bf16.gmra.mrb[0].mxu0 %v1259
      %v3018 = vpop.f32.mrb[0].mxu0
      %v3019 = vadd.f32 %v2794, %v3018
      %v3020 = vpop.f32.mrb[0].mxu0
      %v3021 = vpop.f32.mrb[0].mxu0
      %v3022 = vadd.f32 %v2797, %v3021
      %v3023 = vpop.f32.mrb[0].mxu0
      %3024 = vmatprep.mubr.bf16.mxu0 0
      %3025 = vmatmul.mubr.bf16.gmra.mrb[0].mxu0 %v1271
      %v3026 = vpop.f32.mrb[0].mxu0
      %v3027 = vadd.f32 %v2802, %v3026
      %v3028 = vpop.f32.mrb[0].mxu0
      %v3029 = vpop.f32.mrb[0].mxu0
      %v3030 = vadd.f32 %v2805, %v3029
      %v3031 = vpop.f32.mrb[0].mxu0
      %3032 = vmatprep.mubr.bf16.mxu0 0
      %3033 = vmatmul.mubr.bf16.gmra.mrb[0].mxu0 %v1313
      %v3034 = vpop.f32.mrb[0].mxu0
      %v3035 = vadd.f32 %v2810, %v3034
      %v3036 = vpop.f32.mrb[0].mxu0
      %v3037 = vpop.f32.mrb[0].mxu0
      %v3038 = vadd.f32 %v2813, %v3037
      %v3039 = vpop.f32.mrb[0].mxu0
      %3040 = vmatprep.mubr.bf16.mxu0 0
      %3041 = vmatmul.mubr.bf16.gmra.mrb[0].mxu0 %v1325
      %v3042 = vpop.f32.mrb[0].mxu0
      %v3043 = vadd.f32 %v2818, %v3042
      %v3044 = vpop.f32.mrb[0].mxu0
      %v3045 = vpop.f32.mrb[0].mxu0
      %v3046 = vadd.f32 %v2821, %v3045
      %v3047 = vpop.f32.mrb[0].mxu0
      %3048 = vmatprep.mubr.bf16.mxu0 0
      %3049 = vmatmul.mubr.bf16.gmra.mrb[0].mxu0 %v1337
      %v3050 = vpop.f32.mrb[0].mxu0
      %v3051 = vadd.f32 %v2826, %v3050
      %v3052 = vpop.f32.mrb[0].mxu0
      %v3053 = vpop.f32.mrb[0].mxu0
      %v3054 = vadd.f32 %v2829, %v3053
      %v3055 = vpop.f32.mrb[0].mxu0
      %3056 = vmatprep.mubr.bf16.mxu0 0
      %3057 = vmatmul.mubr.bf16.gmra.mrb[0].mxu0 %v1349
      %v3058 = vpop.f32.mrb[0].mxu0
      %v3059 = vadd.f32 %v2834, %v3058
      %v3060 = vpop.f32.mrb[0].mxu0
      %v3061 = vpop.f32.mrb[0].mxu0
      %v3062 = vadd.f32 %v2837, %v3061
      %v3063 = vpop.f32.mrb[0].mxu0
      %3064 = vmatprep.mubr.bf16.mxu0 0
      %3065 = vmatmul.mubr.bf16.gmra.mrb[0].mxu0 %v1361
      %v3066 = vpop.f32.mrb[0].mxu0
      %v3067 = vadd.f32 %v2842, %v3066
      %v3068 = vpop.f32.mrb[0].mxu0
      %v3069 = vpop.f32.mrb[0].mxu0
      %v3070 = vadd.f32 %v2845, %v3069
      %v3071 = vpop.f32.mrb[0].mxu0
      %3072 = vmatprep.mubr.bf16.mxu0 0
      %3073 = vmatmul.mubr.bf16.gmra.mrb[0].mxu0 %v1373
      %v3074 = vpop.f32.mrb[0].mxu0
      %v3075 = vadd.f32 %v2850, %v3074
      %v3076 = vpop.f32.mrb[0].mxu0
      %v3077 = vpop.f32.mrb[0].mxu0
      %v3078 = vadd.f32 %v2853, %v3077
      %v3079 = vpop.f32.mrb[0].mxu0
      %3080 = vdwg.mxu0
      %v3081 = vmax.f32 %v2891, %v2939
      %v3082 = vmax.f32 %v2894, %v2942
      %v3083 = vmax.f32 %v2899, %v2947
      %v3084 = vmax.f32 %v2902, %v2950
      %v3085 = vmax.f32 %v2907, %v2955
      %v3086 = vmax.f32 %v2910, %v2958
      %v3087 = vmax.f32 %v2915, %v2963
      %v3088 = vmax.f32 %v2918, %v2966
      %v3089 = vmax.f32 %v2923, %v2971
      %v3090 = vmax.f32 %v2926, %v2974
      %v3091 = vmax.f32 %v2931, %v2979
      %v3092 = vmax.f32 %v2934, %v2982
      %v3093 = vmax.f32 %v2987, %v3035
      %v3094 = vmax.f32 %v2990, %v3038
      %v3095 = vmax.f32 %v2995, %v3043
      %v3096 = vmax.f32 %v2998, %v3046
      %v3097 = vmax.f32 %v3003, %v3051
      %v3098 = vmax.f32 %v3006, %v3054
      %v3099 = vmax.f32 %v3011, %v3059
      %v3100 = vmax.f32 %v3014, %v3062
      %v3101 = vmax.f32 %v3019, %v3067
      %v3102 = vmax.f32 %v3022, %v3070
      %v3103 = vmax.f32 %v3027, %v3075
      %v3104 = vmax.f32 %v3030, %v3078
      %v3105 = vmax.f32 %v3081, %v3093
      %v3106 = vmax.f32 %v3082, %v3094
      %v3107 = vmax.f32 %v3083, %v3095
      %v3108 = vmax.f32 %v3084, %v3096
      %v3109 = vmax.f32 %v3085, %v3097
      %v3110 = vmax.f32 %v3086, %v3098
      %v3111 = vmax.f32 %v3087, %v3099
      %v3112 = vmax.f32 %v3088, %v3100
      %v3113 = vmax.f32 %v3089, %v3101
      %v3114 = vmax.f32 %v3090, %v3102
      %v3115 = vmax.f32 %v3091, %v3103
      %v3116 = vmax.f32 %v3092, %v3104
      %v3117 = vld [vmem:[%s2] sm:$0x1]
      %v3119 = vlaneseq
      %v3120 = vshrl.u32 %v3119, 7
      %v3121 = vsub.s32 0, %v3120
      %v3122 = vrot.slane %v3117, %v3121
      %v3124 = vadd.f32 %v3105, %v3122
      %v3125 = vadd.f32 %v3106, %v3122
      %v3126 = vadd.f32 %v3107, %v3122
      %v3127 = vadd.f32 %v3108, %v3122
      %v3128 = vadd.f32 %v3109, %v3122
      %v3129 = vadd.f32 %v3110, %v3122
      %v3130 = vadd.f32 %v3111, %v3122
      %v3131 = vadd.f32 %v3112, %v3122
      %v3132 = vadd.f32 %v3113, %v3122
      %v3133 = vadd.f32 %v3114, %v3122
      %v3134 = vadd.f32 %v3115, %v3122
      %v3135 = vadd.f32 %v3116, %v3122
      %v3136 = vmax.f32 %v3124, 0.0
      %v3137 = vmax.f32 %v3125, 0.0
      %v3138 = vmax.f32 %v3126, 0.0
      %v3139 = vmax.f32 %v3127, 0.0
      %v3140 = vmax.f32 %v3128, 0.0
      %v3141 = vmax.f32 %v3129, 0.0
      %v3142 = vmax.f32 %v3130, 0.0
      %v3143 = vmax.f32 %v3131, 0.0
      %v3144 = vmax.f32 %v3132, 0.0
      %v3145 = vmax.f32 %v3133, 0.0
      %v3146 = vmax.f32 %v3134, 0.0
      %v3147 = vmax.f32 %v3135, 0.0
      %v3148 = vpack.c.bf16 %v3137, %v3136
      %v3149 = vpack.c.bf16 %v3139, %v3138
      %v3150 = vpack.c.bf16 %v3141, %v3140
      %v3151 = vpack.c.bf16 %v3143, %v3142
      %v3152 = vpack.c.bf16 %v3145, %v3144
      %v3153 = vpack.c.bf16 %v3147, %v3146
      %v3160 = vunpack.c.l.b16 %v3148
      %v3161 = vunpack.c.h.b16 %v3148
      %v3162 = vunpack.c.l.b16 %v3149
      %v3163 = vunpack.c.h.b16 %v3149
      %v3164 = vunpack.c.l.b16 %v3150
      %v3165 = vunpack.c.h.b16 %v3150
      %v3166 = vunpack.c.l.b16 %v3151
      %v3167 = vunpack.c.h.b16 %v3151
      %v3168 = vunpack.c.l.b16 %v3152
      %v3169 = vunpack.c.h.b16 %v3152
      %v3170 = vunpack.c.l.b16 %v3153
      %v3171 = vunpack.c.h.b16 %v3153
      %v3172 = vpack.c.b16 %v3160, %v3160
      %v3173 = vpack.c.b16 %v3161, %v3161
      %v3174 = vpack.c.b16 %v3162, %v3162
      %v3175 = vpack.c.b16 %v3163, %v3163
      %v3176 = vpack.c.b16 %v3164, %v3164
      %v3177 = vpack.c.b16 %v3165, %v3165
      %v3178 = vpack.c.b16 %v3166, %v3166
      %v3179 = vpack.c.b16 %v3167, %v3167
      %v3180 = vpack.c.b16 %v3168, %v3168
      %v3181 = vpack.c.b16 %v3169, %v3169
      %v3182 = vpack.c.b16 %v3170, %v3170
      %v3183 = vpack.c.b16 %v3171, %v3171
      %3196 = vst [vmem:[%s170] sm:$0xf] %v3172
      %3197 = vst [vmem:[%s170 + $0x4] sm:$0xf] %v3173
      %3198 = vst [vmem:[%s170 + $0x8] sm:$0xf] %v3174
      %3199 = vst [vmem:[%s170 + $0xc] sm:$0xf] %v3175
      %3200 = vst [vmem:[%s170 + $0x10] sm:$0xf] %v3176
      %3201 = vst [vmem:[%s170 + $0x14] sm:$0xf] %v3177
      %3202 = vst [vmem:[%s170 + $0x18] sm:$0xf] %v3178
      %3203 = vst [vmem:[%s170 + $0x1c] sm:$0xf] %v3179
      %3204 = vst [vmem:[%s170 + $0x20] sm:$0xf] %v3180
      %3205 = vst [vmem:[%s170 + $0x24] sm:$0xf] %v3181
      %3206 = vst [vmem:[%s170 + $0x28] sm:$0xf] %v3182
      %3207 = vst [vmem:[%s170 + $0x2c] sm:$0xf] %v3183
      %p3208 = scmp.lt.s32.totalorder %s14, 1
      %s3209 = scalar_select %p3208, %s14, 1
      %s3210 = smul.addr %s3209, 12
      %s3211 = smul.addr %s3210, 4
      %s3212 = scalar_lea.vmem %s3, %s3211
      // Predicated region
      $region33: #{_lambda_.5} parent=31 // pred_check
        %p3213 = pneg %p100
      $region34: #{_lambda_.5} parent=31 // pred_check_branch
        %3215 = sbr.rel (%p3213) target = $region36
      $region35: #{_lambda_.5} parent=31 // pred_region
        _
      $region36: #{_lambda_.5} parent=31 // pred_fallthru
        _
    $region32: #{_lambda_.5} parent=5 // pred_fallthru
      _
    %p3216 = scmp.le.s32.totalorder 2, %s9
    // Predicated region
    $region37: #{_lambda_.5} parent=5 // pred_check
      %p3217 = pneg %p3216
    $region38: #{_lambda_.5} parent=5 // pred_check_branch
      %3219 = sbr.rel (%p3217) target = $region40
    $region39: #{_lambda_.5} parent=5 // pred_region
      %s3220 = ssub.s32 %s9, 2
      // Predicated region
      $region41: #{_lambda_.5} parent=39 // pred_check
        %p3221 = pneg %p106
      $region42: #{_lambda_.5} parent=39 // pred_check_branch
        %3223 = sbr.rel (%p3221) target = $region44
      $region43: #{_lambda_.5} parent=39 // pred_region
        %p3224 = scmp.lt.s32.totalorder %s15, 1
        %s3225 = scalar_select %p3224, %s15, 1
        %s3226 = smul.addr %s3225, 12
        %s3227 = smul.addr %s3226, 4
        %s3228 = scalar_lea.vmem %s3, %s3227
      $region44: #{_lambda_.5} parent=39 // pred_fallthru
        _
    $region40: #{_lambda_.5} parent=5 // pred_fallthru
      _
  $region6: #{_lambda_.5} parent=0 // loop_footer
    %s13 = sadd.s32 1, %s9
  $region7: #{_lambda_.5} parent=0 // loop_footer_branch
    %8 = sbr.rel target = $region3
  $region8: #{_lambda_.5} parent=0 // loop_exit
    _

// kernel: _lambda_.6
$region0: #{_lambda_.6}
  #allocation0 [shape = 'u32[]', space=smem, size = 0x4, offset = 0x4, fixed_abs, tag = 'smem constant byte address 0x4 - core index']
  #allocation1 [shape = 'u32[144,128]{1,0:T(1,128)}', space=vmem, size = 0x12000, scoped, tag = 'internal scratch']
  %s0 = inlined_call_operand.vmem [shape: bf16[2,12,17,128], index: 0, kind: input, shape index: {}]
  %s1 = inlined_call_operand.vmem [shape: bf16[1152,128], index: 1, kind: input, shape index: {}]
  %s2 = inlined_call_operand.vmem [shape: f32[1,128], index: 2, kind: input, shape index: {}]
  %s3 = inlined_call_operand.vmem [shape: bf16[2,32,128], index: 3, kind: output, shape index: {}]
  %s4 = sld [smem:[#allocation0]]
  $region45: #{_lambda_.6} parent=0
    _
  %s6 = ssub.s32 1, %s4
  %s7 = scalar_select 0, %s6, %s4
  loop: start=0, step=1, limit=4
  $region2: #{_lambda_.6} parent=0 // loop_pre_header
    _
  $region3: #{_lambda_.6} parent=0 // loop_header
    %s9 = sphi 0, %s13
    %p10 = scmp.ge.s32.totalorder %s9, 4
    %s19 = sphi 0, %s21
    %s22 = sphi 0, %s19
    %s23 = sphi 0, %s22
    %s39 = sphi 0, %s23
    %s43 = sphi 0, %s43
    %s45 = sphi 0, %s43
    %s46 = sphi 0, %s45
    %s60 = sphi 0, %s46
    %s64 = sphi 0, %s64
    %s66 = sphi 0, %s64
    %s67 = sphi 0, %s66
    %s81 = sphi 0, %s67
    %s87 = sphi 0, %s89
    %s90 = sphi 0, %s87
    %s91 = sphi 0, %s90
    %s107 = sphi 0, %s91
  $region4: #{_lambda_.6} parent=0 // loop_header_branch
    %12 = sbr.rel (%p10) target = $region8
  $region5: #{_lambda_.6} parent=0 // loop_body
    %s14 = ssub.s32 %s9, 1
    %s15 = ssub.s32 %s9, 2
    %s16 = sadd.s32 %s9, 1
    %s17 = ssub.s32 %s9, %s16
    %p18 = scmp.eq.s32.totalorder %s17, 0
    %s20 = sadd.s32 %s19, 1
    %s21 = scalar_select %p18, %s19, %s20
    %p24 = pneg %p18
    %p25 = scmp.eq.s32.totalorder %s9, 1
    %p26 = por %p24, %p25
    %p27 = scmp.ne.s32.totalorder %s19, %s22
    %p28 = scmp.eq.s32.totalorder %s9, 0
    %p29 = por %p27, %p28
    %p30 = scmp.ne.s32.totalorder %s19, %s22
    %p31 = scmp.eq.s32.totalorder %s14, 1
    %p32 = por %p30, %p31
    %p33 = scmp.ne.s32.totalorder %s22, %s23
    %p34 = scmp.eq.s32.totalorder %s14, 0
    %p35 = por %p33, %p34
    %p36 = scmp.ne.s32.totalorder %s22, %s23
    %p37 = scmp.eq.s32.totalorder %s15, 1
    %p38 = por %p36, %p37
    %p40 = scmp.ne.s32.totalorder %s23, %s39
    %p41 = scmp.eq.s32.totalorder %s15, 0
    %p42 = por %p40, %p41
    %s44 = sadd.s32 %s43, 1
    %p47 = scmp.eq.s32.totalorder %s9, 1
    %p48 = scmp.ne.s32.totalorder %s43, %s45
    %p49 = scmp.eq.s32.totalorder %s9, 0
    %p50 = por %p48, %p49
    %p51 = scmp.ne.s32.totalorder %s43, %s45
    %p52 = scmp.eq.s32.totalorder %s14, 1
    %p53 = por %p51, %p52
    %p54 = scmp.ne.s32.totalorder %s45, %s46
    %p55 = scmp.eq.s32.totalorder %s14, 0
    %p56 = por %p54, %p55
    %p57 = scmp.ne.s32.totalorder %s45, %s46
    %p58 = scmp.eq.s32.totalorder %s15, 1
    %p59 = por %p57, %p58
    %p61 = scmp.ne.s32.totalorder %s46, %s60
    %p62 = scmp.eq.s32.totalorder %s15, 0
    %p63 = por %p61, %p62
    %s65 = sadd.s32 %s64, 1
    %p68 = scmp.eq.s32.totalorder %s9, 1
    %p69 = scmp.ne.s32.totalorder %s64, %s66
    %p70 = scmp.eq.s32.totalorder %s9, 0
    %p71 = por %p69, %p70
    %p72 = scmp.ne.s32.totalorder %s64, %s66
    %p73 = scmp.eq.s32.totalorder %s14, 1
    %p74 = por %p72, %p73
    %p75 = scmp.ne.s32.totalorder %s66, %s67
    %p76 = scmp.eq.s32.totalorder %s14, 0
    %p77 = por %p75, %p76
    %p78 = scmp.ne.s32.totalorder %s66, %s67
    %p79 = scmp.eq.s32.totalorder %s15, 1
    %p80 = por %p78, %p79
    %p82 = scmp.ne.s32.totalorder %s67, %s81
    %p83 = scmp.eq.s32.totalorder %s15, 0
    %p84 = por %p82, %p83
    %s85 = ssub.s32 %s9, %s16
    %p86 = scmp.eq.s32.totalorder %s85, 0
    %s88 = sadd.s32 %s87, 1
    %s89 = scalar_select %p86, %s87, %s88
    %p92 = pneg %p86
    %p93 = scmp.eq.s32.totalorder %s9, 1
    %p94 = por %p92, %p93
    %p95 = scmp.ne.s32.totalorder %s87, %s90
    %p96 = scmp.eq.s32.totalorder %s9, 0
    %p97 = por %p95, %p96
    %p98 = scmp.ne.s32.totalorder %s87, %s90
    %p99 = scmp.eq.s32.totalorder %s14, 1
    %p100 = por %p98, %p99
    %p101 = scmp.ne.s32.totalorder %s90, %s91
    %p102 = scmp.eq.s32.totalorder %s14, 0
    %p103 = por %p101, %p102
    %p104 = scmp.ne.s32.totalorder %s90, %s91
    %p105 = scmp.eq.s32.totalorder %s15, 1
    %p106 = por %p104, %p105
    %p108 = scmp.ne.s32.totalorder %s91, %s107
    %p109 = scmp.eq.s32.totalorder %s15, 0
    %p110 = por %p108, %p109
    %p111 = scmp.le.s32.totalorder 1, %s9
    %p112 = scmp.lt.s32.totalorder %s9, 3
    %p113 = pnand %p111, %p112
    %p114 = pneg %p113
    // Predicated region
    $region9: #{_lambda_.6} parent=5 // pred_check
      _
    $region10: #{_lambda_.6} parent=5 // pred_check_branch
      %116 = sbr.rel (%p113) target = $region12
    $region11: #{_lambda_.6} parent=5 // pred_region
      %s117 = ssub.s32 %s9, 1
      // Predicated region
      $region13: #{_lambda_.6} parent=11 // pred_check
        %p118 = pneg %p56
      $region14: #{_lambda_.6} parent=11 // pred_check_branch
        %120 = sbr.rel (%p118) target = $region16
      $region15: #{_lambda_.6} parent=11 // pred_region
        _
      $region16: #{_lambda_.6} parent=11 // pred_fallthru
        _
      // Predicated region
      $region17: #{_lambda_.6} parent=11 // pred_check
        %p121 = pneg %p77
      $region18: #{_lambda_.6} parent=11 // pred_check_branch
        %123 = sbr.rel (%p121) target = $region20
      $region19: #{_lambda_.6} parent=11 // pred_region
        _
      $region20: #{_lambda_.6} parent=11 // pred_fallthru
        _
    $region12: #{_lambda_.6} parent=5 // pred_fallthru
      _
    %p124 = scmp.lt.s32.totalorder %s9, 2
    // Predicated region
    $region21: #{_lambda_.6} parent=5 // pred_check
      %p125 = pneg %p124
    $region22: #{_lambda_.6} parent=5 // pred_check_branch
      %127 = sbr.rel (%p125) target = $region24
    $region23: #{_lambda_.6} parent=5 // pred_region
      // Predicated region
      $region25: #{_lambda_.6} parent=23 // pred_check
        %p128 = pneg %p29
      $region26: #{_lambda_.6} parent=23 // pred_check_branch
        %130 = sbr.rel (%p128) target = $region28
      $region27: #{_lambda_.6} parent=23 // pred_region
        %p131 = scmp.lt.s32.totalorder %s9, 1
        %s132 = scalar_select %p131, %s9, 1
        %s133 = smul.addr %s132, 36
        %s134 = smul.addr %s133, 4
        %s135 = scalar_lea.vmem %s0, %s134
      $region28: #{_lambda_.6} parent=23 // pred_fallthru
        _
    $region24: #{_lambda_.6} parent=5 // pred_fallthru
      _
    %p136 = scmp.le.s32.totalorder 1, %s9
    %p137 = scmp.lt.s32.totalorder %s9, 3
    %p138 = pnand %p136, %p137
    %p139 = pneg %p138
    // Predicated region
    $region29: #{_lambda_.6} parent=5 // pred_check
      _
    $region30: #{_lambda_.6} parent=5 // pred_check_branch
      %141 = sbr.rel (%p138) target = $region32
    $region31: #{_lambda_.6} parent=5 // pred_region
      %s142 = ssub.s32 %s9, 1
      %p143 = scmp.lt.s32.totalorder %s14, 1
      %s144 = scalar_select %p143, %s14, 1
      %s145 = smul.addr %s144, 36
      %s146 = smul.addr %s145, 4
      %s147 = scalar_lea.vmem %s0, %s146
      %p148 = pneg %p35
      %p149 = pneg %p32
      %p150 = pneg %p56
      %p151 = pneg %p53
      %p152 = pneg %p77
      %p153 = pneg %p74
      %p154 = pneg %p103
      %p155 = pneg %p100
      %p156 = scmp.lt.s32.totalorder %s14, 1
      %s157 = scalar_select %p156, %s14, 1
      %s158 = smul.addr %s157, 4
      %s159 = smul.addr %s158, 4
      %s160 = scalar_lea.vmem %s3, %s159
      %p161 = scmp.lt.s32.totalorder %s14, 1
      %s162 = scalar_select %p161, %s14, 1
      %s163 = smul.addr %s162, 36
      %s164 = smul.addr %s163, 4
      %s165 = scalar_lea.vmem %s0, %s164
      %p166 = scmp.lt.s32.totalorder %s14, 1
      %s167 = scalar_select %p166, %s14, 1
      %s168 = smul.addr %s167, 4
      %s169 = smul.addr %s168, 4
      %s170 = scalar_lea.vmem %s3, %s169
      %v172 = vld [vmem:[%s165] sm:$0xf]
      %v173 = vld [vmem:[%s165 + $0x4] sm:$0xf]
      %v174 = vld [vmem:[%s165 + $0xc] sm:$0xf]
      %v175 = vld [vmem:[%s165 + $0x10] sm:$0xf]
      %s176 = scalar_lea.vmem %s165, 36
      %v177 = vld [vmem:[%s176] sm:$0xf]
      %v178 = vld [vmem:[%s176 + $0x4] sm:$0xf]
      %v179 = vld [vmem:[%s176 + $0xc] sm:$0xf]
      %v180 = vld [vmem:[%s176 + $0x10] sm:$0xf]
      %v181 = vld [vmem:[%s165 + $0x8] sm:$0x1]
      %v182 = vld [vmem:[%s165 + $0x14] sm:$0x1]
      %s183 = scalar_lea.vmem %s165, 72
      %v184 = vld [vmem:[%s183] sm:$0xf]
      %v185 = vld [vmem:[%s183 + $0x4] sm:$0xf]
      %v186 = vld [vmem:[%s183 + $0xc] sm:$0xf]
      %v187 = vld [vmem:[%s183 + $0x10] sm:$0xf]
      %s188 = scalar_lea.vmem %s165, 108
      %v189 = vld [vmem:[%s188] sm:$0xf]
      %v190 = vld [vmem:[%s188 + $0x4] sm:$0xf]
      %v191 = vld [vmem:[%s188 + $0xc] sm:$0xf]
      %v192 = vld [vmem:[%s188 + $0x10] sm:$0xf]
      %v193 = vld [vmem:[%s183 + $0x8] sm:$0x1]
      %v194 = vld [vmem:[%s183 + $0x14] sm:$0x1]
      %s195 = scalar_lea.vmem %s165, 12
      %v196 = vld [vmem:[%s195] sm:$0xf]
      %v197 = vld [vmem:[%s195 + $0x4] sm:$0xf]
      %v198 = vld [vmem:[%s195 + $0xc] sm:$0xf]
      %v199 = vld [vmem:[%s195 + $0x10] sm:$0xf]
      %s200 = scalar_lea.vmem %s165, 48
      %v201 = vld [vmem:[%s200] sm:$0xf]
      %v202 = vld [vmem:[%s200 + $0x4] sm:$0xf]
      %v203 = vld [vmem:[%s200 + $0xc] sm:$0xf]
      %v204 = vld [vmem:[%s200 + $0x10] sm:$0xf]
      %v205 = vld [vmem:[%s195 + $0x8] sm:$0x1]
      %v206 = vld [vmem:[%s195 + $0x14] sm:$0x1]
      %v211 = vunpack.c.l.b16 %v172
      %v212 = vunpack.c.l.b16 %v173
      %v213 = vunpack.c.l.b16 %v174
      %v214 = vunpack.c.l.b16 %v175
      %v215 = vpack.c.b16 %v212, %v211
      %v216 = vpack.c.b16 %v214, %v213
      %v223 = vunpack.c.l.b16 %v177
      %v224 = vunpack.c.l.b16 %v178
      %v225 = vunpack.c.l.b16 %v179
      %v226 = vunpack.c.l.b16 %v180
      %v227 = vpack.c.b16 %v224, %v223
      %v228 = vpack.c.b16 %v226, %v225
      %v233 = vunpack.c.l.b16 %v181
      %v234 = vunpack.c.l.b16 %v182
      %v235 = vpack.c.b16 %v233, %v233
      %v236 = vpack.c.b16 %v234, %v234
      %vm237 = vsmask.f32 7424
      %v239 = vshrl.u32 %v215, 16
      %v241 = vshll.u32 %v215, 16
      %v243 = vrot.slane %v241, 1
      %v244 = vor.u32 %v239, %v243
      %v246 = vshll.u32 %v235, 16
      %v248 = vrot.slane %v246, 1
      %v249 = vsel %vm237, %v244, %v248
      %v251 = vshrl.u32 %v216, 16
      %v253 = vshll.u32 %v216, 16
      %v255 = vrot.slane %v253, 1
      %v256 = vor.u32 %v251, %v255
      %v258 = vshll.u32 %v236, 16
      %v260 = vrot.slane %v258, 1
      %v261 = vsel %vm237, %v256, %v260
      %v268 = vunpack.c.l.b16 %v184
      %v269 = vunpack.c.l.b16 %v185
      %v270 = vunpack.c.l.b16 %v186
      %v271 = vunpack.c.l.b16 %v187
      %v272 = vpack.c.b16 %v269, %v268
      %v273 = vpack.c.b16 %v271, %v270
      %v280 = vunpack.c.l.b16 %v189
      %v281 = vunpack.c.l.b16 %v190
      %v282 = vunpack.c.l.b16 %v191
      %v283 = vunpack.c.l.b16 %v192
      %v284 = vpack.c.b16 %v281, %v280
      %v285 = vpack.c.b16 %v283, %v282
      %v290 = vunpack.c.l.b16 %v193
      %v291 = vunpack.c.l.b16 %v194
      %v292 = vpack.c.b16 %v290, %v290
      %v293 = vpack.c.b16 %v291, %v291
      %v295 = vshrl.u32 %v272, 16
      %v297 = vshll.u32 %v272, 16
      %v299 = vrot.slane %v297, 1
      %v300 = vor.u32 %v295, %v299
      %v302 = vshll.u32 %v292, 16
      %v304 = vrot.slane %v302, 1
      %v305 = vsel %vm237, %v300, %v304
      %v307 = vshrl.u32 %v273, 16
      %v309 = vshll.u32 %v273, 16
      %v311 = vrot.slane %v309, 1
      %v312 = vor.u32 %v307, %v311
      %v314 = vshll.u32 %v293, 16
      %v316 = vrot.slane %v314, 1
      %v317 = vsel %vm237, %v312, %v316
      %v324 = vunpack.c.l.b16 %v196
      %v325 = vunpack.c.l.b16 %v197
      %v326 = vunpack.c.l.b16 %v198
      %v327 = vunpack.c.l.b16 %v199
      %v328 = vpack.c.b16 %v325, %v324
      %v329 = vpack.c.b16 %v327, %v326
      %v336 = vunpack.c.l.b16 %v201
      %v337 = vunpack.c.l.b16 %v202
      %v338 = vunpack.c.l.b16 %v203
      %v339 = vunpack.c.l.b16 %v204
      %v340 = vpack.c.b16 %v337, %v336
      %v341 = vpack.c.b16 %v339, %v338
      %v346 = vunpack.c.l.b16 %v205
      %v347 = vunpack.c.l.b16 %v206
      %v348 = vpack.c.b16 %v346, %v346
      %v349 = vpack.c.b16 %v347, %v347
      %v351 = vshrl.u32 %v328, 16
      %v353 = vshll.u32 %v328, 16
      %v355 = vrot.slane %v353, 1
      %v356 = vor.u32 %v351, %v355
      %v358 = vshll.u32 %v348, 16
      %v360 = vrot.slane %v358, 1
      %v361 = vsel %vm237, %v356, %v360
      %v363 = vshrl.u32 %v329, 16
      %v365 = vshll.u32 %v329, 16
      %v367 = vrot.slane %v365, 1
      %v368 = vor.u32 %v363, %v367
      %v370 = vshll.u32 %v349, 16
      %v372 = vrot.slane %v370, 1
      %v373 = vsel %vm237, %v368, %v372
      %v376 = vld [vmem:[%s176 + $0x8] sm:$0x1]
      %v377 = vld [vmem:[%s176 + $0x14] sm:$0x1]
      %v378 = vld [vmem:[%s188 + $0x8] sm:$0x1]
      %v379 = vld [vmem:[%s188 + $0x14] sm:$0x1]
      %v380 = vld [vmem:[%s200 + $0x8] sm:$0x1]
      %v381 = vld [vmem:[%s200 + $0x14] sm:$0x1]
      %v384 = vunpack.c.l.b16 %v376
      %v385 = vunpack.c.l.b16 %v377
      %v386 = vpack.c.b16 %v384, %v384
      %v387 = vpack.c.b16 %v385, %v385
      %v389 = vshrl.u32 %v227, 16
      %v391 = vshll.u32 %v227, 16
      %v393 = vrot.slane %v391, 1
      %v394 = vor.u32 %v389, %v393
      %v396 = vshll.u32 %v386, 16
      %v398 = vrot.slane %v396, 1
      %v399 = vsel %vm237, %v394, %v398
      %v401 = vshrl.u32 %v228, 16
      %v403 = vshll.u32 %v228, 16
      %v405 = vrot.slane %v403, 1
      %v406 = vor.u32 %v401, %v405
      %v408 = vshll.u32 %v387, 16
      %v410 = vrot.slane %v408, 1
      %v411 = vsel %vm237, %v406, %v410
      %v416 = vunpack.c.l.b16 %v378
      %v417 = vunpack.c.l.b16 %v379
      %v418 = vpack.c.b16 %v416, %v416
      %v419 = vpack.c.b16 %v417, %v417
      %v421 = vshrl.u32 %v284, 16
      %v423 = vshll.u32 %v284, 16
      %v425 = vrot.slane %v423, 1
      %v426 = vor.u32 %v421, %v425
      %v428 = vshll.u32 %v418, 16
      %v430 = vrot.slane %v428, 1
      %v431 = vsel %vm237, %v426, %v430
      %v433 = vshrl.u32 %v285, 16
      %v435 = vshll.u32 %v285, 16
      %v437 = vrot.slane %v435, 1
      %v438 = vor.u32 %v433, %v437
      %v440 = vshll.u32 %v419, 16
      %v442 = vrot.slane %v440, 1
      %v443 = vsel %vm237, %v438, %v442
      %v448 = vunpack.c.l.b16 %v380
      %v449 = vunpack.c.l.b16 %v381
      %v450 = vpack.c.b16 %v448, %v448
      %v451 = vpack.c.b16 %v449, %v449
      %v453 = vshrl.u32 %v340, 16
      %v455 = vshll.u32 %v340, 16
      %v457 = vrot.slane %v455, 1
      %v458 = vor.u32 %v453, %v457
      %v460 = vshll.u32 %v450, 16
      %v462 = vrot.slane %v460, 1
      %v463 = vsel %vm237, %v458, %v462
      %v465 = vshrl.u32 %v341, 16
      %v467 = vshll.u32 %v341, 16
      %v469 = vrot.slane %v467, 1
      %v470 = vor.u32 %v465, %v469
      %v472 = vshll.u32 %v451, 16
      %v474 = vrot.slane %v472, 1
      %v475 = vsel %vm237, %v470, %v474
      %s478 = scalar_lea.vmem %s165, 84
      %v479 = vld [vmem:[%s478] sm:$0xf]
      %v480 = vld [vmem:[%s478 + $0x4] sm:$0xf]
      %v481 = vld [vmem:[%s478 + $0xc] sm:$0xf]
      %v482 = vld [vmem:[%s478 + $0x10] sm:$0xf]
      %s483 = scalar_lea.vmem %s165, 120
      %v484 = vld [vmem:[%s483] sm:$0xf]
      %v485 = vld [vmem:[%s483 + $0x4] sm:$0xf]
      %v486 = vld [vmem:[%s483 + $0xc] sm:$0xf]
      %v487 = vld [vmem:[%s483 + $0x10] sm:$0xf]
      %v488 = vld [vmem:[%s478 + $0x8] sm:$0x1]
      %v489 = vld [vmem:[%s478 + $0x14] sm:$0x1]
      %v494 = vunpack.c.l.b16 %v479
      %v495 = vunpack.c.l.b16 %v480
      %v496 = vunpack.c.l.b16 %v481
      %v497 = vunpack.c.l.b16 %v482
      %v498 = vpack.c.b16 %v495, %v494
      %v499 = vpack.c.b16 %v497, %v496
      %v506 = vunpack.c.l.b16 %v484
      %v507 = vunpack.c.l.b16 %v485
      %v508 = vunpack.c.l.b16 %v486
      %v509 = vunpack.c.l.b16 %v487
      %v510 = vpack.c.b16 %v507, %v506
      %v511 = vpack.c.b16 %v509, %v508
      %v516 = vunpack.c.l.b16 %v488
      %v517 = vunpack.c.l.b16 %v489
      %v518 = vpack.c.b16 %v516, %v516
      %v519 = vpack.c.b16 %v517, %v517
      %v521 = vshrl.u32 %v498, 16
      %v523 = vshll.u32 %v498, 16
      %v525 = vrot.slane %v523, 1
      %v526 = vor.u32 %v521, %v525
      %v528 = vshll.u32 %v518, 16
      %v530 = vrot.slane %v528, 1
      %v531 = vsel %vm237, %v526, %v530
      %v533 = vshrl.u32 %v499, 16
      %v535 = vshll.u32 %v499, 16
      %v537 = vrot.slane %v535, 1
      %v538 = vor.u32 %v533, %v537
      %v540 = vshll.u32 %v519, 16
      %v542 = vrot.slane %v540, 1
      %v543 = vsel %vm237, %v538, %v542
      %v546 = vld [vmem:[%s483 + $0x8] sm:$0x1]
      %v547 = vld [vmem:[%s483 + $0x14] sm:$0x1]
      %v550 = vunpack.c.l.b16 %v546
      %v551 = vunpack.c.l.b16 %v547
      %v552 = vpack.c.b16 %v550, %v550
      %v553 = vpack.c.b16 %v551, %v551
      %v555 = vshrl.u32 %v510, 16
      %v557 = vshll.u32 %v510, 16
      %v559 = vrot.slane %v557, 1
      %v560 = vor.u32 %v555, %v559
      %v562 = vshll.u32 %v552, 16
      %v564 = vrot.slane %v562, 1
      %v565 = vsel %vm237, %v560, %v564
      %v567 = vshrl.u32 %v511, 16
      %v569 = vshll.u32 %v511, 16
      %v571 = vrot.slane %v569, 1
      %v572 = vor.u32 %v567, %v571
      %v574 = vshll.u32 %v553, 16
      %v576 = vrot.slane %v574, 1
      %v577 = vsel %vm237, %v572, %v576
      %v580 = vld [vmem:[%s1] sm:$0xf]
      %v581 = vld [vmem:[%s1 + $0x4] sm:$0xf]
      %v582 = vld [vmem:[%s1 + $0x8] sm:$0xf]
      %v583 = vld [vmem:[%s1 + $0xc] sm:$0xf]
      %v584 = vld [vmem:[%s1 + $0x10] sm:$0xf]
      %v585 = vld [vmem:[%s1 + $0x14] sm:$0xf]
      %v586 = vld [vmem:[%s1 + $0x18] sm:$0xf]
      %v587 = vld [vmem:[%s1 + $0x1c] sm:$0xf]
      %v588 = vld [vmem:[%s1 + $0x20] sm:$0xf]
      %v589 = vld [vmem:[%s1 + $0x24] sm:$0xf]
      %v590 = vld [vmem:[%s1 + $0x28] sm:$0xf]
      %v591 = vld [vmem:[%s1 + $0x2c] sm:$0xf]
      %v592 = vld [vmem:[%s1 + $0x30] sm:$0xf]
      %v593 = vld [vmem:[%s1 + $0x34] sm:$0xf]
      %v594 = vld [vmem:[%s1 + $0x38] sm:$0xf]
      %v595 = vld [vmem:[%s1 + $0x3c] sm:$0xf]
      %v596 = vld [vmem:[%s1 + $0x40] sm:$0xf]
      %v597 = vld [vmem:[%s1 + $0x44] sm:$0xf]
      %v598 = vld [vmem:[%s1 + $0x48] sm:$0xf]
      %v599 = vld [vmem:[%s1 + $0x4c] sm:$0xf]
      %v600 = vld [vmem:[%s1 + $0x50] sm:$0xf]
      %v601 = vld [vmem:[%s1 + $0x54] sm:$0xf]
      %v602 = vld [vmem:[%s1 + $0x58] sm:$0xf]
      %v603 = vld [vmem:[%s1 + $0x5c] sm:$0xf]
      %v604 = vld [vmem:[%s1 + $0x60] sm:$0xf]
      %v605 = vld [vmem:[%s1 + $0x64] sm:$0xf]
      %v606 = vld [vmem:[%s1 + $0x68] sm:$0xf]
      %v607 = vld [vmem:[%s1 + $0x6c] sm:$0xf]
      %v608 = vld [vmem:[%s1 + $0x70] sm:$0xf]
      %v609 = vld [vmem:[%s1 + $0x74] sm:$0xf]
      %v610 = vld [vmem:[%s1 + $0x78] sm:$0xf]
      %v611 = vld [vmem:[%s1 + $0x7c] sm:$0xf]
      %v612 = vld [vmem:[%s1 + $0x80] sm:$0xf]
      %v613 = vld [vmem:[%s1 + $0x84] sm:$0xf]
      %v614 = vld [vmem:[%s1 + $0x88] sm:$0xf]
      %v615 = vld [vmem:[%s1 + $0x8c] sm:$0xf]
      %v616 = vld [vmem:[%s1 + $0x90] sm:$0xf]
      %v617 = vld [vmem:[%s1 + $0x94] sm:$0xf]
      %v618 = vld [vmem:[%s1 + $0x98] sm:$0xf]
      %v619 = vld [vmem:[%s1 + $0x9c] sm:$0xf]
      %v620 = vld [vmem:[%s1 + $0xa0] sm:$0xf]
      %v621 = vld [vmem:[%s1 + $0xa4] sm:$0xf]
      %v622 = vld [vmem:[%s1 + $0xa8] sm:$0xf]
      %v623 = vld [vmem:[%s1 + $0xac] sm:$0xf]
      %v624 = vld [vmem:[%s1 + $0xb0] sm:$0xf]
      %v625 = vld [vmem:[%s1 + $0xb4] sm:$0xf]
      %v626 = vld [vmem:[%s1 + $0xb8] sm:$0xf]
      %v627 = vld [vmem:[%s1 + $0xbc] sm:$0xf]
      %v628 = vld [vmem:[%s1 + $0xc0] sm:$0xf]
      %v629 = vld [vmem:[%s1 + $0xc4] sm:$0xf]
      %v630 = vld [vmem:[%s1 + $0xc8] sm:$0xf]
      %v631 = vld [vmem:[%s1 + $0xcc] sm:$0xf]
      %v632 = vld [vmem:[%s1 + $0xd0] sm:$0xf]
      %v633 = vld [vmem:[%s1 + $0xd4] sm:$0xf]
      %v634 = vld [vmem:[%s1 + $0xd8] sm:$0xf]
      %v635 = vld [vmem:[%s1 + $0xdc] sm:$0xf]
      %v636 = vld [vmem:[%s1 + $0xe0] sm:$0xf]
      %v637 = vld [vmem:[%s1 + $0xe4] sm:$0xf]
      %v638 = vld [vmem:[%s1 + $0xe8] sm:$0xf]
      %v639 = vld [vmem:[%s1 + $0xec] sm:$0xf]
      %v640 = vld [vmem:[%s1 + $0xf0] sm:$0xf]
      %v641 = vld [vmem:[%s1 + $0xf4] sm:$0xf]
      %v642 = vld [vmem:[%s1 + $0xf8] sm:$0xf]
      %v643 = vld [vmem:[%s1 + $0xfc] sm:$0xf]
      %v644 = vld [vmem:[%s1 + $0x100] sm:$0xf]
      %v645 = vld [vmem:[%s1 + $0x104] sm:$0xf]
      %v646 = vld [vmem:[%s1 + $0x108] sm:$0xf]
      %v647 = vld [vmem:[%s1 + $0x10c] sm:$0xf]
      %v648 = vld [vmem:[%s1 + $0x110] sm:$0xf]
      %v649 = vld [vmem:[%s1 + $0x114] sm:$0xf]
      %v650 = vld [vmem:[%s1 + $0x118] sm:$0xf]
      %v651 = vld [vmem:[%s1 + $0x11c] sm:$0xf]
      %v652 = vld [vmem:[%s1 + $0x120] sm:$0xf]
      %v653 = vld [vmem:[%s1 + $0x124] sm:$0xf]
      %v654 = vld [vmem:[%s1 + $0x128] sm:$0xf]
      %v655 = vld [vmem:[%s1 + $0x12c] sm:$0xf]
      %v656 = vld [vmem:[%s1 + $0x130] sm:$0xf]
      %v657 = vld [vmem:[%s1 + $0x134] sm:$0xf]
      %v658 = vld [vmem:[%s1 + $0x138] sm:$0xf]
      %v659 = vld [vmem:[%s1 + $0x13c] sm:$0xf]
      %v660 = vld [vmem:[%s1 + $0x140] sm:$0xf]
      %v661 = vld [vmem:[%s1 + $0x144] sm:$0xf]
      %v662 = vld [vmem:[%s1 + $0x148] sm:$0xf]
      %v663 = vld [vmem:[%s1 + $0x14c] sm:$0xf]
      %v664 = vld [vmem:[%s1 + $0x150] sm:$0xf]
      %v665 = vld [vmem:[%s1 + $0x154] sm:$0xf]
      %v666 = vld [vmem:[%s1 + $0x158] sm:$0xf]
      %v667 = vld [vmem:[%s1 + $0x15c] sm:$0xf]
      %v668 = vld [vmem:[%s1 + $0x160] sm:$0xf]
      %v669 = vld [vmem:[%s1 + $0x164] sm:$0xf]
      %v670 = vld [vmem:[%s1 + $0x168] sm:$0xf]
      %v671 = vld [vmem:[%s1 + $0x16c] sm:$0xf]
      %v672 = vld [vmem:[%s1 + $0x170] sm:$0xf]
      %v673 = vld [vmem:[%s1 + $0x174] sm:$0xf]
      %v674 = vld [vmem:[%s1 + $0x178] sm:$0xf]
      %v675 = vld [vmem:[%s1 + $0x17c] sm:$0xf]
      %v676 = vld [vmem:[%s1 + $0x180] sm:$0xf]
      %v677 = vld [vmem:[%s1 + $0x184] sm:$0xf]
      %v678 = vld [vmem:[%s1 + $0x188] sm:$0xf]
      %v679 = vld [vmem:[%s1 + $0x18c] sm:$0xf]
      %v680 = vld [vmem:[%s1 + $0x190] sm:$0xf]
      %v681 = vld [vmem:[%s1 + $0x194] sm:$0xf]
      %v682 = vld [vmem:[%s1 + $0x198] sm:$0xf]
      %v683 = vld [vmem:[%s1 + $0x19c] sm:$0xf]
      %v684 = vld [vmem:[%s1 + $0x1a0] sm:$0xf]
      %v685 = vld [vmem:[%s1 + $0x1a4] sm:$0xf]
      %v686 = vld [vmem:[%s1 + $0x1a8] sm:$0xf]
      %v687 = vld [vmem:[%s1 + $0x1ac] sm:$0xf]
      %v688 = vld [vmem:[%s1 + $0x1b0] sm:$0xf]
      %v689 = vld [vmem:[%s1 + $0x1b4] sm:$0xf]
      %v690 = vld [vmem:[%s1 + $0x1b8] sm:$0xf]
      %v691 = vld [vmem:[%s1 + $0x1bc] sm:$0xf]
      %v692 = vld [vmem:[%s1 + $0x1c0] sm:$0xf]
      %v693 = vld [vmem:[%s1 + $0x1c4] sm:$0xf]
      %v694 = vld [vmem:[%s1 + $0x1c8] sm:$0xf]
      %v695 = vld [vmem:[%s1 + $0x1cc] sm:$0xf]
      %v696 = vld [vmem:[%s1 + $0x1d0] sm:$0xf]
      %v697 = vld [vmem:[%s1 + $0x1d4] sm:$0xf]
      %v698 = vld [vmem:[%s1 + $0x1d8] sm:$0xf]
      %v699 = vld [vmem:[%s1 + $0x1dc] sm:$0xf]
      %v700 = vld [vmem:[%s1 + $0x1e0] sm:$0xf]
      %v701 = vld [vmem:[%s1 + $0x1e4] sm:$0xf]
      %v702 = vld [vmem:[%s1 + $0x1e8] sm:$0xf]
      %v703 = vld [vmem:[%s1 + $0x1ec] sm:$0xf]
      %v704 = vld [vmem:[%s1 + $0x1f0] sm:$0xf]
      %v705 = vld [vmem:[%s1 + $0x1f4] sm:$0xf]
      %v706 = vld [vmem:[%s1 + $0x1f8] sm:$0xf]
      %v707 = vld [vmem:[%s1 + $0x1fc] sm:$0xf]
      %v708 = vld [vmem:[%s1 + $0x200] sm:$0xf]
      %v709 = vld [vmem:[%s1 + $0x204] sm:$0xf]
      %v710 = vld [vmem:[%s1 + $0x208] sm:$0xf]
      %v711 = vld [vmem:[%s1 + $0x20c] sm:$0xf]
      %v712 = vld [vmem:[%s1 + $0x210] sm:$0xf]
      %v713 = vld [vmem:[%s1 + $0x214] sm:$0xf]
      %v714 = vld [vmem:[%s1 + $0x218] sm:$0xf]
      %v715 = vld [vmem:[%s1 + $0x21c] sm:$0xf]
      %v716 = vld [vmem:[%s1 + $0x220] sm:$0xf]
      %v717 = vld [vmem:[%s1 + $0x224] sm:$0xf]
      %v718 = vld [vmem:[%s1 + $0x228] sm:$0xf]
      %v719 = vld [vmem:[%s1 + $0x22c] sm:$0xf]
      %v720 = vld [vmem:[%s1 + $0x230] sm:$0xf]
      %v721 = vld [vmem:[%s1 + $0x234] sm:$0xf]
      %v722 = vld [vmem:[%s1 + $0x238] sm:$0xf]
      %v723 = vld [vmem:[%s1 + $0x23c] sm:$0xf]
      %v868 = vunpack.c.l.b16 %v580
      %v869 = vunpack.c.l.b16 %v581
      %v870 = vunpack.c.l.b16 %v582
      %v871 = vunpack.c.l.b16 %v583
      %v872 = vunpack.c.l.b16 %v584
      %v873 = vunpack.c.l.b16 %v585
      %v874 = vunpack.c.l.b16 %v586
      %v875 = vunpack.c.l.b16 %v587
      %v876 = vunpack.c.l.b16 %v588
      %v877 = vunpack.c.l.b16 %v589
      %v878 = vunpack.c.l.b16 %v590
      %v879 = vunpack.c.l.b16 %v591
      %v880 = vunpack.c.l.b16 %v592
      %v881 = vunpack.c.l.b16 %v593
      %v882 = vunpack.c.l.b16 %v594
      %v883 = vunpack.c.l.b16 %v595
      %v884 = vunpack.c.l.b16 %v596
      %v885 = vunpack.c.l.b16 %v597
      %v886 = vunpack.c.l.b16 %v598
      %v887 = vunpack.c.l.b16 %v599
      %v888 = vunpack.c.l.b16 %v600
      %v889 = vunpack.c.l.b16 %v601
      %v890 = vunpack.c.l.b16 %v602
      %v891 = vunpack.c.l.b16 %v603
      %v892 = vunpack.c.l.b16 %v604
      %v893 = vunpack.c.l.b16 %v605
      %v894 = vunpack.c.l.b16 %v606
      %v895 = vunpack.c.l.b16 %v607
      %v896 = vunpack.c.l.b16 %v608
      %v897 = vunpack.c.l.b16 %v609
      %v898 = vunpack.c.l.b16 %v610
      %v899 = vunpack.c.l.b16 %v611
      %v900 = vunpack.c.l.b16 %v612
      %v901 = vunpack.c.l.b16 %v613
      %v902 = vunpack.c.l.b16 %v614
      %v903 = vunpack.c.l.b16 %v615
      %v904 = vunpack.c.l.b16 %v616
      %v905 = vunpack.c.l.b16 %v617
      %v906 = vunpack.c.l.b16 %v618
      %v907 = vunpack.c.l.b16 %v619
      %v908 = vunpack.c.l.b16 %v620
      %v909 = vunpack.c.l.b16 %v621
      %v910 = vunpack.c.l.b16 %v622
      %v911 = vunpack.c.l.b16 %v623
      %v912 = vunpack.c.l.b16 %v624
      %v913 = vunpack.c.l.b16 %v625
      %v914 = vunpack.c.l.b16 %v626
      %v915 = vunpack.c.l.b16 %v627
      %v916 = vunpack.c.l.b16 %v628
      %v917 = vunpack.c.l.b16 %v629
      %v918 = vunpack.c.l.b16 %v630
      %v919 = vunpack.c.l.b16 %v631
      %v920 = vunpack.c.l.b16 %v632
      %v921 = vunpack.c.l.b16 %v633
      %v922 = vunpack.c.l.b16 %v634
      %v923 = vunpack.c.l.b16 %v635
      %v924 = vunpack.c.l.b16 %v636
      %v925 = vunpack.c.l.b16 %v637
      %v926 = vunpack.c.l.b16 %v638
      %v927 = vunpack.c.l.b16 %v639
      %v928 = vunpack.c.l.b16 %v640
      %v929 = vunpack.c.l.b16 %v641
      %v930 = vunpack.c.l.b16 %v642
      %v931 = vunpack.c.l.b16 %v643
      %v932 = vunpack.c.l.b16 %v644
      %v933 = vunpack.c.l.b16 %v645
      %v934 = vunpack.c.l.b16 %v646
      %v935 = vunpack.c.l.b16 %v647
      %v936 = vunpack.c.l.b16 %v648
      %v937 = vunpack.c.l.b16 %v649
      %v938 = vunpack.c.l.b16 %v650
      %v939 = vunpack.c.l.b16 %v651
      %v940 = vunpack.c.l.b16 %v652
      %v941 = vunpack.c.l.b16 %v653
      %v942 = vunpack.c.l.b16 %v654
      %v943 = vunpack.c.l.b16 %v655
      %v944 = vunpack.c.l.b16 %v656
      %v945 = vunpack.c.l.b16 %v657
      %v946 = vunpack.c.l.b16 %v658
      %v947 = vunpack.c.l.b16 %v659
      %v948 = vunpack.c.l.b16 %v660
      %v949 = vunpack.c.l.b16 %v661
      %v950 = vunpack.c.l.b16 %v662
      %v951 = vunpack.c.l.b16 %v663
      %v952 = vunpack.c.l.b16 %v664
      %v953 = vunpack.c.l.b16 %v665
      %v954 = vunpack.c.l.b16 %v666
      %v955 = vunpack.c.l.b16 %v667
      %v956 = vunpack.c.l.b16 %v668
      %v957 = vunpack.c.l.b16 %v669
      %v958 = vunpack.c.l.b16 %v670
      %v959 = vunpack.c.l.b16 %v671
      %v960 = vunpack.c.l.b16 %v672
      %v961 = vunpack.c.l.b16 %v673
      %v962 = vunpack.c.l.b16 %v674
      %v963 = vunpack.c.l.b16 %v675
      %v964 = vunpack.c.l.b16 %v676
      %v965 = vunpack.c.l.b16 %v677
      %v966 = vunpack.c.l.b16 %v678
      %v967 = vunpack.c.l.b16 %v679
      %v968 = vunpack.c.l.b16 %v680
      %v969 = vunpack.c.l.b16 %v681
      %v970 = vunpack.c.l.b16 %v682
      %v971 = vunpack.c.l.b16 %v683
      %v972 = vunpack.c.l.b16 %v684
      %v973 = vunpack.c.l.b16 %v685
      %v974 = vunpack.c.l.b16 %v686
      %v975 = vunpack.c.l.b16 %v687
      %v976 = vunpack.c.l.b16 %v688
      %v977 = vunpack.c.l.b16 %v689
      %v978 = vunpack.c.l.b16 %v690
      %v979 = vunpack.c.l.b16 %v691
      %v980 = vunpack.c.l.b16 %v692
      %v981 = vunpack.c.l.b16 %v693
      %v982 = vunpack.c.l.b16 %v694
      %v983 = vunpack.c.l.b16 %v695
      %v984 = vunpack.c.l.b16 %v696
      %v985 = vunpack.c.l.b16 %v697
      %v986 = vunpack.c.l.b16 %v698
      %v987 = vunpack.c.l.b16 %v699
      %v988 = vunpack.c.l.b16 %v700
      %v989 = vunpack.c.l.b16 %v701
      %v990 = vunpack.c.l.b16 %v702
      %v991 = vunpack.c.l.b16 %v703
      %v992 = vunpack.c.l.b16 %v704
      %v993 = vunpack.c.l.b16 %v705
      %v994 = vunpack.c.l.b16 %v706
      %v995 = vunpack.c.l.b16 %v707
      %v996 = vunpack.c.l.b16 %v708
      %v997 = vunpack.c.l.b16 %v709
      %v998 = vunpack.c.l.b16 %v710
      %v999 = vunpack.c.l.b16 %v711
      %v1000 = vunpack.c.l.b16 %v712
      %v1001 = vunpack.c.l.b16 %v713
      %v1002 = vunpack.c.l.b16 %v714
      %v1003 = vunpack.c.l.b16 %v715
      %v1004 = vunpack.c.l.b16 %v716
      %v1005 = vunpack.c.l.b16 %v717
      %v1006 = vunpack.c.l.b16 %v718
      %v1007 = vunpack.c.l.b16 %v719
      %v1008 = vunpack.c.l.b16 %v720
      %v1009 = vunpack.c.l.b16 %v721
      %v1010 = vunpack.c.l.b16 %v722
      %v1011 = vunpack.c.l.b16 %v723
      %v1012 = vpack.c.b16 %v869, %v868
      %v1013 = vpack.c.b16 %v871, %v870
      %v1014 = vpack.c.b16 %v873, %v872
      %v1015 = vpack.c.b16 %v875, %v874
      %v1016 = vpack.c.b16 %v877, %v876
      %v1017 = vpack.c.b16 %v879, %v878
      %v1018 = vpack.c.b16 %v881, %v880
      %v1019 = vpack.c.b16 %v883, %v882
      %v1020 = vpack.c.b16 %v885, %v884
      %v1021 = vpack.c.b16 %v887, %v886
      %v1022 = vpack.c.b16 %v889, %v888
      %v1023 = vpack.c.b16 %v891, %v890
      %v1024 = vpack.c.b16 %v893, %v892
      %v1025 = vpack.c.b16 %v895, %v894
      %v1026 = vpack.c.b16 %v897, %v896
      %v1027 = vpack.c.b16 %v899, %v898
      %v1028 = vpack.c.b16 %v901, %v900
      %v1029 = vpack.c.b16 %v903, %v902
      %v1030 = vpack.c.b16 %v905, %v904
      %v1031 = vpack.c.b16 %v907, %v906
      %v1032 = vpack.c.b16 %v909, %v908
      %v1033 = vpack.c.b16 %v911, %v910
      %v1034 = vpack.c.b16 %v913, %v912
      %v1035 = vpack.c.b16 %v915, %v914
      %v1036 = vpack.c.b16 %v917, %v916
      %v1037 = vpack.c.b16 %v919, %v918
      %v1038 = vpack.c.b16 %v921, %v920
      %v1039 = vpack.c.b16 %v923, %v922
      %v1040 = vpack.c.b16 %v925, %v924
      %v1041 = vpack.c.b16 %v927, %v926
      %v1042 = vpack.c.b16 %v929, %v928
      %v1043 = vpack.c.b16 %v931, %v930
      %v1044 = vpack.c.b16 %v933, %v932
      %v1045 = vpack.c.b16 %v935, %v934
      %v1046 = vpack.c.b16 %v937, %v936
      %v1047 = vpack.c.b16 %v939, %v938
      %v1048 = vpack.c.b16 %v941, %v940
      %v1049 = vpack.c.b16 %v943, %v942
      %v1050 = vpack.c.b16 %v945, %v944
      %v1051 = vpack.c.b16 %v947, %v946
      %v1052 = vpack.c.b16 %v949, %v948
      %v1053 = vpack.c.b16 %v951, %v950
      %v1054 = vpack.c.b16 %v953, %v952
      %v1055 = vpack.c.b16 %v955, %v954
      %v1056 = vpack.c.b16 %v957, %v956
      %v1057 = vpack.c.b16 %v959, %v958
      %v1058 = vpack.c.b16 %v961, %v960
      %v1059 = vpack.c.b16 %v963, %v962
      %v1060 = vpack.c.b16 %v965, %v964
      %v1061 = vpack.c.b16 %v967, %v966
      %v1062 = vpack.c.b16 %v969, %v968
      %v1063 = vpack.c.b16 %v971, %v970
      %v1064 = vpack.c.b16 %v973, %v972
      %v1065 = vpack.c.b16 %v975, %v974
      %v1066 = vpack.c.b16 %v977, %v976
      %v1067 = vpack.c.b16 %v979, %v978
      %v1068 = vpack.c.b16 %v981, %v980
      %v1069 = vpack.c.b16 %v983, %v982
      %v1070 = vpack.c.b16 %v985, %v984
      %v1071 = vpack.c.b16 %v987, %v986
      %v1072 = vpack.c.b16 %v989, %v988
      %v1073 = vpack.c.b16 %v991, %v990
      %v1074 = vpack.c.b16 %v993, %v992
      %v1075 = vpack.c.b16 %v995, %v994
      %v1076 = vpack.c.b16 %v997, %v996
      %v1077 = vpack.c.b16 %v999, %v998
      %v1078 = vpack.c.b16 %v1001, %v1000
      %v1079 = vpack.c.b16 %v1003, %v1002
      %v1080 = vpack.c.b16 %v1005, %v1004
      %v1081 = vpack.c.b16 %v1007, %v1006
      %v1082 = vpack.c.b16 %v1009, %v1008
      %v1083 = vpack.c.b16 %v1011, %v1010
      %1156 = vmatprep.subr.bf16.mxu0 0
      %1157 = vmatpush1.bf16.msra.mxu0 %v1012
      %1158 = vmatprep.subr.bf16.mxu0 0
      %1159 = vmatpush1.bf16.msra.mxu0 %v1013
      %1160 = vmatprep.subr.bf16.mxu0 0
      %1161 = vmatpush1.bf16.msra.mxu0 %v1014
      %1162 = vmatprep.subr.bf16.mxu0 0
      %1163 = vmatpush1.bf16.msra.mxu0 %v1015
      %1164 = vmatprep.subr.bf16.mxu0 0
      %1165 = vmatpush1.bf16.msra.mxu0 %v1016
      %1166 = vmatprep.subr.bf16.mxu0 0
      %1167 = vmatpush1.bf16.msra.mxu0 %v1017
      %1168 = vmatprep.subr.bf16.mxu0 0
      %1169 = vmatpush1.bf16.msra.mxu0 %v1018
      %1170 = vmatprep.subr.bf16.mxu0 0
      %1171 = vmatpush1.bf16.msra.mxu0 %v1019
      %1172 = vmatprep.subr.bf16.mxu0 0
      %1173 = vmatpush1.bf16.msra.mxu0 %v1020
      %1174 = vmatprep.subr.bf16.mxu0 0
      %1175 = vmatpush1.bf16.msra.mxu0 %v1021
      %1176 = vmatprep.subr.bf16.mxu0 0
      %1177 = vmatpush1.bf16.msra.mxu0 %v1022
      %1178 = vmatprep.subr.bf16.mxu0 0
      %1179 = vmatpush1.bf16.msra.mxu0 %v1023
      %1180 = vmatprep.subr.bf16.mxu0 0
      %1181 = vmatpush1.bf16.msra.mxu0 %v1024
      %1182 = vmatprep.subr.bf16.mxu0 0
      %1183 = vmatpush1.bf16.msra.mxu0 %v1025
      %1184 = vmatprep.subr.bf16.mxu0 0
      %1185 = vmatpush1.bf16.msra.mxu0 %v1026
      %1186 = vmatprep.subr.bf16.mxu0 0
      %1187 = vmatpush1.bf16.msra.mxu0 %v1027
      %1188 = vmatprep.mubr.bf16.mxu0 %v227
      %1189 = vmatmul.mubr.bf16.gmra.mrb[0].mxu0 %v215
      %v1190 = vpop.f32.mrb[0].mxu0
      %v1191 = vadd.f32 0.0, %v1190
      %v1192 = vpop.f32.mrb[0].mxu0
      %v1193 = vpop.f32.mrb[0].mxu0
      %v1194 = vadd.f32 0.0, %v1193
      %v1195 = vpop.f32.mrb[0].mxu0
      %1196 = vmatprep.mubr.bf16.mxu0 %v228
      %1197 = vmatmul.mubr.bf16.gmra.mrb[0].mxu0 %v216
      %v1198 = vpop.f32.mrb[0].mxu0
      %v1199 = vadd.f32 0.0, %v1198
      %v1200 = vpop.f32.mrb[0].mxu0
      %v1201 = vpop.f32.mrb[0].mxu0
      %v1202 = vadd.f32 0.0, %v1201
      %v1203 = vpop.f32.mrb[0].mxu0
      %1204 = vmatprep.mubr.bf16.mxu0 %v249
      %1205 = vmatmul.mubr.bf16.gmra.mrb[0].mxu0 %v227
      %v1206 = vpop.f32.mrb[0].mxu0
      %v1207 = vadd.f32 0.0, %v1206
      %v1208 = vpop.f32.mrb[0].mxu0
      %v1209 = vpop.f32.mrb[0].mxu0
      %v1210 = vadd.f32 0.0, %v1209
      %v1211 = vpop.f32.mrb[0].mxu0
      %1212 = vmatprep.mubr.bf16.mxu0 %v261
      %1213 = vmatmul.mubr.bf16.gmra.mrb[0].mxu0 %v228
      %v1214 = vpop.f32.mrb[0].mxu0
      %v1215 = vadd.f32 0.0, %v1214
      %v1216 = vpop.f32.mrb[0].mxu0
      %v1217 = vpop.f32.mrb[0].mxu0
      %v1218 = vadd.f32 0.0, %v1217
      %v1219 = vpop.f32.mrb[0].mxu0
      %1220 = vmatprep.mubr.bf16.mxu0 %v284
      %1221 = vmatmul.mubr.bf16.gmra.mrb[0].mxu0 %v272
      %v1222 = vpop.f32.mrb[0].mxu0
      %v1223 = vadd.f32 0.0, %v1222
      %v1224 = vpop.f32.mrb[0].mxu0
      %v1225 = vpop.f32.mrb[0].mxu0
      %v1226 = vadd.f32 0.0, %v1225
      %v1227 = vpop.f32.mrb[0].mxu0
      %1228 = vmatprep.mubr.bf16.mxu0 %v285
      %1229 = vmatmul.mubr.bf16.gmra.mrb[0].mxu0 %v273
      %v1230 = vpop.f32.mrb[0].mxu0
      %v1231 = vadd.f32 0.0, %v1230
      %v1232 = vpop.f32.mrb[0].mxu0
      %v1233 = vpop.f32.mrb[0].mxu0
      %v1234 = vadd.f32 0.0, %v1233
      %v1235 = vpop.f32.mrb[0].mxu0
      %1236 = vmatprep.mubr.bf16.mxu0 %v305
      %1237 = vmatmul.mubr.bf16.gmra.mrb[0].mxu0 %v284
      %v1238 = vpop.f32.mrb[0].mxu0
      %v1239 = vadd.f32 0.0, %v1238
      %v1240 = vpop.f32.mrb[0].mxu0
      %v1241 = vpop.f32.mrb[0].mxu0
      %v1242 = vadd.f32 0.0, %v1241
      %v1243 = vpop.f32.mrb[0].mxu0
      %1244 = vmatprep.mubr.bf16.mxu0 %v317
      %1245 = vmatmul.mubr.bf16.gmra.mrb[0].mxu0 %v285
      %v1246 = vpop.f32.mrb[0].mxu0
      %v1247 = vadd.f32 0.0, %v1246
      %v1248 = vpop.f32.mrb[0].mxu0
      %v1249 = vpop.f32.mrb[0].mxu0
      %v1250 = vadd.f32 0.0, %v1249
      %v1251 = vpop.f32.mrb[0].mxu0
      %1252 = vdwg.mxu0
      %1253 = vmatprep.subr.bf16.mxu0 0
      %1254 = vmatpush1.bf16.msra.mxu0 %v1028
      %1255 = vmatprep.subr.bf16.mxu0 0
      %1256 = vmatpush1.bf16.msra.mxu0 %v1029
      %1257 = vmatprep.subr.bf16.mxu0 0
      %1258 = vmatpush1.bf16.msra.mxu0 %v1030
      %1259 = vmatprep.subr.bf16.mxu0 0
      %1260 = vmatpush1.bf16.msra.mxu0 %v1031
      %1261 = vmatprep.subr.bf16.mxu0 0
      %1262 = vmatpush1.bf16.msra.mxu0 %v1032
      %1263 = vmatprep.subr.bf16.mxu0 0
      %1264 = vmatpush1.bf16.msra.mxu0 %v1033
      %1265 = vmatprep.subr.bf16.mxu0 0
      %1266 = vmatpush1.bf16.msra.mxu0 %v1034
      %1267 = vmatprep.subr.bf16.mxu0 0
      %1268 = vmatpush1.bf16.msra.mxu0 %v1035
      %1269 = vmatprep.subr.bf16.mxu0 0
      %1270 = vmatpush1.bf16.msra.mxu0 %v1036
      %1271 = vmatprep.subr.bf16.mxu0 0
      %1272 = vmatpush1.bf16.msra.mxu0 %v1037
      %1273 = vmatprep.subr.bf16.mxu0 0
      %1274 = vmatpush1.bf16.msra.mxu0 %v1038
      %1275 = vmatprep.subr.bf16.mxu0 0
      %1276 = vmatpush1.bf16.msra.mxu0 %v1039
      %1277 = vmatprep.subr.bf16.mxu0 0
      %1278 = vmatpush1.bf16.msra.mxu0 %v1040
      %1279 = vmatprep.subr.bf16.mxu0 0
      %1280 = vmatpush1.bf16.msra.mxu0 %v1041
      %1281 = vmatprep.subr.bf16.mxu0 0
      %1282 = vmatpush1.bf16.msra.mxu0 %v1042
      %1283 = vmatprep.subr.bf16.mxu0 0
      %1284 = vmatpush1.bf16.msra.mxu0 %v1043
      %1285 = vmatprep.mubr.bf16.mxu0 %v272
      %1286 = vmatmul.mubr.bf16.gmra.mrb[0].mxu0 %v249
      %v1287 = vpop.f32.mrb[0].mxu0
      %v1288 = vadd.f32 %v1191, %v1287
      %v1289 = vpop.f32.mrb[0].mxu0
      %v1290 = vpop.f32.mrb[0].mxu0
      %v1291 = vadd.f32 %v1194, %v1290
      %v1292 = vpop.f32.mrb[0].mxu0
      %1293 = vmatprep.mubr.bf16.mxu0 %v273
      %1294 = vmatmul.mubr.bf16.gmra.mrb[0].mxu0 %v261
      %v1295 = vpop.f32.mrb[0].mxu0
      %v1296 = vadd.f32 %v1199, %v1295
      %v1297 = vpop.f32.mrb[0].mxu0
      %v1298 = vpop.f32.mrb[0].mxu0
      %v1299 = vadd.f32 %v1202, %v1298
      %v1300 = vpop.f32.mrb[0].mxu0
      %1301 = vmatprep.mubr.bf16.mxu0 %v284
      %1302 = vmatmul.mubr.bf16.gmra.mrb[0].mxu0 %v399
      %v1303 = vpop.f32.mrb[0].mxu0
      %v1304 = vadd.f32 %v1207, %v1303
      %v1305 = vpop.f32.mrb[0].mxu0
      %v1306 = vpop.f32.mrb[0].mxu0
      %v1307 = vadd.f32 %v1210, %v1306
      %v1308 = vpop.f32.mrb[0].mxu0
      %1309 = vmatprep.mubr.bf16.mxu0 %v285
      %1310 = vmatmul.mubr.bf16.gmra.mrb[0].mxu0 %v411
      %v1311 = vpop.f32.mrb[0].mxu0
      %v1312 = vadd.f32 %v1215, %v1311
      %v1313 = vpop.f32.mrb[0].mxu0
      %v1314 = vpop.f32.mrb[0].mxu0
      %v1315 = vadd.f32 %v1218, %v1314
      %v1316 = vpop.f32.mrb[0].mxu0
      %1317 = vmatprep.mubr.bf16.mxu0 %v328
      %1318 = vmatmul.mubr.bf16.gmra.mrb[0].mxu0 %v305
      %v1319 = vpop.f32.mrb[0].mxu0
      %v1320 = vadd.f32 %v1223, %v1319
      %v1321 = vpop.f32.mrb[0].mxu0
      %v1322 = vpop.f32.mrb[0].mxu0
      %v1323 = vadd.f32 %v1226, %v1322
      %v1324 = vpop.f32.mrb[0].mxu0
      %1325 = vmatprep.mubr.bf16.mxu0 %v329
      %1326 = vmatmul.mubr.bf16.gmra.mrb[0].mxu0 %v317
      %v1327 = vpop.f32.mrb[0].mxu0
      %v1328 = vadd.f32 %v1231, %v1327
      %v1329 = vpop.f32.mrb[0].mxu0
      %v1330 = vpop.f32.mrb[0].mxu0
      %v1331 = vadd.f32 %v1234, %v1330
      %v1332 = vpop.f32.mrb[0].mxu0
      %1333 = vmatprep.mubr.bf16.mxu0 %v340
      %1334 = vmatmul.mubr.bf16.gmra.mrb[0].mxu0 %v431
      %v1335 = vpop.f32.mrb[0].mxu0
      %v1336 = vadd.f32 %v1239, %v1335
      %v1337 = vpop.f32.mrb[0].mxu0
      %v1338 = vpop.f32.mrb[0].mxu0
      %v1339 = vadd.f32 %v1242, %v1338
      %v1340 = vpop.f32.mrb[0].mxu0
      %1341 = vmatprep.mubr.bf16.mxu0 %v341
      %1342 = vmatmul.mubr.bf16.gmra.mrb[0].mxu0 %v443
      %v1343 = vpop.f32.mrb[0].mxu0
      %v1344 = vadd.f32 %v1247, %v1343
      %v1345 = vpop.f32.mrb[0].mxu0
      %v1346 = vpop.f32.mrb[0].mxu0
      %v1347 = vadd.f32 %v1250, %v1346
      %v1348 = vpop.f32.mrb[0].mxu0
      %1349 = vdwg.mxu0
      %1350 = vmatprep.subr.bf16.mxu0 0
      %1351 = vmatpush1.bf16.msra.mxu0 %v1044
      %1352 = vmatprep.subr.bf16.mxu0 0
      %1353 = vmatpush1.bf16.msra.mxu0 %v1045
      %1354 = vmatprep.subr.bf16.mxu0 0
      %1355 = vmatpush1.bf16.msra.mxu0 %v1046
      %1356 = vmatprep.subr.bf16.mxu0 0
      %1357 = vmatpush1.bf16.msra.mxu0 %v1047
      %1358 = vmatprep.subr.bf16.mxu0 0
      %1359 = vmatpush1.bf16.msra.mxu0 %v1048
      %1360 = vmatprep.subr.bf16.mxu0 0
      %1361 = vmatpush1.bf16.msra.mxu0 %v1049
      %1362 = vmatprep.subr.bf16.mxu0 0
      %1363 = vmatpush1.bf16.msra.mxu0 %v1050
      %1364 = vmatprep.subr.bf16.mxu0 0
      %1365 = vmatpush1.bf16.msra.mxu0 %v1051
      %1366 = vmatprep.subr.bf16.mxu0 0
      %1367 = vmatpush1.bf16.msra.mxu0 %v1052
      %1368 = vmatprep.subr.bf16.mxu0 0
      %1369 = vmatpush1.bf16.msra.mxu0 %v1053
      %1370 = vmatprep.subr.bf16.mxu0 0
      %1371 = vmatpush1.bf16.msra.mxu0 %v1054
      %1372 = vmatprep.subr.bf16.mxu0 0
      %1373 = vmatpush1.bf16.msra.mxu0 %v1055
      %1374 = vmatprep.subr.bf16.mxu0 0
      %1375 = vmatpush1.bf16.msra.mxu0 %v1056
      %1376 = vmatprep.subr.bf16.mxu0 0
      %1377 = vmatpush1.bf16.msra.mxu0 %v1057
      %1378 = vmatprep.subr.bf16.mxu0 0
      %1379 = vmatpush1.bf16.msra.mxu0 %v1058
      %1380 = vmatprep.subr.bf16.mxu0 0
      %1381 = vmatpush1.bf16.msra.mxu0 %v1059
      %1382 = vmatprep.mubr.bf16.mxu0 %v305
      %1383 = vmatmul.mubr.bf16.gmra.mrb[0].mxu0 %v284
      %v1384 = vpop.f32.mrb[0].mxu0
      %v1385 = vadd.f32 %v1288, %v1384
      %v1386 = vpop.f32.mrb[0].mxu0
      %v1387 = vpop.f32.mrb[0].mxu0
      %v1388 = vadd.f32 %v1291, %v1387
      %v1389 = vpop.f32.mrb[0].mxu0
      %1390 = vmatprep.mubr.bf16.mxu0 %v317
      %1391 = vmatmul.mubr.bf16.gmra.mrb[0].mxu0 %v285
      %v1392 = vpop.f32.mrb[0].mxu0
      %v1393 = vadd.f32 %v1296, %v1392
      %v1394 = vpop.f32.mrb[0].mxu0
      %v1395 = vpop.f32.mrb[0].mxu0
      %v1396 = vadd.f32 %v1299, %v1395
      %v1397 = vpop.f32.mrb[0].mxu0
      %1398 = vmatprep.mubr.bf16.mxu0 %v431
      %1399 = vmatmul.mubr.bf16.gmra.mrb[0].mxu0 %v305
      %v1400 = vpop.f32.mrb[0].mxu0
      %v1401 = vadd.f32 %v1304, %v1400
      %v1402 = vpop.f32.mrb[0].mxu0
      %v1403 = vpop.f32.mrb[0].mxu0
      %v1404 = vadd.f32 %v1307, %v1403
      %v1405 = vpop.f32.mrb[0].mxu0
      %1406 = vmatprep.mubr.bf16.mxu0 %v443
      %1407 = vmatmul.mubr.bf16.gmra.mrb[0].mxu0 %v317
      %v1408 = vpop.f32.mrb[0].mxu0
      %v1409 = vadd.f32 %v1312, %v1408
      %v1410 = vpop.f32.mrb[0].mxu0
      %v1411 = vpop.f32.mrb[0].mxu0
      %v1412 = vadd.f32 %v1315, %v1411
      %v1413 = vpop.f32.mrb[0].mxu0
      %1414 = vmatprep.mubr.bf16.mxu0 %v361
      %1415 = vmatmul.mubr.bf16.gmra.mrb[0].mxu0 %v340
      %v1416 = vpop.f32.mrb[0].mxu0
      %v1417 = vadd.f32 %v1320, %v1416
      %v1418 = vpop.f32.mrb[0].mxu0
      %v1419 = vpop.f32.mrb[0].mxu0
      %v1420 = vadd.f32 %v1323, %v1419
      %v1421 = vpop.f32.mrb[0].mxu0
      %1422 = vmatprep.mubr.bf16.mxu0 %v373
      %1423 = vmatmul.mubr.bf16.gmra.mrb[0].mxu0 %v341
      %v1424 = vpop.f32.mrb[0].mxu0
      %v1425 = vadd.f32 %v1328, %v1424
      %v1426 = vpop.f32.mrb[0].mxu0
      %v1427 = vpop.f32.mrb[0].mxu0
      %v1428 = vadd.f32 %v1331, %v1427
      %v1429 = vpop.f32.mrb[0].mxu0
      %1430 = vmatprep.mubr.bf16.mxu0 %v463
      %1431 = vmatmul.mubr.bf16.gmra.mrb[0].mxu0 %v361
      %v1432 = vpop.f32.mrb[0].mxu0
      %v1433 = vadd.f32 %v1336, %v1432
      %v1434 = vpop.f32.mrb[0].mxu0
      %v1435 = vpop.f32.mrb[0].mxu0
      %v1436 = vadd.f32 %v1339, %v1435
      %v1437 = vpop.f32.mrb[0].mxu0
      %1438 = vmatprep.mubr.bf16.mxu0 %v475
      %1439 = vmatmul.mubr.bf16.gmra.mrb[0].mxu0 %v373
      %v1440 = vpop.f32.mrb[0].mxu0
      %v1441 = vadd.f32 %v1344, %v1440
      %v1442 = vpop.f32.mrb[0].mxu0
      %v1443 = vpop.f32.mrb[0].mxu0
      %v1444 = vadd.f32 %v1347, %v1443
      %v1445 = vpop.f32.mrb[0].mxu0
      %1446 = vdwg.mxu0
      %1447 = vmatprep.subr.bf16.mxu0 0
      %1448 = vmatpush1.bf16.msra.mxu0 %v1060
      %1449 = vmatprep.subr.bf16.mxu0 0
      %1450 = vmatpush1.bf16.msra.mxu0 %v1061
      %1451 = vmatprep.subr.bf16.mxu0 0
      %1452 = vmatpush1.bf16.msra.mxu0 %v1062
      %1453 = vmatprep.subr.bf16.mxu0 0
      %1454 = vmatpush1.bf16.msra.mxu0 %v1063
      %1455 = vmatprep.subr.bf16.mxu0 0
      %1456 = vmatpush1.bf16.msra.mxu0 %v1064
      %1457 = vmatprep.subr.bf16.mxu0 0
      %1458 = vmatpush1.bf16.msra.mxu0 %v1065
      %1459 = vmatprep.subr.bf16.mxu0 0
      %1460 = vmatpush1.bf16.msra.mxu0 %v1066
      %1461 = vmatprep.subr.bf16.mxu0 0
      %1462 = vmatpush1.bf16.msra.mxu0 %v1067
      %1463 = vmatprep.subr.bf16.mxu0 0
      %1464 = vmatpush1.bf16.msra.mxu0 %v1068
      %1465 = vmatprep.subr.bf16.mxu0 0
      %1466 = vmatpush1.bf16.msra.mxu0 %v1069
      %1467 = vmatprep.subr.bf16.mxu0 0
      %1468 = vmatpush1.bf16.msra.mxu0 %v1070
      %1469 = vmatprep.subr.bf16.mxu0 0
      %1470 = vmatpush1.bf16.msra.mxu0 %v1071
      %1471 = vmatprep.subr.bf16.mxu0 0
      %1472 = vmatpush1.bf16.msra.mxu0 %v1072
      %1473 = vmatprep.subr.bf16.mxu0 0
      %1474 = vmatpush1.bf16.msra.mxu0 %v1073
      %1475 = vmatprep.subr.bf16.mxu0 0
      %1476 = vmatpush1.bf16.msra.mxu0 %v1074
      %1477 = vmatprep.subr.bf16.mxu0 0
      %1478 = vmatpush1.bf16.msra.mxu0 %v1075
      %1479 = vmatprep.mubr.bf16.mxu0 %v340
      %1480 = vmatmul.mubr.bf16.gmra.mrb[0].mxu0 %v328
      %v1481 = vpop.f32.mrb[0].mxu0
      %v1482 = vadd.f32 %v1385, %v1481
      %v1483 = vpop.f32.mrb[0].mxu0
      %v1484 = vpop.f32.mrb[0].mxu0
      %v1485 = vadd.f32 %v1388, %v1484
      %v1486 = vpop.f32.mrb[0].mxu0
      %1487 = vmatprep.mubr.bf16.mxu0 %v341
      %1488 = vmatmul.mubr.bf16.gmra.mrb[0].mxu0 %v329
      %v1489 = vpop.f32.mrb[0].mxu0
      %v1490 = vadd.f32 %v1393, %v1489
      %v1491 = vpop.f32.mrb[0].mxu0
      %v1492 = vpop.f32.mrb[0].mxu0
      %v1493 = vadd.f32 %v1396, %v1492
      %v1494 = vpop.f32.mrb[0].mxu0
      %1495 = vmatprep.mubr.bf16.mxu0 %v361
      %1496 = vmatmul.mubr.bf16.gmra.mrb[0].mxu0 %v340
      %v1497 = vpop.f32.mrb[0].mxu0
      %v1498 = vadd.f32 %v1401, %v1497
      %v1499 = vpop.f32.mrb[0].mxu0
      %v1500 = vpop.f32.mrb[0].mxu0
      %v1501 = vadd.f32 %v1404, %v1500
      %v1502 = vpop.f32.mrb[0].mxu0
      %1503 = vmatprep.mubr.bf16.mxu0 %v373
      %1504 = vmatmul.mubr.bf16.gmra.mrb[0].mxu0 %v341
      %v1505 = vpop.f32.mrb[0].mxu0
      %v1506 = vadd.f32 %v1409, %v1505
      %v1507 = vpop.f32.mrb[0].mxu0
      %v1508 = vpop.f32.mrb[0].mxu0
      %v1509 = vadd.f32 %v1412, %v1508
      %v1510 = vpop.f32.mrb[0].mxu0
      %1511 = vmatprep.mubr.bf16.mxu0 %v510
      %1512 = vmatmul.mubr.bf16.gmra.mrb[0].mxu0 %v498
      %v1513 = vpop.f32.mrb[0].mxu0
      %v1514 = vadd.f32 %v1417, %v1513
      %v1515 = vpop.f32.mrb[0].mxu0
      %v1516 = vpop.f32.mrb[0].mxu0
      %v1517 = vadd.f32 %v1420, %v1516
      %v1518 = vpop.f32.mrb[0].mxu0
      %1519 = vmatprep.mubr.bf16.mxu0 %v511
      %1520 = vmatmul.mubr.bf16.gmra.mrb[0].mxu0 %v499
      %v1521 = vpop.f32.mrb[0].mxu0
      %v1522 = vadd.f32 %v1425, %v1521
      %v1523 = vpop.f32.mrb[0].mxu0
      %v1524 = vpop.f32.mrb[0].mxu0
      %v1525 = vadd.f32 %v1428, %v1524
      %v1526 = vpop.f32.mrb[0].mxu0
      %1527 = vmatprep.mubr.bf16.mxu0 %v531
      %1528 = vmatmul.mubr.bf16.gmra.mrb[0].mxu0 %v510
      %v1529 = vpop.f32.mrb[0].mxu0
      %v1530 = vadd.f32 %v1433, %v1529
      %v1531 = vpop.f32.mrb[0].mxu0
      %v1532 = vpop.f32.mrb[0].mxu0
      %v1533 = vadd.f32 %v1436, %v1532
      %v1534 = vpop.f32.mrb[0].mxu0
      %1535 = vmatprep.mubr.bf16.mxu0 %v543
      %1536 = vmatmul.mubr.bf16.gmra.mrb[0].mxu0 %v511
      %v1537 = vpop.f32.mrb[0].mxu0
      %v1538 = vadd.f32 %v1441, %v1537
      %v1539 = vpop.f32.mrb[0].mxu0
      %v1540 = vpop.f32.mrb[0].mxu0
      %v1541 = vadd.f32 %v1444, %v1540
      %v1542 = vpop.f32.mrb[0].mxu0
      %1543 = vdwg.mxu0
      %1544 = vmatprep.subr.bf16.mxu0 0
      %1545 = vmatpush1.bf16.msra.mxu0 %v1076
      %1546 = vmatprep.subr.bf16.mxu0 0
      %1547 = vmatpush1.bf16.msra.mxu0 %v1077
      %1548 = vmatprep.subr.bf16.mxu0 0
      %1549 = vmatpush1.bf16.msra.mxu0 %v1078
      %1550 = vmatprep.subr.bf16.mxu0 0
      %1551 = vmatpush1.bf16.msra.mxu0 %v1079
      %1552 = vmatprep.subr.bf16.mxu0 0
      %1553 = vmatpush1.bf16.msra.mxu0 %v1080
      %1554 = vmatprep.subr.bf16.mxu0 0
      %1555 = vmatpush1.bf16.msra.mxu0 %v1081
      %1556 = vmatprep.subr.bf16.mxu0 0
      %1557 = vmatpush1.bf16.msra.mxu0 %v1082
      %1558 = vmatprep.subr.bf16.mxu0 0
      %1559 = vmatpush1.bf16.msra.mxu0 %v1083
      %1560 = vmatprep.subr.bf16.mxu0 0
      %1561 = vmatpush1.bf16.msra.mxu0 0
      %1562 = vmatprep.subr.bf16.mxu0 0
      %1563 = vmatpush1.bf16.msra.mxu0 0
      %1564 = vmatprep.subr.bf16.mxu0 0
      %1565 = vmatpush1.bf16.msra.mxu0 0
      %1566 = vmatprep.subr.bf16.mxu0 0
      %1567 = vmatpush1.bf16.msra.mxu0 0
      %1568 = vmatprep.subr.bf16.mxu0 0
      %1569 = vmatpush1.bf16.msra.mxu0 0
      %1570 = vmatprep.subr.bf16.mxu0 0
      %1571 = vmatpush1.bf16.msra.mxu0 0
      %1572 = vmatprep.subr.bf16.mxu0 0
      %1573 = vmatpush1.bf16.msra.mxu0 0
      %1574 = vmatprep.subr.bf16.mxu0 0
      %1575 = vmatpush1.bf16.msra.mxu0 0
      %1576 = vmatprep.mubr.bf16.mxu0 0
      %1577 = vmatmul.mubr.bf16.gmra.mrb[0].mxu0 %v361
      %v1578 = vpop.f32.mrb[0].mxu0
      %v1579 = vadd.f32 %v1482, %v1578
      %v1580 = vpop.f32.mrb[0].mxu0
      %v1581 = vpop.f32.mrb[0].mxu0
      %v1582 = vadd.f32 %v1485, %v1581
      %v1583 = vpop.f32.mrb[0].mxu0
      %1584 = vmatprep.mubr.bf16.mxu0 0
      %1585 = vmatmul.mubr.bf16.gmra.mrb[0].mxu0 %v373
      %v1586 = vpop.f32.mrb[0].mxu0
      %v1587 = vadd.f32 %v1490, %v1586
      %v1588 = vpop.f32.mrb[0].mxu0
      %v1589 = vpop.f32.mrb[0].mxu0
      %v1590 = vadd.f32 %v1493, %v1589
      %v1591 = vpop.f32.mrb[0].mxu0
      %1592 = vmatprep.mubr.bf16.mxu0 0
      %1593 = vmatmul.mubr.bf16.gmra.mrb[0].mxu0 %v463
      %v1594 = vpop.f32.mrb[0].mxu0
      %v1595 = vadd.f32 %v1498, %v1594
      %v1596 = vpop.f32.mrb[0].mxu0
      %v1597 = vpop.f32.mrb[0].mxu0
      %v1598 = vadd.f32 %v1501, %v1597
      %v1599 = vpop.f32.mrb[0].mxu0
      %1600 = vmatprep.mubr.bf16.mxu0 0
      %1601 = vmatmul.mubr.bf16.gmra.mrb[0].mxu0 %v475
      %v1602 = vpop.f32.mrb[0].mxu0
      %v1603 = vadd.f32 %v1506, %v1602
      %v1604 = vpop.f32.mrb[0].mxu0
      %v1605 = vpop.f32.mrb[0].mxu0
      %v1606 = vadd.f32 %v1509, %v1605
      %v1607 = vpop.f32.mrb[0].mxu0
      %1608 = vmatprep.mubr.bf16.mxu0 0
      %1609 = vmatmul.mubr.bf16.gmra.mrb[0].mxu0 %v531
      %v1610 = vpop.f32.mrb[0].mxu0
      %v1611 = vadd.f32 %v1514, %v1610
      %v1612 = vpop.f32.mrb[0].mxu0
      %v1613 = vpop.f32.mrb[0].mxu0
      %v1614 = vadd.f32 %v1517, %v1613
      %v1615 = vpop.f32.mrb[0].mxu0
      %1616 = vmatprep.mubr.bf16.mxu0 0
      %1617 = vmatmul.mubr.bf16.gmra.mrb[0].mxu0 %v543
      %v1618 = vpop.f32.mrb[0].mxu0
      %v1619 = vadd.f32 %v1522, %v1618
      %v1620 = vpop.f32.mrb[0].mxu0
      %v1621 = vpop.f32.mrb[0].mxu0
      %v1622 = vadd.f32 %v1525, %v1621
      %v1623 = vpop.f32.mrb[0].mxu0
      %1624 = vmatprep.mubr.bf16.mxu0 0
      %1625 = vmatmul.mubr.bf16.gmra.mrb[0].mxu0 %v565
      %v1626 = vpop.f32.mrb[0].mxu0
      %v1627 = vadd.f32 %v1530, %v1626
      %v1628 = vpop.f32.mrb[0].mxu0
      %v1629 = vpop.f32.mrb[0].mxu0
      %v1630 = vadd.f32 %v1533, %v1629
      %v1631 = vpop.f32.mrb[0].mxu0
      %1632 = vmatprep.mubr.bf16.mxu0 0
      %1633 = vmatmul.mubr.bf16.gmra.mrb[0].mxu0 %v577
      %v1634 = vpop.f32.mrb[0].mxu0
      %v1635 = vadd.f32 %v1538, %v1634
      %v1636 = vpop.f32.mrb[0].mxu0
      %v1637 = vpop.f32.mrb[0].mxu0
      %v1638 = vadd.f32 %v1541, %v1637
      %v1639 = vpop.f32.mrb[0].mxu0
      %1640 = vdwg.mxu0
      %v1641 = vmax.f32 %v1579, %v1595
      %v1642 = vmax.f32 %v1582, %v1598
      %v1643 = vmax.f32 %v1587, %v1603
      %v1644 = vmax.f32 %v1590, %v1606
      %v1645 = vmax.f32 %v1611, %v1627
      %v1646 = vmax.f32 %v1614, %v1630
      %v1647 = vmax.f32 %v1619, %v1635
      %v1648 = vmax.f32 %v1622, %v1638
      %v1649 = vmax.f32 %v1641, %v1645
      %v1650 = vmax.f32 %v1642, %v1646
      %v1651 = vmax.f32 %v1643, %v1647
      %v1652 = vmax.f32 %v1644, %v1648
      %v1653 = vld [vmem:[%s2] sm:$0x1]
      %v1655 = vlaneseq
      %v1656 = vshrl.u32 %v1655, 7
      %v1657 = vsub.s32 0, %v1656
      %v1658 = vrot.slane %v1653, %v1657
      %v1660 = vadd.f32 %v1649, %v1658
      %v1661 = vadd.f32 %v1650, %v1658
      %v1662 = vadd.f32 %v1651, %v1658
      %v1663 = vadd.f32 %v1652, %v1658
      %v1664 = vmax.f32 %v1660, 0.0
      %v1665 = vmax.f32 %v1661, 0.0
      %v1666 = vmax.f32 %v1662, 0.0
      %v1667 = vmax.f32 %v1663, 0.0
      %v1668 = vpack.c.bf16 %v1665, %v1664
      %v1669 = vpack.c.bf16 %v1667, %v1666
      %v1672 = vunpack.c.l.b16 %v1668
      %v1673 = vunpack.c.h.b16 %v1668
      %v1674 = vunpack.c.l.b16 %v1669
      %v1675 = vunpack.c.h.b16 %v1669
      %v1676 = vpack.c.b16 %v1672, %v1672
      %v1677 = vpack.c.b16 %v1673, %v1673
      %v1678 = vpack.c.b16 %v1674, %v1674
      %v1679 = vpack.c.b16 %v1675, %v1675
      %1684 = vst [vmem:[%s170] sm:$0xf] %v1676
      %1685 = vst [vmem:[%s170 + $0x4] sm:$0xf] %v1677
      %1686 = vst [vmem:[%s170 + $0x8] sm:$0xf] %v1678
      %1687 = vst [vmem:[%s170 + $0xc] sm:$0xf] %v1679
      %p1688 = scmp.lt.s32.totalorder %s14, 1
      %s1689 = scalar_select %p1688, %s14, 1
      %s1690 = smul.addr %s1689, 4
      %s1691 = smul.addr %s1690, 4
      %s1692 = scalar_lea.vmem %s3, %s1691
      // Predicated region
      $region33: #{_lambda_.6} parent=31 // pred_check
        %p1693 = pneg %p100
      $region34: #{_lambda_.6} parent=31 // pred_check_branch
        %1695 = sbr.rel (%p1693) target = $region36
      $region35: #{_lambda_.6} parent=31 // pred_region
        _
      $region36: #{_lambda_.6} parent=31 // pred_fallthru
        _
    $region32: #{_lambda_.6} parent=5 // pred_fallthru
      _
    %p1696 = scmp.le.s32.totalorder 2, %s9
    // Predicated region
    $region37: #{_lambda_.6} parent=5 // pred_check
      %p1697 = pneg %p1696
    $region38: #{_lambda_.6} parent=5 // pred_check_branch
      %1699 = sbr.rel (%p1697) target = $region40
    $region39: #{_lambda_.6} parent=5 // pred_region
      %s1700 = ssub.s32 %s9, 2
      // Predicated region
      $region41: #{_lambda_.6} parent=39 // pred_check
        %p1701 = pneg %p106
      $region42: #{_lambda_.6} parent=39 // pred_check_branch
        %1703 = sbr.rel (%p1701) target = $region44
      $region43: #{_lambda_.6} parent=39 // pred_region
        %p1704 = scmp.lt.s32.totalorder %s15, 1
        %s1705 = scalar_select %p1704, %s15, 1
        %s1706 = smul.addr %s1705, 4
        %s1707 = smul.addr %s1706, 4
        %s1708 = scalar_lea.vmem %s3, %s1707
      $region44: #{_lambda_.6} parent=39 // pred_fallthru
        _
    $region40: #{_lambda_.6} parent=5 // pred_fallthru
      _
  $region6: #{_lambda_.6} parent=0 // loop_footer
    %s13 = sadd.s32 1, %s9
  $region7: #{_lambda_.6} parent=0 // loop_footer_branch
    %8 = sbr.rel target = $region3
  $region8: #{_lambda_.6} parent=0 // loop_exit
    _

</llo_original>
